<compile_context>
chip_gen: v7x
topology: tpu7x:2x2x1
jax: 0.10.0
libtpu: 0.0.40
codegen_flags: <defaults>
</compile_context>

<pallas_src>
import functools

import jax
import jax.numpy as jnp
from jax import lax
from jax.experimental import pallas as pl
from jax.experimental.pallas import tpu as pltpu


def _tree_sum(terms):
    """Balanced-tree sum of a list of arrays (keeps partials in vregs)."""
    terms = list(terms)
    while len(terms) > 1:
        nxt = [terms[i] + terms[i + 1] for i in range(0, len(terms) - 1, 2)]
        if len(terms) % 2:
            nxt.append(terms[-1])
        terms = nxt
    return terms[0]


def lka_kernel(x_ref, w0_ref, b0_ref, w1_ref, b1_ref, w2_ref, b2_ref,
               o_ref, yext_ref, z_ref, *, C, H, W):
    """One image per grid step.

    x_ref    : (1, C, H+4, W+4)  input padded by conv0's own 2-pixel ring
    o_ref    : (1, C, H, W)
    yext_ref : (H+18, W+18) f32  conv0 output embedded in the 9-pixel zero
               ring that conv_spatial (pad=9, dilation=3) needs
    z_ref    : (C, H, W) f32     conv_spatial output, staged for the 1x1
    """
    # Zero once per image; only the interior is overwritten below, so the
    # 9-pixel rim stays zero for every channel (= conv_spatial's zero pad).
    yext_ref[...] = jnp.zeros_like(yext_ref)

    # ------------- depthwise 5x5, then depthwise 7x7 (dilation 3) -----------
    for c in range(C):
        xc = x_ref[0, c].astype(jnp.float32)                      # (H+4, W+4)
        # Hoisted column (lane) shifts; the row offsets below are cheap.
        xcols = [xc[:, dj:dj + W] for dj in range(5)]             # 5 x (H+4, W)
        y = _tree_sum(xcols[dj][di:di + H, :] * w0_ref[c * 25 + di * 5 + dj]
                      for di in range(5) for dj in range(5))      # (H, W)
        yext_ref[9:9 + H, 9:9 + W] = y + b0_ref[c]

        # Hoisted column shifts of the zero-rimmed conv0 output.
        ycols = [yext_ref[:, 3 * dj:3 * dj + W] for dj in range(7)]  # 7 x (H+18, W)
        z = _tree_sum(ycols[dj][3 * di:3 * di + H, :] * w1_ref[c * 49 + di * 7 + dj]
                      for di in range(7) for dj in range(7))      # (H, W)
        z_ref[c] = z + b1_ref[c]

    # ------------- 1x1 channel mixing (VPU path for small C) + gating -------
    # TODO(synk): for C >= ~64 replace this loop with one MXU jnp.dot over a
    #             lane-dense (H*W, C) staging of z, with w2 in VMEM.
    for co in range(C):
        attn = _tree_sum(z_ref[cin] * w2_ref[cin * C + co] for cin in range(C))
        attn = attn + b2_ref[co]
        u = x_ref[0, co, 2:2 + H, 2:2 + W].astype(jnp.float32)    # gate = x
        o_ref[0, co] = (attn * u).astype(o_ref.dtype)


def _round_up(x, m):
    return (x + m - 1) // m * m


def _vmem_capacity_bytes():
    """Physical VMEM for this generation (64 MiB v7x, 128 MiB v5e/v6e)."""
    try:
        return int(pltpu.get_tpu_info().vmem_capacity_bytes)
    except Exception:
        return 64 * 1024 * 1024     # conservative fallback (v7x per-core)


def lka(x_nchw, params):
    """NCHW in / NCHW out, matching the PyTorch module."""
    w0, b0, w1, b1, w2, b2 = params
    N, C, H, W = x_nchw.shape
    itemsize = jnp.dtype(x_nchw.dtype).itemsize

    # Pad only the 2-pixel ring conv0 itself needs (review: drop the 11-pad).
    xp = jnp.pad(x_nchw, ((0, 0), (0, 0), (2, 2), (2, 2)))

    # VMEM budget for one whole image per grid step (double-buffered I/O).
    in_blk = C * _round_up(H + 4, 8) * _round_up(W + 4, 128) * itemsize
    out_blk = C * _round_up(H, 8) * _round_up(W, 128) * itemsize
    scratch = (_round_up(H + 18, 8) * _round_up(W + 18, 128)
               + C * _round_up(H, 8) * _round_up(W, 128)) * 4
    need = 2 * in_blk + 2 * out_blk + scratch
    cap = _vmem_capacity_bytes()
    vmem_limit = int(min(max(2 * need + (8 << 20), 32 << 20), cap))
    # TODO(synk): if `need` exceeds ~cap/2 (very large H*W*C), fall back to
    #             row-strip tiling with a manual halo DMA instead of failing.

    kernel = functools.partial(lka_kernel, C=C, H=H, W=W)
    smem = pl.BlockSpec(memory_space=pltpu.MemorySpace.SMEM)
    return pl.pallas_call(
        kernel,
        out_shape=jax.ShapeDtypeStruct((N, C, H, W), x_nchw.dtype),
        grid=(N,),
        in_specs=[
            pl.BlockSpec((1, C, H + 4, W + 4), lambda n: (n, 0, 0, 0)),
            smem,   # w0 flat (C*25,)
            smem,   # b0 (C,)
            smem,   # w1 flat (C*49,)
            smem,   # b1 (C,)
            smem,   # w2 flat (C*C,), Cin-major
            smem,   # b2 (C,)
        ],
        out_specs=pl.BlockSpec((1, C, H, W), lambda n: (n, 0, 0, 0)),
        scratch_shapes=[
            pltpu.VMEM((H + 18, W + 18), jnp.float32),   # zero-rimmed conv0 out
            pltpu.VMEM((C, H, W), jnp.float32),          # conv_spatial out
        ],
        compiler_params=pltpu.CompilerParams(
            dimension_semantics=("parallel",),
            vmem_limit_bytes=vmem_limit),
    )(xp,
      w0.reshape(C * 25), b0.reshape(C),
      w1.reshape(C * 49), b1.reshape(C),
      w2.reshape(C * C), b2.reshape(C))


# ---------------- pure-JAX reference (for correctness check) ----------------
def lka_ref_nchw(x, w0, b0, w1, b1, w2, b2):
    N, C, H, W = x.shape
    dn = ('NCHW', 'OIHW', 'NCHW')
    y = lax.conv_general_dilated(
        x, w0.reshape(C, 1, 5, 5), (1, 1), [(2, 2), (2, 2)],
        dimension_numbers=dn, feature_group_count=C) + b0.reshape(1, C, 1, 1)
    z = lax.conv_general_dilated(
        y, w1.reshape(C, 1, 7, 7), (1, 1), [(9, 9), (9, 9)],
        rhs_dilation=(3, 3), dimension_numbers=dn,
        feature_group_count=C) + b1.reshape(1, C, 1, 1)
    attn = jnp.einsum('nihw,io->nohw', z, w2) + b2.reshape(1, C, 1, 1)
    return attn * x


if __name__ == "__main__":
    key = jax.random.PRNGKey(0)
    k = jax.random.split(key, 7)
    N, C, H, W = 2, 4, 16, 16                            # dim = C = 4

    x_nchw = jax.random.normal(k[0], (N, C, H, W), jnp.float32)
    # Parameter layouts (vs. nn.Conv2d):
    #   conv0:        weight (C,1,5,5) -> (C,5,5), bias (C,)
    #   conv_spatial: weight (C,1,7,7) -> (C,7,7), bias (C,)
    #   conv1:        weight (Cout,Cin,1,1) -> stored (Cin,Cout), bias (C,)
    w0 = jax.random.normal(k[1], (C, 5, 5), jnp.float32) * 0.10
    b0 = jax.random.normal(k[2], (C,), jnp.float32) * 0.10
    w1 = jax.random.normal(k[3], (C, 7, 7), jnp.float32) * 0.05
    b1 = jax.random.normal(k[4], (C,), jnp.float32) * 0.10
    w2 = jax.random.normal(k[5], (C, C), jnp.float32) * 0.10
    b2 = jax.random.normal(k[6], (C,), jnp.float32) * 0.10
    params = (w0, b0, w1, b1, w2, b2)

    out = lka(x_nchw, params)
    out = jax.block_until_ready(out)

    ref = lka_ref_nchw(x_nchw, w0, b0, w1, b1, w2, b2)
    assert out.shape == x_nchw.shape and out.dtype == x_nchw.dtype
    assert jnp.allclose(out, ref, atol=1e-4, rtol=1e-4), "mismatch vs reference"
    print("KERNEL_OK")
</pallas_src>

<mosaic_0001>
module attributes {stable_mosaic.version = 11 : i64} {
  func.func @lka_kernel(%arg0: i32, %arg1: memref<1x4x20x20xf32, #tpu.memory_space<vmem>>, %arg2: memref<100xf32, #tpu.memory_space<smem>>, %arg3: memref<4xf32, #tpu.memory_space<smem>>, %arg4: memref<196xf32, #tpu.memory_space<smem>>, %arg5: memref<4xf32, #tpu.memory_space<smem>>, %arg6: memref<16xf32, #tpu.memory_space<smem>>, %arg7: memref<4xf32, #tpu.memory_space<smem>>, %arg8: memref<1x4x16x16xf32, #tpu.memory_space<vmem>>, %arg9: memref<34x34xf32, #tpu.memory_space<vmem>>, %arg10: memref<4x16x16xf32, #tpu.memory_space<vmem>>) attributes {dimension_semantics = [#tpu.dimension_semantics<parallel>], iteration_bounds = array<i64: 2>, scalar_prefetch = 0 : i64, scratch_operands = 2 : i64, tpu.core_type = #tpu.core_type<tc>, window_params = [{transform_indices = @transform_0, window_bounds = array<i64: 1, 4, 20, 20>}, {transform_indices = @transform_1, window_bounds = array<i64: 100>}, {transform_indices = @transform_2, window_bounds = array<i64: 4>}, {transform_indices = @transform_3, window_bounds = array<i64: 196>}, {transform_indices = @transform_4, window_bounds = array<i64: 4>}, {transform_indices = @transform_5, window_bounds = array<i64: 16>}, {transform_indices = @transform_6, window_bounds = array<i64: 4>}, {transform_indices = @transform_7, window_bounds = array<i64: 1, 4, 16, 16>}]} {
    %cst = arith.constant 0.000000e+00 : f32
    %0 = vector.broadcast %cst : f32 to vector<34x34xf32>
    %c0 = arith.constant 0 : index
    %c0_0 = arith.constant 0 : index
    %1 = vector.load %arg9[%c0, %c0_0] : memref<34x34xf32, #tpu.memory_space<vmem>>, vector<34x34xf32>
    tpu.vector_store %arg9[%c0, %c0_0], %0 {strides = array<i32>} : memref<34x34xf32, #tpu.memory_space<vmem>>, vector<34x34xf32>,
    %c0_1 = arith.constant 0 : index
    %c0_2 = arith.constant 0 : index
    %c0_3 = arith.constant 0 : index
    %c0_4 = arith.constant 0 : index
    %2 = vector.load %arg1[%c0_1, %c0_2, %c0_3, %c0_4] : memref<1x4x20x20xf32, #tpu.memory_space<vmem>>, vector<1x1x20x20xf32>
    %3 = vector.shape_cast %2 : vector<1x1x20x20xf32> to vector<20x20xf32>
    %4 = vector.extract_strided_slice %3 {offsets = [0, 0], sizes = [20, 16], strides = [1, 1]} : vector<20x20xf32> to vector<20x16xf32>
    %5 = vector.extract_strided_slice %3 {offsets = [0, 1], sizes = [20, 16], strides = [1, 1]} : vector<20x20xf32> to vector<20x16xf32>
    %6 = vector.extract_strided_slice %3 {offsets = [0, 2], sizes = [20, 16], strides = [1, 1]} : vector<20x20xf32> to vector<20x16xf32>
    %7 = vector.extract_strided_slice %3 {offsets = [0, 3], sizes = [20, 16], strides = [1, 1]} : vector<20x20xf32> to vector<20x16xf32>
    %8 = vector.extract_strided_slice %3 {offsets = [0, 4], sizes = [20, 16], strides = [1, 1]} : vector<20x20xf32> to vector<20x16xf32>
    %9 = vector.extract_strided_slice %4 {offsets = [0, 0], sizes = [16, 16], strides = [1, 1]} : vector<20x16xf32> to vector<16x16xf32>
    %c0_5 = arith.constant 0 : index
    %10 = memref.load %arg2[%c0_5] : memref<100xf32, #tpu.memory_space<smem>>
    %11 = vector.broadcast %10 : f32 to vector<16x16xf32>
    %12 = arith.mulf %9, %11 : vector<16x16xf32>
    %13 = vector.extract_strided_slice %5 {offsets = [0, 0], sizes = [16, 16], strides = [1, 1]} : vector<20x16xf32> to vector<16x16xf32>
    %c1 = arith.constant 1 : index
    %14 = memref.load %arg2[%c1] : memref<100xf32, #tpu.memory_space<smem>>
    %15 = vector.broadcast %14 : f32 to vector<16x16xf32>
    %16 = arith.mulf %13, %15 : vector<16x16xf32>
    %17 = vector.extract_strided_slice %6 {offsets = [0, 0], sizes = [16, 16], strides = [1, 1]} : vector<20x16xf32> to vector<16x16xf32>
    %c2 = arith.constant 2 : index
    %18 = memref.load %arg2[%c2] : memref<100xf32, #tpu.memory_space<smem>>
    %19 = vector.broadcast %18 : f32 to vector<16x16xf32>
    %20 = arith.mulf %17, %19 : vector<16x16xf32>
    %21 = vector.extract_strided_slice %7 {offsets = [0, 0], sizes = [16, 16], strides = [1, 1]} : vector<20x16xf32> to vector<16x16xf32>
    %c3 = arith.constant 3 : index
    %22 = memref.load %arg2[%c3] : memref<100xf32, #tpu.memory_space<smem>>
    %23 = vector.broadcast %22 : f32 to vector<16x16xf32>
    %24 = arith.mulf %21, %23 : vector<16x16xf32>
    %25 = vector.extract_strided_slice %8 {offsets = [0, 0], sizes = [16, 16], strides = [1, 1]} : vector<20x16xf32> to vector<16x16xf32>
    %c4 = arith.constant 4 : index
    %26 = memref.load %arg2[%c4] : memref<100xf32, #tpu.memory_space<smem>>
    %27 = vector.broadcast %26 : f32 to vector<16x16xf32>
    %28 = arith.mulf %25, %27 : vector<16x16xf32>
    %29 = vector.extract_strided_slice %4 {offsets = [1, 0], sizes = [16, 16], strides = [1, 1]} : vector<20x16xf32> to vector<16x16xf32>
    %c5 = arith.constant 5 : index
    %30 = memref.load %arg2[%c5] : memref<100xf32, #tpu.memory_space<smem>>
    %31 = vector.broadcast %30 : f32 to vector<16x16xf32>
    %32 = arith.mulf %29, %31 : vector<16x16xf32>
    %33 = vector.extract_strided_slice %5 {offsets = [1, 0], sizes = [16, 16], strides = [1, 1]} : vector<20x16xf32> to vector<16x16xf32>
    %c6 = arith.constant 6 : index
    %34 = memref.load %arg2[%c6] : memref<100xf32, #tpu.memory_space<smem>>
    %35 = vector.broadcast %34 : f32 to vector<16x16xf32>
    %36 = arith.mulf %33, %35 : vector<16x16xf32>
    %37 = vector.extract_strided_slice %6 {offsets = [1, 0], sizes = [16, 16], strides = [1, 1]} : vector<20x16xf32> to vector<16x16xf32>
    %c7 = arith.constant 7 : index
    %38 = memref.load %arg2[%c7] : memref<100xf32, #tpu.memory_space<smem>>
    %39 = vector.broadcast %38 : f32 to vector<16x16xf32>
    %40 = arith.mulf %37, %39 : vector<16x16xf32>
    %41 = vector.extract_strided_slice %7 {offsets = [1, 0], sizes = [16, 16], strides = [1, 1]} : vector<20x16xf32> to vector<16x16xf32>
    %c8 = arith.constant 8 : index
    %42 = memref.load %arg2[%c8] : memref<100xf32, #tpu.memory_space<smem>>
    %43 = vector.broadcast %42 : f32 to vector<16x16xf32>
    %44 = arith.mulf %41, %43 : vector<16x16xf32>
    %45 = vector.extract_strided_slice %8 {offsets = [1, 0], sizes = [16, 16], strides = [1, 1]} : vector<20x16xf32> to vector<16x16xf32>
    %c9 = arith.constant 9 : index
    %46 = memref.load %arg2[%c9] : memref<100xf32, #tpu.memory_space<smem>>
    %47 = vector.broadcast %46 : f32 to vector<16x16xf32>
    %48 = arith.mulf %45, %47 : vector<16x16xf32>
    %49 = vector.extract_strided_slice %4 {offsets = [2, 0], sizes = [16, 16], strides = [1, 1]} : vector<20x16xf32> to vector<16x16xf32>
    %c10 = arith.constant 10 : index
    %50 = memref.load %arg2[%c10] : memref<100xf32, #tpu.memory_space<smem>>
    %51 = vector.broadcast %50 : f32 to vector<16x16xf32>
    %52 = arith.mulf %49, %51 : vector<16x16xf32>
    %53 = vector.extract_strided_slice %5 {offsets = [2, 0], sizes = [16, 16], strides = [1, 1]} : vector<20x16xf32> to vector<16x16xf32>
    %c11 = arith.constant 11 : index
    %54 = memref.load %arg2[%c11] : memref<100xf32, #tpu.memory_space<smem>>
    %55 = vector.broadcast %54 : f32 to vector<16x16xf32>
    %56 = arith.mulf %53, %55 : vector<16x16xf32>
    %57 = vector.extract_strided_slice %6 {offsets = [2, 0], sizes = [16, 16], strides = [1, 1]} : vector<20x16xf32> to vector<16x16xf32>
    %c12 = arith.constant 12 : index
    %58 = memref.load %arg2[%c12] : memref<100xf32, #tpu.memory_space<smem>>
    %59 = vector.broadcast %58 : f32 to vector<16x16xf32>
    %60 = arith.mulf %57, %59 : vector<16x16xf32>
    %61 = vector.extract_strided_slice %7 {offsets = [2, 0], sizes = [16, 16], strides = [1, 1]} : vector<20x16xf32> to vector<16x16xf32>
    %c13 = arith.constant 13 : index
    %62 = memref.load %arg2[%c13] : memref<100xf32, #tpu.memory_space<smem>>
    %63 = vector.broadcast %62 : f32 to vector<16x16xf32>
    %64 = arith.mulf %61, %63 : vector<16x16xf32>
    %65 = vector.extract_strided_slice %8 {offsets = [2, 0], sizes = [16, 16], strides = [1, 1]} : vector<20x16xf32> to vector<16x16xf32>
    %c14 = arith.constant 14 : index
    %66 = memref.load %arg2[%c14] : memref<100xf32, #tpu.memory_space<smem>>
    %67 = vector.broadcast %66 : f32 to vector<16x16xf32>
    %68 = arith.mulf %65, %67 : vector<16x16xf32>
    %69 = vector.extract_strided_slice %4 {offsets = [3, 0], sizes = [16, 16], strides = [1, 1]} : vector<20x16xf32> to vector<16x16xf32>
    %c15 = arith.constant 15 : index
    %70 = memref.load %arg2[%c15] : memref<100xf32, #tpu.memory_space<smem>>
    %71 = vector.broadcast %70 : f32 to vector<16x16xf32>
    %72 = arith.mulf %69, %71 : vector<16x16xf32>
    %73 = vector.extract_strided_slice %5 {offsets = [3, 0], sizes = [16, 16], strides = [1, 1]} : vector<20x16xf32> to vector<16x16xf32>
    %c16 = arith.constant 16 : index
    %74 = memref.load %arg2[%c16] : memref<100xf32, #tpu.memory_space<smem>>
    %75 = vector.broadcast %74 : f32 to vector<16x16xf32>
    %76 = arith.mulf %73, %75 : vector<16x16xf32>
    %77 = vector.extract_strided_slice %6 {offsets = [3, 0], sizes = [16, 16], strides = [1, 1]} : vector<20x16xf32> to vector<16x16xf32>
    %c17 = arith.constant 17 : index
    %78 = memref.load %arg2[%c17] : memref<100xf32, #tpu.memory_space<smem>>
    %79 = vector.broadcast %78 : f32 to vector<16x16xf32>
    %80 = arith.mulf %77, %79 : vector<16x16xf32>
    %81 = vector.extract_strided_slice %7 {offsets = [3, 0], sizes = [16, 16], strides = [1, 1]} : vector<20x16xf32> to vector<16x16xf32>
    %c18 = arith.constant 18 : index
    %82 = memref.load %arg2[%c18] : memref<100xf32, #tpu.memory_space<smem>>
    %83 = vector.broadcast %82 : f32 to vector<16x16xf32>
    %84 = arith.mulf %81, %83 : vector<16x16xf32>
    %85 = vector.extract_strided_slice %8 {offsets = [3, 0], sizes = [16, 16], strides = [1, 1]} : vector<20x16xf32> to vector<16x16xf32>
    %c19 = arith.constant 19 : index
    %86 = memref.load %arg2[%c19] : memref<100xf32, #tpu.memory_space<smem>>
    %87 = vector.broadcast %86 : f32 to vector<16x16xf32>
    %88 = arith.mulf %85, %87 : vector<16x16xf32>
    %89 = vector.extract_strided_slice %4 {offsets = [4, 0], sizes = [16, 16], strides = [1, 1]} : vector<20x16xf32> to vector<16x16xf32>
    %c20 = arith.constant 20 : index
    %90 = memref.load %arg2[%c20] : memref<100xf32, #tpu.memory_space<smem>>
    %91 = vector.broadcast %90 : f32 to vector<16x16xf32>
    %92 = arith.mulf %89, %91 : vector<16x16xf32>
    %93 = vector.extract_strided_slice %5 {offsets = [4, 0], sizes = [16, 16], strides = [1, 1]} : vector<20x16xf32> to vector<16x16xf32>
    %c21 = arith.constant 21 : index
    %94 = memref.load %arg2[%c21] : memref<100xf32, #tpu.memory_space<smem>>
    %95 = vector.broadcast %94 : f32 to vector<16x16xf32>
    %96 = arith.mulf %93, %95 : vector<16x16xf32>
    %97 = vector.extract_strided_slice %6 {offsets = [4, 0], sizes = [16, 16], strides = [1, 1]} : vector<20x16xf32> to vector<16x16xf32>
    %c22 = arith.constant 22 : index
    %98 = memref.load %arg2[%c22] : memref<100xf32, #tpu.memory_space<smem>>
    %99 = vector.broadcast %98 : f32 to vector<16x16xf32>
    %100 = arith.mulf %97, %99 : vector<16x16xf32>
    %101 = vector.extract_strided_slice %7 {offsets = [4, 0], sizes = [16, 16], strides = [1, 1]} : vector<20x16xf32> to vector<16x16xf32>
    %c23 = arith.constant 23 : index
    %102 = memref.load %arg2[%c23] : memref<100xf32, #tpu.memory_space<smem>>
    %103 = vector.broadcast %102 : f32 to vector<16x16xf32>
    %104 = arith.mulf %101, %103 : vector<16x16xf32>
    %105 = vector.extract_strided_slice %8 {offsets = [4, 0], sizes = [16, 16], strides = [1, 1]} : vector<20x16xf32> to vector<16x16xf32>
    %c24 = arith.constant 24 : index
    %106 = memref.load %arg2[%c24] : memref<100xf32, #tpu.memory_space<smem>>
    %107 = vector.broadcast %106 : f32 to vector<16x16xf32>
    %108 = arith.mulf %105, %107 : vector<16x16xf32>
    %109 = arith.addf %12, %16 : vector<16x16xf32>
    %110 = arith.addf %20, %24 : vector<16x16xf32>
    %111 = arith.addf %28, %32 : vector<16x16xf32>
    %112 = arith.addf %36, %40 : vector<16x16xf32>
    %113 = arith.addf %44, %48 : vector<16x16xf32>
    %114 = arith.addf %52, %56 : vector<16x16xf32>
    %115 = arith.addf %60, %64 : vector<16x16xf32>
    %116 = arith.addf %68, %72 : vector<16x16xf32>
    %117 = arith.addf %76, %80 : vector<16x16xf32>
    %118 = arith.addf %84, %88 : vector<16x16xf32>
    %119 = arith.addf %92, %96 : vector<16x16xf32>
    %120 = arith.addf %100, %104 : vector<16x16xf32>
    %121 = arith.addf %109, %110 : vector<16x16xf32>
    %122 = arith.addf %111, %112 : vector<16x16xf32>
    %123 = arith.addf %113, %114 : vector<16x16xf32>
    %124 = arith.addf %115, %116 : vector<16x16xf32>
    %125 = arith.addf %117, %118 : vector<16x16xf32>
    %126 = arith.addf %119, %120 : vector<16x16xf32>
    %127 = arith.addf %121, %122 : vector<16x16xf32>
    %128 = arith.addf %123, %124 : vector<16x16xf32>
    %129 = arith.addf %125, %126 : vector<16x16xf32>
    %130 = arith.addf %127, %128 : vector<16x16xf32>
    %131 = arith.addf %129, %108 : vector<16x16xf32>
    %132 = arith.addf %130, %131 : vector<16x16xf32>
    %c0_6 = arith.constant 0 : index
    %133 = memref.load %arg3[%c0_6] : memref<4xf32, #tpu.memory_space<smem>>
    %134 = vector.broadcast %133 : f32 to vector<16x16xf32>
    %135 = arith.addf %132, %134 : vector<16x16xf32>
    %c9_7 = arith.constant 9 : index
    %c9_8 = arith.constant 9 : index
    %136 = vector.load %arg9[%c9_7, %c9_8] : memref<34x34xf32, #tpu.memory_space<vmem>>, vector<16x16xf32>
    tpu.vector_store %arg9[%c9_7, %c9_8], %135 {strides = array<i32>} : memref<34x34xf32, #tpu.memory_space<vmem>>, vector<16x16xf32>,
    %c0_9 = arith.constant 0 : index
    %c0_10 = arith.constant 0 : index
    %137 = vector.load %arg9[%c0_9, %c0_10] : memref<34x34xf32, #tpu.memory_space<vmem>>, vector<34x16xf32>
    %c0_11 = arith.constant 0 : index
    %c3_12 = arith.constant 3 : index
    %138 = vector.load %arg9[%c0_11, %c3_12] : memref<34x34xf32, #tpu.memory_space<vmem>>, vector<34x16xf32>
    %c0_13 = arith.constant 0 : index
    %c6_14 = arith.constant 6 : index
    %139 = vector.load %arg9[%c0_13, %c6_14] : memref<34x34xf32, #tpu.memory_space<vmem>>, vector<34x16xf32>
    %c0_15 = arith.constant 0 : index
    %c9_16 = arith.constant 9 : index
    %140 = vector.load %arg9[%c0_15, %c9_16] : memref<34x34xf32, #tpu.memory_space<vmem>>, vector<34x16xf32>
    %c0_17 = arith.constant 0 : index
    %c12_18 = arith.constant 12 : index
    %141 = vector.load %arg9[%c0_17, %c12_18] : memref<34x34xf32, #tpu.memory_space<vmem>>, vector<34x16xf32>
    %c0_19 = arith.constant 0 : index
    %c15_20 = arith.constant 15 : index
    %142 = vector.load %arg9[%c0_19, %c15_20] : memref<34x34xf32, #tpu.memory_space<vmem>>, vector<34x16xf32>
    %c0_21 = arith.constant 0 : index
    %c18_22 = arith.constant 18 : index
    %143 = vector.load %arg9[%c0_21, %c18_22] : memref<34x34xf32, #tpu.memory_space<vmem>>, vector<34x16xf32>
    %144 = vector.extract_strided_slice %137 {offsets = [0, 0], sizes = [16, 16], strides = [1, 1]} : vector<34x16xf32> to vector<16x16xf32>
    %c0_23 = arith.constant 0 : index
    %145 = memref.load %arg4[%c0_23] : memref<196xf32, #tpu.memory_space<smem>>
    %146 = vector.broadcast %145 : f32 to vector<16x16xf32>
    %147 = arith.mulf %144, %146 : vector<16x16xf32>
    %148 = vector.extract_strided_slice %138 {offsets = [0, 0], sizes = [16, 16], strides = [1, 1]} : vector<34x16xf32> to vector<16x16xf32>
    %c1_24 = arith.constant 1 : index
    %149 = memref.load %arg4[%c1_24] : memref<196xf32, #tpu.memory_space<smem>>
    %150 = vector.broadcast %149 : f32 to vector<16x16xf32>
    %151 = arith.mulf %148, %150 : vector<16x16xf32>
    %152 = vector.extract_strided_slice %139 {offsets = [0, 0], sizes = [16, 16], strides = [1, 1]} : vector<34x16xf32> to vector<16x16xf32>
    %c2_25 = arith.constant 2 : index
    %153 = memref.load %arg4[%c2_25] : memref<196xf32, #tpu.memory_space<smem>>
    %154 = vector.broadcast %153 : f32 to vector<16x16xf32>
    %155 = arith.mulf %152, %154 : vector<16x16xf32>
    %156 = vector.extract_strided_slice %140 {offsets = [0, 0], sizes = [16, 16], strides = [1, 1]} : vector<34x16xf32> to vector<16x16xf32>
    %c3_26 = arith.constant 3 : index
    %157 = memref.load %arg4[%c3_26] : memref<196xf32, #tpu.memory_space<smem>>
    %158 = vector.broadcast %157 : f32 to vector<16x16xf32>
    %159 = arith.mulf %156, %158 : vector<16x16xf32>
    %160 = vector.extract_strided_slice %141 {offsets = [0, 0], sizes = [16, 16], strides = [1, 1]} : vector<34x16xf32> to vector<16x16xf32>
    %c4_27 = arith.constant 4 : index
    %161 = memref.load %arg4[%c4_27] : memref<196xf32, #tpu.memory_space<smem>>
    %162 = vector.broadcast %161 : f32 to vector<16x16xf32>
    %163 = arith.mulf %160, %162 : vector<16x16xf32>
    %164 = vector.extract_strided_slice %142 {offsets = [0, 0], sizes = [16, 16], strides = [1, 1]} : vector<34x16xf32> to vector<16x16xf32>
    %c5_28 = arith.constant 5 : index
    %165 = memref.load %arg4[%c5_28] : memref<196xf32, #tpu.memory_space<smem>>
    %166 = vector.broadcast %165 : f32 to vector<16x16xf32>
    %167 = arith.mulf %164, %166 : vector<16x16xf32>
    %168 = vector.extract_strided_slice %143 {offsets = [0, 0], sizes = [16, 16], strides = [1, 1]} : vector<34x16xf32> to vector<16x16xf32>
    %c6_29 = arith.constant 6 : index
    %169 = memref.load %arg4[%c6_29] : memref<196xf32, #tpu.memory_space<smem>>
    %170 = vector.broadcast %169 : f32 to vector<16x16xf32>
    %171 = arith.mulf %168, %170 : vector<16x16xf32>
    %172 = vector.extract_strided_slice %137 {offsets = [3, 0], sizes = [16, 16], strides = [1, 1]} : vector<34x16xf32> to vector<16x16xf32>
    %c7_30 = arith.constant 7 : index
    %173 = memref.load %arg4[%c7_30] : memref<196xf32, #tpu.memory_space<smem>>
    %174 = vector.broadcast %173 : f32 to vector<16x16xf32>
    %175 = arith.mulf %172, %174 : vector<16x16xf32>
    %176 = vector.extract_strided_slice %138 {offsets = [3, 0], sizes = [16, 16], strides = [1, 1]} : vector<34x16xf32> to vector<16x16xf32>
    %c8_31 = arith.constant 8 : index
    %177 = memref.load %arg4[%c8_31] : memref<196xf32, #tpu.memory_space<smem>>
    %178 = vector.broadcast %177 : f32 to vector<16x16xf32>
    %179 = arith.mulf %176, %178 : vector<16x16xf32>
    %180 = vector.extract_strided_slice %139 {offsets = [3, 0], sizes = [16, 16], strides = [1, 1]} : vector<34x16xf32> to vector<16x16xf32>
    %c9_32 = arith.constant 9 : index
    %181 = memref.load %arg4[%c9_32] : memref<196xf32, #tpu.memory_space<smem>>
    %182 = vector.broadcast %181 : f32 to vector<16x16xf32>
    %183 = arith.mulf %180, %182 : vector<16x16xf32>
    %184 = vector.extract_strided_slice %140 {offsets = [3, 0], sizes = [16, 16], strides = [1, 1]} : vector<34x16xf32> to vector<16x16xf32>
    %c10_33 = arith.constant 10 : index
    %185 = memref.load %arg4[%c10_33] : memref<196xf32, #tpu.memory_space<smem>>
    %186 = vector.broadcast %185 : f32 to vector<16x16xf32>
    %187 = arith.mulf %184, %186 : vector<16x16xf32>
    %188 = vector.extract_strided_slice %141 {offsets = [3, 0], sizes = [16, 16], strides = [1, 1]} : vector<34x16xf32> to vector<16x16xf32>
    %c11_34 = arith.constant 11 : index
    %189 = memref.load %arg4[%c11_34] : memref<196xf32, #tpu.memory_space<smem>>
    %190 = vector.broadcast %189 : f32 to vector<16x16xf32>
    %191 = arith.mulf %188, %190 : vector<16x16xf32>
    %192 = vector.extract_strided_slice %142 {offsets = [3, 0], sizes = [16, 16], strides = [1, 1]} : vector<34x16xf32> to vector<16x16xf32>
    %c12_35 = arith.constant 12 : index
    %193 = memref.load %arg4[%c12_35] : memref<196xf32, #tpu.memory_space<smem>>
    %194 = vector.broadcast %193 : f32 to vector<16x16xf32>
    %195 = arith.mulf %192, %194 : vector<16x16xf32>
    %196 = vector.extract_strided_slice %143 {offsets = [3, 0], sizes = [16, 16], strides = [1, 1]} : vector<34x16xf32> to vector<16x16xf32>
    %c13_36 = arith.constant 13 : index
    %197 = memref.load %arg4[%c13_36] : memref<196xf32, #tpu.memory_space<smem>>
    %198 = vector.broadcast %197 : f32 to vector<16x16xf32>
    %199 = arith.mulf %196, %198 : vector<16x16xf32>
    %200 = vector.extract_strided_slice %137 {offsets = [6, 0], sizes = [16, 16], strides = [1, 1]} : vector<34x16xf32> to vector<16x16xf32>
    %c14_37 = arith.constant 14 : index
    %201 = memref.load %arg4[%c14_37] : memref<196xf32, #tpu.memory_space<smem>>
    %202 = vector.broadcast %201 : f32 to vector<16x16xf32>
    %203 = arith.mulf %200, %202 : vector<16x16xf32>
    %204 = vector.extract_strided_slice %138 {offsets = [6, 0], sizes = [16, 16], strides = [1, 1]} : vector<34x16xf32> to vector<16x16xf32>
    %c15_38 = arith.constant 15 : index
    %205 = memref.load %arg4[%c15_38] : memref<196xf32, #tpu.memory_space<smem>>
    %206 = vector.broadcast %205 : f32 to vector<16x16xf32>
    %207 = arith.mulf %204, %206 : vector<16x16xf32>
    %208 = vector.extract_strided_slice %139 {offsets = [6, 0], sizes = [16, 16], strides = [1, 1]} : vector<34x16xf32> to vector<16x16xf32>
    %c16_39 = arith.constant 16 : index
    %209 = memref.load %arg4[%c16_39] : memref<196xf32, #tpu.memory_space<smem>>
    %210 = vector.broadcast %209 : f32 to vector<16x16xf32>
    %211 = arith.mulf %208, %210 : vector<16x16xf32>
    %212 = vector.extract_strided_slice %140 {offsets = [6, 0], sizes = [16, 16], strides = [1, 1]} : vector<34x16xf32> to vector<16x16xf32>
    %c17_40 = arith.constant 17 : index
    %213 = memref.load %arg4[%c17_40] : memref<196xf32, #tpu.memory_space<smem>>
    %214 = vector.broadcast %213 : f32 to vector<16x16xf32>
    %215 = arith.mulf %212, %214 : vector<16x16xf32>
    %216 = vector.extract_strided_slice %141 {offsets = [6, 0], sizes = [16, 16], strides = [1, 1]} : vector<34x16xf32> to vector<16x16xf32>
    %c18_41 = arith.constant 18 : index
    %217 = memref.load %arg4[%c18_41] : memref<196xf32, #tpu.memory_space<smem>>
    %218 = vector.broadcast %217 : f32 to vector<16x16xf32>
    %219 = arith.mulf %216, %218 : vector<16x16xf32>
    %220 = vector.extract_strided_slice %142 {offsets = [6, 0], sizes = [16, 16], strides = [1, 1]} : vector<34x16xf32> to vector<16x16xf32>
    %c19_42 = arith.constant 19 : index
    %221 = memref.load %arg4[%c19_42] : memref<196xf32, #tpu.memory_space<smem>>
    %222 = vector.broadcast %221 : f32 to vector<16x16xf32>
    %223 = arith.mulf %220, %222 : vector<16x16xf32>
    %224 = vector.extract_strided_slice %143 {offsets = [6, 0], sizes = [16, 16], strides = [1, 1]} : vector<34x16xf32> to vector<16x16xf32>
    %c20_43 = arith.constant 20 : index
    %225 = memref.load %arg4[%c20_43] : memref<196xf32, #tpu.memory_space<smem>>
    %226 = vector.broadcast %225 : f32 to vector<16x16xf32>
    %227 = arith.mulf %224, %226 : vector<16x16xf32>
    %228 = vector.extract_strided_slice %137 {offsets = [9, 0], sizes = [16, 16], strides = [1, 1]} : vector<34x16xf32> to vector<16x16xf32>
    %c21_44 = arith.constant 21 : index
    %229 = memref.load %arg4[%c21_44] : memref<196xf32, #tpu.memory_space<smem>>
    %230 = vector.broadcast %229 : f32 to vector<16x16xf32>
    %231 = arith.mulf %228, %230 : vector<16x16xf32>
    %232 = vector.extract_strided_slice %138 {offsets = [9, 0], sizes = [16, 16], strides = [1, 1]} : vector<34x16xf32> to vector<16x16xf32>
    %c22_45 = arith.constant 22 : index
    %233 = memref.load %arg4[%c22_45] : memref<196xf32, #tpu.memory_space<smem>>
    %234 = vector.broadcast %233 : f32 to vector<16x16xf32>
    %235 = arith.mulf %232, %234 : vector<16x16xf32>
    %236 = vector.extract_strided_slice %139 {offsets = [9, 0], sizes = [16, 16], strides = [1, 1]} : vector<34x16xf32> to vector<16x16xf32>
    %c23_46 = arith.constant 23 : index
    %237 = memref.load %arg4[%c23_46] : memref<196xf32, #tpu.memory_space<smem>>
    %238 = vector.broadcast %237 : f32 to vector<16x16xf32>
    %239 = arith.mulf %236, %238 : vector<16x16xf32>
    %240 = vector.extract_strided_slice %140 {offsets = [9, 0], sizes = [16, 16], strides = [1, 1]} : vector<34x16xf32> to vector<16x16xf32>
    %c24_47 = arith.constant 24 : index
    %241 = memref.load %arg4[%c24_47] : memref<196xf32, #tpu.memory_space<smem>>
    %242 = vector.broadcast %241 : f32 to vector<16x16xf32>
    %243 = arith.mulf %240, %242 : vector<16x16xf32>
    %244 = vector.extract_strided_slice %141 {offsets = [9, 0], sizes = [16, 16], strides = [1, 1]} : vector<34x16xf32> to vector<16x16xf32>
    %c25 = arith.constant 25 : index
    %245 = memref.load %arg4[%c25] : memref<196xf32, #tpu.memory_space<smem>>
    %246 = vector.broadcast %245 : f32 to vector<16x16xf32>
    %247 = arith.mulf %244, %246 : vector<16x16xf32>
    %248 = vector.extract_strided_slice %142 {offsets = [9, 0], sizes = [16, 16], strides = [1, 1]} : vector<34x16xf32> to vector<16x16xf32>
    %c26 = arith.constant 26 : index
    %249 = memref.load %arg4[%c26] : memref<196xf32, #tpu.memory_space<smem>>
    %250 = vector.broadcast %249 : f32 to vector<16x16xf32>
    %251 = arith.mulf %248, %250 : vector<16x16xf32>
    %252 = vector.extract_strided_slice %143 {offsets = [9, 0], sizes = [16, 16], strides = [1, 1]} : vector<34x16xf32> to vector<16x16xf32>
    %c27 = arith.constant 27 : index
    %253 = memref.load %arg4[%c27] : memref<196xf32, #tpu.memory_space<smem>>
    %254 = vector.broadcast %253 : f32 to vector<16x16xf32>
    %255 = arith.mulf %252, %254 : vector<16x16xf32>
    %256 = vector.extract_strided_slice %137 {offsets = [12, 0], sizes = [16, 16], strides = [1, 1]} : vector<34x16xf32> to vector<16x16xf32>
    %c28 = arith.constant 28 : index
    %257 = memref.load %arg4[%c28] : memref<196xf32, #tpu.memory_space<smem>>
    %258 = vector.broadcast %257 : f32 to vector<16x16xf32>
    %259 = arith.mulf %256, %258 : vector<16x16xf32>
    %260 = vector.extract_strided_slice %138 {offsets = [12, 0], sizes = [16, 16], strides = [1, 1]} : vector<34x16xf32> to vector<16x16xf32>
    %c29 = arith.constant 29 : index
    %261 = memref.load %arg4[%c29] : memref<196xf32, #tpu.memory_space<smem>>
    %262 = vector.broadcast %261 : f32 to vector<16x16xf32>
    %263 = arith.mulf %260, %262 : vector<16x16xf32>
    %264 = vector.extract_strided_slice %139 {offsets = [12, 0], sizes = [16, 16], strides = [1, 1]} : vector<34x16xf32> to vector<16x16xf32>
    %c30 = arith.constant 30 : index
    %265 = memref.load %arg4[%c30] : memref<196xf32, #tpu.memory_space<smem>>
    %266 = vector.broadcast %265 : f32 to vector<16x16xf32>
    %267 = arith.mulf %264, %266 : vector<16x16xf32>
    %268 = vector.extract_strided_slice %140 {offsets = [12, 0], sizes = [16, 16], strides = [1, 1]} : vector<34x16xf32> to vector<16x16xf32>
    %c31 = arith.constant 31 : index
    %269 = memref.load %arg4[%c31] : memref<196xf32, #tpu.memory_space<smem>>
    %270 = vector.broadcast %269 : f32 to vector<16x16xf32>
    %271 = arith.mulf %268, %270 : vector<16x16xf32>
    %272 = vector.extract_strided_slice %141 {offsets = [12, 0], sizes = [16, 16], strides = [1, 1]} : vector<34x16xf32> to vector<16x16xf32>
    %c32 = arith.constant 32 : index
    %273 = memref.load %arg4[%c32] : memref<196xf32, #tpu.memory_space<smem>>
    %274 = vector.broadcast %273 : f32 to vector<16x16xf32>
    %275 = arith.mulf %272, %274 : vector<16x16xf32>
    %276 = vector.extract_strided_slice %142 {offsets = [12, 0], sizes = [16, 16], strides = [1, 1]} : vector<34x16xf32> to vector<16x16xf32>
    %c33 = arith.constant 33 : index
    %277 = memref.load %arg4[%c33] : memref<196xf32, #tpu.memory_space<smem>>
    %278 = vector.broadcast %277 : f32 to vector<16x16xf32>
    %279 = arith.mulf %276, %278 : vector<16x16xf32>
    %280 = vector.extract_strided_slice %143 {offsets = [12, 0], sizes = [16, 16], strides = [1, 1]} : vector<34x16xf32> to vector<16x16xf32>
    %c34 = arith.constant 34 : index
    %281 = memref.load %arg4[%c34] : memref<196xf32, #tpu.memory_space<smem>>
    %282 = vector.broadcast %281 : f32 to vector<16x16xf32>
    %283 = arith.mulf %280, %282 : vector<16x16xf32>
    %284 = vector.extract_strided_slice %137 {offsets = [15, 0], sizes = [16, 16], strides = [1, 1]} : vector<34x16xf32> to vector<16x16xf32>
    %c35 = arith.constant 35 : index
    %285 = memref.load %arg4[%c35] : memref<196xf32, #tpu.memory_space<smem>>
    %286 = vector.broadcast %285 : f32 to vector<16x16xf32>
    %287 = arith.mulf %284, %286 : vector<16x16xf32>
    %288 = vector.extract_strided_slice %138 {offsets = [15, 0], sizes = [16, 16], strides = [1, 1]} : vector<34x16xf32> to vector<16x16xf32>
    %c36 = arith.constant 36 : index
    %289 = memref.load %arg4[%c36] : memref<196xf32, #tpu.memory_space<smem>>
    %290 = vector.broadcast %289 : f32 to vector<16x16xf32>
    %291 = arith.mulf %288, %290 : vector<16x16xf32>
    %292 = vector.extract_strided_slice %139 {offsets = [15, 0], sizes = [16, 16], strides = [1, 1]} : vector<34x16xf32> to vector<16x16xf32>
    %c37 = arith.constant 37 : index
    %293 = memref.load %arg4[%c37] : memref<196xf32, #tpu.memory_space<smem>>
    %294 = vector.broadcast %293 : f32 to vector<16x16xf32>
    %295 = arith.mulf %292, %294 : vector<16x16xf32>
    %296 = vector.extract_strided_slice %140 {offsets = [15, 0], sizes = [16, 16], strides = [1, 1]} : vector<34x16xf32> to vector<16x16xf32>
    %c38 = arith.constant 38 : index
    %297 = memref.load %arg4[%c38] : memref<196xf32, #tpu.memory_space<smem>>
    %298 = vector.broadcast %297 : f32 to vector<16x16xf32>
    %299 = arith.mulf %296, %298 : vector<16x16xf32>
    %300 = vector.extract_strided_slice %141 {offsets = [15, 0], sizes = [16, 16], strides = [1, 1]} : vector<34x16xf32> to vector<16x16xf32>
    %c39 = arith.constant 39 : index
    %301 = memref.load %arg4[%c39] : memref<196xf32, #tpu.memory_space<smem>>
    %302 = vector.broadcast %301 : f32 to vector<16x16xf32>
    %303 = arith.mulf %300, %302 : vector<16x16xf32>
    %304 = vector.extract_strided_slice %142 {offsets = [15, 0], sizes = [16, 16], strides = [1, 1]} : vector<34x16xf32> to vector<16x16xf32>
    %c40 = arith.constant 40 : index
    %305 = memref.load %arg4[%c40] : memref<196xf32, #tpu.memory_space<smem>>
    %306 = vector.broadcast %305 : f32 to vector<16x16xf32>
    %307 = arith.mulf %304, %306 : vector<16x16xf32>
    %308 = vector.extract_strided_slice %143 {offsets = [15, 0], sizes = [16, 16], strides = [1, 1]} : vector<34x16xf32> to vector<16x16xf32>
    %c41 = arith.constant 41 : index
    %309 = memref.load %arg4[%c41] : memref<196xf32, #tpu.memory_space<smem>>
    %310 = vector.broadcast %309 : f32 to vector<16x16xf32>
    %311 = arith.mulf %308, %310 : vector<16x16xf32>
    %312 = vector.extract_strided_slice %137 {offsets = [18, 0], sizes = [16, 16], strides = [1, 1]} : vector<34x16xf32> to vector<16x16xf32>
    %c42 = arith.constant 42 : index
    %313 = memref.load %arg4[%c42] : memref<196xf32, #tpu.memory_space<smem>>
    %314 = vector.broadcast %313 : f32 to vector<16x16xf32>
    %315 = arith.mulf %312, %314 : vector<16x16xf32>
    %316 = vector.extract_strided_slice %138 {offsets = [18, 0], sizes = [16, 16], strides = [1, 1]} : vector<34x16xf32> to vector<16x16xf32>
    %c43 = arith.constant 43 : index
    %317 = memref.load %arg4[%c43] : memref<196xf32, #tpu.memory_space<smem>>
    %318 = vector.broadcast %317 : f32 to vector<16x16xf32>
    %319 = arith.mulf %316, %318 : vector<16x16xf32>
    %320 = vector.extract_strided_slice %139 {offsets = [18, 0], sizes = [16, 16], strides = [1, 1]} : vector<34x16xf32> to vector<16x16xf32>
    %c44 = arith.constant 44 : index
    %321 = memref.load %arg4[%c44] : memref<196xf32, #tpu.memory_space<smem>>
    %322 = vector.broadcast %321 : f32 to vector<16x16xf32>
    %323 = arith.mulf %320, %322 : vector<16x16xf32>
    %324 = vector.extract_strided_slice %140 {offsets = [18, 0], sizes = [16, 16], strides = [1, 1]} : vector<34x16xf32> to vector<16x16xf32>
    %c45 = arith.constant 45 : index
    %325 = memref.load %arg4[%c45] : memref<196xf32, #tpu.memory_space<smem>>
    %326 = vector.broadcast %325 : f32 to vector<16x16xf32>
    %327 = arith.mulf %324, %326 : vector<16x16xf32>
    %328 = vector.extract_strided_slice %141 {offsets = [18, 0], sizes = [16, 16], strides = [1, 1]} : vector<34x16xf32> to vector<16x16xf32>
    %c46 = arith.constant 46 : index
    %329 = memref.load %arg4[%c46] : memref<196xf32, #tpu.memory_space<smem>>
    %330 = vector.broadcast %329 : f32 to vector<16x16xf32>
    %331 = arith.mulf %328, %330 : vector<16x16xf32>
    %332 = vector.extract_strided_slice %142 {offsets = [18, 0], sizes = [16, 16], strides = [1, 1]} : vector<34x16xf32> to vector<16x16xf32>
    %c47 = arith.constant 47 : index
    %333 = memref.load %arg4[%c47] : memref<196xf32, #tpu.memory_space<smem>>
    %334 = vector.broadcast %333 : f32 to vector<16x16xf32>
    %335 = arith.mulf %332, %334 : vector<16x16xf32>
    %336 = vector.extract_strided_slice %143 {offsets = [18, 0], sizes = [16, 16], strides = [1, 1]} : vector<34x16xf32> to vector<16x16xf32>
    %c48 = arith.constant 48 : index
    %337 = memref.load %arg4[%c48] : memref<196xf32, #tpu.memory_space<smem>>
    %338 = vector.broadcast %337 : f32 to vector<16x16xf32>
    %339 = arith.mulf %336, %338 : vector<16x16xf32>
    %340 = arith.addf %147, %151 : vector<16x16xf32>
    %341 = arith.addf %155, %159 : vector<16x16xf32>
    %342 = arith.addf %163, %167 : vector<16x16xf32>
    %343 = arith.addf %171, %175 : vector<16x16xf32>
    %344 = arith.addf %179, %183 : vector<16x16xf32>
    %345 = arith.addf %187, %191 : vector<16x16xf32>
    %346 = arith.addf %195, %199 : vector<16x16xf32>
    %347 = arith.addf %203, %207 : vector<16x16xf32>
    %348 = arith.addf %211, %215 : vector<16x16xf32>
    %349 = arith.addf %219, %223 : vector<16x16xf32>
    %350 = arith.addf %227, %231 : vector<16x16xf32>
    %351 = arith.addf %235, %239 : vector<16x16xf32>
    %352 = arith.addf %243, %247 : vector<16x16xf32>
    %353 = arith.addf %251, %255 : vector<16x16xf32>
    %354 = arith.addf %259, %263 : vector<16x16xf32>
    %355 = arith.addf %267, %271 : vector<16x16xf32>
    %356 = arith.addf %275, %279 : vector<16x16xf32>
    %357 = arith.addf %283, %287 : vector<16x16xf32>
    %358 = arith.addf %291, %295 : vector<16x16xf32>
    %359 = arith.addf %299, %303 : vector<16x16xf32>
    %360 = arith.addf %307, %311 : vector<16x16xf32>
    %361 = arith.addf %315, %319 : vector<16x16xf32>
    %362 = arith.addf %323, %327 : vector<16x16xf32>
    %363 = arith.addf %331, %335 : vector<16x16xf32>
    %364 = arith.addf %340, %341 : vector<16x16xf32>
    %365 = arith.addf %342, %343 : vector<16x16xf32>
    %366 = arith.addf %344, %345 : vector<16x16xf32>
    %367 = arith.addf %346, %347 : vector<16x16xf32>
    %368 = arith.addf %348, %349 : vector<16x16xf32>
    %369 = arith.addf %350, %351 : vector<16x16xf32>
    %370 = arith.addf %352, %353 : vector<16x16xf32>
    %371 = arith.addf %354, %355 : vector<16x16xf32>
    %372 = arith.addf %356, %357 : vector<16x16xf32>
    %373 = arith.addf %358, %359 : vector<16x16xf32>
    %374 = arith.addf %360, %361 : vector<16x16xf32>
    %375 = arith.addf %362, %363 : vector<16x16xf32>
    %376 = arith.addf %364, %365 : vector<16x16xf32>
    %377 = arith.addf %366, %367 : vector<16x16xf32>
    %378 = arith.addf %368, %369 : vector<16x16xf32>
    %379 = arith.addf %370, %371 : vector<16x16xf32>
    %380 = arith.addf %372, %373 : vector<16x16xf32>
    %381 = arith.addf %374, %375 : vector<16x16xf32>
    %382 = arith.addf %376, %377 : vector<16x16xf32>
    %383 = arith.addf %378, %379 : vector<16x16xf32>
    %384 = arith.addf %380, %381 : vector<16x16xf32>
    %385 = arith.addf %382, %383 : vector<16x16xf32>
    %386 = arith.addf %384, %339 : vector<16x16xf32>
    %387 = arith.addf %385, %386 : vector<16x16xf32>
    %c0_48 = arith.constant 0 : index
    %388 = memref.load %arg5[%c0_48] : memref<4xf32, #tpu.memory_space<smem>>
    %389 = vector.broadcast %388 : f32 to vector<16x16xf32>
    %390 = arith.addf %387, %389 : vector<16x16xf32>
    %c0_49 = arith.constant 0 : index
    %c0_50 = arith.constant 0 : index
    %c0_51 = arith.constant 0 : index
    %391 = vector.load %arg10[%c0_49, %c0_50, %c0_51] : memref<4x16x16xf32, #tpu.memory_space<vmem>>, vector<1x16x16xf32>
    %392 = vector.shape_cast %391 : vector<1x16x16xf32> to vector<16x16xf32>
    %393 = vector.shape_cast %390 : vector<16x16xf32> to vector<1x16x16xf32>
    tpu.vector_store %arg10[%c0_49, %c0_50, %c0_51], %393 {strides = array<i32>} : memref<4x16x16xf32, #tpu.memory_space<vmem>>, vector<1x16x16xf32>,
    %c0_52 = arith.constant 0 : index
    %c1_53 = arith.constant 1 : index
    %c0_54 = arith.constant 0 : index
    %c0_55 = arith.constant 0 : index
    %394 = vector.load %arg1[%c0_52, %c1_53, %c0_54, %c0_55] : memref<1x4x20x20xf32, #tpu.memory_space<vmem>>, vector<1x1x20x20xf32>
    %395 = vector.shape_cast %394 : vector<1x1x20x20xf32> to vector<20x20xf32>
    %396 = vector.extract_strided_slice %395 {offsets = [0, 0], sizes = [20, 16], strides = [1, 1]} : vector<20x20xf32> to vector<20x16xf32>
    %397 = vector.extract_strided_slice %395 {offsets = [0, 1], sizes = [20, 16], strides = [1, 1]} : vector<20x20xf32> to vector<20x16xf32>
    %398 = vector.extract_strided_slice %395 {offsets = [0, 2], sizes = [20, 16], strides = [1, 1]} : vector<20x20xf32> to vector<20x16xf32>
    %399 = vector.extract_strided_slice %395 {offsets = [0, 3], sizes = [20, 16], strides = [1, 1]} : vector<20x20xf32> to vector<20x16xf32>
    %400 = vector.extract_strided_slice %395 {offsets = [0, 4], sizes = [20, 16], strides = [1, 1]} : vector<20x20xf32> to vector<20x16xf32>
    %401 = vector.extract_strided_slice %396 {offsets = [0, 0], sizes = [16, 16], strides = [1, 1]} : vector<20x16xf32> to vector<16x16xf32>
    %c25_56 = arith.constant 25 : index
    %402 = memref.load %arg2[%c25_56] : memref<100xf32, #tpu.memory_space<smem>>
    %403 = vector.broadcast %402 : f32 to vector<16x16xf32>
    %404 = arith.mulf %401, %403 : vector<16x16xf32>
    %405 = vector.extract_strided_slice %397 {offsets = [0, 0], sizes = [16, 16], strides = [1, 1]} : vector<20x16xf32> to vector<16x16xf32>
    %c26_57 = arith.constant 26 : index
    %406 = memref.load %arg2[%c26_57] : memref<100xf32, #tpu.memory_space<smem>>
    %407 = vector.broadcast %406 : f32 to vector<16x16xf32>
    %408 = arith.mulf %405, %407 : vector<16x16xf32>
    %409 = vector.extract_strided_slice %398 {offsets = [0, 0], sizes = [16, 16], strides = [1, 1]} : vector<20x16xf32> to vector<16x16xf32>
    %c27_58 = arith.constant 27 : index
    %410 = memref.load %arg2[%c27_58] : memref<100xf32, #tpu.memory_space<smem>>
    %411 = vector.broadcast %410 : f32 to vector<16x16xf32>
    %412 = arith.mulf %409, %411 : vector<16x16xf32>
    %413 = vector.extract_strided_slice %399 {offsets = [0, 0], sizes = [16, 16], strides = [1, 1]} : vector<20x16xf32> to vector<16x16xf32>
    %c28_59 = arith.constant 28 : index
    %414 = memref.load %arg2[%c28_59] : memref<100xf32, #tpu.memory_space<smem>>
    %415 = vector.broadcast %414 : f32 to vector<16x16xf32>
    %416 = arith.mulf %413, %415 : vector<16x16xf32>
    %417 = vector.extract_strided_slice %400 {offsets = [0, 0], sizes = [16, 16], strides = [1, 1]} : vector<20x16xf32> to vector<16x16xf32>
    %c29_60 = arith.constant 29 : index
    %418 = memref.load %arg2[%c29_60] : memref<100xf32, #tpu.memory_space<smem>>
    %419 = vector.broadcast %418 : f32 to vector<16x16xf32>
    %420 = arith.mulf %417, %419 : vector<16x16xf32>
    %421 = vector.extract_strided_slice %396 {offsets = [1, 0], sizes = [16, 16], strides = [1, 1]} : vector<20x16xf32> to vector<16x16xf32>
    %c30_61 = arith.constant 30 : index
    %422 = memref.load %arg2[%c30_61] : memref<100xf32, #tpu.memory_space<smem>>
    %423 = vector.broadcast %422 : f32 to vector<16x16xf32>
    %424 = arith.mulf %421, %423 : vector<16x16xf32>
    %425 = vector.extract_strided_slice %397 {offsets = [1, 0], sizes = [16, 16], strides = [1, 1]} : vector<20x16xf32> to vector<16x16xf32>
    %c31_62 = arith.constant 31 : index
    %426 = memref.load %arg2[%c31_62] : memref<100xf32, #tpu.memory_space<smem>>
    %427 = vector.broadcast %426 : f32 to vector<16x16xf32>
    %428 = arith.mulf %425, %427 : vector<16x16xf32>
    %429 = vector.extract_strided_slice %398 {offsets = [1, 0], sizes = [16, 16], strides = [1, 1]} : vector<20x16xf32> to vector<16x16xf32>
    %c32_63 = arith.constant 32 : index
    %430 = memref.load %arg2[%c32_63] : memref<100xf32, #tpu.memory_space<smem>>
    %431 = vector.broadcast %430 : f32 to vector<16x16xf32>
    %432 = arith.mulf %429, %431 : vector<16x16xf32>
    %433 = vector.extract_strided_slice %399 {offsets = [1, 0], sizes = [16, 16], strides = [1, 1]} : vector<20x16xf32> to vector<16x16xf32>
    %c33_64 = arith.constant 33 : index
    %434 = memref.load %arg2[%c33_64] : memref<100xf32, #tpu.memory_space<smem>>
    %435 = vector.broadcast %434 : f32 to vector<16x16xf32>
    %436 = arith.mulf %433, %435 : vector<16x16xf32>
    %437 = vector.extract_strided_slice %400 {offsets = [1, 0], sizes = [16, 16], strides = [1, 1]} : vector<20x16xf32> to vector<16x16xf32>
    %c34_65 = arith.constant 34 : index
    %438 = memref.load %arg2[%c34_65] : memref<100xf32, #tpu.memory_space<smem>>
    %439 = vector.broadcast %438 : f32 to vector<16x16xf32>
    %440 = arith.mulf %437, %439 : vector<16x16xf32>
    %441 = vector.extract_strided_slice %396 {offsets = [2, 0], sizes = [16, 16], strides = [1, 1]} : vector<20x16xf32> to vector<16x16xf32>
    %c35_66 = arith.constant 35 : index
    %442 = memref.load %arg2[%c35_66] : memref<100xf32, #tpu.memory_space<smem>>
    %443 = vector.broadcast %442 : f32 to vector<16x16xf32>
    %444 = arith.mulf %441, %443 : vector<16x16xf32>
    %445 = vector.extract_strided_slice %397 {offsets = [2, 0], sizes = [16, 16], strides = [1, 1]} : vector<20x16xf32> to vector<16x16xf32>
    %c36_67 = arith.constant 36 : index
    %446 = memref.load %arg2[%c36_67] : memref<100xf32, #tpu.memory_space<smem>>
    %447 = vector.broadcast %446 : f32 to vector<16x16xf32>
    %448 = arith.mulf %445, %447 : vector<16x16xf32>
    %449 = vector.extract_strided_slice %398 {offsets = [2, 0], sizes = [16, 16], strides = [1, 1]} : vector<20x16xf32> to vector<16x16xf32>
    %c37_68 = arith.constant 37 : index
    %450 = memref.load %arg2[%c37_68] : memref<100xf32, #tpu.memory_space<smem>>
    %451 = vector.broadcast %450 : f32 to vector<16x16xf32>
    %452 = arith.mulf %449, %451 : vector<16x16xf32>
    %453 = vector.extract_strided_slice %399 {offsets = [2, 0], sizes = [16, 16], strides = [1, 1]} : vector<20x16xf32> to vector<16x16xf32>
    %c38_69 = arith.constant 38 : index
    %454 = memref.load %arg2[%c38_69] : memref<100xf32, #tpu.memory_space<smem>>
    %455 = vector.broadcast %454 : f32 to vector<16x16xf32>
    %456 = arith.mulf %453, %455 : vector<16x16xf32>
    %457 = vector.extract_strided_slice %400 {offsets = [2, 0], sizes = [16, 16], strides = [1, 1]} : vector<20x16xf32> to vector<16x16xf32>
    %c39_70 = arith.constant 39 : index
    %458 = memref.load %arg2[%c39_70] : memref<100xf32, #tpu.memory_space<smem>>
    %459 = vector.broadcast %458 : f32 to vector<16x16xf32>
    %460 = arith.mulf %457, %459 : vector<16x16xf32>
    %461 = vector.extract_strided_slice %396 {offsets = [3, 0], sizes = [16, 16], strides = [1, 1]} : vector<20x16xf32> to vector<16x16xf32>
    %c40_71 = arith.constant 40 : index
    %462 = memref.load %arg2[%c40_71] : memref<100xf32, #tpu.memory_space<smem>>
    %463 = vector.broadcast %462 : f32 to vector<16x16xf32>
    %464 = arith.mulf %461, %463 : vector<16x16xf32>
    %465 = vector.extract_strided_slice %397 {offsets = [3, 0], sizes = [16, 16], strides = [1, 1]} : vector<20x16xf32> to vector<16x16xf32>
    %c41_72 = arith.constant 41 : index
    %466 = memref.load %arg2[%c41_72] : memref<100xf32, #tpu.memory_space<smem>>
    %467 = vector.broadcast %466 : f32 to vector<16x16xf32>
    %468 = arith.mulf %465, %467 : vector<16x16xf32>
    %469 = vector.extract_strided_slice %398 {offsets = [3, 0], sizes = [16, 16], strides = [1, 1]} : vector<20x16xf32> to vector<16x16xf32>
    %c42_73 = arith.constant 42 : index
    %470 = memref.load %arg2[%c42_73] : memref<100xf32, #tpu.memory_space<smem>>
    %471 = vector.broadcast %470 : f32 to vector<16x16xf32>
    %472 = arith.mulf %469, %471 : vector<16x16xf32>
    %473 = vector.extract_strided_slice %399 {offsets = [3, 0], sizes = [16, 16], strides = [1, 1]} : vector<20x16xf32> to vector<16x16xf32>
    %c43_74 = arith.constant 43 : index
    %474 = memref.load %arg2[%c43_74] : memref<100xf32, #tpu.memory_space<smem>>
    %475 = vector.broadcast %474 : f32 to vector<16x16xf32>
    %476 = arith.mulf %473, %475 : vector<16x16xf32>
    %477 = vector.extract_strided_slice %400 {offsets = [3, 0], sizes = [16, 16], strides = [1, 1]} : vector<20x16xf32> to vector<16x16xf32>
    %c44_75 = arith.constant 44 : index
    %478 = memref.load %arg2[%c44_75] : memref<100xf32, #tpu.memory_space<smem>>
    %479 = vector.broadcast %478 : f32 to vector<16x16xf32>
    %480 = arith.mulf %477, %479 : vector<16x16xf32>
    %481 = vector.extract_strided_slice %396 {offsets = [4, 0], sizes = [16, 16], strides = [1, 1]} : vector<20x16xf32> to vector<16x16xf32>
    %c45_76 = arith.constant 45 : index
    %482 = memref.load %arg2[%c45_76] : memref<100xf32, #tpu.memory_space<smem>>
    %483 = vector.broadcast %482 : f32 to vector<16x16xf32>
    %484 = arith.mulf %481, %483 : vector<16x16xf32>
    %485 = vector.extract_strided_slice %397 {offsets = [4, 0], sizes = [16, 16], strides = [1, 1]} : vector<20x16xf32> to vector<16x16xf32>
    %c46_77 = arith.constant 46 : index
    %486 = memref.load %arg2[%c46_77] : memref<100xf32, #tpu.memory_space<smem>>
    %487 = vector.broadcast %486 : f32 to vector<16x16xf32>
    %488 = arith.mulf %485, %487 : vector<16x16xf32>
    %489 = vector.extract_strided_slice %398 {offsets = [4, 0], sizes = [16, 16], strides = [1, 1]} : vector<20x16xf32> to vector<16x16xf32>
    %c47_78 = arith.constant 47 : index
    %490 = memref.load %arg2[%c47_78] : memref<100xf32, #tpu.memory_space<smem>>
    %491 = vector.broadcast %490 : f32 to vector<16x16xf32>
    %492 = arith.mulf %489, %491 : vector<16x16xf32>
    %493 = vector.extract_strided_slice %399 {offsets = [4, 0], sizes = [16, 16], strides = [1, 1]} : vector<20x16xf32> to vector<16x16xf32>
    %c48_79 = arith.constant 48 : index
    %494 = memref.load %arg2[%c48_79] : memref<100xf32, #tpu.memory_space<smem>>
    %495 = vector.broadcast %494 : f32 to vector<16x16xf32>
    %496 = arith.mulf %493, %495 : vector<16x16xf32>
    %497 = vector.extract_strided_slice %400 {offsets = [4, 0], sizes = [16, 16], strides = [1, 1]} : vector<20x16xf32> to vector<16x16xf32>
    %c49 = arith.constant 49 : index
    %498 = memref.load %arg2[%c49] : memref<100xf32, #tpu.memory_space<smem>>
    %499 = vector.broadcast %498 : f32 to vector<16x16xf32>
    %500 = arith.mulf %497, %499 : vector<16x16xf32>
    %501 = arith.addf %404, %408 : vector<16x16xf32>
    %502 = arith.addf %412, %416 : vector<16x16xf32>
    %503 = arith.addf %420, %424 : vector<16x16xf32>
    %504 = arith.addf %428, %432 : vector<16x16xf32>
    %505 = arith.addf %436, %440 : vector<16x16xf32>
    %506 = arith.addf %444, %448 : vector<16x16xf32>
    %507 = arith.addf %452, %456 : vector<16x16xf32>
    %508 = arith.addf %460, %464 : vector<16x16xf32>
    %509 = arith.addf %468, %472 : vector<16x16xf32>
    %510 = arith.addf %476, %480 : vector<16x16xf32>
    %511 = arith.addf %484, %488 : vector<16x16xf32>
    %512 = arith.addf %492, %496 : vector<16x16xf32>
    %513 = arith.addf %501, %502 : vector<16x16xf32>
    %514 = arith.addf %503, %504 : vector<16x16xf32>
    %515 = arith.addf %505, %506 : vector<16x16xf32>
    %516 = arith.addf %507, %508 : vector<16x16xf32>
    %517 = arith.addf %509, %510 : vector<16x16xf32>
    %518 = arith.addf %511, %512 : vector<16x16xf32>
    %519 = arith.addf %513, %514 : vector<16x16xf32>
    %520 = arith.addf %515, %516 : vector<16x16xf32>
    %521 = arith.addf %517, %518 : vector<16x16xf32>
    %522 = arith.addf %519, %520 : vector<16x16xf32>
    %523 = arith.addf %521, %500 : vector<16x16xf32>
    %524 = arith.addf %522, %523 : vector<16x16xf32>
    %c1_80 = arith.constant 1 : index
    %525 = memref.load %arg3[%c1_80] : memref<4xf32, #tpu.memory_space<smem>>
    %526 = vector.broadcast %525 : f32 to vector<16x16xf32>
    %527 = arith.addf %524, %526 : vector<16x16xf32>
    %c9_81 = arith.constant 9 : index
    %c9_82 = arith.constant 9 : index
    %528 = vector.load %arg9[%c9_81, %c9_82] : memref<34x34xf32, #tpu.memory_space<vmem>>, vector<16x16xf32>
    tpu.vector_store %arg9[%c9_81, %c9_82], %527 {strides = array<i32>} : memref<34x34xf32, #tpu.memory_space<vmem>>, vector<16x16xf32>,
    %c0_83 = arith.constant 0 : index
    %c0_84 = arith.constant 0 : index
    %529 = vector.load %arg9[%c0_83, %c0_84] : memref<34x34xf32, #tpu.memory_space<vmem>>, vector<34x16xf32>
    %c0_85 = arith.constant 0 : index
    %c3_86 = arith.constant 3 : index
    %530 = vector.load %arg9[%c0_85, %c3_86] : memref<34x34xf32, #tpu.memory_space<vmem>>, vector<34x16xf32>
    %c0_87 = arith.constant 0 : index
    %c6_88 = arith.constant 6 : index
    %531 = vector.load %arg9[%c0_87, %c6_88] : memref<34x34xf32, #tpu.memory_space<vmem>>, vector<34x16xf32>
    %c0_89 = arith.constant 0 : index
    %c9_90 = arith.constant 9 : index
    %532 = vector.load %arg9[%c0_89, %c9_90] : memref<34x34xf32, #tpu.memory_space<vmem>>, vector<34x16xf32>
    %c0_91 = arith.constant 0 : index
    %c12_92 = arith.constant 12 : index
    %533 = vector.load %arg9[%c0_91, %c12_92] : memref<34x34xf32, #tpu.memory_space<vmem>>, vector<34x16xf32>
    %c0_93 = arith.constant 0 : index
    %c15_94 = arith.constant 15 : index
    %534 = vector.load %arg9[%c0_93, %c15_94] : memref<34x34xf32, #tpu.memory_space<vmem>>, vector<34x16xf32>
    %c0_95 = arith.constant 0 : index
    %c18_96 = arith.constant 18 : index
    %535 = vector.load %arg9[%c0_95, %c18_96] : memref<34x34xf32, #tpu.memory_space<vmem>>, vector<34x16xf32>
    %536 = vector.extract_strided_slice %529 {offsets = [0, 0], sizes = [16, 16], strides = [1, 1]} : vector<34x16xf32> to vector<16x16xf32>
    %c49_97 = arith.constant 49 : index
    %537 = memref.load %arg4[%c49_97] : memref<196xf32, #tpu.memory_space<smem>>
    %538 = vector.broadcast %537 : f32 to vector<16x16xf32>
    %539 = arith.mulf %536, %538 : vector<16x16xf32>
    %540 = vector.extract_strided_slice %530 {offsets = [0, 0], sizes = [16, 16], strides = [1, 1]} : vector<34x16xf32> to vector<16x16xf32>
    %c50 = arith.constant 50 : index
    %541 = memref.load %arg4[%c50] : memref<196xf32, #tpu.memory_space<smem>>
    %542 = vector.broadcast %541 : f32 to vector<16x16xf32>
    %543 = arith.mulf %540, %542 : vector<16x16xf32>
    %544 = vector.extract_strided_slice %531 {offsets = [0, 0], sizes = [16, 16], strides = [1, 1]} : vector<34x16xf32> to vector<16x16xf32>
    %c51 = arith.constant 51 : index
    %545 = memref.load %arg4[%c51] : memref<196xf32, #tpu.memory_space<smem>>
    %546 = vector.broadcast %545 : f32 to vector<16x16xf32>
    %547 = arith.mulf %544, %546 : vector<16x16xf32>
    %548 = vector.extract_strided_slice %532 {offsets = [0, 0], sizes = [16, 16], strides = [1, 1]} : vector<34x16xf32> to vector<16x16xf32>
    %c52 = arith.constant 52 : index
    %549 = memref.load %arg4[%c52] : memref<196xf32, #tpu.memory_space<smem>>
    %550 = vector.broadcast %549 : f32 to vector<16x16xf32>
    %551 = arith.mulf %548, %550 : vector<16x16xf32>
    %552 = vector.extract_strided_slice %533 {offsets = [0, 0], sizes = [16, 16], strides = [1, 1]} : vector<34x16xf32> to vector<16x16xf32>
    %c53 = arith.constant 53 : index
    %553 = memref.load %arg4[%c53] : memref<196xf32, #tpu.memory_space<smem>>
    %554 = vector.broadcast %553 : f32 to vector<16x16xf32>
    %555 = arith.mulf %552, %554 : vector<16x16xf32>
    %556 = vector.extract_strided_slice %534 {offsets = [0, 0], sizes = [16, 16], strides = [1, 1]} : vector<34x16xf32> to vector<16x16xf32>
    %c54 = arith.constant 54 : index
    %557 = memref.load %arg4[%c54] : memref<196xf32, #tpu.memory_space<smem>>
    %558 = vector.broadcast %557 : f32 to vector<16x16xf32>
    %559 = arith.mulf %556, %558 : vector<16x16xf32>
    %560 = vector.extract_strided_slice %535 {offsets = [0, 0], sizes = [16, 16], strides = [1, 1]} : vector<34x16xf32> to vector<16x16xf32>
    %c55 = arith.constant 55 : index
    %561 = memref.load %arg4[%c55] : memref<196xf32, #tpu.memory_space<smem>>
    %562 = vector.broadcast %561 : f32 to vector<16x16xf32>
    %563 = arith.mulf %560, %562 : vector<16x16xf32>
    %564 = vector.extract_strided_slice %529 {offsets = [3, 0], sizes = [16, 16], strides = [1, 1]} : vector<34x16xf32> to vector<16x16xf32>
    %c56 = arith.constant 56 : index
    %565 = memref.load %arg4[%c56] : memref<196xf32, #tpu.memory_space<smem>>
    %566 = vector.broadcast %565 : f32 to vector<16x16xf32>
    %567 = arith.mulf %564, %566 : vector<16x16xf32>
    %568 = vector.extract_strided_slice %530 {offsets = [3, 0], sizes = [16, 16], strides = [1, 1]} : vector<34x16xf32> to vector<16x16xf32>
    %c57 = arith.constant 57 : index
    %569 = memref.load %arg4[%c57] : memref<196xf32, #tpu.memory_space<smem>>
    %570 = vector.broadcast %569 : f32 to vector<16x16xf32>
    %571 = arith.mulf %568, %570 : vector<16x16xf32>
    %572 = vector.extract_strided_slice %531 {offsets = [3, 0], sizes = [16, 16], strides = [1, 1]} : vector<34x16xf32> to vector<16x16xf32>
    %c58 = arith.constant 58 : index
    %573 = memref.load %arg4[%c58] : memref<196xf32, #tpu.memory_space<smem>>
    %574 = vector.broadcast %573 : f32 to vector<16x16xf32>
    %575 = arith.mulf %572, %574 : vector<16x16xf32>
    %576 = vector.extract_strided_slice %532 {offsets = [3, 0], sizes = [16, 16], strides = [1, 1]} : vector<34x16xf32> to vector<16x16xf32>
    %c59 = arith.constant 59 : index
    %577 = memref.load %arg4[%c59] : memref<196xf32, #tpu.memory_space<smem>>
    %578 = vector.broadcast %577 : f32 to vector<16x16xf32>
    %579 = arith.mulf %576, %578 : vector<16x16xf32>
    %580 = vector.extract_strided_slice %533 {offsets = [3, 0], sizes = [16, 16], strides = [1, 1]} : vector<34x16xf32> to vector<16x16xf32>
    %c60 = arith.constant 60 : index
    %581 = memref.load %arg4[%c60] : memref<196xf32, #tpu.memory_space<smem>>
    %582 = vector.broadcast %581 : f32 to vector<16x16xf32>
    %583 = arith.mulf %580, %582 : vector<16x16xf32>
    %584 = vector.extract_strided_slice %534 {offsets = [3, 0], sizes = [16, 16], strides = [1, 1]} : vector<34x16xf32> to vector<16x16xf32>
    %c61 = arith.constant 61 : index
    %585 = memref.load %arg4[%c61] : memref<196xf32, #tpu.memory_space<smem>>
    %586 = vector.broadcast %585 : f32 to vector<16x16xf32>
    %587 = arith.mulf %584, %586 : vector<16x16xf32>
    %588 = vector.extract_strided_slice %535 {offsets = [3, 0], sizes = [16, 16], strides = [1, 1]} : vector<34x16xf32> to vector<16x16xf32>
    %c62 = arith.constant 62 : index
    %589 = memref.load %arg4[%c62] : memref<196xf32, #tpu.memory_space<smem>>
    %590 = vector.broadcast %589 : f32 to vector<16x16xf32>
    %591 = arith.mulf %588, %590 : vector<16x16xf32>
    %592 = vector.extract_strided_slice %529 {offsets = [6, 0], sizes = [16, 16], strides = [1, 1]} : vector<34x16xf32> to vector<16x16xf32>
    %c63 = arith.constant 63 : index
    %593 = memref.load %arg4[%c63] : memref<196xf32, #tpu.memory_space<smem>>
    %594 = vector.broadcast %593 : f32 to vector<16x16xf32>
    %595 = arith.mulf %592, %594 : vector<16x16xf32>
    %596 = vector.extract_strided_slice %530 {offsets = [6, 0], sizes = [16, 16], strides = [1, 1]} : vector<34x16xf32> to vector<16x16xf32>
    %c64 = arith.constant 64 : index
    %597 = memref.load %arg4[%c64] : memref<196xf32, #tpu.memory_space<smem>>
    %598 = vector.broadcast %597 : f32 to vector<16x16xf32>
    %599 = arith.mulf %596, %598 : vector<16x16xf32>
    %600 = vector.extract_strided_slice %531 {offsets = [6, 0], sizes = [16, 16], strides = [1, 1]} : vector<34x16xf32> to vector<16x16xf32>
    %c65 = arith.constant 65 : index
    %601 = memref.load %arg4[%c65] : memref<196xf32, #tpu.memory_space<smem>>
    %602 = vector.broadcast %601 : f32 to vector<16x16xf32>
    %603 = arith.mulf %600, %602 : vector<16x16xf32>
    %604 = vector.extract_strided_slice %532 {offsets = [6, 0], sizes = [16, 16], strides = [1, 1]} : vector<34x16xf32> to vector<16x16xf32>
    %c66 = arith.constant 66 : index
    %605 = memref.load %arg4[%c66] : memref<196xf32, #tpu.memory_space<smem>>
    %606 = vector.broadcast %605 : f32 to vector<16x16xf32>
    %607 = arith.mulf %604, %606 : vector<16x16xf32>
    %608 = vector.extract_strided_slice %533 {offsets = [6, 0], sizes = [16, 16], strides = [1, 1]} : vector<34x16xf32> to vector<16x16xf32>
    %c67 = arith.constant 67 : index
    %609 = memref.load %arg4[%c67] : memref<196xf32, #tpu.memory_space<smem>>
    %610 = vector.broadcast %609 : f32 to vector<16x16xf32>
    %611 = arith.mulf %608, %610 : vector<16x16xf32>
    %612 = vector.extract_strided_slice %534 {offsets = [6, 0], sizes = [16, 16], strides = [1, 1]} : vector<34x16xf32> to vector<16x16xf32>
    %c68 = arith.constant 68 : index
    %613 = memref.load %arg4[%c68] : memref<196xf32, #tpu.memory_space<smem>>
    %614 = vector.broadcast %613 : f32 to vector<16x16xf32>
    %615 = arith.mulf %612, %614 : vector<16x16xf32>
    %616 = vector.extract_strided_slice %535 {offsets = [6, 0], sizes = [16, 16], strides = [1, 1]} : vector<34x16xf32> to vector<16x16xf32>
    %c69 = arith.constant 69 : index
    %617 = memref.load %arg4[%c69] : memref<196xf32, #tpu.memory_space<smem>>
    %618 = vector.broadcast %617 : f32 to vector<16x16xf32>
    %619 = arith.mulf %616, %618 : vector<16x16xf32>
    %620 = vector.extract_strided_slice %529 {offsets = [9, 0], sizes = [16, 16], strides = [1, 1]} : vector<34x16xf32> to vector<16x16xf32>
    %c70 = arith.constant 70 : index
    %621 = memref.load %arg4[%c70] : memref<196xf32, #tpu.memory_space<smem>>
    %622 = vector.broadcast %621 : f32 to vector<16x16xf32>
    %623 = arith.mulf %620, %622 : vector<16x16xf32>
    %624 = vector.extract_strided_slice %530 {offsets = [9, 0], sizes = [16, 16], strides = [1, 1]} : vector<34x16xf32> to vector<16x16xf32>
    %c71 = arith.constant 71 : index
    %625 = memref.load %arg4[%c71] : memref<196xf32, #tpu.memory_space<smem>>
    %626 = vector.broadcast %625 : f32 to vector<16x16xf32>
    %627 = arith.mulf %624, %626 : vector<16x16xf32>
    %628 = vector.extract_strided_slice %531 {offsets = [9, 0], sizes = [16, 16], strides = [1, 1]} : vector<34x16xf32> to vector<16x16xf32>
    %c72 = arith.constant 72 : index
    %629 = memref.load %arg4[%c72] : memref<196xf32, #tpu.memory_space<smem>>
    %630 = vector.broadcast %629 : f32 to vector<16x16xf32>
    %631 = arith.mulf %628, %630 : vector<16x16xf32>
    %632 = vector.extract_strided_slice %532 {offsets = [9, 0], sizes = [16, 16], strides = [1, 1]} : vector<34x16xf32> to vector<16x16xf32>
    %c73 = arith.constant 73 : index
    %633 = memref.load %arg4[%c73] : memref<196xf32, #tpu.memory_space<smem>>
    %634 = vector.broadcast %633 : f32 to vector<16x16xf32>
    %635 = arith.mulf %632, %634 : vector<16x16xf32>
    %636 = vector.extract_strided_slice %533 {offsets = [9, 0], sizes = [16, 16], strides = [1, 1]} : vector<34x16xf32> to vector<16x16xf32>
    %c74 = arith.constant 74 : index
    %637 = memref.load %arg4[%c74] : memref<196xf32, #tpu.memory_space<smem>>
    %638 = vector.broadcast %637 : f32 to vector<16x16xf32>
    %639 = arith.mulf %636, %638 : vector<16x16xf32>
    %640 = vector.extract_strided_slice %534 {offsets = [9, 0], sizes = [16, 16], strides = [1, 1]} : vector<34x16xf32> to vector<16x16xf32>
    %c75 = arith.constant 75 : index
    %641 = memref.load %arg4[%c75] : memref<196xf32, #tpu.memory_space<smem>>
    %642 = vector.broadcast %641 : f32 to vector<16x16xf32>
    %643 = arith.mulf %640, %642 : vector<16x16xf32>
    %644 = vector.extract_strided_slice %535 {offsets = [9, 0], sizes = [16, 16], strides = [1, 1]} : vector<34x16xf32> to vector<16x16xf32>
    %c76 = arith.constant 76 : index
    %645 = memref.load %arg4[%c76] : memref<196xf32, #tpu.memory_space<smem>>
    %646 = vector.broadcast %645 : f32 to vector<16x16xf32>
    %647 = arith.mulf %644, %646 : vector<16x16xf32>
    %648 = vector.extract_strided_slice %529 {offsets = [12, 0], sizes = [16, 16], strides = [1, 1]} : vector<34x16xf32> to vector<16x16xf32>
    %c77 = arith.constant 77 : index
    %649 = memref.load %arg4[%c77] : memref<196xf32, #tpu.memory_space<smem>>
    %650 = vector.broadcast %649 : f32 to vector<16x16xf32>
    %651 = arith.mulf %648, %650 : vector<16x16xf32>
    %652 = vector.extract_strided_slice %530 {offsets = [12, 0], sizes = [16, 16], strides = [1, 1]} : vector<34x16xf32> to vector<16x16xf32>
    %c78 = arith.constant 78 : index
    %653 = memref.load %arg4[%c78] : memref<196xf32, #tpu.memory_space<smem>>
    %654 = vector.broadcast %653 : f32 to vector<16x16xf32>
    %655 = arith.mulf %652, %654 : vector<16x16xf32>
    %656 = vector.extract_strided_slice %531 {offsets = [12, 0], sizes = [16, 16], strides = [1, 1]} : vector<34x16xf32> to vector<16x16xf32>
    %c79 = arith.constant 79 : index
    %657 = memref.load %arg4[%c79] : memref<196xf32, #tpu.memory_space<smem>>
    %658 = vector.broadcast %657 : f32 to vector<16x16xf32>
    %659 = arith.mulf %656, %658 : vector<16x16xf32>
    %660 = vector.extract_strided_slice %532 {offsets = [12, 0], sizes = [16, 16], strides = [1, 1]} : vector<34x16xf32> to vector<16x16xf32>
    %c80 = arith.constant 80 : index
    %661 = memref.load %arg4[%c80] : memref<196xf32, #tpu.memory_space<smem>>
    %662 = vector.broadcast %661 : f32 to vector<16x16xf32>
    %663 = arith.mulf %660, %662 : vector<16x16xf32>
    %664 = vector.extract_strided_slice %533 {offsets = [12, 0], sizes = [16, 16], strides = [1, 1]} : vector<34x16xf32> to vector<16x16xf32>
    %c81 = arith.constant 81 : index
    %665 = memref.load %arg4[%c81] : memref<196xf32, #tpu.memory_space<smem>>
    %666 = vector.broadcast %665 : f32 to vector<16x16xf32>
    %667 = arith.mulf %664, %666 : vector<16x16xf32>
    %668 = vector.extract_strided_slice %534 {offsets = [12, 0], sizes = [16, 16], strides = [1, 1]} : vector<34x16xf32> to vector<16x16xf32>
    %c82 = arith.constant 82 : index
    %669 = memref.load %arg4[%c82] : memref<196xf32, #tpu.memory_space<smem>>
    %670 = vector.broadcast %669 : f32 to vector<16x16xf32>
    %671 = arith.mulf %668, %670 : vector<16x16xf32>
    %672 = vector.extract_strided_slice %535 {offsets = [12, 0], sizes = [16, 16], strides = [1, 1]} : vector<34x16xf32> to vector<16x16xf32>
    %c83 = arith.constant 83 : index
    %673 = memref.load %arg4[%c83] : memref<196xf32, #tpu.memory_space<smem>>
    %674 = vector.broadcast %673 : f32 to vector<16x16xf32>
    %675 = arith.mulf %672, %674 : vector<16x16xf32>
    %676 = vector.extract_strided_slice %529 {offsets = [15, 0], sizes = [16, 16], strides = [1, 1]} : vector<34x16xf32> to vector<16x16xf32>
    %c84 = arith.constant 84 : index
    %677 = memref.load %arg4[%c84] : memref<196xf32, #tpu.memory_space<smem>>
    %678 = vector.broadcast %677 : f32 to vector<16x16xf32>
    %679 = arith.mulf %676, %678 : vector<16x16xf32>
    %680 = vector.extract_strided_slice %530 {offsets = [15, 0], sizes = [16, 16], strides = [1, 1]} : vector<34x16xf32> to vector<16x16xf32>
    %c85 = arith.constant 85 : index
    %681 = memref.load %arg4[%c85] : memref<196xf32, #tpu.memory_space<smem>>
    %682 = vector.broadcast %681 : f32 to vector<16x16xf32>
    %683 = arith.mulf %680, %682 : vector<16x16xf32>
    %684 = vector.extract_strided_slice %531 {offsets = [15, 0], sizes = [16, 16], strides = [1, 1]} : vector<34x16xf32> to vector<16x16xf32>
    %c86 = arith.constant 86 : index
    %685 = memref.load %arg4[%c86] : memref<196xf32, #tpu.memory_space<smem>>
    %686 = vector.broadcast %685 : f32 to vector<16x16xf32>
    %687 = arith.mulf %684, %686 : vector<16x16xf32>
    %688 = vector.extract_strided_slice %532 {offsets = [15, 0], sizes = [16, 16], strides = [1, 1]} : vector<34x16xf32> to vector<16x16xf32>
    %c87 = arith.constant 87 : index
    %689 = memref.load %arg4[%c87] : memref<196xf32, #tpu.memory_space<smem>>
    %690 = vector.broadcast %689 : f32 to vector<16x16xf32>
    %691 = arith.mulf %688, %690 : vector<16x16xf32>
    %692 = vector.extract_strided_slice %533 {offsets = [15, 0], sizes = [16, 16], strides = [1, 1]} : vector<34x16xf32> to vector<16x16xf32>
    %c88 = arith.constant 88 : index
    %693 = memref.load %arg4[%c88] : memref<196xf32, #tpu.memory_space<smem>>
    %694 = vector.broadcast %693 : f32 to vector<16x16xf32>
    %695 = arith.mulf %692, %694 : vector<16x16xf32>
    %696 = vector.extract_strided_slice %534 {offsets = [15, 0], sizes = [16, 16], strides = [1, 1]} : vector<34x16xf32> to vector<16x16xf32>
    %c89 = arith.constant 89 : index
    %697 = memref.load %arg4[%c89] : memref<196xf32, #tpu.memory_space<smem>>
    %698 = vector.broadcast %697 : f32 to vector<16x16xf32>
    %699 = arith.mulf %696, %698 : vector<16x16xf32>
    %700 = vector.extract_strided_slice %535 {offsets = [15, 0], sizes = [16, 16], strides = [1, 1]} : vector<34x16xf32> to vector<16x16xf32>
    %c90 = arith.constant 90 : index
    %701 = memref.load %arg4[%c90] : memref<196xf32, #tpu.memory_space<smem>>
    %702 = vector.broadcast %701 : f32 to vector<16x16xf32>
    %703 = arith.mulf %700, %702 : vector<16x16xf32>
    %704 = vector.extract_strided_slice %529 {offsets = [18, 0], sizes = [16, 16], strides = [1, 1]} : vector<34x16xf32> to vector<16x16xf32>
    %c91 = arith.constant 91 : index
    %705 = memref.load %arg4[%c91] : memref<196xf32, #tpu.memory_space<smem>>
    %706 = vector.broadcast %705 : f32 to vector<16x16xf32>
    %707 = arith.mulf %704, %706 : vector<16x16xf32>
    %708 = vector.extract_strided_slice %530 {offsets = [18, 0], sizes = [16, 16], strides = [1, 1]} : vector<34x16xf32> to vector<16x16xf32>
    %c92 = arith.constant 92 : index
    %709 = memref.load %arg4[%c92] : memref<196xf32, #tpu.memory_space<smem>>
    %710 = vector.broadcast %709 : f32 to vector<16x16xf32>
    %711 = arith.mulf %708, %710 : vector<16x16xf32>
    %712 = vector.extract_strided_slice %531 {offsets = [18, 0], sizes = [16, 16], strides = [1, 1]} : vector<34x16xf32> to vector<16x16xf32>
    %c93 = arith.constant 93 : index
    %713 = memref.load %arg4[%c93] : memref<196xf32, #tpu.memory_space<smem>>
    %714 = vector.broadcast %713 : f32 to vector<16x16xf32>
    %715 = arith.mulf %712, %714 : vector<16x16xf32>
    %716 = vector.extract_strided_slice %532 {offsets = [18, 0], sizes = [16, 16], strides = [1, 1]} : vector<34x16xf32> to vector<16x16xf32>
    %c94 = arith.constant 94 : index
    %717 = memref.load %arg4[%c94] : memref<196xf32, #tpu.memory_space<smem>>
    %718 = vector.broadcast %717 : f32 to vector<16x16xf32>
    %719 = arith.mulf %716, %718 : vector<16x16xf32>
    %720 = vector.extract_strided_slice %533 {offsets = [18, 0], sizes = [16, 16], strides = [1, 1]} : vector<34x16xf32> to vector<16x16xf32>
    %c95 = arith.constant 95 : index
    %721 = memref.load %arg4[%c95] : memref<196xf32, #tpu.memory_space<smem>>
    %722 = vector.broadcast %721 : f32 to vector<16x16xf32>
    %723 = arith.mulf %720, %722 : vector<16x16xf32>
    %724 = vector.extract_strided_slice %534 {offsets = [18, 0], sizes = [16, 16], strides = [1, 1]} : vector<34x16xf32> to vector<16x16xf32>
    %c96 = arith.constant 96 : index
    %725 = memref.load %arg4[%c96] : memref<196xf32, #tpu.memory_space<smem>>
    %726 = vector.broadcast %725 : f32 to vector<16x16xf32>
    %727 = arith.mulf %724, %726 : vector<16x16xf32>
    %728 = vector.extract_strided_slice %535 {offsets = [18, 0], sizes = [16, 16], strides = [1, 1]} : vector<34x16xf32> to vector<16x16xf32>
    %c97 = arith.constant 97 : index
    %729 = memref.load %arg4[%c97] : memref<196xf32, #tpu.memory_space<smem>>
    %730 = vector.broadcast %729 : f32 to vector<16x16xf32>
    %731 = arith.mulf %728, %730 : vector<16x16xf32>
    %732 = arith.addf %539, %543 : vector<16x16xf32>
    %733 = arith.addf %547, %551 : vector<16x16xf32>
    %734 = arith.addf %555, %559 : vector<16x16xf32>
    %735 = arith.addf %563, %567 : vector<16x16xf32>
    %736 = arith.addf %571, %575 : vector<16x16xf32>
    %737 = arith.addf %579, %583 : vector<16x16xf32>
    %738 = arith.addf %587, %591 : vector<16x16xf32>
    %739 = arith.addf %595, %599 : vector<16x16xf32>
    %740 = arith.addf %603, %607 : vector<16x16xf32>
    %741 = arith.addf %611, %615 : vector<16x16xf32>
    %742 = arith.addf %619, %623 : vector<16x16xf32>
    %743 = arith.addf %627, %631 : vector<16x16xf32>
    %744 = arith.addf %635, %639 : vector<16x16xf32>
    %745 = arith.addf %643, %647 : vector<16x16xf32>
    %746 = arith.addf %651, %655 : vector<16x16xf32>
    %747 = arith.addf %659, %663 : vector<16x16xf32>
    %748 = arith.addf %667, %671 : vector<16x16xf32>
    %749 = arith.addf %675, %679 : vector<16x16xf32>
    %750 = arith.addf %683, %687 : vector<16x16xf32>
    %751 = arith.addf %691, %695 : vector<16x16xf32>
    %752 = arith.addf %699, %703 : vector<16x16xf32>
    %753 = arith.addf %707, %711 : vector<16x16xf32>
    %754 = arith.addf %715, %719 : vector<16x16xf32>
    %755 = arith.addf %723, %727 : vector<16x16xf32>
    %756 = arith.addf %732, %733 : vector<16x16xf32>
    %757 = arith.addf %734, %735 : vector<16x16xf32>
    %758 = arith.addf %736, %737 : vector<16x16xf32>
    %759 = arith.addf %738, %739 : vector<16x16xf32>
    %760 = arith.addf %740, %741 : vector<16x16xf32>
    %761 = arith.addf %742, %743 : vector<16x16xf32>
    %762 = arith.addf %744, %745 : vector<16x16xf32>
    %763 = arith.addf %746, %747 : vector<16x16xf32>
    %764 = arith.addf %748, %749 : vector<16x16xf32>
    %765 = arith.addf %750, %751 : vector<16x16xf32>
    %766 = arith.addf %752, %753 : vector<16x16xf32>
    %767 = arith.addf %754, %755 : vector<16x16xf32>
    %768 = arith.addf %756, %757 : vector<16x16xf32>
    %769 = arith.addf %758, %759 : vector<16x16xf32>
    %770 = arith.addf %760, %761 : vector<16x16xf32>
    %771 = arith.addf %762, %763 : vector<16x16xf32>
    %772 = arith.addf %764, %765 : vector<16x16xf32>
    %773 = arith.addf %766, %767 : vector<16x16xf32>
    %774 = arith.addf %768, %769 : vector<16x16xf32>
    %775 = arith.addf %770, %771 : vector<16x16xf32>
    %776 = arith.addf %772, %773 : vector<16x16xf32>
    %777 = arith.addf %774, %775 : vector<16x16xf32>
    %778 = arith.addf %776, %731 : vector<16x16xf32>
    %779 = arith.addf %777, %778 : vector<16x16xf32>
    %c1_98 = arith.constant 1 : index
    %780 = memref.load %arg5[%c1_98] : memref<4xf32, #tpu.memory_space<smem>>
    %781 = vector.broadcast %780 : f32 to vector<16x16xf32>
    %782 = arith.addf %779, %781 : vector<16x16xf32>
    %c1_99 = arith.constant 1 : index
    %c0_100 = arith.constant 0 : index
    %c0_101 = arith.constant 0 : index
    %783 = vector.load %arg10[%c1_99, %c0_100, %c0_101] : memref<4x16x16xf32, #tpu.memory_space<vmem>>, vector<1x16x16xf32>
    %784 = vector.shape_cast %783 : vector<1x16x16xf32> to vector<16x16xf32>
    %785 = vector.shape_cast %782 : vector<16x16xf32> to vector<1x16x16xf32>
    tpu.vector_store %arg10[%c1_99, %c0_100, %c0_101], %785 {strides = array<i32>} : memref<4x16x16xf32, #tpu.memory_space<vmem>>, vector<1x16x16xf32>,
    %c0_102 = arith.constant 0 : index
    %c2_103 = arith.constant 2 : index
    %c0_104 = arith.constant 0 : index
    %c0_105 = arith.constant 0 : index
    %786 = vector.load %arg1[%c0_102, %c2_103, %c0_104, %c0_105] : memref<1x4x20x20xf32, #tpu.memory_space<vmem>>, vector<1x1x20x20xf32>
    %787 = vector.shape_cast %786 : vector<1x1x20x20xf32> to vector<20x20xf32>
    %788 = vector.extract_strided_slice %787 {offsets = [0, 0], sizes = [20, 16], strides = [1, 1]} : vector<20x20xf32> to vector<20x16xf32>
    %789 = vector.extract_strided_slice %787 {offsets = [0, 1], sizes = [20, 16], strides = [1, 1]} : vector<20x20xf32> to vector<20x16xf32>
    %790 = vector.extract_strided_slice %787 {offsets = [0, 2], sizes = [20, 16], strides = [1, 1]} : vector<20x20xf32> to vector<20x16xf32>
    %791 = vector.extract_strided_slice %787 {offsets = [0, 3], sizes = [20, 16], strides = [1, 1]} : vector<20x20xf32> to vector<20x16xf32>
    %792 = vector.extract_strided_slice %787 {offsets = [0, 4], sizes = [20, 16], strides = [1, 1]} : vector<20x20xf32> to vector<20x16xf32>
    %793 = vector.extract_strided_slice %788 {offsets = [0, 0], sizes = [16, 16], strides = [1, 1]} : vector<20x16xf32> to vector<16x16xf32>
    %c50_106 = arith.constant 50 : index
    %794 = memref.load %arg2[%c50_106] : memref<100xf32, #tpu.memory_space<smem>>
    %795 = vector.broadcast %794 : f32 to vector<16x16xf32>
    %796 = arith.mulf %793, %795 : vector<16x16xf32>
    %797 = vector.extract_strided_slice %789 {offsets = [0, 0], sizes = [16, 16], strides = [1, 1]} : vector<20x16xf32> to vector<16x16xf32>
    %c51_107 = arith.constant 51 : index
    %798 = memref.load %arg2[%c51_107] : memref<100xf32, #tpu.memory_space<smem>>
    %799 = vector.broadcast %798 : f32 to vector<16x16xf32>
    %800 = arith.mulf %797, %799 : vector<16x16xf32>
    %801 = vector.extract_strided_slice %790 {offsets = [0, 0], sizes = [16, 16], strides = [1, 1]} : vector<20x16xf32> to vector<16x16xf32>
    %c52_108 = arith.constant 52 : index
    %802 = memref.load %arg2[%c52_108] : memref<100xf32, #tpu.memory_space<smem>>
    %803 = vector.broadcast %802 : f32 to vector<16x16xf32>
    %804 = arith.mulf %801, %803 : vector<16x16xf32>
    %805 = vector.extract_strided_slice %791 {offsets = [0, 0], sizes = [16, 16], strides = [1, 1]} : vector<20x16xf32> to vector<16x16xf32>
    %c53_109 = arith.constant 53 : index
    %806 = memref.load %arg2[%c53_109] : memref<100xf32, #tpu.memory_space<smem>>
    %807 = vector.broadcast %806 : f32 to vector<16x16xf32>
    %808 = arith.mulf %805, %807 : vector<16x16xf32>
    %809 = vector.extract_strided_slice %792 {offsets = [0, 0], sizes = [16, 16], strides = [1, 1]} : vector<20x16xf32> to vector<16x16xf32>
    %c54_110 = arith.constant 54 : index
    %810 = memref.load %arg2[%c54_110] : memref<100xf32, #tpu.memory_space<smem>>
    %811 = vector.broadcast %810 : f32 to vector<16x16xf32>
    %812 = arith.mulf %809, %811 : vector<16x16xf32>
    %813 = vector.extract_strided_slice %788 {offsets = [1, 0], sizes = [16, 16], strides = [1, 1]} : vector<20x16xf32> to vector<16x16xf32>
    %c55_111 = arith.constant 55 : index
    %814 = memref.load %arg2[%c55_111] : memref<100xf32, #tpu.memory_space<smem>>
    %815 = vector.broadcast %814 : f32 to vector<16x16xf32>
    %816 = arith.mulf %813, %815 : vector<16x16xf32>
    %817 = vector.extract_strided_slice %789 {offsets = [1, 0], sizes = [16, 16], strides = [1, 1]} : vector<20x16xf32> to vector<16x16xf32>
    %c56_112 = arith.constant 56 : index
    %818 = memref.load %arg2[%c56_112] : memref<100xf32, #tpu.memory_space<smem>>
    %819 = vector.broadcast %818 : f32 to vector<16x16xf32>
    %820 = arith.mulf %817, %819 : vector<16x16xf32>
    %821 = vector.extract_strided_slice %790 {offsets = [1, 0], sizes = [16, 16], strides = [1, 1]} : vector<20x16xf32> to vector<16x16xf32>
    %c57_113 = arith.constant 57 : index
    %822 = memref.load %arg2[%c57_113] : memref<100xf32, #tpu.memory_space<smem>>
    %823 = vector.broadcast %822 : f32 to vector<16x16xf32>
    %824 = arith.mulf %821, %823 : vector<16x16xf32>
    %825 = vector.extract_strided_slice %791 {offsets = [1, 0], sizes = [16, 16], strides = [1, 1]} : vector<20x16xf32> to vector<16x16xf32>
    %c58_114 = arith.constant 58 : index
    %826 = memref.load %arg2[%c58_114] : memref<100xf32, #tpu.memory_space<smem>>
    %827 = vector.broadcast %826 : f32 to vector<16x16xf32>
    %828 = arith.mulf %825, %827 : vector<16x16xf32>
    %829 = vector.extract_strided_slice %792 {offsets = [1, 0], sizes = [16, 16], strides = [1, 1]} : vector<20x16xf32> to vector<16x16xf32>
    %c59_115 = arith.constant 59 : index
    %830 = memref.load %arg2[%c59_115] : memref<100xf32, #tpu.memory_space<smem>>
    %831 = vector.broadcast %830 : f32 to vector<16x16xf32>
    %832 = arith.mulf %829, %831 : vector<16x16xf32>
    %833 = vector.extract_strided_slice %788 {offsets = [2, 0], sizes = [16, 16], strides = [1, 1]} : vector<20x16xf32> to vector<16x16xf32>
    %c60_116 = arith.constant 60 : index
    %834 = memref.load %arg2[%c60_116] : memref<100xf32, #tpu.memory_space<smem>>
    %835 = vector.broadcast %834 : f32 to vector<16x16xf32>
    %836 = arith.mulf %833, %835 : vector<16x16xf32>
    %837 = vector.extract_strided_slice %789 {offsets = [2, 0], sizes = [16, 16], strides = [1, 1]} : vector<20x16xf32> to vector<16x16xf32>
    %c61_117 = arith.constant 61 : index
    %838 = memref.load %arg2[%c61_117] : memref<100xf32, #tpu.memory_space<smem>>
    %839 = vector.broadcast %838 : f32 to vector<16x16xf32>
    %840 = arith.mulf %837, %839 : vector<16x16xf32>
    %841 = vector.extract_strided_slice %790 {offsets = [2, 0], sizes = [16, 16], strides = [1, 1]} : vector<20x16xf32> to vector<16x16xf32>
    %c62_118 = arith.constant 62 : index
    %842 = memref.load %arg2[%c62_118] : memref<100xf32, #tpu.memory_space<smem>>
    %843 = vector.broadcast %842 : f32 to vector<16x16xf32>
    %844 = arith.mulf %841, %843 : vector<16x16xf32>
    %845 = vector.extract_strided_slice %791 {offsets = [2, 0], sizes = [16, 16], strides = [1, 1]} : vector<20x16xf32> to vector<16x16xf32>
    %c63_119 = arith.constant 63 : index
    %846 = memref.load %arg2[%c63_119] : memref<100xf32, #tpu.memory_space<smem>>
    %847 = vector.broadcast %846 : f32 to vector<16x16xf32>
    %848 = arith.mulf %845, %847 : vector<16x16xf32>
    %849 = vector.extract_strided_slice %792 {offsets = [2, 0], sizes = [16, 16], strides = [1, 1]} : vector<20x16xf32> to vector<16x16xf32>
    %c64_120 = arith.constant 64 : index
    %850 = memref.load %arg2[%c64_120] : memref<100xf32, #tpu.memory_space<smem>>
    %851 = vector.broadcast %850 : f32 to vector<16x16xf32>
    %852 = arith.mulf %849, %851 : vector<16x16xf32>
    %853 = vector.extract_strided_slice %788 {offsets = [3, 0], sizes = [16, 16], strides = [1, 1]} : vector<20x16xf32> to vector<16x16xf32>
    %c65_121 = arith.constant 65 : index
    %854 = memref.load %arg2[%c65_121] : memref<100xf32, #tpu.memory_space<smem>>
    %855 = vector.broadcast %854 : f32 to vector<16x16xf32>
    %856 = arith.mulf %853, %855 : vector<16x16xf32>
    %857 = vector.extract_strided_slice %789 {offsets = [3, 0], sizes = [16, 16], strides = [1, 1]} : vector<20x16xf32> to vector<16x16xf32>
    %c66_122 = arith.constant 66 : index
    %858 = memref.load %arg2[%c66_122] : memref<100xf32, #tpu.memory_space<smem>>
    %859 = vector.broadcast %858 : f32 to vector<16x16xf32>
    %860 = arith.mulf %857, %859 : vector<16x16xf32>
    %861 = vector.extract_strided_slice %790 {offsets = [3, 0], sizes = [16, 16], strides = [1, 1]} : vector<20x16xf32> to vector<16x16xf32>
    %c67_123 = arith.constant 67 : index
    %862 = memref.load %arg2[%c67_123] : memref<100xf32, #tpu.memory_space<smem>>
    %863 = vector.broadcast %862 : f32 to vector<16x16xf32>
    %864 = arith.mulf %861, %863 : vector<16x16xf32>
    %865 = vector.extract_strided_slice %791 {offsets = [3, 0], sizes = [16, 16], strides = [1, 1]} : vector<20x16xf32> to vector<16x16xf32>
    %c68_124 = arith.constant 68 : index
    %866 = memref.load %arg2[%c68_124] : memref<100xf32, #tpu.memory_space<smem>>
    %867 = vector.broadcast %866 : f32 to vector<16x16xf32>
    %868 = arith.mulf %865, %867 : vector<16x16xf32>
    %869 = vector.extract_strided_slice %792 {offsets = [3, 0], sizes = [16, 16], strides = [1, 1]} : vector<20x16xf32> to vector<16x16xf32>
    %c69_125 = arith.constant 69 : index
    %870 = memref.load %arg2[%c69_125] : memref<100xf32, #tpu.memory_space<smem>>
    %871 = vector.broadcast %870 : f32 to vector<16x16xf32>
    %872 = arith.mulf %869, %871 : vector<16x16xf32>
    %873 = vector.extract_strided_slice %788 {offsets = [4, 0], sizes = [16, 16], strides = [1, 1]} : vector<20x16xf32> to vector<16x16xf32>
    %c70_126 = arith.constant 70 : index
    %874 = memref.load %arg2[%c70_126] : memref<100xf32, #tpu.memory_space<smem>>
    %875 = vector.broadcast %874 : f32 to vector<16x16xf32>
    %876 = arith.mulf %873, %875 : vector<16x16xf32>
    %877 = vector.extract_strided_slice %789 {offsets = [4, 0], sizes = [16, 16], strides = [1, 1]} : vector<20x16xf32> to vector<16x16xf32>
    %c71_127 = arith.constant 71 : index
    %878 = memref.load %arg2[%c71_127] : memref<100xf32, #tpu.memory_space<smem>>
    %879 = vector.broadcast %878 : f32 to vector<16x16xf32>
    %880 = arith.mulf %877, %879 : vector<16x16xf32>
    %881 = vector.extract_strided_slice %790 {offsets = [4, 0], sizes = [16, 16], strides = [1, 1]} : vector<20x16xf32> to vector<16x16xf32>
    %c72_128 = arith.constant 72 : index
    %882 = memref.load %arg2[%c72_128] : memref<100xf32, #tpu.memory_space<smem>>
    %883 = vector.broadcast %882 : f32 to vector<16x16xf32>
    %884 = arith.mulf %881, %883 : vector<16x16xf32>
    %885 = vector.extract_strided_slice %791 {offsets = [4, 0], sizes = [16, 16], strides = [1, 1]} : vector<20x16xf32> to vector<16x16xf32>
    %c73_129 = arith.constant 73 : index
    %886 = memref.load %arg2[%c73_129] : memref<100xf32, #tpu.memory_space<smem>>
    %887 = vector.broadcast %886 : f32 to vector<16x16xf32>
    %888 = arith.mulf %885, %887 : vector<16x16xf32>
    %889 = vector.extract_strided_slice %792 {offsets = [4, 0], sizes = [16, 16], strides = [1, 1]} : vector<20x16xf32> to vector<16x16xf32>
    %c74_130 = arith.constant 74 : index
    %890 = memref.load %arg2[%c74_130] : memref<100xf32, #tpu.memory_space<smem>>
    %891 = vector.broadcast %890 : f32 to vector<16x16xf32>
    %892 = arith.mulf %889, %891 : vector<16x16xf32>
    %893 = arith.addf %796, %800 : vector<16x16xf32>
    %894 = arith.addf %804, %808 : vector<16x16xf32>
    %895 = arith.addf %812, %816 : vector<16x16xf32>
    %896 = arith.addf %820, %824 : vector<16x16xf32>
    %897 = arith.addf %828, %832 : vector<16x16xf32>
    %898 = arith.addf %836, %840 : vector<16x16xf32>
    %899 = arith.addf %844, %848 : vector<16x16xf32>
    %900 = arith.addf %852, %856 : vector<16x16xf32>
    %901 = arith.addf %860, %864 : vector<16x16xf32>
    %902 = arith.addf %868, %872 : vector<16x16xf32>
    %903 = arith.addf %876, %880 : vector<16x16xf32>
    %904 = arith.addf %884, %888 : vector<16x16xf32>
    %905 = arith.addf %893, %894 : vector<16x16xf32>
    %906 = arith.addf %895, %896 : vector<16x16xf32>
    %907 = arith.addf %897, %898 : vector<16x16xf32>
    %908 = arith.addf %899, %900 : vector<16x16xf32>
    %909 = arith.addf %901, %902 : vector<16x16xf32>
    %910 = arith.addf %903, %904 : vector<16x16xf32>
    %911 = arith.addf %905, %906 : vector<16x16xf32>
    %912 = arith.addf %907, %908 : vector<16x16xf32>
    %913 = arith.addf %909, %910 : vector<16x16xf32>
    %914 = arith.addf %911, %912 : vector<16x16xf32>
    %915 = arith.addf %913, %892 : vector<16x16xf32>
    %916 = arith.addf %914, %915 : vector<16x16xf32>
    %c2_131 = arith.constant 2 : index
    %917 = memref.load %arg3[%c2_131] : memref<4xf32, #tpu.memory_space<smem>>
    %918 = vector.broadcast %917 : f32 to vector<16x16xf32>
    %919 = arith.addf %916, %918 : vector<16x16xf32>
    %c9_132 = arith.constant 9 : index
    %c9_133 = arith.constant 9 : index
    %920 = vector.load %arg9[%c9_132, %c9_133] : memref<34x34xf32, #tpu.memory_space<vmem>>, vector<16x16xf32>
    tpu.vector_store %arg9[%c9_132, %c9_133], %919 {strides = array<i32>} : memref<34x34xf32, #tpu.memory_space<vmem>>, vector<16x16xf32>,
    %c0_134 = arith.constant 0 : index
    %c0_135 = arith.constant 0 : index
    %921 = vector.load %arg9[%c0_134, %c0_135] : memref<34x34xf32, #tpu.memory_space<vmem>>, vector<34x16xf32>
    %c0_136 = arith.constant 0 : index
    %c3_137 = arith.constant 3 : index
    %922 = vector.load %arg9[%c0_136, %c3_137] : memref<34x34xf32, #tpu.memory_space<vmem>>, vector<34x16xf32>
    %c0_138 = arith.constant 0 : index
    %c6_139 = arith.constant 6 : index
    %923 = vector.load %arg9[%c0_138, %c6_139] : memref<34x34xf32, #tpu.memory_space<vmem>>, vector<34x16xf32>
    %c0_140 = arith.constant 0 : index
    %c9_141 = arith.constant 9 : index
    %924 = vector.load %arg9[%c0_140, %c9_141] : memref<34x34xf32, #tpu.memory_space<vmem>>, vector<34x16xf32>
    %c0_142 = arith.constant 0 : index
    %c12_143 = arith.constant 12 : index
    %925 = vector.load %arg9[%c0_142, %c12_143] : memref<34x34xf32, #tpu.memory_space<vmem>>, vector<34x16xf32>
    %c0_144 = arith.constant 0 : index
    %c15_145 = arith.constant 15 : index
    %926 = vector.load %arg9[%c0_144, %c15_145] : memref<34x34xf32, #tpu.memory_space<vmem>>, vector<34x16xf32>
    %c0_146 = arith.constant 0 : index
    %c18_147 = arith.constant 18 : index
    %927 = vector.load %arg9[%c0_146, %c18_147] : memref<34x34xf32, #tpu.memory_space<vmem>>, vector<34x16xf32>
    %928 = vector.extract_strided_slice %921 {offsets = [0, 0], sizes = [16, 16], strides = [1, 1]} : vector<34x16xf32> to vector<16x16xf32>
    %c98 = arith.constant 98 : index
    %929 = memref.load %arg4[%c98] : memref<196xf32, #tpu.memory_space<smem>>
    %930 = vector.broadcast %929 : f32 to vector<16x16xf32>
    %931 = arith.mulf %928, %930 : vector<16x16xf32>
    %932 = vector.extract_strided_slice %922 {offsets = [0, 0], sizes = [16, 16], strides = [1, 1]} : vector<34x16xf32> to vector<16x16xf32>
    %c99 = arith.constant 99 : index
    %933 = memref.load %arg4[%c99] : memref<196xf32, #tpu.memory_space<smem>>
    %934 = vector.broadcast %933 : f32 to vector<16x16xf32>
    %935 = arith.mulf %932, %934 : vector<16x16xf32>
    %936 = vector.extract_strided_slice %923 {offsets = [0, 0], sizes = [16, 16], strides = [1, 1]} : vector<34x16xf32> to vector<16x16xf32>
    %c100 = arith.constant 100 : index
    %937 = memref.load %arg4[%c100] : memref<196xf32, #tpu.memory_space<smem>>
    %938 = vector.broadcast %937 : f32 to vector<16x16xf32>
    %939 = arith.mulf %936, %938 : vector<16x16xf32>
    %940 = vector.extract_strided_slice %924 {offsets = [0, 0], sizes = [16, 16], strides = [1, 1]} : vector<34x16xf32> to vector<16x16xf32>
    %c101 = arith.constant 101 : index
    %941 = memref.load %arg4[%c101] : memref<196xf32, #tpu.memory_space<smem>>
    %942 = vector.broadcast %941 : f32 to vector<16x16xf32>
    %943 = arith.mulf %940, %942 : vector<16x16xf32>
    %944 = vector.extract_strided_slice %925 {offsets = [0, 0], sizes = [16, 16], strides = [1, 1]} : vector<34x16xf32> to vector<16x16xf32>
    %c102 = arith.constant 102 : index
    %945 = memref.load %arg4[%c102] : memref<196xf32, #tpu.memory_space<smem>>
    %946 = vector.broadcast %945 : f32 to vector<16x16xf32>
    %947 = arith.mulf %944, %946 : vector<16x16xf32>
    %948 = vector.extract_strided_slice %926 {offsets = [0, 0], sizes = [16, 16], strides = [1, 1]} : vector<34x16xf32> to vector<16x16xf32>
    %c103 = arith.constant 103 : index
    %949 = memref.load %arg4[%c103] : memref<196xf32, #tpu.memory_space<smem>>
    %950 = vector.broadcast %949 : f32 to vector<16x16xf32>
    %951 = arith.mulf %948, %950 : vector<16x16xf32>
    %952 = vector.extract_strided_slice %927 {offsets = [0, 0], sizes = [16, 16], strides = [1, 1]} : vector<34x16xf32> to vector<16x16xf32>
    %c104 = arith.constant 104 : index
    %953 = memref.load %arg4[%c104] : memref<196xf32, #tpu.memory_space<smem>>
    %954 = vector.broadcast %953 : f32 to vector<16x16xf32>
    %955 = arith.mulf %952, %954 : vector<16x16xf32>
    %956 = vector.extract_strided_slice %921 {offsets = [3, 0], sizes = [16, 16], strides = [1, 1]} : vector<34x16xf32> to vector<16x16xf32>
    %c105 = arith.constant 105 : index
    %957 = memref.load %arg4[%c105] : memref<196xf32, #tpu.memory_space<smem>>
    %958 = vector.broadcast %957 : f32 to vector<16x16xf32>
    %959 = arith.mulf %956, %958 : vector<16x16xf32>
    %960 = vector.extract_strided_slice %922 {offsets = [3, 0], sizes = [16, 16], strides = [1, 1]} : vector<34x16xf32> to vector<16x16xf32>
    %c106 = arith.constant 106 : index
    %961 = memref.load %arg4[%c106] : memref<196xf32, #tpu.memory_space<smem>>
    %962 = vector.broadcast %961 : f32 to vector<16x16xf32>
    %963 = arith.mulf %960, %962 : vector<16x16xf32>
    %964 = vector.extract_strided_slice %923 {offsets = [3, 0], sizes = [16, 16], strides = [1, 1]} : vector<34x16xf32> to vector<16x16xf32>
    %c107 = arith.constant 107 : index
    %965 = memref.load %arg4[%c107] : memref<196xf32, #tpu.memory_space<smem>>
    %966 = vector.broadcast %965 : f32 to vector<16x16xf32>
    %967 = arith.mulf %964, %966 : vector<16x16xf32>
    %968 = vector.extract_strided_slice %924 {offsets = [3, 0], sizes = [16, 16], strides = [1, 1]} : vector<34x16xf32> to vector<16x16xf32>
    %c108 = arith.constant 108 : index
    %969 = memref.load %arg4[%c108] : memref<196xf32, #tpu.memory_space<smem>>
    %970 = vector.broadcast %969 : f32 to vector<16x16xf32>
    %971 = arith.mulf %968, %970 : vector<16x16xf32>
    %972 = vector.extract_strided_slice %925 {offsets = [3, 0], sizes = [16, 16], strides = [1, 1]} : vector<34x16xf32> to vector<16x16xf32>
    %c109 = arith.constant 109 : index
    %973 = memref.load %arg4[%c109] : memref<196xf32, #tpu.memory_space<smem>>
    %974 = vector.broadcast %973 : f32 to vector<16x16xf32>
    %975 = arith.mulf %972, %974 : vector<16x16xf32>
    %976 = vector.extract_strided_slice %926 {offsets = [3, 0], sizes = [16, 16], strides = [1, 1]} : vector<34x16xf32> to vector<16x16xf32>
    %c110 = arith.constant 110 : index
    %977 = memref.load %arg4[%c110] : memref<196xf32, #tpu.memory_space<smem>>
    %978 = vector.broadcast %977 : f32 to vector<16x16xf32>
    %979 = arith.mulf %976, %978 : vector<16x16xf32>
    %980 = vector.extract_strided_slice %927 {offsets = [3, 0], sizes = [16, 16], strides = [1, 1]} : vector<34x16xf32> to vector<16x16xf32>
    %c111 = arith.constant 111 : index
    %981 = memref.load %arg4[%c111] : memref<196xf32, #tpu.memory_space<smem>>
    %982 = vector.broadcast %981 : f32 to vector<16x16xf32>
    %983 = arith.mulf %980, %982 : vector<16x16xf32>
    %984 = vector.extract_strided_slice %921 {offsets = [6, 0], sizes = [16, 16], strides = [1, 1]} : vector<34x16xf32> to vector<16x16xf32>
    %c112 = arith.constant 112 : index
    %985 = memref.load %arg4[%c112] : memref<196xf32, #tpu.memory_space<smem>>
    %986 = vector.broadcast %985 : f32 to vector<16x16xf32>
    %987 = arith.mulf %984, %986 : vector<16x16xf32>
    %988 = vector.extract_strided_slice %922 {offsets = [6, 0], sizes = [16, 16], strides = [1, 1]} : vector<34x16xf32> to vector<16x16xf32>
    %c113 = arith.constant 113 : index
    %989 = memref.load %arg4[%c113] : memref<196xf32, #tpu.memory_space<smem>>
    %990 = vector.broadcast %989 : f32 to vector<16x16xf32>
    %991 = arith.mulf %988, %990 : vector<16x16xf32>
    %992 = vector.extract_strided_slice %923 {offsets = [6, 0], sizes = [16, 16], strides = [1, 1]} : vector<34x16xf32> to vector<16x16xf32>
    %c114 = arith.constant 114 : index
    %993 = memref.load %arg4[%c114] : memref<196xf32, #tpu.memory_space<smem>>
    %994 = vector.broadcast %993 : f32 to vector<16x16xf32>
    %995 = arith.mulf %992, %994 : vector<16x16xf32>
    %996 = vector.extract_strided_slice %924 {offsets = [6, 0], sizes = [16, 16], strides = [1, 1]} : vector<34x16xf32> to vector<16x16xf32>
    %c115 = arith.constant 115 : index
    %997 = memref.load %arg4[%c115] : memref<196xf32, #tpu.memory_space<smem>>
    %998 = vector.broadcast %997 : f32 to vector<16x16xf32>
    %999 = arith.mulf %996, %998 : vector<16x16xf32>
    %1000 = vector.extract_strided_slice %925 {offsets = [6, 0], sizes = [16, 16], strides = [1, 1]} : vector<34x16xf32> to vector<16x16xf32>
    %c116 = arith.constant 116 : index
    %1001 = memref.load %arg4[%c116] : memref<196xf32, #tpu.memory_space<smem>>
    %1002 = vector.broadcast %1001 : f32 to vector<16x16xf32>
    %1003 = arith.mulf %1000, %1002 : vector<16x16xf32>
    %1004 = vector.extract_strided_slice %926 {offsets = [6, 0], sizes = [16, 16], strides = [1, 1]} : vector<34x16xf32> to vector<16x16xf32>
    %c117 = arith.constant 117 : index
    %1005 = memref.load %arg4[%c117] : memref<196xf32, #tpu.memory_space<smem>>
    %1006 = vector.broadcast %1005 : f32 to vector<16x16xf32>
    %1007 = arith.mulf %1004, %1006 : vector<16x16xf32>
    %1008 = vector.extract_strided_slice %927 {offsets = [6, 0], sizes = [16, 16], strides = [1, 1]} : vector<34x16xf32> to vector<16x16xf32>
    %c118 = arith.constant 118 : index
    %1009 = memref.load %arg4[%c118] : memref<196xf32, #tpu.memory_space<smem>>
    %1010 = vector.broadcast %1009 : f32 to vector<16x16xf32>
    %1011 = arith.mulf %1008, %1010 : vector<16x16xf32>
    %1012 = vector.extract_strided_slice %921 {offsets = [9, 0], sizes = [16, 16], strides = [1, 1]} : vector<34x16xf32> to vector<16x16xf32>
    %c119 = arith.constant 119 : index
    %1013 = memref.load %arg4[%c119] : memref<196xf32, #tpu.memory_space<smem>>
    %1014 = vector.broadcast %1013 : f32 to vector<16x16xf32>
    %1015 = arith.mulf %1012, %1014 : vector<16x16xf32>
    %1016 = vector.extract_strided_slice %922 {offsets = [9, 0], sizes = [16, 16], strides = [1, 1]} : vector<34x16xf32> to vector<16x16xf32>
    %c120 = arith.constant 120 : index
    %1017 = memref.load %arg4[%c120] : memref<196xf32, #tpu.memory_space<smem>>
    %1018 = vector.broadcast %1017 : f32 to vector<16x16xf32>
    %1019 = arith.mulf %1016, %1018 : vector<16x16xf32>
    %1020 = vector.extract_strided_slice %923 {offsets = [9, 0], sizes = [16, 16], strides = [1, 1]} : vector<34x16xf32> to vector<16x16xf32>
    %c121 = arith.constant 121 : index
    %1021 = memref.load %arg4[%c121] : memref<196xf32, #tpu.memory_space<smem>>
    %1022 = vector.broadcast %1021 : f32 to vector<16x16xf32>
    %1023 = arith.mulf %1020, %1022 : vector<16x16xf32>
    %1024 = vector.extract_strided_slice %924 {offsets = [9, 0], sizes = [16, 16], strides = [1, 1]} : vector<34x16xf32> to vector<16x16xf32>
    %c122 = arith.constant 122 : index
    %1025 = memref.load %arg4[%c122] : memref<196xf32, #tpu.memory_space<smem>>
    %1026 = vector.broadcast %1025 : f32 to vector<16x16xf32>
    %1027 = arith.mulf %1024, %1026 : vector<16x16xf32>
    %1028 = vector.extract_strided_slice %925 {offsets = [9, 0], sizes = [16, 16], strides = [1, 1]} : vector<34x16xf32> to vector<16x16xf32>
    %c123 = arith.constant 123 : index
    %1029 = memref.load %arg4[%c123] : memref<196xf32, #tpu.memory_space<smem>>
    %1030 = vector.broadcast %1029 : f32 to vector<16x16xf32>
    %1031 = arith.mulf %1028, %1030 : vector<16x16xf32>
    %1032 = vector.extract_strided_slice %926 {offsets = [9, 0], sizes = [16, 16], strides = [1, 1]} : vector<34x16xf32> to vector<16x16xf32>
    %c124 = arith.constant 124 : index
    %1033 = memref.load %arg4[%c124] : memref<196xf32, #tpu.memory_space<smem>>
    %1034 = vector.broadcast %1033 : f32 to vector<16x16xf32>
    %1035 = arith.mulf %1032, %1034 : vector<16x16xf32>
    %1036 = vector.extract_strided_slice %927 {offsets = [9, 0], sizes = [16, 16], strides = [1, 1]} : vector<34x16xf32> to vector<16x16xf32>
    %c125 = arith.constant 125 : index
    %1037 = memref.load %arg4[%c125] : memref<196xf32, #tpu.memory_space<smem>>
    %1038 = vector.broadcast %1037 : f32 to vector<16x16xf32>
    %1039 = arith.mulf %1036, %1038 : vector<16x16xf32>
    %1040 = vector.extract_strided_slice %921 {offsets = [12, 0], sizes = [16, 16], strides = [1, 1]} : vector<34x16xf32> to vector<16x16xf32>
    %c126 = arith.constant 126 : index
    %1041 = memref.load %arg4[%c126] : memref<196xf32, #tpu.memory_space<smem>>
    %1042 = vector.broadcast %1041 : f32 to vector<16x16xf32>
    %1043 = arith.mulf %1040, %1042 : vector<16x16xf32>
    %1044 = vector.extract_strided_slice %922 {offsets = [12, 0], sizes = [16, 16], strides = [1, 1]} : vector<34x16xf32> to vector<16x16xf32>
    %c127 = arith.constant 127 : index
    %1045 = memref.load %arg4[%c127] : memref<196xf32, #tpu.memory_space<smem>>
    %1046 = vector.broadcast %1045 : f32 to vector<16x16xf32>
    %1047 = arith.mulf %1044, %1046 : vector<16x16xf32>
    %1048 = vector.extract_strided_slice %923 {offsets = [12, 0], sizes = [16, 16], strides = [1, 1]} : vector<34x16xf32> to vector<16x16xf32>
    %c128 = arith.constant 128 : index
    %1049 = memref.load %arg4[%c128] : memref<196xf32, #tpu.memory_space<smem>>
    %1050 = vector.broadcast %1049 : f32 to vector<16x16xf32>
    %1051 = arith.mulf %1048, %1050 : vector<16x16xf32>
    %1052 = vector.extract_strided_slice %924 {offsets = [12, 0], sizes = [16, 16], strides = [1, 1]} : vector<34x16xf32> to vector<16x16xf32>
    %c129 = arith.constant 129 : index
    %1053 = memref.load %arg4[%c129] : memref<196xf32, #tpu.memory_space<smem>>
    %1054 = vector.broadcast %1053 : f32 to vector<16x16xf32>
    %1055 = arith.mulf %1052, %1054 : vector<16x16xf32>
    %1056 = vector.extract_strided_slice %925 {offsets = [12, 0], sizes = [16, 16], strides = [1, 1]} : vector<34x16xf32> to vector<16x16xf32>
    %c130 = arith.constant 130 : index
    %1057 = memref.load %arg4[%c130] : memref<196xf32, #tpu.memory_space<smem>>
    %1058 = vector.broadcast %1057 : f32 to vector<16x16xf32>
    %1059 = arith.mulf %1056, %1058 : vector<16x16xf32>
    %1060 = vector.extract_strided_slice %926 {offsets = [12, 0], sizes = [16, 16], strides = [1, 1]} : vector<34x16xf32> to vector<16x16xf32>
    %c131 = arith.constant 131 : index
    %1061 = memref.load %arg4[%c131] : memref<196xf32, #tpu.memory_space<smem>>
    %1062 = vector.broadcast %1061 : f32 to vector<16x16xf32>
    %1063 = arith.mulf %1060, %1062 : vector<16x16xf32>
    %1064 = vector.extract_strided_slice %927 {offsets = [12, 0], sizes = [16, 16], strides = [1, 1]} : vector<34x16xf32> to vector<16x16xf32>
    %c132 = arith.constant 132 : index
    %1065 = memref.load %arg4[%c132] : memref<196xf32, #tpu.memory_space<smem>>
    %1066 = vector.broadcast %1065 : f32 to vector<16x16xf32>
    %1067 = arith.mulf %1064, %1066 : vector<16x16xf32>
    %1068 = vector.extract_strided_slice %921 {offsets = [15, 0], sizes = [16, 16], strides = [1, 1]} : vector<34x16xf32> to vector<16x16xf32>
    %c133 = arith.constant 133 : index
    %1069 = memref.load %arg4[%c133] : memref<196xf32, #tpu.memory_space<smem>>
    %1070 = vector.broadcast %1069 : f32 to vector<16x16xf32>
    %1071 = arith.mulf %1068, %1070 : vector<16x16xf32>
    %1072 = vector.extract_strided_slice %922 {offsets = [15, 0], sizes = [16, 16], strides = [1, 1]} : vector<34x16xf32> to vector<16x16xf32>
    %c134 = arith.constant 134 : index
    %1073 = memref.load %arg4[%c134] : memref<196xf32, #tpu.memory_space<smem>>
    %1074 = vector.broadcast %1073 : f32 to vector<16x16xf32>
    %1075 = arith.mulf %1072, %1074 : vector<16x16xf32>
    %1076 = vector.extract_strided_slice %923 {offsets = [15, 0], sizes = [16, 16], strides = [1, 1]} : vector<34x16xf32> to vector<16x16xf32>
    %c135 = arith.constant 135 : index
    %1077 = memref.load %arg4[%c135] : memref<196xf32, #tpu.memory_space<smem>>
    %1078 = vector.broadcast %1077 : f32 to vector<16x16xf32>
    %1079 = arith.mulf %1076, %1078 : vector<16x16xf32>
    %1080 = vector.extract_strided_slice %924 {offsets = [15, 0], sizes = [16, 16], strides = [1, 1]} : vector<34x16xf32> to vector<16x16xf32>
    %c136 = arith.constant 136 : index
    %1081 = memref.load %arg4[%c136] : memref<196xf32, #tpu.memory_space<smem>>
    %1082 = vector.broadcast %1081 : f32 to vector<16x16xf32>
    %1083 = arith.mulf %1080, %1082 : vector<16x16xf32>
    %1084 = vector.extract_strided_slice %925 {offsets = [15, 0], sizes = [16, 16], strides = [1, 1]} : vector<34x16xf32> to vector<16x16xf32>
    %c137 = arith.constant 137 : index
    %1085 = memref.load %arg4[%c137] : memref<196xf32, #tpu.memory_space<smem>>
    %1086 = vector.broadcast %1085 : f32 to vector<16x16xf32>
    %1087 = arith.mulf %1084, %1086 : vector<16x16xf32>
    %1088 = vector.extract_strided_slice %926 {offsets = [15, 0], sizes = [16, 16], strides = [1, 1]} : vector<34x16xf32> to vector<16x16xf32>
    %c138 = arith.constant 138 : index
    %1089 = memref.load %arg4[%c138] : memref<196xf32, #tpu.memory_space<smem>>
    %1090 = vector.broadcast %1089 : f32 to vector<16x16xf32>
    %1091 = arith.mulf %1088, %1090 : vector<16x16xf32>
    %1092 = vector.extract_strided_slice %927 {offsets = [15, 0], sizes = [16, 16], strides = [1, 1]} : vector<34x16xf32> to vector<16x16xf32>
    %c139 = arith.constant 139 : index
    %1093 = memref.load %arg4[%c139] : memref<196xf32, #tpu.memory_space<smem>>
    %1094 = vector.broadcast %1093 : f32 to vector<16x16xf32>
    %1095 = arith.mulf %1092, %1094 : vector<16x16xf32>
    %1096 = vector.extract_strided_slice %921 {offsets = [18, 0], sizes = [16, 16], strides = [1, 1]} : vector<34x16xf32> to vector<16x16xf32>
    %c140 = arith.constant 140 : index
    %1097 = memref.load %arg4[%c140] : memref<196xf32, #tpu.memory_space<smem>>
    %1098 = vector.broadcast %1097 : f32 to vector<16x16xf32>
    %1099 = arith.mulf %1096, %1098 : vector<16x16xf32>
    %1100 = vector.extract_strided_slice %922 {offsets = [18, 0], sizes = [16, 16], strides = [1, 1]} : vector<34x16xf32> to vector<16x16xf32>
    %c141 = arith.constant 141 : index
    %1101 = memref.load %arg4[%c141] : memref<196xf32, #tpu.memory_space<smem>>
    %1102 = vector.broadcast %1101 : f32 to vector<16x16xf32>
    %1103 = arith.mulf %1100, %1102 : vector<16x16xf32>
    %1104 = vector.extract_strided_slice %923 {offsets = [18, 0], sizes = [16, 16], strides = [1, 1]} : vector<34x16xf32> to vector<16x16xf32>
    %c142 = arith.constant 142 : index
    %1105 = memref.load %arg4[%c142] : memref<196xf32, #tpu.memory_space<smem>>
    %1106 = vector.broadcast %1105 : f32 to vector<16x16xf32>
    %1107 = arith.mulf %1104, %1106 : vector<16x16xf32>
    %1108 = vector.extract_strided_slice %924 {offsets = [18, 0], sizes = [16, 16], strides = [1, 1]} : vector<34x16xf32> to vector<16x16xf32>
    %c143 = arith.constant 143 : index
    %1109 = memref.load %arg4[%c143] : memref<196xf32, #tpu.memory_space<smem>>
    %1110 = vector.broadcast %1109 : f32 to vector<16x16xf32>
    %1111 = arith.mulf %1108, %1110 : vector<16x16xf32>
    %1112 = vector.extract_strided_slice %925 {offsets = [18, 0], sizes = [16, 16], strides = [1, 1]} : vector<34x16xf32> to vector<16x16xf32>
    %c144 = arith.constant 144 : index
    %1113 = memref.load %arg4[%c144] : memref<196xf32, #tpu.memory_space<smem>>
    %1114 = vector.broadcast %1113 : f32 to vector<16x16xf32>
    %1115 = arith.mulf %1112, %1114 : vector<16x16xf32>
    %1116 = vector.extract_strided_slice %926 {offsets = [18, 0], sizes = [16, 16], strides = [1, 1]} : vector<34x16xf32> to vector<16x16xf32>
    %c145 = arith.constant 145 : index
    %1117 = memref.load %arg4[%c145] : memref<196xf32, #tpu.memory_space<smem>>
    %1118 = vector.broadcast %1117 : f32 to vector<16x16xf32>
    %1119 = arith.mulf %1116, %1118 : vector<16x16xf32>
    %1120 = vector.extract_strided_slice %927 {offsets = [18, 0], sizes = [16, 16], strides = [1, 1]} : vector<34x16xf32> to vector<16x16xf32>
    %c146 = arith.constant 146 : index
    %1121 = memref.load %arg4[%c146] : memref<196xf32, #tpu.memory_space<smem>>
    %1122 = vector.broadcast %1121 : f32 to vector<16x16xf32>
    %1123 = arith.mulf %1120, %1122 : vector<16x16xf32>
    %1124 = arith.addf %931, %935 : vector<16x16xf32>
    %1125 = arith.addf %939, %943 : vector<16x16xf32>
    %1126 = arith.addf %947, %951 : vector<16x16xf32>
    %1127 = arith.addf %955, %959 : vector<16x16xf32>
    %1128 = arith.addf %963, %967 : vector<16x16xf32>
    %1129 = arith.addf %971, %975 : vector<16x16xf32>
    %1130 = arith.addf %979, %983 : vector<16x16xf32>
    %1131 = arith.addf %987, %991 : vector<16x16xf32>
    %1132 = arith.addf %995, %999 : vector<16x16xf32>
    %1133 = arith.addf %1003, %1007 : vector<16x16xf32>
    %1134 = arith.addf %1011, %1015 : vector<16x16xf32>
    %1135 = arith.addf %1019, %1023 : vector<16x16xf32>
    %1136 = arith.addf %1027, %1031 : vector<16x16xf32>
    %1137 = arith.addf %1035, %1039 : vector<16x16xf32>
    %1138 = arith.addf %1043, %1047 : vector<16x16xf32>
    %1139 = arith.addf %1051, %1055 : vector<16x16xf32>
    %1140 = arith.addf %1059, %1063 : vector<16x16xf32>
    %1141 = arith.addf %1067, %1071 : vector<16x16xf32>
    %1142 = arith.addf %1075, %1079 : vector<16x16xf32>
    %1143 = arith.addf %1083, %1087 : vector<16x16xf32>
    %1144 = arith.addf %1091, %1095 : vector<16x16xf32>
    %1145 = arith.addf %1099, %1103 : vector<16x16xf32>
    %1146 = arith.addf %1107, %1111 : vector<16x16xf32>
    %1147 = arith.addf %1115, %1119 : vector<16x16xf32>
    %1148 = arith.addf %1124, %1125 : vector<16x16xf32>
    %1149 = arith.addf %1126, %1127 : vector<16x16xf32>
    %1150 = arith.addf %1128, %1129 : vector<16x16xf32>
    %1151 = arith.addf %1130, %1131 : vector<16x16xf32>
    %1152 = arith.addf %1132, %1133 : vector<16x16xf32>
    %1153 = arith.addf %1134, %1135 : vector<16x16xf32>
    %1154 = arith.addf %1136, %1137 : vector<16x16xf32>
    %1155 = arith.addf %1138, %1139 : vector<16x16xf32>
    %1156 = arith.addf %1140, %1141 : vector<16x16xf32>
    %1157 = arith.addf %1142, %1143 : vector<16x16xf32>
    %1158 = arith.addf %1144, %1145 : vector<16x16xf32>
    %1159 = arith.addf %1146, %1147 : vector<16x16xf32>
    %1160 = arith.addf %1148, %1149 : vector<16x16xf32>
    %1161 = arith.addf %1150, %1151 : vector<16x16xf32>
    %1162 = arith.addf %1152, %1153 : vector<16x16xf32>
    %1163 = arith.addf %1154, %1155 : vector<16x16xf32>
    %1164 = arith.addf %1156, %1157 : vector<16x16xf32>
    %1165 = arith.addf %1158, %1159 : vector<16x16xf32>
    %1166 = arith.addf %1160, %1161 : vector<16x16xf32>
    %1167 = arith.addf %1162, %1163 : vector<16x16xf32>
    %1168 = arith.addf %1164, %1165 : vector<16x16xf32>
    %1169 = arith.addf %1166, %1167 : vector<16x16xf32>
    %1170 = arith.addf %1168, %1123 : vector<16x16xf32>
    %1171 = arith.addf %1169, %1170 : vector<16x16xf32>
    %c2_148 = arith.constant 2 : index
    %1172 = memref.load %arg5[%c2_148] : memref<4xf32, #tpu.memory_space<smem>>
    %1173 = vector.broadcast %1172 : f32 to vector<16x16xf32>
    %1174 = arith.addf %1171, %1173 : vector<16x16xf32>
    %c2_149 = arith.constant 2 : index
    %c0_150 = arith.constant 0 : index
    %c0_151 = arith.constant 0 : index
    %1175 = vector.load %arg10[%c2_149, %c0_150, %c0_151] : memref<4x16x16xf32, #tpu.memory_space<vmem>>, vector<1x16x16xf32>
    %1176 = vector.shape_cast %1175 : vector<1x16x16xf32> to vector<16x16xf32>
    %1177 = vector.shape_cast %1174 : vector<16x16xf32> to vector<1x16x16xf32>
    tpu.vector_store %arg10[%c2_149, %c0_150, %c0_151], %1177 {strides = array<i32>} : memref<4x16x16xf32, #tpu.memory_space<vmem>>, vector<1x16x16xf32>,
    %c0_152 = arith.constant 0 : index
    %c3_153 = arith.constant 3 : index
    %c0_154 = arith.constant 0 : index
    %c0_155 = arith.constant 0 : index
    %1178 = vector.load %arg1[%c0_152, %c3_153, %c0_154, %c0_155] : memref<1x4x20x20xf32, #tpu.memory_space<vmem>>, vector<1x1x20x20xf32>
    %1179 = vector.shape_cast %1178 : vector<1x1x20x20xf32> to vector<20x20xf32>
    %1180 = vector.extract_strided_slice %1179 {offsets = [0, 0], sizes = [20, 16], strides = [1, 1]} : vector<20x20xf32> to vector<20x16xf32>
    %1181 = vector.extract_strided_slice %1179 {offsets = [0, 1], sizes = [20, 16], strides = [1, 1]} : vector<20x20xf32> to vector<20x16xf32>
    %1182 = vector.extract_strided_slice %1179 {offsets = [0, 2], sizes = [20, 16], strides = [1, 1]} : vector<20x20xf32> to vector<20x16xf32>
    %1183 = vector.extract_strided_slice %1179 {offsets = [0, 3], sizes = [20, 16], strides = [1, 1]} : vector<20x20xf32> to vector<20x16xf32>
    %1184 = vector.extract_strided_slice %1179 {offsets = [0, 4], sizes = [20, 16], strides = [1, 1]} : vector<20x20xf32> to vector<20x16xf32>
    %1185 = vector.extract_strided_slice %1180 {offsets = [0, 0], sizes = [16, 16], strides = [1, 1]} : vector<20x16xf32> to vector<16x16xf32>
    %c75_156 = arith.constant 75 : index
    %1186 = memref.load %arg2[%c75_156] : memref<100xf32, #tpu.memory_space<smem>>
    %1187 = vector.broadcast %1186 : f32 to vector<16x16xf32>
    %1188 = arith.mulf %1185, %1187 : vector<16x16xf32>
    %1189 = vector.extract_strided_slice %1181 {offsets = [0, 0], sizes = [16, 16], strides = [1, 1]} : vector<20x16xf32> to vector<16x16xf32>
    %c76_157 = arith.constant 76 : index
    %1190 = memref.load %arg2[%c76_157] : memref<100xf32, #tpu.memory_space<smem>>
    %1191 = vector.broadcast %1190 : f32 to vector<16x16xf32>
    %1192 = arith.mulf %1189, %1191 : vector<16x16xf32>
    %1193 = vector.extract_strided_slice %1182 {offsets = [0, 0], sizes = [16, 16], strides = [1, 1]} : vector<20x16xf32> to vector<16x16xf32>
    %c77_158 = arith.constant 77 : index
    %1194 = memref.load %arg2[%c77_158] : memref<100xf32, #tpu.memory_space<smem>>
    %1195 = vector.broadcast %1194 : f32 to vector<16x16xf32>
    %1196 = arith.mulf %1193, %1195 : vector<16x16xf32>
    %1197 = vector.extract_strided_slice %1183 {offsets = [0, 0], sizes = [16, 16], strides = [1, 1]} : vector<20x16xf32> to vector<16x16xf32>
    %c78_159 = arith.constant 78 : index
    %1198 = memref.load %arg2[%c78_159] : memref<100xf32, #tpu.memory_space<smem>>
    %1199 = vector.broadcast %1198 : f32 to vector<16x16xf32>
    %1200 = arith.mulf %1197, %1199 : vector<16x16xf32>
    %1201 = vector.extract_strided_slice %1184 {offsets = [0, 0], sizes = [16, 16], strides = [1, 1]} : vector<20x16xf32> to vector<16x16xf32>
    %c79_160 = arith.constant 79 : index
    %1202 = memref.load %arg2[%c79_160] : memref<100xf32, #tpu.memory_space<smem>>
    %1203 = vector.broadcast %1202 : f32 to vector<16x16xf32>
    %1204 = arith.mulf %1201, %1203 : vector<16x16xf32>
    %1205 = vector.extract_strided_slice %1180 {offsets = [1, 0], sizes = [16, 16], strides = [1, 1]} : vector<20x16xf32> to vector<16x16xf32>
    %c80_161 = arith.constant 80 : index
    %1206 = memref.load %arg2[%c80_161] : memref<100xf32, #tpu.memory_space<smem>>
    %1207 = vector.broadcast %1206 : f32 to vector<16x16xf32>
    %1208 = arith.mulf %1205, %1207 : vector<16x16xf32>
    %1209 = vector.extract_strided_slice %1181 {offsets = [1, 0], sizes = [16, 16], strides = [1, 1]} : vector<20x16xf32> to vector<16x16xf32>
    %c81_162 = arith.constant 81 : index
    %1210 = memref.load %arg2[%c81_162] : memref<100xf32, #tpu.memory_space<smem>>
    %1211 = vector.broadcast %1210 : f32 to vector<16x16xf32>
    %1212 = arith.mulf %1209, %1211 : vector<16x16xf32>
    %1213 = vector.extract_strided_slice %1182 {offsets = [1, 0], sizes = [16, 16], strides = [1, 1]} : vector<20x16xf32> to vector<16x16xf32>
    %c82_163 = arith.constant 82 : index
    %1214 = memref.load %arg2[%c82_163] : memref<100xf32, #tpu.memory_space<smem>>
    %1215 = vector.broadcast %1214 : f32 to vector<16x16xf32>
    %1216 = arith.mulf %1213, %1215 : vector<16x16xf32>
    %1217 = vector.extract_strided_slice %1183 {offsets = [1, 0], sizes = [16, 16], strides = [1, 1]} : vector<20x16xf32> to vector<16x16xf32>
    %c83_164 = arith.constant 83 : index
    %1218 = memref.load %arg2[%c83_164] : memref<100xf32, #tpu.memory_space<smem>>
    %1219 = vector.broadcast %1218 : f32 to vector<16x16xf32>
    %1220 = arith.mulf %1217, %1219 : vector<16x16xf32>
    %1221 = vector.extract_strided_slice %1184 {offsets = [1, 0], sizes = [16, 16], strides = [1, 1]} : vector<20x16xf32> to vector<16x16xf32>
    %c84_165 = arith.constant 84 : index
    %1222 = memref.load %arg2[%c84_165] : memref<100xf32, #tpu.memory_space<smem>>
    %1223 = vector.broadcast %1222 : f32 to vector<16x16xf32>
    %1224 = arith.mulf %1221, %1223 : vector<16x16xf32>
    %1225 = vector.extract_strided_slice %1180 {offsets = [2, 0], sizes = [16, 16], strides = [1, 1]} : vector<20x16xf32> to vector<16x16xf32>
    %c85_166 = arith.constant 85 : index
    %1226 = memref.load %arg2[%c85_166] : memref<100xf32, #tpu.memory_space<smem>>
    %1227 = vector.broadcast %1226 : f32 to vector<16x16xf32>
    %1228 = arith.mulf %1225, %1227 : vector<16x16xf32>
    %1229 = vector.extract_strided_slice %1181 {offsets = [2, 0], sizes = [16, 16], strides = [1, 1]} : vector<20x16xf32> to vector<16x16xf32>
    %c86_167 = arith.constant 86 : index
    %1230 = memref.load %arg2[%c86_167] : memref<100xf32, #tpu.memory_space<smem>>
    %1231 = vector.broadcast %1230 : f32 to vector<16x16xf32>
    %1232 = arith.mulf %1229, %1231 : vector<16x16xf32>
    %1233 = vector.extract_strided_slice %1182 {offsets = [2, 0], sizes = [16, 16], strides = [1, 1]} : vector<20x16xf32> to vector<16x16xf32>
    %c87_168 = arith.constant 87 : index
    %1234 = memref.load %arg2[%c87_168] : memref<100xf32, #tpu.memory_space<smem>>
    %1235 = vector.broadcast %1234 : f32 to vector<16x16xf32>
    %1236 = arith.mulf %1233, %1235 : vector<16x16xf32>
    %1237 = vector.extract_strided_slice %1183 {offsets = [2, 0], sizes = [16, 16], strides = [1, 1]} : vector<20x16xf32> to vector<16x16xf32>
    %c88_169 = arith.constant 88 : index
    %1238 = memref.load %arg2[%c88_169] : memref<100xf32, #tpu.memory_space<smem>>
    %1239 = vector.broadcast %1238 : f32 to vector<16x16xf32>
    %1240 = arith.mulf %1237, %1239 : vector<16x16xf32>
    %1241 = vector.extract_strided_slice %1184 {offsets = [2, 0], sizes = [16, 16], strides = [1, 1]} : vector<20x16xf32> to vector<16x16xf32>
    %c89_170 = arith.constant 89 : index
    %1242 = memref.load %arg2[%c89_170] : memref<100xf32, #tpu.memory_space<smem>>
    %1243 = vector.broadcast %1242 : f32 to vector<16x16xf32>
    %1244 = arith.mulf %1241, %1243 : vector<16x16xf32>
    %1245 = vector.extract_strided_slice %1180 {offsets = [3, 0], sizes = [16, 16], strides = [1, 1]} : vector<20x16xf32> to vector<16x16xf32>
    %c90_171 = arith.constant 90 : index
    %1246 = memref.load %arg2[%c90_171] : memref<100xf32, #tpu.memory_space<smem>>
    %1247 = vector.broadcast %1246 : f32 to vector<16x16xf32>
    %1248 = arith.mulf %1245, %1247 : vector<16x16xf32>
    %1249 = vector.extract_strided_slice %1181 {offsets = [3, 0], sizes = [16, 16], strides = [1, 1]} : vector<20x16xf32> to vector<16x16xf32>
    %c91_172 = arith.constant 91 : index
    %1250 = memref.load %arg2[%c91_172] : memref<100xf32, #tpu.memory_space<smem>>
    %1251 = vector.broadcast %1250 : f32 to vector<16x16xf32>
    %1252 = arith.mulf %1249, %1251 : vector<16x16xf32>
    %1253 = vector.extract_strided_slice %1182 {offsets = [3, 0], sizes = [16, 16], strides = [1, 1]} : vector<20x16xf32> to vector<16x16xf32>
    %c92_173 = arith.constant 92 : index
    %1254 = memref.load %arg2[%c92_173] : memref<100xf32, #tpu.memory_space<smem>>
    %1255 = vector.broadcast %1254 : f32 to vector<16x16xf32>
    %1256 = arith.mulf %1253, %1255 : vector<16x16xf32>
    %1257 = vector.extract_strided_slice %1183 {offsets = [3, 0], sizes = [16, 16], strides = [1, 1]} : vector<20x16xf32> to vector<16x16xf32>
    %c93_174 = arith.constant 93 : index
    %1258 = memref.load %arg2[%c93_174] : memref<100xf32, #tpu.memory_space<smem>>
    %1259 = vector.broadcast %1258 : f32 to vector<16x16xf32>
    %1260 = arith.mulf %1257, %1259 : vector<16x16xf32>
    %1261 = vector.extract_strided_slice %1184 {offsets = [3, 0], sizes = [16, 16], strides = [1, 1]} : vector<20x16xf32> to vector<16x16xf32>
    %c94_175 = arith.constant 94 : index
    %1262 = memref.load %arg2[%c94_175] : memref<100xf32, #tpu.memory_space<smem>>
    %1263 = vector.broadcast %1262 : f32 to vector<16x16xf32>
    %1264 = arith.mulf %1261, %1263 : vector<16x16xf32>
    %1265 = vector.extract_strided_slice %1180 {offsets = [4, 0], sizes = [16, 16], strides = [1, 1]} : vector<20x16xf32> to vector<16x16xf32>
    %c95_176 = arith.constant 95 : index
    %1266 = memref.load %arg2[%c95_176] : memref<100xf32, #tpu.memory_space<smem>>
    %1267 = vector.broadcast %1266 : f32 to vector<16x16xf32>
    %1268 = arith.mulf %1265, %1267 : vector<16x16xf32>
    %1269 = vector.extract_strided_slice %1181 {offsets = [4, 0], sizes = [16, 16], strides = [1, 1]} : vector<20x16xf32> to vector<16x16xf32>
    %c96_177 = arith.constant 96 : index
    %1270 = memref.load %arg2[%c96_177] : memref<100xf32, #tpu.memory_space<smem>>
    %1271 = vector.broadcast %1270 : f32 to vector<16x16xf32>
    %1272 = arith.mulf %1269, %1271 : vector<16x16xf32>
    %1273 = vector.extract_strided_slice %1182 {offsets = [4, 0], sizes = [16, 16], strides = [1, 1]} : vector<20x16xf32> to vector<16x16xf32>
    %c97_178 = arith.constant 97 : index
    %1274 = memref.load %arg2[%c97_178] : memref<100xf32, #tpu.memory_space<smem>>
    %1275 = vector.broadcast %1274 : f32 to vector<16x16xf32>
    %1276 = arith.mulf %1273, %1275 : vector<16x16xf32>
    %1277 = vector.extract_strided_slice %1183 {offsets = [4, 0], sizes = [16, 16], strides = [1, 1]} : vector<20x16xf32> to vector<16x16xf32>
    %c98_179 = arith.constant 98 : index
    %1278 = memref.load %arg2[%c98_179] : memref<100xf32, #tpu.memory_space<smem>>
    %1279 = vector.broadcast %1278 : f32 to vector<16x16xf32>
    %1280 = arith.mulf %1277, %1279 : vector<16x16xf32>
    %1281 = vector.extract_strided_slice %1184 {offsets = [4, 0], sizes = [16, 16], strides = [1, 1]} : vector<20x16xf32> to vector<16x16xf32>
    %c99_180 = arith.constant 99 : index
    %1282 = memref.load %arg2[%c99_180] : memref<100xf32, #tpu.memory_space<smem>>
    %1283 = vector.broadcast %1282 : f32 to vector<16x16xf32>
    %1284 = arith.mulf %1281, %1283 : vector<16x16xf32>
    %1285 = arith.addf %1188, %1192 : vector<16x16xf32>
    %1286 = arith.addf %1196, %1200 : vector<16x16xf32>
    %1287 = arith.addf %1204, %1208 : vector<16x16xf32>
    %1288 = arith.addf %1212, %1216 : vector<16x16xf32>
    %1289 = arith.addf %1220, %1224 : vector<16x16xf32>
    %1290 = arith.addf %1228, %1232 : vector<16x16xf32>
    %1291 = arith.addf %1236, %1240 : vector<16x16xf32>
    %1292 = arith.addf %1244, %1248 : vector<16x16xf32>
    %1293 = arith.addf %1252, %1256 : vector<16x16xf32>
    %1294 = arith.addf %1260, %1264 : vector<16x16xf32>
    %1295 = arith.addf %1268, %1272 : vector<16x16xf32>
    %1296 = arith.addf %1276, %1280 : vector<16x16xf32>
    %1297 = arith.addf %1285, %1286 : vector<16x16xf32>
    %1298 = arith.addf %1287, %1288 : vector<16x16xf32>
    %1299 = arith.addf %1289, %1290 : vector<16x16xf32>
    %1300 = arith.addf %1291, %1292 : vector<16x16xf32>
    %1301 = arith.addf %1293, %1294 : vector<16x16xf32>
    %1302 = arith.addf %1295, %1296 : vector<16x16xf32>
    %1303 = arith.addf %1297, %1298 : vector<16x16xf32>
    %1304 = arith.addf %1299, %1300 : vector<16x16xf32>
    %1305 = arith.addf %1301, %1302 : vector<16x16xf32>
    %1306 = arith.addf %1303, %1304 : vector<16x16xf32>
    %1307 = arith.addf %1305, %1284 : vector<16x16xf32>
    %1308 = arith.addf %1306, %1307 : vector<16x16xf32>
    %c3_181 = arith.constant 3 : index
    %1309 = memref.load %arg3[%c3_181] : memref<4xf32, #tpu.memory_space<smem>>
    %1310 = vector.broadcast %1309 : f32 to vector<16x16xf32>
    %1311 = arith.addf %1308, %1310 : vector<16x16xf32>
    %c9_182 = arith.constant 9 : index
    %c9_183 = arith.constant 9 : index
    %1312 = vector.load %arg9[%c9_182, %c9_183] : memref<34x34xf32, #tpu.memory_space<vmem>>, vector<16x16xf32>
    tpu.vector_store %arg9[%c9_182, %c9_183], %1311 {strides = array<i32>} : memref<34x34xf32, #tpu.memory_space<vmem>>, vector<16x16xf32>,
    %c0_184 = arith.constant 0 : index
    %c0_185 = arith.constant 0 : index
    %1313 = vector.load %arg9[%c0_184, %c0_185] : memref<34x34xf32, #tpu.memory_space<vmem>>, vector<34x16xf32>
    %c0_186 = arith.constant 0 : index
    %c3_187 = arith.constant 3 : index
    %1314 = vector.load %arg9[%c0_186, %c3_187] : memref<34x34xf32, #tpu.memory_space<vmem>>, vector<34x16xf32>
    %c0_188 = arith.constant 0 : index
    %c6_189 = arith.constant 6 : index
    %1315 = vector.load %arg9[%c0_188, %c6_189] : memref<34x34xf32, #tpu.memory_space<vmem>>, vector<34x16xf32>
    %c0_190 = arith.constant 0 : index
    %c9_191 = arith.constant 9 : index
    %1316 = vector.load %arg9[%c0_190, %c9_191] : memref<34x34xf32, #tpu.memory_space<vmem>>, vector<34x16xf32>
    %c0_192 = arith.constant 0 : index
    %c12_193 = arith.constant 12 : index
    %1317 = vector.load %arg9[%c0_192, %c12_193] : memref<34x34xf32, #tpu.memory_space<vmem>>, vector<34x16xf32>
    %c0_194 = arith.constant 0 : index
    %c15_195 = arith.constant 15 : index
    %1318 = vector.load %arg9[%c0_194, %c15_195] : memref<34x34xf32, #tpu.memory_space<vmem>>, vector<34x16xf32>
    %c0_196 = arith.constant 0 : index
    %c18_197 = arith.constant 18 : index
    %1319 = vector.load %arg9[%c0_196, %c18_197] : memref<34x34xf32, #tpu.memory_space<vmem>>, vector<34x16xf32>
    %1320 = vector.extract_strided_slice %1313 {offsets = [0, 0], sizes = [16, 16], strides = [1, 1]} : vector<34x16xf32> to vector<16x16xf32>
    %c147 = arith.constant 147 : index
    %1321 = memref.load %arg4[%c147] : memref<196xf32, #tpu.memory_space<smem>>
    %1322 = vector.broadcast %1321 : f32 to vector<16x16xf32>
    %1323 = arith.mulf %1320, %1322 : vector<16x16xf32>
    %1324 = vector.extract_strided_slice %1314 {offsets = [0, 0], sizes = [16, 16], strides = [1, 1]} : vector<34x16xf32> to vector<16x16xf32>
    %c148 = arith.constant 148 : index
    %1325 = memref.load %arg4[%c148] : memref<196xf32, #tpu.memory_space<smem>>
    %1326 = vector.broadcast %1325 : f32 to vector<16x16xf32>
    %1327 = arith.mulf %1324, %1326 : vector<16x16xf32>
    %1328 = vector.extract_strided_slice %1315 {offsets = [0, 0], sizes = [16, 16], strides = [1, 1]} : vector<34x16xf32> to vector<16x16xf32>
    %c149 = arith.constant 149 : index
    %1329 = memref.load %arg4[%c149] : memref<196xf32, #tpu.memory_space<smem>>
    %1330 = vector.broadcast %1329 : f32 to vector<16x16xf32>
    %1331 = arith.mulf %1328, %1330 : vector<16x16xf32>
    %1332 = vector.extract_strided_slice %1316 {offsets = [0, 0], sizes = [16, 16], strides = [1, 1]} : vector<34x16xf32> to vector<16x16xf32>
    %c150 = arith.constant 150 : index
    %1333 = memref.load %arg4[%c150] : memref<196xf32, #tpu.memory_space<smem>>
    %1334 = vector.broadcast %1333 : f32 to vector<16x16xf32>
    %1335 = arith.mulf %1332, %1334 : vector<16x16xf32>
    %1336 = vector.extract_strided_slice %1317 {offsets = [0, 0], sizes = [16, 16], strides = [1, 1]} : vector<34x16xf32> to vector<16x16xf32>
    %c151 = arith.constant 151 : index
    %1337 = memref.load %arg4[%c151] : memref<196xf32, #tpu.memory_space<smem>>
    %1338 = vector.broadcast %1337 : f32 to vector<16x16xf32>
    %1339 = arith.mulf %1336, %1338 : vector<16x16xf32>
    %1340 = vector.extract_strided_slice %1318 {offsets = [0, 0], sizes = [16, 16], strides = [1, 1]} : vector<34x16xf32> to vector<16x16xf32>
    %c152 = arith.constant 152 : index
    %1341 = memref.load %arg4[%c152] : memref<196xf32, #tpu.memory_space<smem>>
    %1342 = vector.broadcast %1341 : f32 to vector<16x16xf32>
    %1343 = arith.mulf %1340, %1342 : vector<16x16xf32>
    %1344 = vector.extract_strided_slice %1319 {offsets = [0, 0], sizes = [16, 16], strides = [1, 1]} : vector<34x16xf32> to vector<16x16xf32>
    %c153 = arith.constant 153 : index
    %1345 = memref.load %arg4[%c153] : memref<196xf32, #tpu.memory_space<smem>>
    %1346 = vector.broadcast %1345 : f32 to vector<16x16xf32>
    %1347 = arith.mulf %1344, %1346 : vector<16x16xf32>
    %1348 = vector.extract_strided_slice %1313 {offsets = [3, 0], sizes = [16, 16], strides = [1, 1]} : vector<34x16xf32> to vector<16x16xf32>
    %c154 = arith.constant 154 : index
    %1349 = memref.load %arg4[%c154] : memref<196xf32, #tpu.memory_space<smem>>
    %1350 = vector.broadcast %1349 : f32 to vector<16x16xf32>
    %1351 = arith.mulf %1348, %1350 : vector<16x16xf32>
    %1352 = vector.extract_strided_slice %1314 {offsets = [3, 0], sizes = [16, 16], strides = [1, 1]} : vector<34x16xf32> to vector<16x16xf32>
    %c155 = arith.constant 155 : index
    %1353 = memref.load %arg4[%c155] : memref<196xf32, #tpu.memory_space<smem>>
    %1354 = vector.broadcast %1353 : f32 to vector<16x16xf32>
    %1355 = arith.mulf %1352, %1354 : vector<16x16xf32>
    %1356 = vector.extract_strided_slice %1315 {offsets = [3, 0], sizes = [16, 16], strides = [1, 1]} : vector<34x16xf32> to vector<16x16xf32>
    %c156 = arith.constant 156 : index
    %1357 = memref.load %arg4[%c156] : memref<196xf32, #tpu.memory_space<smem>>
    %1358 = vector.broadcast %1357 : f32 to vector<16x16xf32>
    %1359 = arith.mulf %1356, %1358 : vector<16x16xf32>
    %1360 = vector.extract_strided_slice %1316 {offsets = [3, 0], sizes = [16, 16], strides = [1, 1]} : vector<34x16xf32> to vector<16x16xf32>
    %c157 = arith.constant 157 : index
    %1361 = memref.load %arg4[%c157] : memref<196xf32, #tpu.memory_space<smem>>
    %1362 = vector.broadcast %1361 : f32 to vector<16x16xf32>
    %1363 = arith.mulf %1360, %1362 : vector<16x16xf32>
    %1364 = vector.extract_strided_slice %1317 {offsets = [3, 0], sizes = [16, 16], strides = [1, 1]} : vector<34x16xf32> to vector<16x16xf32>
    %c158 = arith.constant 158 : index
    %1365 = memref.load %arg4[%c158] : memref<196xf32, #tpu.memory_space<smem>>
    %1366 = vector.broadcast %1365 : f32 to vector<16x16xf32>
    %1367 = arith.mulf %1364, %1366 : vector<16x16xf32>
    %1368 = vector.extract_strided_slice %1318 {offsets = [3, 0], sizes = [16, 16], strides = [1, 1]} : vector<34x16xf32> to vector<16x16xf32>
    %c159 = arith.constant 159 : index
    %1369 = memref.load %arg4[%c159] : memref<196xf32, #tpu.memory_space<smem>>
    %1370 = vector.broadcast %1369 : f32 to vector<16x16xf32>
    %1371 = arith.mulf %1368, %1370 : vector<16x16xf32>
    %1372 = vector.extract_strided_slice %1319 {offsets = [3, 0], sizes = [16, 16], strides = [1, 1]} : vector<34x16xf32> to vector<16x16xf32>
    %c160 = arith.constant 160 : index
    %1373 = memref.load %arg4[%c160] : memref<196xf32, #tpu.memory_space<smem>>
    %1374 = vector.broadcast %1373 : f32 to vector<16x16xf32>
    %1375 = arith.mulf %1372, %1374 : vector<16x16xf32>
    %1376 = vector.extract_strided_slice %1313 {offsets = [6, 0], sizes = [16, 16], strides = [1, 1]} : vector<34x16xf32> to vector<16x16xf32>
    %c161 = arith.constant 161 : index
    %1377 = memref.load %arg4[%c161] : memref<196xf32, #tpu.memory_space<smem>>
    %1378 = vector.broadcast %1377 : f32 to vector<16x16xf32>
    %1379 = arith.mulf %1376, %1378 : vector<16x16xf32>
    %1380 = vector.extract_strided_slice %1314 {offsets = [6, 0], sizes = [16, 16], strides = [1, 1]} : vector<34x16xf32> to vector<16x16xf32>
    %c162 = arith.constant 162 : index
    %1381 = memref.load %arg4[%c162] : memref<196xf32, #tpu.memory_space<smem>>
    %1382 = vector.broadcast %1381 : f32 to vector<16x16xf32>
    %1383 = arith.mulf %1380, %1382 : vector<16x16xf32>
    %1384 = vector.extract_strided_slice %1315 {offsets = [6, 0], sizes = [16, 16], strides = [1, 1]} : vector<34x16xf32> to vector<16x16xf32>
    %c163 = arith.constant 163 : index
    %1385 = memref.load %arg4[%c163] : memref<196xf32, #tpu.memory_space<smem>>
    %1386 = vector.broadcast %1385 : f32 to vector<16x16xf32>
    %1387 = arith.mulf %1384, %1386 : vector<16x16xf32>
    %1388 = vector.extract_strided_slice %1316 {offsets = [6, 0], sizes = [16, 16], strides = [1, 1]} : vector<34x16xf32> to vector<16x16xf32>
    %c164 = arith.constant 164 : index
    %1389 = memref.load %arg4[%c164] : memref<196xf32, #tpu.memory_space<smem>>
    %1390 = vector.broadcast %1389 : f32 to vector<16x16xf32>
    %1391 = arith.mulf %1388, %1390 : vector<16x16xf32>
    %1392 = vector.extract_strided_slice %1317 {offsets = [6, 0], sizes = [16, 16], strides = [1, 1]} : vector<34x16xf32> to vector<16x16xf32>
    %c165 = arith.constant 165 : index
    %1393 = memref.load %arg4[%c165] : memref<196xf32, #tpu.memory_space<smem>>
    %1394 = vector.broadcast %1393 : f32 to vector<16x16xf32>
    %1395 = arith.mulf %1392, %1394 : vector<16x16xf32>
    %1396 = vector.extract_strided_slice %1318 {offsets = [6, 0], sizes = [16, 16], strides = [1, 1]} : vector<34x16xf32> to vector<16x16xf32>
    %c166 = arith.constant 166 : index
    %1397 = memref.load %arg4[%c166] : memref<196xf32, #tpu.memory_space<smem>>
    %1398 = vector.broadcast %1397 : f32 to vector<16x16xf32>
    %1399 = arith.mulf %1396, %1398 : vector<16x16xf32>
    %1400 = vector.extract_strided_slice %1319 {offsets = [6, 0], sizes = [16, 16], strides = [1, 1]} : vector<34x16xf32> to vector<16x16xf32>
    %c167 = arith.constant 167 : index
    %1401 = memref.load %arg4[%c167] : memref<196xf32, #tpu.memory_space<smem>>
    %1402 = vector.broadcast %1401 : f32 to vector<16x16xf32>
    %1403 = arith.mulf %1400, %1402 : vector<16x16xf32>
    %1404 = vector.extract_strided_slice %1313 {offsets = [9, 0], sizes = [16, 16], strides = [1, 1]} : vector<34x16xf32> to vector<16x16xf32>
    %c168 = arith.constant 168 : index
    %1405 = memref.load %arg4[%c168] : memref<196xf32, #tpu.memory_space<smem>>
    %1406 = vector.broadcast %1405 : f32 to vector<16x16xf32>
    %1407 = arith.mulf %1404, %1406 : vector<16x16xf32>
    %1408 = vector.extract_strided_slice %1314 {offsets = [9, 0], sizes = [16, 16], strides = [1, 1]} : vector<34x16xf32> to vector<16x16xf32>
    %c169 = arith.constant 169 : index
    %1409 = memref.load %arg4[%c169] : memref<196xf32, #tpu.memory_space<smem>>
    %1410 = vector.broadcast %1409 : f32 to vector<16x16xf32>
    %1411 = arith.mulf %1408, %1410 : vector<16x16xf32>
    %1412 = vector.extract_strided_slice %1315 {offsets = [9, 0], sizes = [16, 16], strides = [1, 1]} : vector<34x16xf32> to vector<16x16xf32>
    %c170 = arith.constant 170 : index
    %1413 = memref.load %arg4[%c170] : memref<196xf32, #tpu.memory_space<smem>>
    %1414 = vector.broadcast %1413 : f32 to vector<16x16xf32>
    %1415 = arith.mulf %1412, %1414 : vector<16x16xf32>
    %1416 = vector.extract_strided_slice %1316 {offsets = [9, 0], sizes = [16, 16], strides = [1, 1]} : vector<34x16xf32> to vector<16x16xf32>
    %c171 = arith.constant 171 : index
    %1417 = memref.load %arg4[%c171] : memref<196xf32, #tpu.memory_space<smem>>
    %1418 = vector.broadcast %1417 : f32 to vector<16x16xf32>
    %1419 = arith.mulf %1416, %1418 : vector<16x16xf32>
    %1420 = vector.extract_strided_slice %1317 {offsets = [9, 0], sizes = [16, 16], strides = [1, 1]} : vector<34x16xf32> to vector<16x16xf32>
    %c172 = arith.constant 172 : index
    %1421 = memref.load %arg4[%c172] : memref<196xf32, #tpu.memory_space<smem>>
    %1422 = vector.broadcast %1421 : f32 to vector<16x16xf32>
    %1423 = arith.mulf %1420, %1422 : vector<16x16xf32>
    %1424 = vector.extract_strided_slice %1318 {offsets = [9, 0], sizes = [16, 16], strides = [1, 1]} : vector<34x16xf32> to vector<16x16xf32>
    %c173 = arith.constant 173 : index
    %1425 = memref.load %arg4[%c173] : memref<196xf32, #tpu.memory_space<smem>>
    %1426 = vector.broadcast %1425 : f32 to vector<16x16xf32>
    %1427 = arith.mulf %1424, %1426 : vector<16x16xf32>
    %1428 = vector.extract_strided_slice %1319 {offsets = [9, 0], sizes = [16, 16], strides = [1, 1]} : vector<34x16xf32> to vector<16x16xf32>
    %c174 = arith.constant 174 : index
    %1429 = memref.load %arg4[%c174] : memref<196xf32, #tpu.memory_space<smem>>
    %1430 = vector.broadcast %1429 : f32 to vector<16x16xf32>
    %1431 = arith.mulf %1428, %1430 : vector<16x16xf32>
    %1432 = vector.extract_strided_slice %1313 {offsets = [12, 0], sizes = [16, 16], strides = [1, 1]} : vector<34x16xf32> to vector<16x16xf32>
    %c175 = arith.constant 175 : index
    %1433 = memref.load %arg4[%c175] : memref<196xf32, #tpu.memory_space<smem>>
    %1434 = vector.broadcast %1433 : f32 to vector<16x16xf32>
    %1435 = arith.mulf %1432, %1434 : vector<16x16xf32>
    %1436 = vector.extract_strided_slice %1314 {offsets = [12, 0], sizes = [16, 16], strides = [1, 1]} : vector<34x16xf32> to vector<16x16xf32>
    %c176 = arith.constant 176 : index
    %1437 = memref.load %arg4[%c176] : memref<196xf32, #tpu.memory_space<smem>>
    %1438 = vector.broadcast %1437 : f32 to vector<16x16xf32>
    %1439 = arith.mulf %1436, %1438 : vector<16x16xf32>
    %1440 = vector.extract_strided_slice %1315 {offsets = [12, 0], sizes = [16, 16], strides = [1, 1]} : vector<34x16xf32> to vector<16x16xf32>
    %c177 = arith.constant 177 : index
    %1441 = memref.load %arg4[%c177] : memref<196xf32, #tpu.memory_space<smem>>
    %1442 = vector.broadcast %1441 : f32 to vector<16x16xf32>
    %1443 = arith.mulf %1440, %1442 : vector<16x16xf32>
    %1444 = vector.extract_strided_slice %1316 {offsets = [12, 0], sizes = [16, 16], strides = [1, 1]} : vector<34x16xf32> to vector<16x16xf32>
    %c178 = arith.constant 178 : index
    %1445 = memref.load %arg4[%c178] : memref<196xf32, #tpu.memory_space<smem>>
    %1446 = vector.broadcast %1445 : f32 to vector<16x16xf32>
    %1447 = arith.mulf %1444, %1446 : vector<16x16xf32>
    %1448 = vector.extract_strided_slice %1317 {offsets = [12, 0], sizes = [16, 16], strides = [1, 1]} : vector<34x16xf32> to vector<16x16xf32>
    %c179 = arith.constant 179 : index
    %1449 = memref.load %arg4[%c179] : memref<196xf32, #tpu.memory_space<smem>>
    %1450 = vector.broadcast %1449 : f32 to vector<16x16xf32>
    %1451 = arith.mulf %1448, %1450 : vector<16x16xf32>
    %1452 = vector.extract_strided_slice %1318 {offsets = [12, 0], sizes = [16, 16], strides = [1, 1]} : vector<34x16xf32> to vector<16x16xf32>
    %c180 = arith.constant 180 : index
    %1453 = memref.load %arg4[%c180] : memref<196xf32, #tpu.memory_space<smem>>
    %1454 = vector.broadcast %1453 : f32 to vector<16x16xf32>
    %1455 = arith.mulf %1452, %1454 : vector<16x16xf32>
    %1456 = vector.extract_strided_slice %1319 {offsets = [12, 0], sizes = [16, 16], strides = [1, 1]} : vector<34x16xf32> to vector<16x16xf32>
    %c181 = arith.constant 181 : index
    %1457 = memref.load %arg4[%c181] : memref<196xf32, #tpu.memory_space<smem>>
    %1458 = vector.broadcast %1457 : f32 to vector<16x16xf32>
    %1459 = arith.mulf %1456, %1458 : vector<16x16xf32>
    %1460 = vector.extract_strided_slice %1313 {offsets = [15, 0], sizes = [16, 16], strides = [1, 1]} : vector<34x16xf32> to vector<16x16xf32>
    %c182 = arith.constant 182 : index
    %1461 = memref.load %arg4[%c182] : memref<196xf32, #tpu.memory_space<smem>>
    %1462 = vector.broadcast %1461 : f32 to vector<16x16xf32>
    %1463 = arith.mulf %1460, %1462 : vector<16x16xf32>
    %1464 = vector.extract_strided_slice %1314 {offsets = [15, 0], sizes = [16, 16], strides = [1, 1]} : vector<34x16xf32> to vector<16x16xf32>
    %c183 = arith.constant 183 : index
    %1465 = memref.load %arg4[%c183] : memref<196xf32, #tpu.memory_space<smem>>
    %1466 = vector.broadcast %1465 : f32 to vector<16x16xf32>
    %1467 = arith.mulf %1464, %1466 : vector<16x16xf32>
    %1468 = vector.extract_strided_slice %1315 {offsets = [15, 0], sizes = [16, 16], strides = [1, 1]} : vector<34x16xf32> to vector<16x16xf32>
    %c184 = arith.constant 184 : index
    %1469 = memref.load %arg4[%c184] : memref<196xf32, #tpu.memory_space<smem>>
    %1470 = vector.broadcast %1469 : f32 to vector<16x16xf32>
    %1471 = arith.mulf %1468, %1470 : vector<16x16xf32>
    %1472 = vector.extract_strided_slice %1316 {offsets = [15, 0], sizes = [16, 16], strides = [1, 1]} : vector<34x16xf32> to vector<16x16xf32>
    %c185 = arith.constant 185 : index
    %1473 = memref.load %arg4[%c185] : memref<196xf32, #tpu.memory_space<smem>>
    %1474 = vector.broadcast %1473 : f32 to vector<16x16xf32>
    %1475 = arith.mulf %1472, %1474 : vector<16x16xf32>
    %1476 = vector.extract_strided_slice %1317 {offsets = [15, 0], sizes = [16, 16], strides = [1, 1]} : vector<34x16xf32> to vector<16x16xf32>
    %c186 = arith.constant 186 : index
    %1477 = memref.load %arg4[%c186] : memref<196xf32, #tpu.memory_space<smem>>
    %1478 = vector.broadcast %1477 : f32 to vector<16x16xf32>
    %1479 = arith.mulf %1476, %1478 : vector<16x16xf32>
    %1480 = vector.extract_strided_slice %1318 {offsets = [15, 0], sizes = [16, 16], strides = [1, 1]} : vector<34x16xf32> to vector<16x16xf32>
    %c187 = arith.constant 187 : index
    %1481 = memref.load %arg4[%c187] : memref<196xf32, #tpu.memory_space<smem>>
    %1482 = vector.broadcast %1481 : f32 to vector<16x16xf32>
    %1483 = arith.mulf %1480, %1482 : vector<16x16xf32>
    %1484 = vector.extract_strided_slice %1319 {offsets = [15, 0], sizes = [16, 16], strides = [1, 1]} : vector<34x16xf32> to vector<16x16xf32>
    %c188 = arith.constant 188 : index
    %1485 = memref.load %arg4[%c188] : memref<196xf32, #tpu.memory_space<smem>>
    %1486 = vector.broadcast %1485 : f32 to vector<16x16xf32>
    %1487 = arith.mulf %1484, %1486 : vector<16x16xf32>
    %1488 = vector.extract_strided_slice %1313 {offsets = [18, 0], sizes = [16, 16], strides = [1, 1]} : vector<34x16xf32> to vector<16x16xf32>
    %c189 = arith.constant 189 : index
    %1489 = memref.load %arg4[%c189] : memref<196xf32, #tpu.memory_space<smem>>
    %1490 = vector.broadcast %1489 : f32 to vector<16x16xf32>
    %1491 = arith.mulf %1488, %1490 : vector<16x16xf32>
    %1492 = vector.extract_strided_slice %1314 {offsets = [18, 0], sizes = [16, 16], strides = [1, 1]} : vector<34x16xf32> to vector<16x16xf32>
    %c190 = arith.constant 190 : index
    %1493 = memref.load %arg4[%c190] : memref<196xf32, #tpu.memory_space<smem>>
    %1494 = vector.broadcast %1493 : f32 to vector<16x16xf32>
    %1495 = arith.mulf %1492, %1494 : vector<16x16xf32>
    %1496 = vector.extract_strided_slice %1315 {offsets = [18, 0], sizes = [16, 16], strides = [1, 1]} : vector<34x16xf32> to vector<16x16xf32>
    %c191 = arith.constant 191 : index
    %1497 = memref.load %arg4[%c191] : memref<196xf32, #tpu.memory_space<smem>>
    %1498 = vector.broadcast %1497 : f32 to vector<16x16xf32>
    %1499 = arith.mulf %1496, %1498 : vector<16x16xf32>
    %1500 = vector.extract_strided_slice %1316 {offsets = [18, 0], sizes = [16, 16], strides = [1, 1]} : vector<34x16xf32> to vector<16x16xf32>
    %c192 = arith.constant 192 : index
    %1501 = memref.load %arg4[%c192] : memref<196xf32, #tpu.memory_space<smem>>
    %1502 = vector.broadcast %1501 : f32 to vector<16x16xf32>
    %1503 = arith.mulf %1500, %1502 : vector<16x16xf32>
    %1504 = vector.extract_strided_slice %1317 {offsets = [18, 0], sizes = [16, 16], strides = [1, 1]} : vector<34x16xf32> to vector<16x16xf32>
    %c193 = arith.constant 193 : index
    %1505 = memref.load %arg4[%c193] : memref<196xf32, #tpu.memory_space<smem>>
    %1506 = vector.broadcast %1505 : f32 to vector<16x16xf32>
    %1507 = arith.mulf %1504, %1506 : vector<16x16xf32>
    %1508 = vector.extract_strided_slice %1318 {offsets = [18, 0], sizes = [16, 16], strides = [1, 1]} : vector<34x16xf32> to vector<16x16xf32>
    %c194 = arith.constant 194 : index
    %1509 = memref.load %arg4[%c194] : memref<196xf32, #tpu.memory_space<smem>>
    %1510 = vector.broadcast %1509 : f32 to vector<16x16xf32>
    %1511 = arith.mulf %1508, %1510 : vector<16x16xf32>
    %1512 = vector.extract_strided_slice %1319 {offsets = [18, 0], sizes = [16, 16], strides = [1, 1]} : vector<34x16xf32> to vector<16x16xf32>
    %c195 = arith.constant 195 : index
    %1513 = memref.load %arg4[%c195] : memref<196xf32, #tpu.memory_space<smem>>
    %1514 = vector.broadcast %1513 : f32 to vector<16x16xf32>
    %1515 = arith.mulf %1512, %1514 : vector<16x16xf32>
    %1516 = arith.addf %1323, %1327 : vector<16x16xf32>
    %1517 = arith.addf %1331, %1335 : vector<16x16xf32>
    %1518 = arith.addf %1339, %1343 : vector<16x16xf32>
    %1519 = arith.addf %1347, %1351 : vector<16x16xf32>
    %1520 = arith.addf %1355, %1359 : vector<16x16xf32>
    %1521 = arith.addf %1363, %1367 : vector<16x16xf32>
    %1522 = arith.addf %1371, %1375 : vector<16x16xf32>
    %1523 = arith.addf %1379, %1383 : vector<16x16xf32>
    %1524 = arith.addf %1387, %1391 : vector<16x16xf32>
    %1525 = arith.addf %1395, %1399 : vector<16x16xf32>
    %1526 = arith.addf %1403, %1407 : vector<16x16xf32>
    %1527 = arith.addf %1411, %1415 : vector<16x16xf32>
    %1528 = arith.addf %1419, %1423 : vector<16x16xf32>
    %1529 = arith.addf %1427, %1431 : vector<16x16xf32>
    %1530 = arith.addf %1435, %1439 : vector<16x16xf32>
    %1531 = arith.addf %1443, %1447 : vector<16x16xf32>
    %1532 = arith.addf %1451, %1455 : vector<16x16xf32>
    %1533 = arith.addf %1459, %1463 : vector<16x16xf32>
    %1534 = arith.addf %1467, %1471 : vector<16x16xf32>
    %1535 = arith.addf %1475, %1479 : vector<16x16xf32>
    %1536 = arith.addf %1483, %1487 : vector<16x16xf32>
    %1537 = arith.addf %1491, %1495 : vector<16x16xf32>
    %1538 = arith.addf %1499, %1503 : vector<16x16xf32>
    %1539 = arith.addf %1507, %1511 : vector<16x16xf32>
    %1540 = arith.addf %1516, %1517 : vector<16x16xf32>
    %1541 = arith.addf %1518, %1519 : vector<16x16xf32>
    %1542 = arith.addf %1520, %1521 : vector<16x16xf32>
    %1543 = arith.addf %1522, %1523 : vector<16x16xf32>
    %1544 = arith.addf %1524, %1525 : vector<16x16xf32>
    %1545 = arith.addf %1526, %1527 : vector<16x16xf32>
    %1546 = arith.addf %1528, %1529 : vector<16x16xf32>
    %1547 = arith.addf %1530, %1531 : vector<16x16xf32>
    %1548 = arith.addf %1532, %1533 : vector<16x16xf32>
    %1549 = arith.addf %1534, %1535 : vector<16x16xf32>
    %1550 = arith.addf %1536, %1537 : vector<16x16xf32>
    %1551 = arith.addf %1538, %1539 : vector<16x16xf32>
    %1552 = arith.addf %1540, %1541 : vector<16x16xf32>
    %1553 = arith.addf %1542, %1543 : vector<16x16xf32>
    %1554 = arith.addf %1544, %1545 : vector<16x16xf32>
    %1555 = arith.addf %1546, %1547 : vector<16x16xf32>
    %1556 = arith.addf %1548, %1549 : vector<16x16xf32>
    %1557 = arith.addf %1550, %1551 : vector<16x16xf32>
    %1558 = arith.addf %1552, %1553 : vector<16x16xf32>
    %1559 = arith.addf %1554, %1555 : vector<16x16xf32>
    %1560 = arith.addf %1556, %1557 : vector<16x16xf32>
    %1561 = arith.addf %1558, %1559 : vector<16x16xf32>
    %1562 = arith.addf %1560, %1515 : vector<16x16xf32>
    %1563 = arith.addf %1561, %1562 : vector<16x16xf32>
    %c3_198 = arith.constant 3 : index
    %1564 = memref.load %arg5[%c3_198] : memref<4xf32, #tpu.memory_space<smem>>
    %1565 = vector.broadcast %1564 : f32 to vector<16x16xf32>
    %1566 = arith.addf %1563, %1565 : vector<16x16xf32>
    %c3_199 = arith.constant 3 : index
    %c0_200 = arith.constant 0 : index
    %c0_201 = arith.constant 0 : index
    %1567 = vector.load %arg10[%c3_199, %c0_200, %c0_201] : memref<4x16x16xf32, #tpu.memory_space<vmem>>, vector<1x16x16xf32>
    %1568 = vector.shape_cast %1567 : vector<1x16x16xf32> to vector<16x16xf32>
    %1569 = vector.shape_cast %1566 : vector<16x16xf32> to vector<1x16x16xf32>
    tpu.vector_store %arg10[%c3_199, %c0_200, %c0_201], %1569 {strides = array<i32>} : memref<4x16x16xf32, #tpu.memory_space<vmem>>, vector<1x16x16xf32>,
    %c0_202 = arith.constant 0 : index
    %c0_203 = arith.constant 0 : index
    %c0_204 = arith.constant 0 : index
    %1570 = vector.load %arg10[%c0_202, %c0_203, %c0_204] : memref<4x16x16xf32, #tpu.memory_space<vmem>>, vector<1x16x16xf32>
    %1571 = vector.shape_cast %1570 : vector<1x16x16xf32> to vector<16x16xf32>
    %c0_205 = arith.constant 0 : index
    %1572 = memref.load %arg6[%c0_205] : memref<16xf32, #tpu.memory_space<smem>>
    %1573 = vector.broadcast %1572 : f32 to vector<16x16xf32>
    %1574 = arith.mulf %1571, %1573 : vector<16x16xf32>
    %c1_206 = arith.constant 1 : index
    %c0_207 = arith.constant 0 : index
    %c0_208 = arith.constant 0 : index
    %1575 = vector.load %arg10[%c1_206, %c0_207, %c0_208] : memref<4x16x16xf32, #tpu.memory_space<vmem>>, vector<1x16x16xf32>
    %1576 = vector.shape_cast %1575 : vector<1x16x16xf32> to vector<16x16xf32>
    %c4_209 = arith.constant 4 : index
    %1577 = memref.load %arg6[%c4_209] : memref<16xf32, #tpu.memory_space<smem>>
    %1578 = vector.broadcast %1577 : f32 to vector<16x16xf32>
    %1579 = arith.mulf %1576, %1578 : vector<16x16xf32>
    %c2_210 = arith.constant 2 : index
    %c0_211 = arith.constant 0 : index
    %c0_212 = arith.constant 0 : index
    %1580 = vector.load %arg10[%c2_210, %c0_211, %c0_212] : memref<4x16x16xf32, #tpu.memory_space<vmem>>, vector<1x16x16xf32>
    %1581 = vector.shape_cast %1580 : vector<1x16x16xf32> to vector<16x16xf32>
    %c8_213 = arith.constant 8 : index
    %1582 = memref.load %arg6[%c8_213] : memref<16xf32, #tpu.memory_space<smem>>
    %1583 = vector.broadcast %1582 : f32 to vector<16x16xf32>
    %1584 = arith.mulf %1581, %1583 : vector<16x16xf32>
    %c3_214 = arith.constant 3 : index
    %c0_215 = arith.constant 0 : index
    %c0_216 = arith.constant 0 : index
    %1585 = vector.load %arg10[%c3_214, %c0_215, %c0_216] : memref<4x16x16xf32, #tpu.memory_space<vmem>>, vector<1x16x16xf32>
    %1586 = vector.shape_cast %1585 : vector<1x16x16xf32> to vector<16x16xf32>
    %c12_217 = arith.constant 12 : index
    %1587 = memref.load %arg6[%c12_217] : memref<16xf32, #tpu.memory_space<smem>>
    %1588 = vector.broadcast %1587 : f32 to vector<16x16xf32>
    %1589 = arith.mulf %1586, %1588 : vector<16x16xf32>
    %1590 = arith.addf %1574, %1579 : vector<16x16xf32>
    %1591 = arith.addf %1584, %1589 : vector<16x16xf32>
    %1592 = arith.addf %1590, %1591 : vector<16x16xf32>
    %c0_218 = arith.constant 0 : index
    %1593 = memref.load %arg7[%c0_218] : memref<4xf32, #tpu.memory_space<smem>>
    %1594 = vector.broadcast %1593 : f32 to vector<16x16xf32>
    %1595 = arith.addf %1592, %1594 : vector<16x16xf32>
    %c0_219 = arith.constant 0 : index
    %c0_220 = arith.constant 0 : index
    %c2_221 = arith.constant 2 : index
    %c2_222 = arith.constant 2 : index
    %1596 = vector.load %arg1[%c0_219, %c0_220, %c2_221, %c2_222] : memref<1x4x20x20xf32, #tpu.memory_space<vmem>>, vector<1x1x16x16xf32>
    %1597 = vector.shape_cast %1596 : vector<1x1x16x16xf32> to vector<16x16xf32>
    %1598 = arith.mulf %1595, %1597 : vector<16x16xf32>
    %c0_223 = arith.constant 0 : index
    %c0_224 = arith.constant 0 : index
    %c0_225 = arith.constant 0 : index
    %c0_226 = arith.constant 0 : index
    %1599 = vector.load %arg8[%c0_223, %c0_224, %c0_225, %c0_226] : memref<1x4x16x16xf32, #tpu.memory_space<vmem>>, vector<1x1x16x16xf32>
    %1600 = vector.shape_cast %1599 : vector<1x1x16x16xf32> to vector<16x16xf32>
    %1601 = vector.shape_cast %1598 : vector<16x16xf32> to vector<1x1x16x16xf32>
    tpu.vector_store %arg8[%c0_223, %c0_224, %c0_225, %c0_226], %1601 {strides = array<i32>} : memref<1x4x16x16xf32, #tpu.memory_space<vmem>>, vector<1x1x16x16xf32>,
    %c0_227 = arith.constant 0 : index
    %c0_228 = arith.constant 0 : index
    %c0_229 = arith.constant 0 : index
    %1602 = vector.load %arg10[%c0_227, %c0_228, %c0_229] : memref<4x16x16xf32, #tpu.memory_space<vmem>>, vector<1x16x16xf32>
    %1603 = vector.shape_cast %1602 : vector<1x16x16xf32> to vector<16x16xf32>
    %c1_230 = arith.constant 1 : index
    %1604 = memref.load %arg6[%c1_230] : memref<16xf32, #tpu.memory_space<smem>>
    %1605 = vector.broadcast %1604 : f32 to vector<16x16xf32>
    %1606 = arith.mulf %1603, %1605 : vector<16x16xf32>
    %c1_231 = arith.constant 1 : index
    %c0_232 = arith.constant 0 : index
    %c0_233 = arith.constant 0 : index
    %1607 = vector.load %arg10[%c1_231, %c0_232, %c0_233] : memref<4x16x16xf32, #tpu.memory_space<vmem>>, vector<1x16x16xf32>
    %1608 = vector.shape_cast %1607 : vector<1x16x16xf32> to vector<16x16xf32>
    %c5_234 = arith.constant 5 : index
    %1609 = memref.load %arg6[%c5_234] : memref<16xf32, #tpu.memory_space<smem>>
    %1610 = vector.broadcast %1609 : f32 to vector<16x16xf32>
    %1611 = arith.mulf %1608, %1610 : vector<16x16xf32>
    %c2_235 = arith.constant 2 : index
    %c0_236 = arith.constant 0 : index
    %c0_237 = arith.constant 0 : index
    %1612 = vector.load %arg10[%c2_235, %c0_236, %c0_237] : memref<4x16x16xf32, #tpu.memory_space<vmem>>, vector<1x16x16xf32>
    %1613 = vector.shape_cast %1612 : vector<1x16x16xf32> to vector<16x16xf32>
    %c9_238 = arith.constant 9 : index
    %1614 = memref.load %arg6[%c9_238] : memref<16xf32, #tpu.memory_space<smem>>
    %1615 = vector.broadcast %1614 : f32 to vector<16x16xf32>
    %1616 = arith.mulf %1613, %1615 : vector<16x16xf32>
    %c3_239 = arith.constant 3 : index
    %c0_240 = arith.constant 0 : index
    %c0_241 = arith.constant 0 : index
    %1617 = vector.load %arg10[%c3_239, %c0_240, %c0_241] : memref<4x16x16xf32, #tpu.memory_space<vmem>>, vector<1x16x16xf32>
    %1618 = vector.shape_cast %1617 : vector<1x16x16xf32> to vector<16x16xf32>
    %c13_242 = arith.constant 13 : index
    %1619 = memref.load %arg6[%c13_242] : memref<16xf32, #tpu.memory_space<smem>>
    %1620 = vector.broadcast %1619 : f32 to vector<16x16xf32>
    %1621 = arith.mulf %1618, %1620 : vector<16x16xf32>
    %1622 = arith.addf %1606, %1611 : vector<16x16xf32>
    %1623 = arith.addf %1616, %1621 : vector<16x16xf32>
    %1624 = arith.addf %1622, %1623 : vector<16x16xf32>
    %c1_243 = arith.constant 1 : index
    %1625 = memref.load %arg7[%c1_243] : memref<4xf32, #tpu.memory_space<smem>>
    %1626 = vector.broadcast %1625 : f32 to vector<16x16xf32>
    %1627 = arith.addf %1624, %1626 : vector<16x16xf32>
    %c0_244 = arith.constant 0 : index
    %c1_245 = arith.constant 1 : index
    %c2_246 = arith.constant 2 : index
    %c2_247 = arith.constant 2 : index
    %1628 = vector.load %arg1[%c0_244, %c1_245, %c2_246, %c2_247] : memref<1x4x20x20xf32, #tpu.memory_space<vmem>>, vector<1x1x16x16xf32>
    %1629 = vector.shape_cast %1628 : vector<1x1x16x16xf32> to vector<16x16xf32>
    %1630 = arith.mulf %1627, %1629 : vector<16x16xf32>
    %c0_248 = arith.constant 0 : index
    %c1_249 = arith.constant 1 : index
    %c0_250 = arith.constant 0 : index
    %c0_251 = arith.constant 0 : index
    %1631 = vector.load %arg8[%c0_248, %c1_249, %c0_250, %c0_251] : memref<1x4x16x16xf32, #tpu.memory_space<vmem>>, vector<1x1x16x16xf32>
    %1632 = vector.shape_cast %1631 : vector<1x1x16x16xf32> to vector<16x16xf32>
    %1633 = vector.shape_cast %1630 : vector<16x16xf32> to vector<1x1x16x16xf32>
    tpu.vector_store %arg8[%c0_248, %c1_249, %c0_250, %c0_251], %1633 {strides = array<i32>} : memref<1x4x16x16xf32, #tpu.memory_space<vmem>>, vector<1x1x16x16xf32>,
    %c0_252 = arith.constant 0 : index
    %c0_253 = arith.constant 0 : index
    %c0_254 = arith.constant 0 : index
    %1634 = vector.load %arg10[%c0_252, %c0_253, %c0_254] : memref<4x16x16xf32, #tpu.memory_space<vmem>>, vector<1x16x16xf32>
    %1635 = vector.shape_cast %1634 : vector<1x16x16xf32> to vector<16x16xf32>
    %c2_255 = arith.constant 2 : index
    %1636 = memref.load %arg6[%c2_255] : memref<16xf32, #tpu.memory_space<smem>>
    %1637 = vector.broadcast %1636 : f32 to vector<16x16xf32>
    %1638 = arith.mulf %1635, %1637 : vector<16x16xf32>
    %c1_256 = arith.constant 1 : index
    %c0_257 = arith.constant 0 : index
    %c0_258 = arith.constant 0 : index
    %1639 = vector.load %arg10[%c1_256, %c0_257, %c0_258] : memref<4x16x16xf32, #tpu.memory_space<vmem>>, vector<1x16x16xf32>
    %1640 = vector.shape_cast %1639 : vector<1x16x16xf32> to vector<16x16xf32>
    %c6_259 = arith.constant 6 : index
    %1641 = memref.load %arg6[%c6_259] : memref<16xf32, #tpu.memory_space<smem>>
    %1642 = vector.broadcast %1641 : f32 to vector<16x16xf32>
    %1643 = arith.mulf %1640, %1642 : vector<16x16xf32>
    %c2_260 = arith.constant 2 : index
    %c0_261 = arith.constant 0 : index
    %c0_262 = arith.constant 0 : index
    %1644 = vector.load %arg10[%c2_260, %c0_261, %c0_262] : memref<4x16x16xf32, #tpu.memory_space<vmem>>, vector<1x16x16xf32>
    %1645 = vector.shape_cast %1644 : vector<1x16x16xf32> to vector<16x16xf32>
    %c10_263 = arith.constant 10 : index
    %1646 = memref.load %arg6[%c10_263] : memref<16xf32, #tpu.memory_space<smem>>
    %1647 = vector.broadcast %1646 : f32 to vector<16x16xf32>
    %1648 = arith.mulf %1645, %1647 : vector<16x16xf32>
    %c3_264 = arith.constant 3 : index
    %c0_265 = arith.constant 0 : index
    %c0_266 = arith.constant 0 : index
    %1649 = vector.load %arg10[%c3_264, %c0_265, %c0_266] : memref<4x16x16xf32, #tpu.memory_space<vmem>>, vector<1x16x16xf32>
    %1650 = vector.shape_cast %1649 : vector<1x16x16xf32> to vector<16x16xf32>
    %c14_267 = arith.constant 14 : index
    %1651 = memref.load %arg6[%c14_267] : memref<16xf32, #tpu.memory_space<smem>>
    %1652 = vector.broadcast %1651 : f32 to vector<16x16xf32>
    %1653 = arith.mulf %1650, %1652 : vector<16x16xf32>
    %1654 = arith.addf %1638, %1643 : vector<16x16xf32>
    %1655 = arith.addf %1648, %1653 : vector<16x16xf32>
    %1656 = arith.addf %1654, %1655 : vector<16x16xf32>
    %c2_268 = arith.constant 2 : index
    %1657 = memref.load %arg7[%c2_268] : memref<4xf32, #tpu.memory_space<smem>>
    %1658 = vector.broadcast %1657 : f32 to vector<16x16xf32>
    %1659 = arith.addf %1656, %1658 : vector<16x16xf32>
    %c0_269 = arith.constant 0 : index
    %c2_270 = arith.constant 2 : index
    %c2_271 = arith.constant 2 : index
    %c2_272 = arith.constant 2 : index
    %1660 = vector.load %arg1[%c0_269, %c2_270, %c2_271, %c2_272] : memref<1x4x20x20xf32, #tpu.memory_space<vmem>>, vector<1x1x16x16xf32>
    %1661 = vector.shape_cast %1660 : vector<1x1x16x16xf32> to vector<16x16xf32>
    %1662 = arith.mulf %1659, %1661 : vector<16x16xf32>
    %c0_273 = arith.constant 0 : index
    %c2_274 = arith.constant 2 : index
    %c0_275 = arith.constant 0 : index
    %c0_276 = arith.constant 0 : index
    %1663 = vector.load %arg8[%c0_273, %c2_274, %c0_275, %c0_276] : memref<1x4x16x16xf32, #tpu.memory_space<vmem>>, vector<1x1x16x16xf32>
    %1664 = vector.shape_cast %1663 : vector<1x1x16x16xf32> to vector<16x16xf32>
    %1665 = vector.shape_cast %1662 : vector<16x16xf32> to vector<1x1x16x16xf32>
    tpu.vector_store %arg8[%c0_273, %c2_274, %c0_275, %c0_276], %1665 {strides = array<i32>} : memref<1x4x16x16xf32, #tpu.memory_space<vmem>>, vector<1x1x16x16xf32>,
    %c0_277 = arith.constant 0 : index
    %c0_278 = arith.constant 0 : index
    %c0_279 = arith.constant 0 : index
    %1666 = vector.load %arg10[%c0_277, %c0_278, %c0_279] : memref<4x16x16xf32, #tpu.memory_space<vmem>>, vector<1x16x16xf32>
    %1667 = vector.shape_cast %1666 : vector<1x16x16xf32> to vector<16x16xf32>
    %c3_280 = arith.constant 3 : index
    %1668 = memref.load %arg6[%c3_280] : memref<16xf32, #tpu.memory_space<smem>>
    %1669 = vector.broadcast %1668 : f32 to vector<16x16xf32>
    %1670 = arith.mulf %1667, %1669 : vector<16x16xf32>
    %c1_281 = arith.constant 1 : index
    %c0_282 = arith.constant 0 : index
    %c0_283 = arith.constant 0 : index
    %1671 = vector.load %arg10[%c1_281, %c0_282, %c0_283] : memref<4x16x16xf32, #tpu.memory_space<vmem>>, vector<1x16x16xf32>
    %1672 = vector.shape_cast %1671 : vector<1x16x16xf32> to vector<16x16xf32>
    %c7_284 = arith.constant 7 : index
    %1673 = memref.load %arg6[%c7_284] : memref<16xf32, #tpu.memory_space<smem>>
    %1674 = vector.broadcast %1673 : f32 to vector<16x16xf32>
    %1675 = arith.mulf %1672, %1674 : vector<16x16xf32>
    %c2_285 = arith.constant 2 : index
    %c0_286 = arith.constant 0 : index
    %c0_287 = arith.constant 0 : index
    %1676 = vector.load %arg10[%c2_285, %c0_286, %c0_287] : memref<4x16x16xf32, #tpu.memory_space<vmem>>, vector<1x16x16xf32>
    %1677 = vector.shape_cast %1676 : vector<1x16x16xf32> to vector<16x16xf32>
    %c11_288 = arith.constant 11 : index
    %1678 = memref.load %arg6[%c11_288] : memref<16xf32, #tpu.memory_space<smem>>
    %1679 = vector.broadcast %1678 : f32 to vector<16x16xf32>
    %1680 = arith.mulf %1677, %1679 : vector<16x16xf32>
    %c3_289 = arith.constant 3 : index
    %c0_290 = arith.constant 0 : index
    %c0_291 = arith.constant 0 : index
    %1681 = vector.load %arg10[%c3_289, %c0_290, %c0_291] : memref<4x16x16xf32, #tpu.memory_space<vmem>>, vector<1x16x16xf32>
    %1682 = vector.shape_cast %1681 : vector<1x16x16xf32> to vector<16x16xf32>
    %c15_292 = arith.constant 15 : index
    %1683 = memref.load %arg6[%c15_292] : memref<16xf32, #tpu.memory_space<smem>>
    %1684 = vector.broadcast %1683 : f32 to vector<16x16xf32>
    %1685 = arith.mulf %1682, %1684 : vector<16x16xf32>
    %1686 = arith.addf %1670, %1675 : vector<16x16xf32>
    %1687 = arith.addf %1680, %1685 : vector<16x16xf32>
    %1688 = arith.addf %1686, %1687 : vector<16x16xf32>
    %c3_293 = arith.constant 3 : index
    %1689 = memref.load %arg7[%c3_293] : memref<4xf32, #tpu.memory_space<smem>>
    %1690 = vector.broadcast %1689 : f32 to vector<16x16xf32>
    %1691 = arith.addf %1688, %1690 : vector<16x16xf32>
    %c0_294 = arith.constant 0 : index
    %c3_295 = arith.constant 3 : index
    %c2_296 = arith.constant 2 : index
    %c2_297 = arith.constant 2 : index
    %1692 = vector.load %arg1[%c0_294, %c3_295, %c2_296, %c2_297] : memref<1x4x20x20xf32, #tpu.memory_space<vmem>>, vector<1x1x16x16xf32>
    %1693 = vector.shape_cast %1692 : vector<1x1x16x16xf32> to vector<16x16xf32>
    %1694 = arith.mulf %1691, %1693 : vector<16x16xf32>
    %c0_298 = arith.constant 0 : index
    %c3_299 = arith.constant 3 : index
    %c0_300 = arith.constant 0 : index
    %c0_301 = arith.constant 0 : index
    %1695 = vector.load %arg8[%c0_298, %c3_299, %c0_300, %c0_301] : memref<1x4x16x16xf32, #tpu.memory_space<vmem>>, vector<1x1x16x16xf32>
    %1696 = vector.shape_cast %1695 : vector<1x1x16x16xf32> to vector<16x16xf32>
    %1697 = vector.shape_cast %1694 : vector<16x16xf32> to vector<1x1x16x16xf32>
    tpu.vector_store %arg8[%c0_298, %c3_299, %c0_300, %c0_301], %1697 {strides = array<i32>} : memref<1x4x16x16xf32, #tpu.memory_space<vmem>>, vector<1x1x16x16xf32>,
    return
  }
  func.func @transform_0(%arg0: i32) -> (i32, i32, i32, i32) {
    %c0_i32 = arith.constant 0 : i32
    %c0_i32_0 = arith.constant 0 : i32
    %c0_i32_1 = arith.constant 0 : i32
    %c0_i32_2 = arith.constant 0 : i32
    return %arg0, %c0_i32, %c0_i32_0, %c0_i32_1 : i32, i32, i32, i32
  }
  func.func @transform_1(%arg0: i32) -> i32 {
    %c0_i32 = arith.constant 0 : i32
    %c0_i32_0 = arith.constant 0 : i32
    return %c0_i32 : i32
  }
  func.func @transform_2(%arg0: i32) -> i32 {
    %c0_i32 = arith.constant 0 : i32
    %c0_i32_0 = arith.constant 0 : i32
    return %c0_i32 : i32
  }
  func.func @transform_3(%arg0: i32) -> i32 {
    %c0_i32 = arith.constant 0 : i32
    %c0_i32_0 = arith.constant 0 : i32
    return %c0_i32 : i32
  }
  func.func @transform_4(%arg0: i32) -> i32 {
    %c0_i32 = arith.constant 0 : i32
    %c0_i32_0 = arith.constant 0 : i32
    return %c0_i32 : i32
  }
  func.func @transform_5(%arg0: i32) -> i32 {
    %c0_i32 = arith.constant 0 : i32
    %c0_i32_0 = arith.constant 0 : i32
    return %c0_i32 : i32
  }
  func.func @transform_6(%arg0: i32) -> i32 {
    %c0_i32 = arith.constant 0 : i32
    %c0_i32_0 = arith.constant 0 : i32
    return %c0_i32 : i32
  }
  func.func @transform_7(%arg0: i32) -> (i32, i32, i32, i32) {
    %c0_i32 = arith.constant 0 : i32
    %c0_i32_0 = arith.constant 0 : i32
    %c0_i32_1 = arith.constant 0 : i32
    %c0_i32_2 = arith.constant 0 : i32
    return %arg0, %c0_i32, %c0_i32_0, %c0_i32_1 : i32, i32, i32, i32
  }
}

</mosaic_0001>

<llo_original>
// kernel: tpu_custom_call.1
$region0: #{tpu_custom_call.1}
  #allocation0 [shape = 'u32[]', space=smem, size = 0x4, offset = 0x4, fixed_abs, tag = 'smem constant byte address 0x4 - core index']
  #allocation1 [shape = 'u32[144,128]{1,0:T(1,128)}', space=vmem, size = 0x12000, scoped, tag = 'internal scratch']
  #allocation2 [shape = 'f32[34,34]{1,0:T(8,128)}', space=vmem, size = 0x5000, scoped, tag = 'scratch operand']
  #allocation3 [shape = 'f32[4,16,16]{2,1,0:T(8,128)}', space=vmem, size = 0x8000, scoped, tag = 'scratch operand']
  %s0 = inlined_call_operand.vmem [shape: f32[2,4,20,20], index: 0, kind: input, shape index: {}]
  %s1 = inlined_call_operand.vmem [shape: f32[100], index: 1, kind: input, shape index: {}]
  %s2 = inlined_call_operand.vmem [shape: f32[4], index: 2, kind: input, shape index: {}]
  %s3 = inlined_call_operand.vmem [shape: f32[196], index: 3, kind: input, shape index: {}]
  %s4 = inlined_call_operand.vmem [shape: f32[4], index: 4, kind: input, shape index: {}]
  %s5 = inlined_call_operand.vmem [shape: f32[16], index: 5, kind: input, shape index: {}]
  %s6 = inlined_call_operand.vmem [shape: f32[4], index: 6, kind: input, shape index: {}]
  %s7 = inlined_call_operand.hbm [shape: f32[2,4,16,16], index: 7, kind: output, shape index: {}]
  %s8 = sld [smem:[#allocation0]]
  $region85: #{tpu_custom_call.1} parent=0
    _
  %s10 = ssub.s32 1, %s8
  %s11 = scalar_select 0, %s10, %s8
  $region1: #{tpu_custom_call.1} parent=0
    #allocation4 [shape = 'u8[512]{0}', space=smem, size = 0x200, scoped, tag = 'input window, operand 1, single buffered']
    #allocation5 [shape = 's32[2]{0}', space=sflag, size = 0x8, scoped, tag = 'scoped memory for tpu_custom_call.1']
    #allocation6 [shape = 's32[2]{0}', space=sflag, size = 0x8, scoped, tag = 'scoped memory for tpu_custom_call.1']
    #allocation7 [shape = 'u8[512]{0}', space=smem, size = 0x200, scoped, tag = 'input window, operand 2, single buffered']
    #allocation8 [shape = 's32[1]{0}', space=sflag, size = 0x4, scoped, tag = 'scoped memory for tpu_custom_call.1']
    #allocation9 [shape = 'u8[1024]{0}', space=smem, size = 0x400, scoped, tag = 'input window, operand 3, single buffered']
    #allocation10 [shape = 'u8[512]{0}', space=smem, size = 0x200, scoped, tag = 'input window, operand 4, single buffered']
    #allocation11 [shape = 's32[1]{0}', space=sflag, size = 0x4, scoped, tag = 'scoped memory for tpu_custom_call.1']
    #allocation12 [shape = 'u8[512]{0}', space=smem, size = 0x200, scoped, tag = 'input window, operand 5, single buffered']
    #allocation13 [shape = 'u8[512]{0}', space=smem, size = 0x200, scoped, tag = 'input window, operand 6, single buffered']
    #allocation14 [shape = 's32[1]{0}', space=sflag, size = 0x4, scoped, tag = 'scoped memory for tpu_custom_call.1']
    #allocation15 [shape = 'u8[65536]{0}', space=vmem, size = 0x10000, scoped, tag = 'output window, operand 0']
    %12 = vsyncpa [#allocation6], 0
    %13 = vsyncpa [#allocation8], 0
    %14 = vsyncpa [#allocation11], 0
    %15 = vsyncpa [#allocation14], 0
    %16 = vsyncpa [#allocation5], 0
    %s17 = scalar_lea.sflag [#allocation5], 1
    %18 = vsyncpa %s17, 0
    loop: start=0, step=1, limit=4
    $region2: #{tpu_custom_call.1} parent=1 // loop_pre_header
      _
    $region3: #{tpu_custom_call.1} parent=1 // loop_header
      %s20 = sphi 0, %s24
      %p21 = scmp.ge.s32.totalorder %s20, 4
      %s30 = sphi 0, %s32
      %s33 = sphi 0, %s30
      %s34 = sphi 0, %s33
      %s50 = sphi 0, %s34
      %s54 = sphi 0, %s54
      %s56 = sphi 0, %s54
      %s57 = sphi 0, %s56
      %s71 = sphi 0, %s57
      %s75 = sphi 0, %s75
      %s77 = sphi 0, %s75
      %s78 = sphi 0, %s77
      %s92 = sphi 0, %s78
      %s96 = sphi 0, %s96
      %s98 = sphi 0, %s96
      %s99 = sphi 0, %s98
      %s113 = sphi 0, %s99
      %s117 = sphi 0, %s117
      %s119 = sphi 0, %s117
      %s120 = sphi 0, %s119
      %s134 = sphi 0, %s120
      %s138 = sphi 0, %s138
      %s140 = sphi 0, %s138
      %s141 = sphi 0, %s140
      %s155 = sphi 0, %s141
      %s159 = sphi 0, %s159
      %s161 = sphi 0, %s159
      %s162 = sphi 0, %s161
      %s176 = sphi 0, %s162
      %s182 = sphi 0, %s184
      %s185 = sphi 0, %s182
      %s186 = sphi 0, %s185
      %s202 = sphi 0, %s186
    $region4: #{tpu_custom_call.1} parent=1 // loop_header_branch
      %23 = sbr.rel (%p21) target = $region8
    $region5: #{tpu_custom_call.1} parent=1 // loop_body
      %s25 = ssub.s32 %s20, 1
      %s26 = ssub.s32 %s20, 2
      %s27 = sadd.s32 %s20, 1
      %s28 = ssub.s32 %s20, %s27
      %p29 = scmp.eq.s32.totalorder %s28, 0
      %s31 = sadd.s32 %s30, 1
      %s32 = scalar_select %p29, %s30, %s31
      %p35 = pneg %p29
      %p36 = scmp.eq.s32.totalorder %s20, 1
      %p37 = por %p35, %p36
      %p38 = scmp.ne.s32.totalorder %s30, %s33
      %p39 = scmp.eq.s32.totalorder %s20, 0
      %p40 = por %p38, %p39
      %p41 = scmp.ne.s32.totalorder %s30, %s33
      %p42 = scmp.eq.s32.totalorder %s25, 1
      %p43 = por %p41, %p42
      %p44 = scmp.ne.s32.totalorder %s33, %s34
      %p45 = scmp.eq.s32.totalorder %s25, 0
      %p46 = por %p44, %p45
      %p47 = scmp.ne.s32.totalorder %s33, %s34
      %p48 = scmp.eq.s32.totalorder %s26, 1
      %p49 = por %p47, %p48
      %p51 = scmp.ne.s32.totalorder %s34, %s50
      %p52 = scmp.eq.s32.totalorder %s26, 0
      %p53 = por %p51, %p52
      %s55 = sadd.s32 %s54, 1
      %p58 = scmp.eq.s32.totalorder %s20, 1
      %p59 = scmp.ne.s32.totalorder %s54, %s56
      %p60 = scmp.eq.s32.totalorder %s20, 0
      %p61 = por %p59, %p60
      %p62 = scmp.ne.s32.totalorder %s54, %s56
      %p63 = scmp.eq.s32.totalorder %s25, 1
      %p64 = por %p62, %p63
      %p65 = scmp.ne.s32.totalorder %s56, %s57
      %p66 = scmp.eq.s32.totalorder %s25, 0
      %p67 = por %p65, %p66
      %p68 = scmp.ne.s32.totalorder %s56, %s57
      %p69 = scmp.eq.s32.totalorder %s26, 1
      %p70 = por %p68, %p69
      %p72 = scmp.ne.s32.totalorder %s57, %s71
      %p73 = scmp.eq.s32.totalorder %s26, 0
      %p74 = por %p72, %p73
      %s76 = sadd.s32 %s75, 1
      %p79 = scmp.eq.s32.totalorder %s20, 1
      %p80 = scmp.ne.s32.totalorder %s75, %s77
      %p81 = scmp.eq.s32.totalorder %s20, 0
      %p82 = por %p80, %p81
      %p83 = scmp.ne.s32.totalorder %s75, %s77
      %p84 = scmp.eq.s32.totalorder %s25, 1
      %p85 = por %p83, %p84
      %p86 = scmp.ne.s32.totalorder %s77, %s78
      %p87 = scmp.eq.s32.totalorder %s25, 0
      %p88 = por %p86, %p87
      %p89 = scmp.ne.s32.totalorder %s77, %s78
      %p90 = scmp.eq.s32.totalorder %s26, 1
      %p91 = por %p89, %p90
      %p93 = scmp.ne.s32.totalorder %s78, %s92
      %p94 = scmp.eq.s32.totalorder %s26, 0
      %p95 = por %p93, %p94
      %s97 = sadd.s32 %s96, 1
      %p100 = scmp.eq.s32.totalorder %s20, 1
      %p101 = scmp.ne.s32.totalorder %s96, %s98
      %p102 = scmp.eq.s32.totalorder %s20, 0
      %p103 = por %p101, %p102
      %p104 = scmp.ne.s32.totalorder %s96, %s98
      %p105 = scmp.eq.s32.totalorder %s25, 1
      %p106 = por %p104, %p105
      %p107 = scmp.ne.s32.totalorder %s98, %s99
      %p108 = scmp.eq.s32.totalorder %s25, 0
      %p109 = por %p107, %p108
      %p110 = scmp.ne.s32.totalorder %s98, %s99
      %p111 = scmp.eq.s32.totalorder %s26, 1
      %p112 = por %p110, %p111
      %p114 = scmp.ne.s32.totalorder %s99, %s113
      %p115 = scmp.eq.s32.totalorder %s26, 0
      %p116 = por %p114, %p115
      %s118 = sadd.s32 %s117, 1
      %p121 = scmp.eq.s32.totalorder %s20, 1
      %p122 = scmp.ne.s32.totalorder %s117, %s119
      %p123 = scmp.eq.s32.totalorder %s20, 0
      %p124 = por %p122, %p123
      %p125 = scmp.ne.s32.totalorder %s117, %s119
      %p126 = scmp.eq.s32.totalorder %s25, 1
      %p127 = por %p125, %p126
      %p128 = scmp.ne.s32.totalorder %s119, %s120
      %p129 = scmp.eq.s32.totalorder %s25, 0
      %p130 = por %p128, %p129
      %p131 = scmp.ne.s32.totalorder %s119, %s120
      %p132 = scmp.eq.s32.totalorder %s26, 1
      %p133 = por %p131, %p132
      %p135 = scmp.ne.s32.totalorder %s120, %s134
      %p136 = scmp.eq.s32.totalorder %s26, 0
      %p137 = por %p135, %p136
      %s139 = sadd.s32 %s138, 1
      %p142 = scmp.eq.s32.totalorder %s20, 1
      %p143 = scmp.ne.s32.totalorder %s138, %s140
      %p144 = scmp.eq.s32.totalorder %s20, 0
      %p145 = por %p143, %p144
      %p146 = scmp.ne.s32.totalorder %s138, %s140
      %p147 = scmp.eq.s32.totalorder %s25, 1
      %p148 = por %p146, %p147
      %p149 = scmp.ne.s32.totalorder %s140, %s141
      %p150 = scmp.eq.s32.totalorder %s25, 0
      %p151 = por %p149, %p150
      %p152 = scmp.ne.s32.totalorder %s140, %s141
      %p153 = scmp.eq.s32.totalorder %s26, 1
      %p154 = por %p152, %p153
      %p156 = scmp.ne.s32.totalorder %s141, %s155
      %p157 = scmp.eq.s32.totalorder %s26, 0
      %p158 = por %p156, %p157
      %s160 = sadd.s32 %s159, 1
      %p163 = scmp.eq.s32.totalorder %s20, 1
      %p164 = scmp.ne.s32.totalorder %s159, %s161
      %p165 = scmp.eq.s32.totalorder %s20, 0
      %p166 = por %p164, %p165
      %p167 = scmp.ne.s32.totalorder %s159, %s161
      %p168 = scmp.eq.s32.totalorder %s25, 1
      %p169 = por %p167, %p168
      %p170 = scmp.ne.s32.totalorder %s161, %s162
      %p171 = scmp.eq.s32.totalorder %s25, 0
      %p172 = por %p170, %p171
      %p173 = scmp.ne.s32.totalorder %s161, %s162
      %p174 = scmp.eq.s32.totalorder %s26, 1
      %p175 = por %p173, %p174
      %p177 = scmp.ne.s32.totalorder %s162, %s176
      %p178 = scmp.eq.s32.totalorder %s26, 0
      %p179 = por %p177, %p178
      %s180 = ssub.s32 %s20, %s27
      %p181 = scmp.eq.s32.totalorder %s180, 0
      %s183 = sadd.s32 %s182, 1
      %s184 = scalar_select %p181, %s182, %s183
      %p187 = pneg %p181
      %p188 = scmp.eq.s32.totalorder %s20, 1
      %p189 = por %p187, %p188
      %p190 = scmp.ne.s32.totalorder %s182, %s185
      %p191 = scmp.eq.s32.totalorder %s20, 0
      %p192 = por %p190, %p191
      %p193 = scmp.ne.s32.totalorder %s182, %s185
      %p194 = scmp.eq.s32.totalorder %s25, 1
      %p195 = por %p193, %p194
      %p196 = scmp.ne.s32.totalorder %s185, %s186
      %p197 = scmp.eq.s32.totalorder %s25, 0
      %p198 = por %p196, %p197
      %p199 = scmp.ne.s32.totalorder %s185, %s186
      %p200 = scmp.eq.s32.totalorder %s26, 1
      %p201 = por %p199, %p200
      %p203 = scmp.ne.s32.totalorder %s186, %s202
      %p204 = scmp.eq.s32.totalorder %s26, 0
      %p205 = por %p203, %p204
      %p206 = scmp.le.s32.totalorder 1, %s20
      %p207 = scmp.lt.s32.totalorder %s20, 3
      %p208 = pnand %p206, %p207
      %p209 = pneg %p208
      // Predicated region
      $region9: #{tpu_custom_call.1} parent=5 // pred_check
        _
      $region10: #{tpu_custom_call.1} parent=5 // pred_check_branch
        %211 = sbr.rel (%p208) target = $region12
      $region11: #{tpu_custom_call.1} parent=5 // pred_region
        %s212 = ssub.s32 %s20, 1
        // Predicated region
        $region13: #{tpu_custom_call.1} parent=11 // pred_check
          %p213 = pneg %p67
        $region14: #{tpu_custom_call.1} parent=11 // pred_check_branch
          %215 = sbr.rel (%p213) target = $region16
        $region15: #{tpu_custom_call.1} parent=11 // pred_region
          %s217 = ssub.s32 16, 16
          %218 = vsyncadd [#allocation6], %s217
          %s220 = sshll.u32 %s1, 4
          %s221 = int_to_ptr.vmem [resolvable:$true] %s220
          %223 = dma.vmem_to_smem %s221, 16, [#allocation4], [#allocation6]
        $region16: #{tpu_custom_call.1} parent=11 // pred_fallthru
          _
        // Predicated region
        $region17: #{tpu_custom_call.1} parent=11 // pred_check
          %p224 = pneg %p88
        $region18: #{tpu_custom_call.1} parent=11 // pred_check_branch
          %226 = sbr.rel (%p224) target = $region20
        $region19: #{tpu_custom_call.1} parent=11 // pred_region
          %s228 = ssub.s32 16, 16
          %229 = vsyncadd [#allocation8], %s228
          %s231 = sshll.u32 %s2, 4
          %s232 = int_to_ptr.vmem [resolvable:$true] %s231
          %234 = dma.vmem_to_smem %s232, 16, [#allocation7], [#allocation8]
        $region20: #{tpu_custom_call.1} parent=11 // pred_fallthru
          _
        // Predicated region
        $region21: #{tpu_custom_call.1} parent=11 // pred_check
          %p235 = pneg %p109
        $region22: #{tpu_custom_call.1} parent=11 // pred_check_branch
          %237 = sbr.rel (%p235) target = $region24
        $region23: #{tpu_custom_call.1} parent=11 // pred_region
          %s239 = ssub.s32 32, 32
          %240 = vsyncadd [#allocation8], %s239
          %s242 = sshll.u32 %s3, 4
          %s243 = int_to_ptr.vmem [resolvable:$true] %s242
          %245 = dma.vmem_to_smem %s243, 32, [#allocation9], [#allocation8]
        $region24: #{tpu_custom_call.1} parent=11 // pred_fallthru
          _
        // Predicated region
        $region25: #{tpu_custom_call.1} parent=11 // pred_check
          %p246 = pneg %p130
        $region26: #{tpu_custom_call.1} parent=11 // pred_check_branch
          %248 = sbr.rel (%p246) target = $region28
        $region27: #{tpu_custom_call.1} parent=11 // pred_region
          %s250 = ssub.s32 16, 16
          %251 = vsyncadd [#allocation11], %s250
          %s253 = sshll.u32 %s4, 4
          %s254 = int_to_ptr.vmem [resolvable:$true] %s253
          %256 = dma.vmem_to_smem %s254, 16, [#allocation10], [#allocation11]
        $region28: #{tpu_custom_call.1} parent=11 // pred_fallthru
          _
        // Predicated region
        $region29: #{tpu_custom_call.1} parent=11 // pred_check
          %p257 = pneg %p151
        $region30: #{tpu_custom_call.1} parent=11 // pred_check_branch
          %259 = sbr.rel (%p257) target = $region32
        $region31: #{tpu_custom_call.1} parent=11 // pred_region
          %s261 = ssub.s32 16, 16
          %262 = vsyncadd [#allocation11], %s261
          %s264 = sshll.u32 %s5, 4
          %s265 = int_to_ptr.vmem [resolvable:$true] %s264
          %267 = dma.vmem_to_smem %s265, 16, [#allocation12], [#allocation11]
        $region32: #{tpu_custom_call.1} parent=11 // pred_fallthru
          _
        // Predicated region
        $region33: #{tpu_custom_call.1} parent=11 // pred_check
          %p268 = pneg %p172
        $region34: #{tpu_custom_call.1} parent=11 // pred_check_branch
          %270 = sbr.rel (%p268) target = $region36
        $region35: #{tpu_custom_call.1} parent=11 // pred_region
          %s272 = ssub.s32 16, 16
          %273 = vsyncadd [#allocation14], %s272
          %s275 = sshll.u32 %s6, 4
          %s276 = int_to_ptr.vmem [resolvable:$true] %s275
          %278 = dma.vmem_to_smem %s276, 16, [#allocation13], [#allocation14]
        $region36: #{tpu_custom_call.1} parent=11 // pred_fallthru
          _
      $region12: #{tpu_custom_call.1} parent=5 // pred_fallthru
        _
      %p279 = scmp.lt.s32.totalorder %s20, 2
      // Predicated region
      $region37: #{tpu_custom_call.1} parent=5 // pred_check
        %p280 = pneg %p279
      $region38: #{tpu_custom_call.1} parent=5 // pred_check_branch
        %282 = sbr.rel (%p280) target = $region40
      $region39: #{tpu_custom_call.1} parent=5 // pred_region
        // Predicated region
        $region41: #{tpu_custom_call.1} parent=39 // pred_check
          %p283 = pneg %p40
        $region42: #{tpu_custom_call.1} parent=39 // pred_check_branch
          %285 = sbr.rel (%p283) target = $region44
        $region43: #{tpu_custom_call.1} parent=39 // pred_region
          %p286 = scmp.lt.s32.totalorder %s20, 1
          %s287 = scalar_select %p286, %s20, 1
          %s288 = smul.addr %s287, 12
          %s289 = smul.addr %s288, 8
          %s290 = scalar_lea.vmem %s0, %s289
        $region44: #{tpu_custom_call.1} parent=39 // pred_fallthru
          _
      $region40: #{tpu_custom_call.1} parent=5 // pred_fallthru
        _
      %p291 = scmp.le.s32.totalorder 1, %s20
      %p292 = scmp.lt.s32.totalorder %s20, 3
      %p293 = pnand %p291, %p292
      %p294 = pneg %p293
      // Predicated region
      $region45: #{tpu_custom_call.1} parent=5 // pred_check
        _
      $region46: #{tpu_custom_call.1} parent=5 // pred_check_branch
        %296 = sbr.rel (%p293) target = $region48
      $region47: #{tpu_custom_call.1} parent=5 // pred_region
        %s297 = ssub.s32 %s20, 1
        // Predicated region
        $region49: #{tpu_custom_call.1} parent=47 // pred_check
          %p298 = pneg %p67
        $region50: #{tpu_custom_call.1} parent=47 // pred_check_branch
          %300 = sbr.rel (%p298) target = $region52
        $region51: #{tpu_custom_call.1} parent=47 // pred_region
          %301 = dma.done [#allocation6], 16
        $region52: #{tpu_custom_call.1} parent=47 // pred_fallthru
          _
        // Predicated region
        $region53: #{tpu_custom_call.1} parent=47 // pred_check
          %p302 = pneg %p88
        $region54: #{tpu_custom_call.1} parent=47 // pred_check_branch
          %304 = sbr.rel (%p302) target = $region56
        $region55: #{tpu_custom_call.1} parent=47 // pred_region
          %305 = dma.done [#allocation8], 16
        $region56: #{tpu_custom_call.1} parent=47 // pred_fallthru
          _
        // Predicated region
        $region57: #{tpu_custom_call.1} parent=47 // pred_check
          %p306 = pneg %p109
        $region58: #{tpu_custom_call.1} parent=47 // pred_check_branch
          %308 = sbr.rel (%p306) target = $region60
        $region59: #{tpu_custom_call.1} parent=47 // pred_region
          %309 = dma.done [#allocation8], 32
        $region60: #{tpu_custom_call.1} parent=47 // pred_fallthru
          _
        // Predicated region
        $region61: #{tpu_custom_call.1} parent=47 // pred_check
          %p310 = pneg %p130
        $region62: #{tpu_custom_call.1} parent=47 // pred_check_branch
          %312 = sbr.rel (%p310) target = $region64
        $region63: #{tpu_custom_call.1} parent=47 // pred_region
          %313 = dma.done [#allocation11], 16
        $region64: #{tpu_custom_call.1} parent=47 // pred_fallthru
          _
        // Predicated region
        $region65: #{tpu_custom_call.1} parent=47 // pred_check
          %p314 = pneg %p151
        $region66: #{tpu_custom_call.1} parent=47 // pred_check_branch
          %316 = sbr.rel (%p314) target = $region68
        $region67: #{tpu_custom_call.1} parent=47 // pred_region
          %317 = dma.done [#allocation11], 16
        $region68: #{tpu_custom_call.1} parent=47 // pred_fallthru
          _
        // Predicated region
        $region69: #{tpu_custom_call.1} parent=47 // pred_check
          %p318 = pneg %p172
        $region70: #{tpu_custom_call.1} parent=47 // pred_check_branch
          %320 = sbr.rel (%p318) target = $region72
        $region71: #{tpu_custom_call.1} parent=47 // pred_region
          %321 = dma.done [#allocation14], 16
        $region72: #{tpu_custom_call.1} parent=47 // pred_fallthru
          _
        %322 = sfence
        %p323 = scmp.lt.s32.totalorder %s25, 1
        %s324 = scalar_select %p323, %s25, 1
        %s325 = smul.addr %s324, 12
        %s326 = smul.addr %s325, 8
        %s327 = scalar_lea.vmem %s0, %s326
        %p328 = pneg %p46
        %p329 = pneg %p43
        %p330 = pneg %p67
        %p331 = pneg %p64
        %p332 = pneg %p88
        %p333 = pneg %p85
        %p334 = pneg %p109
        %p335 = pneg %p106
        %p336 = pneg %p130
        %p337 = pneg %p127
        %p338 = pneg %p151
        %p339 = pneg %p148
        %p340 = pneg %p172
        %p341 = pneg %p169
        %p342 = pneg %p198
        %p343 = pneg %p195
        %s344 = sand.u32 %s185, 1
        %s345 = scalar_lea.sflag [#allocation5], %s344
        %s346 = sand.u32 %s185, 1
        %s347 = smul.addr %s346, 64
        %s348 = scalar_lea.vmem [#allocation15], %s347
        %p349 = scmp.lt.s32.totalorder %s25, 1
        %s350 = scalar_select %p349, %s25, 1
        %s351 = smul.addr %s350, 12
        %s352 = smul.addr %s351, 8
        %s353 = scalar_lea.vmem %s0, %s352
        %vm354 = vcmask 277504
        %355 = vst.msk [vmem:[#allocation2] sm:$0xff] %vm354, 0.0
        %356 = vst.msk [vmem:[#allocation2 + $0x8] sm:$0xff] %vm354, 0.0
        %357 = vst.msk [vmem:[#allocation2 + $0x10] sm:$0xff] %vm354, 0.0
        %358 = vst.msk [vmem:[#allocation2 + $0x18] sm:$0xff] %vm354, 0.0
        %vm359 = vcmask 271360
        %360 = vst.msk [vmem:[#allocation2 + $0x20] sm:$0x3] %vm359, 0.0
        %v361 = vld [vmem:[%s353] sm:$0xff]
        %v362 = vld [vmem:[%s353 + $0x8] sm:$0xff]
        %v363 = vld [vmem:[%s353 + $0x10] sm:$0xf]
        %s364 = sld [smem:[#allocation4]]
        %v365 = vstv %s364
        %v366 = vmul.f32 %v361, %v365
        %v367 = vmul.f32 %v362, %v365
        %s368 = sld [smem:[#allocation4 + $0x1]]
        %v369 = vstv %s368
        %v370 = vmul.f32 %v361, %v369
        %v371 = vmul.f32 %v362, %v369
        %s372 = sld [smem:[#allocation4 + $0x2]]
        %v373 = vstv %s372
        %v374 = vmul.f32 %v361, %v373
        %v375 = vmul.f32 %v362, %v373
        %s376 = sld [smem:[#allocation4 + $0x3]]
        %v377 = vstv %s376
        %v378 = vmul.f32 %v361, %v377
        %v379 = vmul.f32 %v362, %v377
        %s380 = sld [smem:[#allocation4 + $0x4]]
        %v381 = vstv %s380
        %v382 = vmul.f32 %v361, %v381
        %v383 = vmul.f32 %v362, %v381
        %s384 = sld [smem:[#allocation4 + $0x5]]
        %v385 = vstv %s384
        %v386 = vmul.f32 %v361, %v385
        %v387 = vmul.f32 %v362, %v385
        %v388 = vmul.f32 %v363, %v385
        %s389 = sld [smem:[#allocation4 + $0x6]]
        %v390 = vstv %s389
        %v391 = vmul.f32 %v361, %v390
        %v392 = vmul.f32 %v362, %v390
        %v393 = vmul.f32 %v363, %v390
        %s394 = sld [smem:[#allocation4 + $0x7]]
        %v395 = vstv %s394
        %v396 = vmul.f32 %v361, %v395
        %v397 = vmul.f32 %v362, %v395
        %v398 = vmul.f32 %v363, %v395
        %s399 = sld [smem:[#allocation4 + $0x8]]
        %v400 = vstv %s399
        %v401 = vmul.f32 %v361, %v400
        %v402 = vmul.f32 %v362, %v400
        %v403 = vmul.f32 %v363, %v400
        %s404 = sld [smem:[#allocation4 + $0x9]]
        %v405 = vstv %s404
        %v406 = vmul.f32 %v361, %v405
        %v407 = vmul.f32 %v362, %v405
        %v408 = vmul.f32 %v363, %v405
        %s409 = sld [smem:[#allocation4 + $0xa]]
        %v410 = vstv %s409
        %v411 = vmul.f32 %v361, %v410
        %v412 = vmul.f32 %v362, %v410
        %v413 = vmul.f32 %v363, %v410
        %s414 = sld [smem:[#allocation4 + $0xb]]
        %v415 = vstv %s414
        %v416 = vmul.f32 %v361, %v415
        %v417 = vmul.f32 %v362, %v415
        %v418 = vmul.f32 %v363, %v415
        %s419 = sld [smem:[#allocation4 + $0xc]]
        %v420 = vstv %s419
        %v421 = vmul.f32 %v361, %v420
        %v422 = vmul.f32 %v362, %v420
        %v423 = vmul.f32 %v363, %v420
        %s424 = sld [smem:[#allocation4 + $0xd]]
        %v425 = vstv %s424
        %v426 = vmul.f32 %v361, %v425
        %v427 = vmul.f32 %v362, %v425
        %v428 = vmul.f32 %v363, %v425
        %s429 = sld [smem:[#allocation4 + $0xe]]
        %v430 = vstv %s429
        %v431 = vmul.f32 %v361, %v430
        %v432 = vmul.f32 %v362, %v430
        %v433 = vmul.f32 %v363, %v430
        %s434 = sld [smem:[#allocation4 + $0xf]]
        %v435 = vstv %s434
        %v436 = vmul.f32 %v361, %v435
        %v437 = vmul.f32 %v362, %v435
        %v438 = vmul.f32 %v363, %v435
        %s439 = sld [smem:[#allocation4 + $0x10]]
        %v440 = vstv %s439
        %v441 = vmul.f32 %v361, %v440
        %v442 = vmul.f32 %v362, %v440
        %v443 = vmul.f32 %v363, %v440
        %s444 = sld [smem:[#allocation4 + $0x11]]
        %v445 = vstv %s444
        %v446 = vmul.f32 %v361, %v445
        %v447 = vmul.f32 %v362, %v445
        %v448 = vmul.f32 %v363, %v445
        %s449 = sld [smem:[#allocation4 + $0x12]]
        %v450 = vstv %s449
        %v451 = vmul.f32 %v361, %v450
        %v452 = vmul.f32 %v362, %v450
        %v453 = vmul.f32 %v363, %v450
        %s454 = sld [smem:[#allocation4 + $0x13]]
        %v455 = vstv %s454
        %v456 = vmul.f32 %v361, %v455
        %v457 = vmul.f32 %v362, %v455
        %v458 = vmul.f32 %v363, %v455
        %s459 = sld [smem:[#allocation4 + $0x14]]
        %v460 = vstv %s459
        %v461 = vmul.f32 %v361, %v460
        %v462 = vmul.f32 %v362, %v460
        %v463 = vmul.f32 %v363, %v460
        %s464 = sld [smem:[#allocation4 + $0x15]]
        %v465 = vstv %s464
        %v466 = vmul.f32 %v361, %v465
        %v467 = vmul.f32 %v362, %v465
        %v468 = vmul.f32 %v363, %v465
        %s469 = sld [smem:[#allocation4 + $0x16]]
        %v470 = vstv %s469
        %v471 = vmul.f32 %v361, %v470
        %v472 = vmul.f32 %v362, %v470
        %v473 = vmul.f32 %v363, %v470
        %s474 = sld [smem:[#allocation4 + $0x17]]
        %v475 = vstv %s474
        %v476 = vmul.f32 %v361, %v475
        %v477 = vmul.f32 %v362, %v475
        %v478 = vmul.f32 %v363, %v475
        %s479 = sld [smem:[#allocation4 + $0x18]]
        %v480 = vstv %s479
        %v481 = vmul.f32 %v361, %v480
        %v482 = vmul.f32 %v362, %v480
        %v483 = vmul.f32 %v363, %v480
        %486 = vrot.lane.b32.xlu0 %v370, 127
        %v487 = vpop.permute.xlu0 %486
        %488 = vrot.lane.b32.xlu0 %v371, 127
        %v489 = vpop.permute.xlu0 %488
        %v492 = vadd.f32 %v366, %v487
        %v493 = vadd.f32 %v367, %v489
        %496 = vrot.lane.b32.xlu0 %v378, 127
        %v497 = vpop.permute.xlu0 %496
        %498 = vrot.lane.b32.xlu0 %v379, 127
        %v499 = vpop.permute.xlu0 %498
        %v502 = vadd.f32 %v374, %v497
        %v503 = vadd.f32 %v375, %v499
        %vm507 = vcmask 1046528
        %v508 = vrot.slane %v386, 1
        %v509 = vrot.slane %v387, 1
        %v510 = vsel %vm507, %v508, %v509
        %v511 = vrot.slane %v388, 1
        %v512 = vsel %vm507, %v509, %v511
        %513 = vrot.lane.b32.xlu0 %v510, 4
        %v514 = vpop.permute.xlu0 %513
        %515 = vrot.lane.b32.xlu0 %v512, 4
        %v516 = vpop.permute.xlu0 %515
        %v519 = vadd.f32 %v382, %v514
        %v520 = vadd.f32 %v383, %v516
        %524 = vrot.lane.b32.xlu0 %v396, 127
        %v525 = vpop.permute.xlu0 %524
        %526 = vrot.lane.b32.xlu0 %v397, 127
        %v527 = vpop.permute.xlu0 %526
        %528 = vrot.lane.b32.xlu0 %v398, 127
        %v529 = vpop.permute.xlu0 %528
        %v533 = vadd.f32 %v391, %v525
        %v534 = vadd.f32 %v392, %v527
        %v535 = vadd.f32 %v393, %v529
        %539 = vrot.lane.b32.xlu0 %v406, 127
        %v540 = vpop.permute.xlu0 %539
        %541 = vrot.lane.b32.xlu0 %v407, 127
        %v542 = vpop.permute.xlu0 %541
        %543 = vrot.lane.b32.xlu0 %v408, 127
        %v544 = vpop.permute.xlu0 %543
        %v548 = vadd.f32 %v401, %v540
        %v549 = vadd.f32 %v402, %v542
        %v550 = vadd.f32 %v403, %v544
        %554 = vrot.lane.b32.xlu0 %v416, 127
        %v555 = vpop.permute.xlu0 %554
        %556 = vrot.lane.b32.xlu0 %v417, 127
        %v557 = vpop.permute.xlu0 %556
        %558 = vrot.lane.b32.xlu0 %v418, 127
        %v559 = vpop.permute.xlu0 %558
        %v563 = vadd.f32 %v411, %v555
        %v564 = vadd.f32 %v412, %v557
        %v565 = vadd.f32 %v413, %v559
        %569 = vrot.lane.b32.xlu0 %v426, 127
        %v570 = vpop.permute.xlu0 %569
        %571 = vrot.lane.b32.xlu0 %v427, 127
        %v572 = vpop.permute.xlu0 %571
        %573 = vrot.lane.b32.xlu0 %v428, 127
        %v574 = vpop.permute.xlu0 %573
        %v578 = vadd.f32 %v421, %v570
        %v579 = vadd.f32 %v422, %v572
        %v580 = vadd.f32 %v423, %v574
        %v584 = vrot.slane %v436, 1
        %v585 = vrot.slane %v437, 1
        %v586 = vsel %vm507, %v584, %v585
        %v587 = vrot.slane %v438, 1
        %v588 = vsel %vm507, %v585, %v587
        %589 = vrot.lane.b32.xlu0 %v586, 4
        %v590 = vpop.permute.xlu0 %589
        %591 = vrot.lane.b32.xlu0 %v588, 4
        %v592 = vpop.permute.xlu0 %591
        %593 = vrot.lane.b32.xlu0 %v587, 4
        %v594 = vpop.permute.xlu0 %593
        %v598 = vadd.f32 %v431, %v590
        %v599 = vadd.f32 %v432, %v592
        %v600 = vadd.f32 %v433, %v594
        %604 = vrot.lane.b32.xlu0 %v446, 127
        %v605 = vpop.permute.xlu0 %604
        %606 = vrot.lane.b32.xlu0 %v447, 127
        %v607 = vpop.permute.xlu0 %606
        %608 = vrot.lane.b32.xlu0 %v448, 127
        %v609 = vpop.permute.xlu0 %608
        %v613 = vadd.f32 %v441, %v605
        %v614 = vadd.f32 %v442, %v607
        %v615 = vadd.f32 %v443, %v609
        %619 = vrot.lane.b32.xlu0 %v456, 127
        %v620 = vpop.permute.xlu0 %619
        %621 = vrot.lane.b32.xlu0 %v457, 127
        %v622 = vpop.permute.xlu0 %621
        %623 = vrot.lane.b32.xlu0 %v458, 127
        %v624 = vpop.permute.xlu0 %623
        %v628 = vadd.f32 %v451, %v620
        %v629 = vadd.f32 %v452, %v622
        %v630 = vadd.f32 %v453, %v624
        %634 = vrot.lane.b32.xlu0 %v466, 127
        %v635 = vpop.permute.xlu0 %634
        %636 = vrot.lane.b32.xlu0 %v467, 127
        %v637 = vpop.permute.xlu0 %636
        %638 = vrot.lane.b32.xlu0 %v468, 127
        %v639 = vpop.permute.xlu0 %638
        %v643 = vadd.f32 %v461, %v635
        %v644 = vadd.f32 %v462, %v637
        %v645 = vadd.f32 %v463, %v639
        %649 = vrot.lane.b32.xlu0 %v476, 127
        %v650 = vpop.permute.xlu0 %649
        %651 = vrot.lane.b32.xlu0 %v477, 127
        %v652 = vpop.permute.xlu0 %651
        %653 = vrot.lane.b32.xlu0 %v478, 127
        %v654 = vpop.permute.xlu0 %653
        %v658 = vadd.f32 %v471, %v650
        %v659 = vadd.f32 %v472, %v652
        %v660 = vadd.f32 %v473, %v654
        %663 = vrot.lane.b32.xlu0 %v502, 126
        %v664 = vpop.permute.xlu0 %663
        %665 = vrot.lane.b32.xlu0 %v503, 126
        %v666 = vpop.permute.xlu0 %665
        %v669 = vadd.f32 %v492, %v664
        %v670 = vadd.f32 %v493, %v666
        %v674 = vrot.slane %v533, 1
        %v675 = vrot.slane %v534, 1
        %v676 = vsel %vm507, %v674, %v675
        %v677 = vrot.slane %v535, 1
        %v678 = vsel %vm507, %v675, %v677
        %679 = vrot.lane.b32.xlu0 %v676, 3
        %v680 = vpop.permute.xlu0 %679
        %681 = vrot.lane.b32.xlu0 %v678, 3
        %v682 = vpop.permute.xlu0 %681
        %v685 = vadd.f32 %v519, %v680
        %v686 = vadd.f32 %v520, %v682
        %v690 = vrot.slane %v563, 1
        %v691 = vrot.slane %v564, 1
        %v692 = vsel %vm507, %v690, %v691
        %v693 = vrot.slane %v565, 1
        %v694 = vsel %vm507, %v691, %v693
        %695 = vrot.lane.b32.xlu0 %v692, 3
        %v696 = vpop.permute.xlu0 %695
        %697 = vrot.lane.b32.xlu0 %v694, 3
        %v698 = vpop.permute.xlu0 %697
        %699 = vrot.lane.b32.xlu0 %v693, 3
        %v700 = vpop.permute.xlu0 %699
        %v704 = vadd.f32 %v548, %v696
        %v705 = vadd.f32 %v549, %v698
        %v706 = vadd.f32 %v550, %v700
        %710 = vrot.lane.b32.xlu0 %v598, 126
        %v711 = vpop.permute.xlu0 %710
        %712 = vrot.lane.b32.xlu0 %v599, 126
        %v713 = vpop.permute.xlu0 %712
        %714 = vrot.lane.b32.xlu0 %v600, 126
        %v715 = vpop.permute.xlu0 %714
        %v719 = vadd.f32 %v578, %v711
        %v720 = vadd.f32 %v579, %v713
        %v721 = vadd.f32 %v580, %v715
        %725 = vrot.lane.b32.xlu0 %v628, 126
        %v726 = vpop.permute.xlu0 %725
        %727 = vrot.lane.b32.xlu0 %v629, 126
        %v728 = vpop.permute.xlu0 %727
        %729 = vrot.lane.b32.xlu0 %v630, 126
        %v730 = vpop.permute.xlu0 %729
        %v734 = vadd.f32 %v613, %v726
        %v735 = vadd.f32 %v614, %v728
        %v736 = vadd.f32 %v615, %v730
        %740 = vrot.lane.b32.xlu0 %v658, 126
        %v741 = vpop.permute.xlu0 %740
        %742 = vrot.lane.b32.xlu0 %v659, 126
        %v743 = vpop.permute.xlu0 %742
        %744 = vrot.lane.b32.xlu0 %v660, 126
        %v745 = vpop.permute.xlu0 %744
        %v749 = vadd.f32 %v643, %v741
        %v750 = vadd.f32 %v644, %v743
        %v751 = vadd.f32 %v645, %v745
        %754 = vrot.lane.b32.xlu0 %v685, 124
        %v755 = vpop.permute.xlu0 %754
        %756 = vrot.lane.b32.xlu0 %v686, 124
        %v757 = vpop.permute.xlu0 %756
        %v760 = vadd.f32 %v669, %v755
        %v761 = vadd.f32 %v670, %v757
        %v765 = vrot.slane %v719, 1
        %v766 = vrot.slane %v720, 1
        %v767 = vsel %vm507, %v765, %v766
        %v768 = vrot.slane %v721, 1
        %v769 = vsel %vm507, %v766, %v768
        %770 = vrot.lane.b32.xlu0 %v767, 1
        %v771 = vpop.permute.xlu0 %770
        %772 = vrot.lane.b32.xlu0 %v769, 1
        %v773 = vpop.permute.xlu0 %772
        %774 = vrot.lane.b32.xlu0 %v768, 1
        %v775 = vpop.permute.xlu0 %774
        %v779 = vadd.f32 %v704, %v771
        %v780 = vadd.f32 %v705, %v773
        %v781 = vadd.f32 %v706, %v775
        %v785 = vrot.slane %v749, 1
        %v786 = vrot.slane %v750, 1
        %v787 = vsel %vm507, %v785, %v786
        %v788 = vrot.slane %v751, 1
        %v789 = vsel %vm507, %v786, %v788
        %790 = vrot.lane.b32.xlu0 %v787, 1
        %v791 = vpop.permute.xlu0 %790
        %792 = vrot.lane.b32.xlu0 %v789, 1
        %v793 = vpop.permute.xlu0 %792
        %794 = vrot.lane.b32.xlu0 %v788, 1
        %v795 = vpop.permute.xlu0 %794
        %v799 = vadd.f32 %v734, %v791
        %v800 = vadd.f32 %v735, %v793
        %v801 = vadd.f32 %v736, %v795
        %v805 = vrot.slane %v779, 1
        %v806 = vrot.slane %v780, 1
        %v807 = vsel %vm507, %v805, %v806
        %v808 = vrot.slane %v781, 1
        %v809 = vsel %vm507, %v806, %v808
        %810 = vrot.lane.b32.xlu0 %v807, 125
        %v811 = vpop.permute.xlu0 %810
        %812 = vrot.lane.b32.xlu0 %v809, 125
        %v813 = vpop.permute.xlu0 %812
        %v816 = vadd.f32 %v760, %v811
        %v817 = vadd.f32 %v761, %v813
        %v821 = vrot.slane %v481, 1
        %v822 = vrot.slane %v482, 1
        %v823 = vsel %vm507, %v821, %v822
        %v824 = vrot.slane %v483, 1
        %v825 = vsel %vm507, %v822, %v824
        %826 = vrot.lane.b32.xlu0 %v823, 125
        %v827 = vpop.permute.xlu0 %826
        %828 = vrot.lane.b32.xlu0 %v825, 125
        %v829 = vpop.permute.xlu0 %828
        %830 = vrot.lane.b32.xlu0 %v824, 125
        %v831 = vpop.permute.xlu0 %830
        %v835 = vadd.f32 %v799, %v827
        %v836 = vadd.f32 %v800, %v829
        %v837 = vadd.f32 %v801, %v831
        %vm841 = vcmask 1044480
        %v842 = vrot.slane %v835, 3
        %v843 = vrot.slane %v836, 3
        %v844 = vsel %vm841, %v842, %v843
        %v845 = vrot.slane %v837, 3
        %v846 = vsel %vm841, %v843, %v845
        %847 = vrot.lane.b32.xlu0 %v844, 127
        %v848 = vpop.permute.xlu0 %847
        %849 = vrot.lane.b32.xlu0 %v846, 127
        %v850 = vpop.permute.xlu0 %849
        %v853 = vadd.f32 %v816, %v848
        %v854 = vadd.f32 %v817, %v850
        %s855 = sld [smem:[#allocation7]]
        %v856 = vstv %s855
        %v857 = vadd.f32 %v853, %v856
        %v858 = vadd.f32 %v854, %v856
        %861 = vrot.lane.b32.xlu0 %v857, 9
        %v862 = vpop.permute.xlu0 %861
        %863 = vrot.lane.b32.xlu0 %v858, 9
        %v864 = vpop.permute.xlu0 %863
        %vm867 = vcmask 203848
        %868 = vst.msk [vmem:[#allocation2 + $0x9] sm:$0xff] %vm867, %v862
        %869 = vst.msk [vmem:[#allocation2 + $0x11] sm:$0xff] %vm867, %v864
        %v870 = vld [vmem:[#allocation2] sm:$0xff]
        %v871 = vld [vmem:[#allocation2 + $0x8] sm:$0xff]
        %v872 = vld [vmem:[#allocation2 + $0x10] sm:$0xff]
        %v873 = vld [vmem:[#allocation2 + $0x18] sm:$0xff]
        %v874 = vld [vmem:[#allocation2 + $0x20] sm:$0x3]
        %s875 = sld [smem:[#allocation9]]
        %v876 = vstv %s875
        %v877 = vmul.f32 %v870, %v876
        %v878 = vmul.f32 %v871, %v876
        %s879 = sld [smem:[#allocation9 + $0x1]]
        %v880 = vstv %s879
        %v881 = vmul.f32 %v870, %v880
        %v882 = vmul.f32 %v871, %v880
        %s883 = sld [smem:[#allocation9 + $0x2]]
        %v884 = vstv %s883
        %v885 = vmul.f32 %v870, %v884
        %v886 = vmul.f32 %v871, %v884
        %s887 = sld [smem:[#allocation9 + $0x3]]
        %v888 = vstv %s887
        %v889 = vmul.f32 %v870, %v888
        %v890 = vmul.f32 %v871, %v888
        %s891 = sld [smem:[#allocation9 + $0x4]]
        %v892 = vstv %s891
        %v893 = vmul.f32 %v870, %v892
        %v894 = vmul.f32 %v871, %v892
        %s895 = sld [smem:[#allocation9 + $0x5]]
        %v896 = vstv %s895
        %v897 = vmul.f32 %v870, %v896
        %v898 = vmul.f32 %v871, %v896
        %s899 = sld [smem:[#allocation9 + $0x6]]
        %v900 = vstv %s899
        %v901 = vmul.f32 %v870, %v900
        %v902 = vmul.f32 %v871, %v900
        %s903 = sld [smem:[#allocation9 + $0x7]]
        %v904 = vstv %s903
        %v905 = vmul.f32 %v870, %v904
        %v906 = vmul.f32 %v871, %v904
        %v907 = vmul.f32 %v872, %v904
        %s908 = sld [smem:[#allocation9 + $0x8]]
        %v909 = vstv %s908
        %v910 = vmul.f32 %v870, %v909
        %v911 = vmul.f32 %v871, %v909
        %v912 = vmul.f32 %v872, %v909
        %s913 = sld [smem:[#allocation9 + $0x9]]
        %v914 = vstv %s913
        %v915 = vmul.f32 %v870, %v914
        %v916 = vmul.f32 %v871, %v914
        %v917 = vmul.f32 %v872, %v914
        %s918 = sld [smem:[#allocation9 + $0xa]]
        %v919 = vstv %s918
        %v920 = vmul.f32 %v870, %v919
        %v921 = vmul.f32 %v871, %v919
        %v922 = vmul.f32 %v872, %v919
        %s923 = sld [smem:[#allocation9 + $0xb]]
        %v924 = vstv %s923
        %v925 = vmul.f32 %v870, %v924
        %v926 = vmul.f32 %v871, %v924
        %v927 = vmul.f32 %v872, %v924
        %s928 = sld [smem:[#allocation9 + $0xc]]
        %v929 = vstv %s928
        %v930 = vmul.f32 %v870, %v929
        %v931 = vmul.f32 %v871, %v929
        %v932 = vmul.f32 %v872, %v929
        %s933 = sld [smem:[#allocation9 + $0xd]]
        %v934 = vstv %s933
        %v935 = vmul.f32 %v870, %v934
        %v936 = vmul.f32 %v871, %v934
        %v937 = vmul.f32 %v872, %v934
        %s938 = sld [smem:[#allocation9 + $0xe]]
        %v939 = vstv %s938
        %v940 = vmul.f32 %v870, %v939
        %v941 = vmul.f32 %v871, %v939
        %v942 = vmul.f32 %v872, %v939
        %s943 = sld [smem:[#allocation9 + $0xf]]
        %v944 = vstv %s943
        %v945 = vmul.f32 %v870, %v944
        %v946 = vmul.f32 %v871, %v944
        %v947 = vmul.f32 %v872, %v944
        %s948 = sld [smem:[#allocation9 + $0x10]]
        %v949 = vstv %s948
        %v950 = vmul.f32 %v870, %v949
        %v951 = vmul.f32 %v871, %v949
        %v952 = vmul.f32 %v872, %v949
        %s953 = sld [smem:[#allocation9 + $0x11]]
        %v954 = vstv %s953
        %v955 = vmul.f32 %v870, %v954
        %v956 = vmul.f32 %v871, %v954
        %v957 = vmul.f32 %v872, %v954
        %s958 = sld [smem:[#allocation9 + $0x12]]
        %v959 = vstv %s958
        %v960 = vmul.f32 %v870, %v959
        %v961 = vmul.f32 %v871, %v959
        %v962 = vmul.f32 %v872, %v959
        %s963 = sld [smem:[#allocation9 + $0x13]]
        %v964 = vstv %s963
        %v965 = vmul.f32 %v870, %v964
        %v966 = vmul.f32 %v871, %v964
        %v967 = vmul.f32 %v872, %v964
        %s968 = sld [smem:[#allocation9 + $0x14]]
        %v969 = vstv %s968
        %v970 = vmul.f32 %v870, %v969
        %v971 = vmul.f32 %v871, %v969
        %v972 = vmul.f32 %v872, %v969
        %s973 = sld [smem:[#allocation9 + $0x15]]
        %v974 = vstv %s973
        %v975 = vmul.f32 %v871, %v974
        %v976 = vmul.f32 %v872, %v974
        %v977 = vmul.f32 %v873, %v974
        %s978 = sld [smem:[#allocation9 + $0x16]]
        %v979 = vstv %s978
        %v980 = vmul.f32 %v871, %v979
        %v981 = vmul.f32 %v872, %v979
        %v982 = vmul.f32 %v873, %v979
        %s983 = sld [smem:[#allocation9 + $0x17]]
        %v984 = vstv %s983
        %v985 = vmul.f32 %v871, %v984
        %v986 = vmul.f32 %v872, %v984
        %v987 = vmul.f32 %v873, %v984
        %s988 = sld [smem:[#allocation9 + $0x18]]
        %v989 = vstv %s988
        %v990 = vmul.f32 %v871, %v989
        %v991 = vmul.f32 %v872, %v989
        %v992 = vmul.f32 %v873, %v989
        %s993 = sld [smem:[#allocation9 + $0x19]]
        %v994 = vstv %s993
        %v995 = vmul.f32 %v871, %v994
        %v996 = vmul.f32 %v872, %v994
        %v997 = vmul.f32 %v873, %v994
        %s998 = sld [smem:[#allocation9 + $0x1a]]
        %v999 = vstv %s998
        %v1000 = vmul.f32 %v871, %v999
        %v1001 = vmul.f32 %v872, %v999
        %v1002 = vmul.f32 %v873, %v999
        %s1003 = sld [smem:[#allocation9 + $0x1b]]
        %v1004 = vstv %s1003
        %v1005 = vmul.f32 %v871, %v1004
        %v1006 = vmul.f32 %v872, %v1004
        %v1007 = vmul.f32 %v873, %v1004
        %s1008 = sld [smem:[#allocation9 + $0x1c]]
        %v1009 = vstv %s1008
        %v1010 = vmul.f32 %v871, %v1009
        %v1011 = vmul.f32 %v872, %v1009
        %v1012 = vmul.f32 %v873, %v1009
        %s1013 = sld [smem:[#allocation9 + $0x1d]]
        %v1014 = vstv %s1013
        %v1015 = vmul.f32 %v871, %v1014
        %v1016 = vmul.f32 %v872, %v1014
        %v1017 = vmul.f32 %v873, %v1014
        %s1018 = sld [smem:[#allocation9 + $0x1e]]
        %v1019 = vstv %s1018
        %v1020 = vmul.f32 %v871, %v1019
        %v1021 = vmul.f32 %v872, %v1019
        %v1022 = vmul.f32 %v873, %v1019
        %s1023 = sld [smem:[#allocation9 + $0x1f]]
        %v1024 = vstv %s1023
        %v1025 = vmul.f32 %v871, %v1024
        %v1026 = vmul.f32 %v872, %v1024
        %v1027 = vmul.f32 %v873, %v1024
        %s1028 = sld [smem:[#allocation9 + $0x20]]
        %v1029 = vstv %s1028
        %v1030 = vmul.f32 %v871, %v1029
        %v1031 = vmul.f32 %v872, %v1029
        %v1032 = vmul.f32 %v873, %v1029
        %s1033 = sld [smem:[#allocation9 + $0x21]]
        %v1034 = vstv %s1033
        %v1035 = vmul.f32 %v871, %v1034
        %v1036 = vmul.f32 %v872, %v1034
        %v1037 = vmul.f32 %v873, %v1034
        %s1038 = sld [smem:[#allocation9 + $0x22]]
        %v1039 = vstv %s1038
        %v1040 = vmul.f32 %v871, %v1039
        %v1041 = vmul.f32 %v872, %v1039
        %v1042 = vmul.f32 %v873, %v1039
        %s1043 = sld [smem:[#allocation9 + $0x23]]
        %v1044 = vstv %s1043
        %v1045 = vmul.f32 %v871, %v1044
        %v1046 = vmul.f32 %v872, %v1044
        %v1047 = vmul.f32 %v873, %v1044
        %s1048 = sld [smem:[#allocation9 + $0x24]]
        %v1049 = vstv %s1048
        %v1050 = vmul.f32 %v871, %v1049
        %v1051 = vmul.f32 %v872, %v1049
        %v1052 = vmul.f32 %v873, %v1049
        %s1053 = sld [smem:[#allocation9 + $0x25]]
        %v1054 = vstv %s1053
        %v1055 = vmul.f32 %v871, %v1054
        %v1056 = vmul.f32 %v872, %v1054
        %v1057 = vmul.f32 %v873, %v1054
        %s1058 = sld [smem:[#allocation9 + $0x26]]
        %v1059 = vstv %s1058
        %v1060 = vmul.f32 %v871, %v1059
        %v1061 = vmul.f32 %v872, %v1059
        %v1062 = vmul.f32 %v873, %v1059
        %s1063 = sld [smem:[#allocation9 + $0x27]]
        %v1064 = vstv %s1063
        %v1065 = vmul.f32 %v871, %v1064
        %v1066 = vmul.f32 %v872, %v1064
        %v1067 = vmul.f32 %v873, %v1064
        %s1068 = sld [smem:[#allocation9 + $0x28]]
        %v1069 = vstv %s1068
        %v1070 = vmul.f32 %v871, %v1069
        %v1071 = vmul.f32 %v872, %v1069
        %v1072 = vmul.f32 %v873, %v1069
        %s1073 = sld [smem:[#allocation9 + $0x29]]
        %v1074 = vstv %s1073
        %v1075 = vmul.f32 %v871, %v1074
        %v1076 = vmul.f32 %v872, %v1074
        %v1077 = vmul.f32 %v873, %v1074
        %s1078 = sld [smem:[#allocation9 + $0x2a]]
        %v1079 = vstv %s1078
        %v1080 = vmul.f32 %v872, %v1079
        %v1081 = vmul.f32 %v873, %v1079
        %v1082 = vmul.f32 %v874, %v1079
        %s1083 = sld [smem:[#allocation9 + $0x2b]]
        %v1084 = vstv %s1083
        %v1085 = vmul.f32 %v872, %v1084
        %v1086 = vmul.f32 %v873, %v1084
        %v1087 = vmul.f32 %v874, %v1084
        %s1088 = sld [smem:[#allocation9 + $0x2c]]
        %v1089 = vstv %s1088
        %v1090 = vmul.f32 %v872, %v1089
        %v1091 = vmul.f32 %v873, %v1089
        %v1092 = vmul.f32 %v874, %v1089
        %s1093 = sld [smem:[#allocation9 + $0x2d]]
        %v1094 = vstv %s1093
        %v1095 = vmul.f32 %v872, %v1094
        %v1096 = vmul.f32 %v873, %v1094
        %v1097 = vmul.f32 %v874, %v1094
        %s1098 = sld [smem:[#allocation9 + $0x2e]]
        %v1099 = vstv %s1098
        %v1100 = vmul.f32 %v872, %v1099
        %v1101 = vmul.f32 %v873, %v1099
        %v1102 = vmul.f32 %v874, %v1099
        %s1103 = sld [smem:[#allocation9 + $0x2f]]
        %v1104 = vstv %s1103
        %v1105 = vmul.f32 %v872, %v1104
        %v1106 = vmul.f32 %v873, %v1104
        %v1107 = vmul.f32 %v874, %v1104
        %s1108 = sld [smem:[#allocation9 + $0x30]]
        %v1109 = vstv %s1108
        %v1110 = vmul.f32 %v872, %v1109
        %v1111 = vmul.f32 %v873, %v1109
        %v1112 = vmul.f32 %v874, %v1109
        %1115 = vrot.lane.b32.xlu0 %v881, 125
        %v1116 = vpop.permute.xlu0 %1115
        %1117 = vrot.lane.b32.xlu0 %v882, 125
        %v1118 = vpop.permute.xlu0 %1117
        %v1121 = vadd.f32 %v877, %v1116
        %v1122 = vadd.f32 %v878, %v1118
        %1125 = vrot.lane.b32.xlu0 %v889, 125
        %v1126 = vpop.permute.xlu0 %1125
        %1127 = vrot.lane.b32.xlu0 %v890, 125
        %v1128 = vpop.permute.xlu0 %1127
        %v1131 = vadd.f32 %v885, %v1126
        %v1132 = vadd.f32 %v886, %v1128
        %1135 = vrot.lane.b32.xlu0 %v897, 125
        %v1136 = vpop.permute.xlu0 %1135
        %1137 = vrot.lane.b32.xlu0 %v898, 125
        %v1138 = vpop.permute.xlu0 %1137
        %v1141 = vadd.f32 %v893, %v1136
        %v1142 = vadd.f32 %v894, %v1138
        %v1146 = vrot.slane %v905, 3
        %v1147 = vrot.slane %v906, 3
        %v1148 = vsel %vm841, %v1146, %v1147
        %v1149 = vrot.slane %v907, 3
        %v1150 = vsel %vm841, %v1147, %v1149
        %1151 = vrot.lane.b32.xlu0 %v1148, 18
        %v1152 = vpop.permute.xlu0 %1151
        %1153 = vrot.lane.b32.xlu0 %v1150, 18
        %v1154 = vpop.permute.xlu0 %1153
        %v1157 = vadd.f32 %v901, %v1152
        %v1158 = vadd.f32 %v902, %v1154
        %1162 = vrot.lane.b32.xlu0 %v915, 125
        %v1163 = vpop.permute.xlu0 %1162
        %1164 = vrot.lane.b32.xlu0 %v916, 125
        %v1165 = vpop.permute.xlu0 %1164
        %1166 = vrot.lane.b32.xlu0 %v917, 125
        %v1167 = vpop.permute.xlu0 %1166
        %v1171 = vadd.f32 %v910, %v1163
        %v1172 = vadd.f32 %v911, %v1165
        %v1173 = vadd.f32 %v912, %v1167
        %1177 = vrot.lane.b32.xlu0 %v925, 125
        %v1178 = vpop.permute.xlu0 %1177
        %1179 = vrot.lane.b32.xlu0 %v926, 125
        %v1180 = vpop.permute.xlu0 %1179
        %1181 = vrot.lane.b32.xlu0 %v927, 125
        %v1182 = vpop.permute.xlu0 %1181
        %v1186 = vadd.f32 %v920, %v1178
        %v1187 = vadd.f32 %v921, %v1180
        %v1188 = vadd.f32 %v922, %v1182
        %1192 = vrot.lane.b32.xlu0 %v935, 125
        %v1193 = vpop.permute.xlu0 %1192
        %1194 = vrot.lane.b32.xlu0 %v936, 125
        %v1195 = vpop.permute.xlu0 %1194
        %1196 = vrot.lane.b32.xlu0 %v937, 125
        %v1197 = vpop.permute.xlu0 %1196
        %v1201 = vadd.f32 %v930, %v1193
        %v1202 = vadd.f32 %v931, %v1195
        %v1203 = vadd.f32 %v932, %v1197
        %1207 = vrot.lane.b32.xlu0 %v945, 125
        %v1208 = vpop.permute.xlu0 %1207
        %1209 = vrot.lane.b32.xlu0 %v946, 125
        %v1210 = vpop.permute.xlu0 %1209
        %1211 = vrot.lane.b32.xlu0 %v947, 125
        %v1212 = vpop.permute.xlu0 %1211
        %v1216 = vadd.f32 %v940, %v1208
        %v1217 = vadd.f32 %v941, %v1210
        %v1218 = vadd.f32 %v942, %v1212
        %1222 = vrot.lane.b32.xlu0 %v955, 125
        %v1223 = vpop.permute.xlu0 %1222
        %1224 = vrot.lane.b32.xlu0 %v956, 125
        %v1225 = vpop.permute.xlu0 %1224
        %1226 = vrot.lane.b32.xlu0 %v957, 125
        %v1227 = vpop.permute.xlu0 %1226
        %v1231 = vadd.f32 %v950, %v1223
        %v1232 = vadd.f32 %v951, %v1225
        %v1233 = vadd.f32 %v952, %v1227
        %1237 = vrot.lane.b32.xlu0 %v965, 125
        %v1238 = vpop.permute.xlu0 %1237
        %1239 = vrot.lane.b32.xlu0 %v966, 125
        %v1240 = vpop.permute.xlu0 %1239
        %1241 = vrot.lane.b32.xlu0 %v967, 125
        %v1242 = vpop.permute.xlu0 %1241
        %v1246 = vadd.f32 %v960, %v1238
        %v1247 = vadd.f32 %v961, %v1240
        %v1248 = vadd.f32 %v962, %v1242
        %v1252 = vrot.slane %v975, 3
        %v1253 = vrot.slane %v976, 3
        %v1254 = vsel %vm841, %v1252, %v1253
        %v1255 = vrot.slane %v977, 3
        %v1256 = vsel %vm841, %v1253, %v1255
        %1257 = vrot.lane.b32.xlu0 %v1252, 18
        %v1258 = vpop.permute.xlu0 %1257
        %1259 = vrot.lane.b32.xlu0 %v1254, 18
        %v1260 = vpop.permute.xlu0 %1259
        %1261 = vrot.lane.b32.xlu0 %v1256, 18
        %v1262 = vpop.permute.xlu0 %1261
        %v1266 = vadd.f32 %v970, %v1258
        %v1267 = vadd.f32 %v971, %v1260
        %v1268 = vadd.f32 %v972, %v1262
        %1272 = vrot.lane.b32.xlu0 %v985, 125
        %v1273 = vpop.permute.xlu0 %1272
        %1274 = vrot.lane.b32.xlu0 %v986, 125
        %v1275 = vpop.permute.xlu0 %1274
        %1276 = vrot.lane.b32.xlu0 %v987, 125
        %v1277 = vpop.permute.xlu0 %1276
        %v1281 = vadd.f32 %v980, %v1273
        %v1282 = vadd.f32 %v981, %v1275
        %v1283 = vadd.f32 %v982, %v1277
        %1287 = vrot.lane.b32.xlu0 %v995, 125
        %v1288 = vpop.permute.xlu0 %1287
        %1289 = vrot.lane.b32.xlu0 %v996, 125
        %v1290 = vpop.permute.xlu0 %1289
        %1291 = vrot.lane.b32.xlu0 %v997, 125
        %v1292 = vpop.permute.xlu0 %1291
        %v1296 = vadd.f32 %v990, %v1288
        %v1297 = vadd.f32 %v991, %v1290
        %v1298 = vadd.f32 %v992, %v1292
        %1302 = vrot.lane.b32.xlu0 %v1005, 125
        %v1303 = vpop.permute.xlu0 %1302
        %1304 = vrot.lane.b32.xlu0 %v1006, 125
        %v1305 = vpop.permute.xlu0 %1304
        %1306 = vrot.lane.b32.xlu0 %v1007, 125
        %v1307 = vpop.permute.xlu0 %1306
        %v1311 = vadd.f32 %v1000, %v1303
        %v1312 = vadd.f32 %v1001, %v1305
        %v1313 = vadd.f32 %v1002, %v1307
        %1317 = vrot.lane.b32.xlu0 %v1015, 125
        %v1318 = vpop.permute.xlu0 %1317
        %1319 = vrot.lane.b32.xlu0 %v1016, 125
        %v1320 = vpop.permute.xlu0 %1319
        %1321 = vrot.lane.b32.xlu0 %v1017, 125
        %v1322 = vpop.permute.xlu0 %1321
        %v1326 = vadd.f32 %v1010, %v1318
        %v1327 = vadd.f32 %v1011, %v1320
        %v1328 = vadd.f32 %v1012, %v1322
        %1332 = vrot.lane.b32.xlu0 %v1025, 125
        %v1333 = vpop.permute.xlu0 %1332
        %1334 = vrot.lane.b32.xlu0 %v1026, 125
        %v1335 = vpop.permute.xlu0 %1334
        %1336 = vrot.lane.b32.xlu0 %v1027, 125
        %v1337 = vpop.permute.xlu0 %1336
        %v1341 = vadd.f32 %v1020, %v1333
        %v1342 = vadd.f32 %v1021, %v1335
        %v1343 = vadd.f32 %v1022, %v1337
        %1347 = vrot.lane.b32.xlu0 %v1035, 125
        %v1348 = vpop.permute.xlu0 %1347
        %1349 = vrot.lane.b32.xlu0 %v1036, 125
        %v1350 = vpop.permute.xlu0 %1349
        %1351 = vrot.lane.b32.xlu0 %v1037, 125
        %v1352 = vpop.permute.xlu0 %1351
        %v1356 = vadd.f32 %v1030, %v1348
        %v1357 = vadd.f32 %v1031, %v1350
        %v1358 = vadd.f32 %v1032, %v1352
        %v1362 = vrot.slane %v1045, 3
        %v1363 = vrot.slane %v1046, 3
        %v1364 = vsel %vm841, %v1362, %v1363
        %v1365 = vrot.slane %v1047, 3
        %v1366 = vsel %vm841, %v1363, %v1365
        %1367 = vrot.lane.b32.xlu0 %v1364, 18
        %v1368 = vpop.permute.xlu0 %1367
        %1369 = vrot.lane.b32.xlu0 %v1366, 18
        %v1370 = vpop.permute.xlu0 %1369
        %1371 = vrot.lane.b32.xlu0 %v1365, 18
        %v1372 = vpop.permute.xlu0 %1371
        %v1376 = vadd.f32 %v1040, %v1368
        %v1377 = vadd.f32 %v1041, %v1370
        %v1378 = vadd.f32 %v1042, %v1372
        %1382 = vrot.lane.b32.xlu0 %v1055, 125
        %v1383 = vpop.permute.xlu0 %1382
        %1384 = vrot.lane.b32.xlu0 %v1056, 125
        %v1385 = vpop.permute.xlu0 %1384
        %1386 = vrot.lane.b32.xlu0 %v1057, 125
        %v1387 = vpop.permute.xlu0 %1386
        %v1391 = vadd.f32 %v1050, %v1383
        %v1392 = vadd.f32 %v1051, %v1385
        %v1393 = vadd.f32 %v1052, %v1387
        %1397 = vrot.lane.b32.xlu0 %v1065, 125
        %v1398 = vpop.permute.xlu0 %1397
        %1399 = vrot.lane.b32.xlu0 %v1066, 125
        %v1400 = vpop.permute.xlu0 %1399
        %1401 = vrot.lane.b32.xlu0 %v1067, 125
        %v1402 = vpop.permute.xlu0 %1401
        %v1406 = vadd.f32 %v1060, %v1398
        %v1407 = vadd.f32 %v1061, %v1400
        %v1408 = vadd.f32 %v1062, %v1402
        %1412 = vrot.lane.b32.xlu0 %v1075, 125
        %v1413 = vpop.permute.xlu0 %1412
        %1414 = vrot.lane.b32.xlu0 %v1076, 125
        %v1415 = vpop.permute.xlu0 %1414
        %1416 = vrot.lane.b32.xlu0 %v1077, 125
        %v1417 = vpop.permute.xlu0 %1416
        %v1421 = vadd.f32 %v1070, %v1413
        %v1422 = vadd.f32 %v1071, %v1415
        %v1423 = vadd.f32 %v1072, %v1417
        %1427 = vrot.lane.b32.xlu0 %v1085, 125
        %v1428 = vpop.permute.xlu0 %1427
        %1429 = vrot.lane.b32.xlu0 %v1086, 125
        %v1430 = vpop.permute.xlu0 %1429
        %1431 = vrot.lane.b32.xlu0 %v1087, 125
        %v1432 = vpop.permute.xlu0 %1431
        %v1436 = vadd.f32 %v1080, %v1428
        %v1437 = vadd.f32 %v1081, %v1430
        %v1438 = vadd.f32 %v1082, %v1432
        %1442 = vrot.lane.b32.xlu0 %v1095, 125
        %v1443 = vpop.permute.xlu0 %1442
        %1444 = vrot.lane.b32.xlu0 %v1096, 125
        %v1445 = vpop.permute.xlu0 %1444
        %1446 = vrot.lane.b32.xlu0 %v1097, 125
        %v1447 = vpop.permute.xlu0 %1446
        %v1451 = vadd.f32 %v1090, %v1443
        %v1452 = vadd.f32 %v1091, %v1445
        %v1453 = vadd.f32 %v1092, %v1447
        %1457 = vrot.lane.b32.xlu0 %v1105, 125
        %v1458 = vpop.permute.xlu0 %1457
        %1459 = vrot.lane.b32.xlu0 %v1106, 125
        %v1460 = vpop.permute.xlu0 %1459
        %1461 = vrot.lane.b32.xlu0 %v1107, 125
        %v1462 = vpop.permute.xlu0 %1461
        %v1466 = vadd.f32 %v1100, %v1458
        %v1467 = vadd.f32 %v1101, %v1460
        %v1468 = vadd.f32 %v1102, %v1462
        %1471 = vrot.lane.b32.xlu0 %v1131, 122
        %v1472 = vpop.permute.xlu0 %1471
        %1473 = vrot.lane.b32.xlu0 %v1132, 122
        %v1474 = vpop.permute.xlu0 %1473
        %v1477 = vadd.f32 %v1121, %v1472
        %v1478 = vadd.f32 %v1122, %v1474
        %1481 = vrot.lane.b32.xlu0 %v1157, 122
        %v1482 = vpop.permute.xlu0 %1481
        %1483 = vrot.lane.b32.xlu0 %v1158, 122
        %v1484 = vpop.permute.xlu0 %1483
        %v1487 = vadd.f32 %v1141, %v1482
        %v1488 = vadd.f32 %v1142, %v1484
        %1492 = vrot.lane.b32.xlu0 %v1186, 122
        %v1493 = vpop.permute.xlu0 %1492
        %1494 = vrot.lane.b32.xlu0 %v1187, 122
        %v1495 = vpop.permute.xlu0 %1494
        %1496 = vrot.lane.b32.xlu0 %v1188, 122
        %v1497 = vpop.permute.xlu0 %1496
        %v1501 = vadd.f32 %v1171, %v1493
        %v1502 = vadd.f32 %v1172, %v1495
        %v1503 = vadd.f32 %v1173, %v1497
        %v1507 = vrot.slane %v1216, 3
        %v1508 = vrot.slane %v1217, 3
        %v1509 = vsel %vm841, %v1507, %v1508
        %v1510 = vrot.slane %v1218, 3
        %v1511 = vsel %vm841, %v1508, %v1510
        %1512 = vrot.lane.b32.xlu0 %v1509, 15
        %v1513 = vpop.permute.xlu0 %1512
        %1514 = vrot.lane.b32.xlu0 %v1511, 15
        %v1515 = vpop.permute.xlu0 %1514
        %1516 = vrot.lane.b32.xlu0 %v1510, 15
        %v1517 = vpop.permute.xlu0 %1516
        %v1521 = vadd.f32 %v1201, %v1513
        %v1522 = vadd.f32 %v1202, %v1515
        %v1523 = vadd.f32 %v1203, %v1517
        %1527 = vrot.lane.b32.xlu0 %v1246, 122
        %v1528 = vpop.permute.xlu0 %1527
        %1529 = vrot.lane.b32.xlu0 %v1247, 122
        %v1530 = vpop.permute.xlu0 %1529
        %1531 = vrot.lane.b32.xlu0 %v1248, 122
        %v1532 = vpop.permute.xlu0 %1531
        %v1536 = vadd.f32 %v1231, %v1528
        %v1537 = vadd.f32 %v1232, %v1530
        %v1538 = vadd.f32 %v1233, %v1532
        %v1542 = vrot.slane %v1281, 3
        %v1543 = vrot.slane %v1282, 3
        %v1544 = vsel %vm841, %v1542, %v1543
        %v1545 = vrot.slane %v1283, 3
        %v1546 = vsel %vm841, %v1543, %v1545
        %1547 = vrot.lane.b32.xlu0 %v1542, 15
        %v1548 = vpop.permute.xlu0 %1547
        %1549 = vrot.lane.b32.xlu0 %v1544, 15
        %v1550 = vpop.permute.xlu0 %1549
        %1551 = vrot.lane.b32.xlu0 %v1546, 15
        %v1552 = vpop.permute.xlu0 %1551
        %v1556 = vadd.f32 %v1266, %v1548
        %v1557 = vadd.f32 %v1267, %v1550
        %v1558 = vadd.f32 %v1268, %v1552
        %1562 = vrot.lane.b32.xlu0 %v1311, 122
        %v1563 = vpop.permute.xlu0 %1562
        %1564 = vrot.lane.b32.xlu0 %v1312, 122
        %v1565 = vpop.permute.xlu0 %1564
        %1566 = vrot.lane.b32.xlu0 %v1313, 122
        %v1567 = vpop.permute.xlu0 %1566
        %v1571 = vadd.f32 %v1296, %v1563
        %v1572 = vadd.f32 %v1297, %v1565
        %v1573 = vadd.f32 %v1298, %v1567
        %1577 = vrot.lane.b32.xlu0 %v1341, 122
        %v1578 = vpop.permute.xlu0 %1577
        %1579 = vrot.lane.b32.xlu0 %v1342, 122
        %v1580 = vpop.permute.xlu0 %1579
        %1581 = vrot.lane.b32.xlu0 %v1343, 122
        %v1582 = vpop.permute.xlu0 %1581
        %v1586 = vadd.f32 %v1326, %v1578
        %v1587 = vadd.f32 %v1327, %v1580
        %v1588 = vadd.f32 %v1328, %v1582
        %1592 = vrot.lane.b32.xlu0 %v1376, 122
        %v1593 = vpop.permute.xlu0 %1592
        %1594 = vrot.lane.b32.xlu0 %v1377, 122
        %v1595 = vpop.permute.xlu0 %1594
        %1596 = vrot.lane.b32.xlu0 %v1378, 122
        %v1597 = vpop.permute.xlu0 %1596
        %v1601 = vadd.f32 %v1356, %v1593
        %v1602 = vadd.f32 %v1357, %v1595
        %v1603 = vadd.f32 %v1358, %v1597
        %1607 = vrot.lane.b32.xlu0 %v1406, 122
        %v1608 = vpop.permute.xlu0 %1607
        %1609 = vrot.lane.b32.xlu0 %v1407, 122
        %v1610 = vpop.permute.xlu0 %1609
        %1611 = vrot.lane.b32.xlu0 %v1408, 122
        %v1612 = vpop.permute.xlu0 %1611
        %v1616 = vadd.f32 %v1391, %v1608
        %v1617 = vadd.f32 %v1392, %v1610
        %v1618 = vadd.f32 %v1393, %v1612
        %v1622 = vrot.slane %v1436, 3
        %v1623 = vrot.slane %v1437, 3
        %v1624 = vsel %vm841, %v1622, %v1623
        %v1625 = vrot.slane %v1438, 3
        %v1626 = vsel %vm841, %v1623, %v1625
        %1627 = vrot.lane.b32.xlu0 %v1622, 15
        %v1628 = vpop.permute.xlu0 %1627
        %1629 = vrot.lane.b32.xlu0 %v1624, 15
        %v1630 = vpop.permute.xlu0 %1629
        %1631 = vrot.lane.b32.xlu0 %v1626, 15
        %v1632 = vpop.permute.xlu0 %1631
        %v1636 = vadd.f32 %v1421, %v1628
        %v1637 = vadd.f32 %v1422, %v1630
        %v1638 = vadd.f32 %v1423, %v1632
        %1642 = vrot.lane.b32.xlu0 %v1466, 122
        %v1643 = vpop.permute.xlu0 %1642
        %1644 = vrot.lane.b32.xlu0 %v1467, 122
        %v1645 = vpop.permute.xlu0 %1644
        %1646 = vrot.lane.b32.xlu0 %v1468, 122
        %v1647 = vpop.permute.xlu0 %1646
        %v1651 = vadd.f32 %v1451, %v1643
        %v1652 = vadd.f32 %v1452, %v1645
        %v1653 = vadd.f32 %v1453, %v1647
        %1656 = vrot.lane.b32.xlu0 %v1487, 116
        %v1657 = vpop.permute.xlu0 %1656
        %1658 = vrot.lane.b32.xlu0 %v1488, 116
        %v1659 = vpop.permute.xlu0 %1658
        %v1662 = vadd.f32 %v1477, %v1657
        %v1663 = vadd.f32 %v1478, %v1659
        %1667 = vrot.lane.b32.xlu0 %v1521, 116
        %v1668 = vpop.permute.xlu0 %1667
        %1669 = vrot.lane.b32.xlu0 %v1522, 116
        %v1670 = vpop.permute.xlu0 %1669
        %1671 = vrot.lane.b32.xlu0 %v1523, 116
        %v1672 = vpop.permute.xlu0 %1671
        %v1676 = vadd.f32 %v1501, %v1668
        %v1677 = vadd.f32 %v1502, %v1670
        %v1678 = vadd.f32 %v1503, %v1672
        %1682 = vrot.lane.b32.xlu0 %v1556, 116
        %v1683 = vpop.permute.xlu0 %1682
        %1684 = vrot.lane.b32.xlu0 %v1557, 116
        %v1685 = vpop.permute.xlu0 %1684
        %1686 = vrot.lane.b32.xlu0 %v1558, 116
        %v1687 = vpop.permute.xlu0 %1686
        %v1691 = vadd.f32 %v1536, %v1683
        %v1692 = vadd.f32 %v1537, %v1685
        %v1693 = vadd.f32 %v1538, %v1687
        %v1697 = vrot.slane %v1586, 3
        %v1698 = vrot.slane %v1587, 3
        %v1699 = vsel %vm841, %v1697, %v1698
        %v1700 = vrot.slane %v1588, 3
        %v1701 = vsel %vm841, %v1698, %v1700
        %1702 = vrot.lane.b32.xlu0 %v1699, 9
        %v1703 = vpop.permute.xlu0 %1702
        %1704 = vrot.lane.b32.xlu0 %v1701, 9
        %v1705 = vpop.permute.xlu0 %1704
        %1706 = vrot.lane.b32.xlu0 %v1700, 9
        %v1707 = vpop.permute.xlu0 %1706
        %v1711 = vadd.f32 %v1571, %v1703
        %v1712 = vadd.f32 %v1572, %v1705
        %v1713 = vadd.f32 %v1573, %v1707
        %v1717 = vrot.slane %v1616, 3
        %v1718 = vrot.slane %v1617, 3
        %v1719 = vsel %vm841, %v1717, %v1718
        %v1720 = vrot.slane %v1618, 3
        %v1721 = vsel %vm841, %v1718, %v1720
        %1722 = vrot.lane.b32.xlu0 %v1719, 9
        %v1723 = vpop.permute.xlu0 %1722
        %1724 = vrot.lane.b32.xlu0 %v1721, 9
        %v1725 = vpop.permute.xlu0 %1724
        %1726 = vrot.lane.b32.xlu0 %v1720, 9
        %v1727 = vpop.permute.xlu0 %1726
        %v1731 = vadd.f32 %v1601, %v1723
        %v1732 = vadd.f32 %v1602, %v1725
        %v1733 = vadd.f32 %v1603, %v1727
        %v1737 = vrot.slane %v1651, 3
        %v1738 = vrot.slane %v1652, 3
        %v1739 = vsel %vm841, %v1737, %v1738
        %v1740 = vrot.slane %v1653, 3
        %v1741 = vsel %vm841, %v1738, %v1740
        %1742 = vrot.lane.b32.xlu0 %v1737, 9
        %v1743 = vpop.permute.xlu0 %1742
        %1744 = vrot.lane.b32.xlu0 %v1739, 9
        %v1745 = vpop.permute.xlu0 %1744
        %1746 = vrot.lane.b32.xlu0 %v1741, 9
        %v1747 = vpop.permute.xlu0 %1746
        %v1751 = vadd.f32 %v1636, %v1743
        %v1752 = vadd.f32 %v1637, %v1745
        %v1753 = vadd.f32 %v1638, %v1747
        %v1757 = vrot.slane %v1676, 3
        %v1758 = vrot.slane %v1677, 3
        %v1759 = vsel %vm841, %v1757, %v1758
        %v1760 = vrot.slane %v1678, 3
        %v1761 = vsel %vm841, %v1758, %v1760
        %1762 = vrot.lane.b32.xlu0 %v1759, 125
        %v1763 = vpop.permute.xlu0 %1762
        %1764 = vrot.lane.b32.xlu0 %v1761, 125
        %v1765 = vpop.permute.xlu0 %1764
        %v1768 = vadd.f32 %v1662, %v1763
        %v1769 = vadd.f32 %v1663, %v1765
        %v1773 = vrot.slane %v1711, 3
        %v1774 = vrot.slane %v1712, 3
        %v1775 = vsel %vm841, %v1773, %v1774
        %v1776 = vrot.slane %v1713, 3
        %v1777 = vsel %vm841, %v1774, %v1776
        %1778 = vrot.lane.b32.xlu0 %v1773, 125
        %v1779 = vpop.permute.xlu0 %1778
        %1780 = vrot.lane.b32.xlu0 %v1775, 125
        %v1781 = vpop.permute.xlu0 %1780
        %1782 = vrot.lane.b32.xlu0 %v1777, 125
        %v1783 = vpop.permute.xlu0 %1782
        %v1787 = vadd.f32 %v1691, %v1779
        %v1788 = vadd.f32 %v1692, %v1781
        %v1789 = vadd.f32 %v1693, %v1783
        %v1793 = vrot.slane %v1751, 3
        %v1794 = vrot.slane %v1752, 3
        %v1795 = vsel %vm841, %v1793, %v1794
        %v1796 = vrot.slane %v1753, 3
        %v1797 = vsel %vm841, %v1794, %v1796
        %1798 = vrot.lane.b32.xlu0 %v1795, 125
        %v1799 = vpop.permute.xlu0 %1798
        %1800 = vrot.lane.b32.xlu0 %v1797, 125
        %v1801 = vpop.permute.xlu0 %1800
        %1802 = vrot.lane.b32.xlu0 %v1796, 125
        %v1803 = vpop.permute.xlu0 %1802
        %v1807 = vadd.f32 %v1731, %v1799
        %v1808 = vadd.f32 %v1732, %v1801
        %v1809 = vadd.f32 %v1733, %v1803
        %vm1813 = vcmask 1041408
        %v1814 = vrot.slane %v1787, 6
        %v1815 = vrot.slane %v1788, 6
        %v1816 = vsel %vm1813, %v1814, %v1815
        %v1817 = vrot.slane %v1789, 6
        %v1818 = vsel %vm1813, %v1815, %v1817
        %1819 = vrot.lane.b32.xlu0 %v1816, 122
        %v1820 = vpop.permute.xlu0 %1819
        %1821 = vrot.lane.b32.xlu0 %v1818, 122
        %v1822 = vpop.permute.xlu0 %1821
        %v1825 = vadd.f32 %v1768, %v1820
        %v1826 = vadd.f32 %v1769, %v1822
        %v1830 = vrot.slane %v1110, 6
        %v1831 = vrot.slane %v1111, 6
        %v1832 = vsel %vm1813, %v1830, %v1831
        %v1833 = vrot.slane %v1112, 6
        %v1834 = vsel %vm1813, %v1831, %v1833
        %1835 = vrot.lane.b32.xlu0 %v1830, 122
        %v1836 = vpop.permute.xlu0 %1835
        %1837 = vrot.lane.b32.xlu0 %v1832, 122
        %v1838 = vpop.permute.xlu0 %1837
        %1839 = vrot.lane.b32.xlu0 %v1834, 122
        %v1840 = vpop.permute.xlu0 %1839
        %v1844 = vadd.f32 %v1807, %v1836
        %v1845 = vadd.f32 %v1808, %v1838
        %v1846 = vadd.f32 %v1809, %v1840
        %vm1850 = vcmask 1043456
        %v1851 = vrot.slane %v1844, 4
        %v1852 = vrot.slane %v1845, 4
        %v1853 = vsel %vm1850, %v1851, %v1852
        %v1854 = vrot.slane %v1846, 4
        %v1855 = vsel %vm1850, %v1852, %v1854
        %1856 = vrot.lane.b32.xlu0 %v1853, 116
        %v1857 = vpop.permute.xlu0 %1856
        %1858 = vrot.lane.b32.xlu0 %v1855, 116
        %v1859 = vpop.permute.xlu0 %1858
        %v1862 = vadd.f32 %v1825, %v1857
        %v1863 = vadd.f32 %v1826, %v1859
        %s1864 = sld [smem:[#allocation10]]
        %v1865 = vstv %s1864
        %v1866 = vadd.f32 %v1862, %v1865
        %v1867 = vadd.f32 %v1863, %v1865
        %vm1868 = vcmask 130048
        %1869 = vst.msk [vmem:[#allocation3] sm:$0xff] %vm1868, %v1866
        %1870 = vst.msk [vmem:[#allocation3 + $0x8] sm:$0xff] %vm1868, %v1867
        %s1871 = scalar_lea.vmem %s353, 24
        %v1872 = vld [vmem:[%s1871] sm:$0xff]
        %v1873 = vld [vmem:[%s1871 + $0x8] sm:$0xff]
        %v1874 = vld [vmem:[%s1871 + $0x10] sm:$0xf]
        %s1875 = sld [smem:[#allocation4 + $0x19]]
        %v1876 = vstv %s1875
        %v1877 = vmul.f32 %v1872, %v1876
        %v1878 = vmul.f32 %v1873, %v1876
        %s1879 = sld [smem:[#allocation4 + $0x1a]]
        %v1880 = vstv %s1879
        %v1881 = vmul.f32 %v1872, %v1880
        %v1882 = vmul.f32 %v1873, %v1880
        %s1883 = sld [smem:[#allocation4 + $0x1b]]
        %v1884 = vstv %s1883
        %v1885 = vmul.f32 %v1872, %v1884
        %v1886 = vmul.f32 %v1873, %v1884
        %s1887 = sld [smem:[#allocation4 + $0x1c]]
        %v1888 = vstv %s1887
        %v1889 = vmul.f32 %v1872, %v1888
        %v1890 = vmul.f32 %v1873, %v1888
        %s1891 = sld [smem:[#allocation4 + $0x1d]]
        %v1892 = vstv %s1891
        %v1893 = vmul.f32 %v1872, %v1892
        %v1894 = vmul.f32 %v1873, %v1892
        %s1895 = sld [smem:[#allocation4 + $0x1e]]
        %v1896 = vstv %s1895
        %v1897 = vmul.f32 %v1872, %v1896
        %v1898 = vmul.f32 %v1873, %v1896
        %v1899 = vmul.f32 %v1874, %v1896
        %s1900 = sld [smem:[#allocation4 + $0x1f]]
        %v1901 = vstv %s1900
        %v1902 = vmul.f32 %v1872, %v1901
        %v1903 = vmul.f32 %v1873, %v1901
        %v1904 = vmul.f32 %v1874, %v1901
        %s1905 = sld [smem:[#allocation4 + $0x20]]
        %v1906 = vstv %s1905
        %v1907 = vmul.f32 %v1872, %v1906
        %v1908 = vmul.f32 %v1873, %v1906
        %v1909 = vmul.f32 %v1874, %v1906
        %s1910 = sld [smem:[#allocation4 + $0x21]]
        %v1911 = vstv %s1910
        %v1912 = vmul.f32 %v1872, %v1911
        %v1913 = vmul.f32 %v1873, %v1911
        %v1914 = vmul.f32 %v1874, %v1911
        %s1915 = sld [smem:[#allocation4 + $0x22]]
        %v1916 = vstv %s1915
        %v1917 = vmul.f32 %v1872, %v1916
        %v1918 = vmul.f32 %v1873, %v1916
        %v1919 = vmul.f32 %v1874, %v1916
        %s1920 = sld [smem:[#allocation4 + $0x23]]
        %v1921 = vstv %s1920
        %v1922 = vmul.f32 %v1872, %v1921
        %v1923 = vmul.f32 %v1873, %v1921
        %v1924 = vmul.f32 %v1874, %v1921
        %s1925 = sld [smem:[#allocation4 + $0x24]]
        %v1926 = vstv %s1925
        %v1927 = vmul.f32 %v1872, %v1926
        %v1928 = vmul.f32 %v1873, %v1926
        %v1929 = vmul.f32 %v1874, %v1926
        %s1930 = sld [smem:[#allocation4 + $0x25]]
        %v1931 = vstv %s1930
        %v1932 = vmul.f32 %v1872, %v1931
        %v1933 = vmul.f32 %v1873, %v1931
        %v1934 = vmul.f32 %v1874, %v1931
        %s1935 = sld [smem:[#allocation4 + $0x26]]
        %v1936 = vstv %s1935
        %v1937 = vmul.f32 %v1872, %v1936
        %v1938 = vmul.f32 %v1873, %v1936
        %v1939 = vmul.f32 %v1874, %v1936
        %s1940 = sld [smem:[#allocation4 + $0x27]]
        %v1941 = vstv %s1940
        %v1942 = vmul.f32 %v1872, %v1941
        %v1943 = vmul.f32 %v1873, %v1941
        %v1944 = vmul.f32 %v1874, %v1941
        %s1945 = sld [smem:[#allocation4 + $0x28]]
        %v1946 = vstv %s1945
        %v1947 = vmul.f32 %v1872, %v1946
        %v1948 = vmul.f32 %v1873, %v1946
        %v1949 = vmul.f32 %v1874, %v1946
        %s1950 = sld [smem:[#allocation4 + $0x29]]
        %v1951 = vstv %s1950
        %v1952 = vmul.f32 %v1872, %v1951
        %v1953 = vmul.f32 %v1873, %v1951
        %v1954 = vmul.f32 %v1874, %v1951
        %s1955 = sld [smem:[#allocation4 + $0x2a]]
        %v1956 = vstv %s1955
        %v1957 = vmul.f32 %v1872, %v1956
        %v1958 = vmul.f32 %v1873, %v1956
        %v1959 = vmul.f32 %v1874, %v1956
        %s1960 = sld [smem:[#allocation4 + $0x2b]]
        %v1961 = vstv %s1960
        %v1962 = vmul.f32 %v1872, %v1961
        %v1963 = vmul.f32 %v1873, %v1961
        %v1964 = vmul.f32 %v1874, %v1961
        %s1965 = sld [smem:[#allocation4 + $0x2c]]
        %v1966 = vstv %s1965
        %v1967 = vmul.f32 %v1872, %v1966
        %v1968 = vmul.f32 %v1873, %v1966
        %v1969 = vmul.f32 %v1874, %v1966
        %s1970 = sld [smem:[#allocation4 + $0x2d]]
        %v1971 = vstv %s1970
        %v1972 = vmul.f32 %v1872, %v1971
        %v1973 = vmul.f32 %v1873, %v1971
        %v1974 = vmul.f32 %v1874, %v1971
        %s1975 = sld [smem:[#allocation4 + $0x2e]]
        %v1976 = vstv %s1975
        %v1977 = vmul.f32 %v1872, %v1976
        %v1978 = vmul.f32 %v1873, %v1976
        %v1979 = vmul.f32 %v1874, %v1976
        %s1980 = sld [smem:[#allocation4 + $0x2f]]
        %v1981 = vstv %s1980
        %v1982 = vmul.f32 %v1872, %v1981
        %v1983 = vmul.f32 %v1873, %v1981
        %v1984 = vmul.f32 %v1874, %v1981
        %s1985 = sld [smem:[#allocation4 + $0x30]]
        %v1986 = vstv %s1985
        %v1987 = vmul.f32 %v1872, %v1986
        %v1988 = vmul.f32 %v1873, %v1986
        %v1989 = vmul.f32 %v1874, %v1986
        %s1990 = sld [smem:[#allocation4 + $0x31]]
        %v1991 = vstv %s1990
        %v1992 = vmul.f32 %v1872, %v1991
        %v1993 = vmul.f32 %v1873, %v1991
        %v1994 = vmul.f32 %v1874, %v1991
        %1997 = vrot.lane.b32.xlu0 %v1881, 127
        %v1998 = vpop.permute.xlu0 %1997
        %1999 = vrot.lane.b32.xlu0 %v1882, 127
        %v2000 = vpop.permute.xlu0 %1999
        %v2003 = vadd.f32 %v1877, %v1998
        %v2004 = vadd.f32 %v1878, %v2000
        %2007 = vrot.lane.b32.xlu0 %v1889, 127
        %v2008 = vpop.permute.xlu0 %2007
        %2009 = vrot.lane.b32.xlu0 %v1890, 127
        %v2010 = vpop.permute.xlu0 %2009
        %v2013 = vadd.f32 %v1885, %v2008
        %v2014 = vadd.f32 %v1886, %v2010
        %v2018 = vrot.slane %v1897, 1
        %v2019 = vrot.slane %v1898, 1
        %v2020 = vsel %vm507, %v2018, %v2019
        %v2021 = vrot.slane %v1899, 1
        %v2022 = vsel %vm507, %v2019, %v2021
        %2023 = vrot.lane.b32.xlu0 %v2020, 4
        %v2024 = vpop.permute.xlu0 %2023
        %2025 = vrot.lane.b32.xlu0 %v2022, 4
        %v2026 = vpop.permute.xlu0 %2025
        %v2029 = vadd.f32 %v1893, %v2024
        %v2030 = vadd.f32 %v1894, %v2026
        %2034 = vrot.lane.b32.xlu0 %v1907, 127
        %v2035 = vpop.permute.xlu0 %2034
        %2036 = vrot.lane.b32.xlu0 %v1908, 127
        %v2037 = vpop.permute.xlu0 %2036
        %2038 = vrot.lane.b32.xlu0 %v1909, 127
        %v2039 = vpop.permute.xlu0 %2038
        %v2043 = vadd.f32 %v1902, %v2035
        %v2044 = vadd.f32 %v1903, %v2037
        %v2045 = vadd.f32 %v1904, %v2039
        %2049 = vrot.lane.b32.xlu0 %v1917, 127
        %v2050 = vpop.permute.xlu0 %2049
        %2051 = vrot.lane.b32.xlu0 %v1918, 127
        %v2052 = vpop.permute.xlu0 %2051
        %2053 = vrot.lane.b32.xlu0 %v1919, 127
        %v2054 = vpop.permute.xlu0 %2053
        %v2058 = vadd.f32 %v1912, %v2050
        %v2059 = vadd.f32 %v1913, %v2052
        %v2060 = vadd.f32 %v1914, %v2054
        %2064 = vrot.lane.b32.xlu0 %v1927, 127
        %v2065 = vpop.permute.xlu0 %2064
        %2066 = vrot.lane.b32.xlu0 %v1928, 127
        %v2067 = vpop.permute.xlu0 %2066
        %2068 = vrot.lane.b32.xlu0 %v1929, 127
        %v2069 = vpop.permute.xlu0 %2068
        %v2073 = vadd.f32 %v1922, %v2065
        %v2074 = vadd.f32 %v1923, %v2067
        %v2075 = vadd.f32 %v1924, %v2069
        %2079 = vrot.lane.b32.xlu0 %v1937, 127
        %v2080 = vpop.permute.xlu0 %2079
        %2081 = vrot.lane.b32.xlu0 %v1938, 127
        %v2082 = vpop.permute.xlu0 %2081
        %2083 = vrot.lane.b32.xlu0 %v1939, 127
        %v2084 = vpop.permute.xlu0 %2083
        %v2088 = vadd.f32 %v1932, %v2080
        %v2089 = vadd.f32 %v1933, %v2082
        %v2090 = vadd.f32 %v1934, %v2084
        %v2094 = vrot.slane %v1947, 1
        %v2095 = vrot.slane %v1948, 1
        %v2096 = vsel %vm507, %v2094, %v2095
        %v2097 = vrot.slane %v1949, 1
        %v2098 = vsel %vm507, %v2095, %v2097
        %2099 = vrot.lane.b32.xlu0 %v2096, 4
        %v2100 = vpop.permute.xlu0 %2099
        %2101 = vrot.lane.b32.xlu0 %v2098, 4
        %v2102 = vpop.permute.xlu0 %2101
        %2103 = vrot.lane.b32.xlu0 %v2097, 4
        %v2104 = vpop.permute.xlu0 %2103
        %v2108 = vadd.f32 %v1942, %v2100
        %v2109 = vadd.f32 %v1943, %v2102
        %v2110 = vadd.f32 %v1944, %v2104
        %2114 = vrot.lane.b32.xlu0 %v1957, 127
        %v2115 = vpop.permute.xlu0 %2114
        %2116 = vrot.lane.b32.xlu0 %v1958, 127
        %v2117 = vpop.permute.xlu0 %2116
        %2118 = vrot.lane.b32.xlu0 %v1959, 127
        %v2119 = vpop.permute.xlu0 %2118
        %v2123 = vadd.f32 %v1952, %v2115
        %v2124 = vadd.f32 %v1953, %v2117
        %v2125 = vadd.f32 %v1954, %v2119
        %2129 = vrot.lane.b32.xlu0 %v1967, 127
        %v2130 = vpop.permute.xlu0 %2129
        %2131 = vrot.lane.b32.xlu0 %v1968, 127
        %v2132 = vpop.permute.xlu0 %2131
        %2133 = vrot.lane.b32.xlu0 %v1969, 127
        %v2134 = vpop.permute.xlu0 %2133
        %v2138 = vadd.f32 %v1962, %v2130
        %v2139 = vadd.f32 %v1963, %v2132
        %v2140 = vadd.f32 %v1964, %v2134
        %2144 = vrot.lane.b32.xlu0 %v1977, 127
        %v2145 = vpop.permute.xlu0 %2144
        %2146 = vrot.lane.b32.xlu0 %v1978, 127
        %v2147 = vpop.permute.xlu0 %2146
        %2148 = vrot.lane.b32.xlu0 %v1979, 127
        %v2149 = vpop.permute.xlu0 %2148
        %v2153 = vadd.f32 %v1972, %v2145
        %v2154 = vadd.f32 %v1973, %v2147
        %v2155 = vadd.f32 %v1974, %v2149
        %2159 = vrot.lane.b32.xlu0 %v1987, 127
        %v2160 = vpop.permute.xlu0 %2159
        %2161 = vrot.lane.b32.xlu0 %v1988, 127
        %v2162 = vpop.permute.xlu0 %2161
        %2163 = vrot.lane.b32.xlu0 %v1989, 127
        %v2164 = vpop.permute.xlu0 %2163
        %v2168 = vadd.f32 %v1982, %v2160
        %v2169 = vadd.f32 %v1983, %v2162
        %v2170 = vadd.f32 %v1984, %v2164
        %2173 = vrot.lane.b32.xlu0 %v2013, 126
        %v2174 = vpop.permute.xlu0 %2173
        %2175 = vrot.lane.b32.xlu0 %v2014, 126
        %v2176 = vpop.permute.xlu0 %2175
        %v2179 = vadd.f32 %v2003, %v2174
        %v2180 = vadd.f32 %v2004, %v2176
        %v2184 = vrot.slane %v2043, 1
        %v2185 = vrot.slane %v2044, 1
        %v2186 = vsel %vm507, %v2184, %v2185
        %v2187 = vrot.slane %v2045, 1
        %v2188 = vsel %vm507, %v2185, %v2187
        %2189 = vrot.lane.b32.xlu0 %v2186, 3
        %v2190 = vpop.permute.xlu0 %2189
        %2191 = vrot.lane.b32.xlu0 %v2188, 3
        %v2192 = vpop.permute.xlu0 %2191
        %v2195 = vadd.f32 %v2029, %v2190
        %v2196 = vadd.f32 %v2030, %v2192
        %v2200 = vrot.slane %v2073, 1
        %v2201 = vrot.slane %v2074, 1
        %v2202 = vsel %vm507, %v2200, %v2201
        %v2203 = vrot.slane %v2075, 1
        %v2204 = vsel %vm507, %v2201, %v2203
        %2205 = vrot.lane.b32.xlu0 %v2202, 3
        %v2206 = vpop.permute.xlu0 %2205
        %2207 = vrot.lane.b32.xlu0 %v2204, 3
        %v2208 = vpop.permute.xlu0 %2207
        %2209 = vrot.lane.b32.xlu0 %v2203, 3
        %v2210 = vpop.permute.xlu0 %2209
        %v2214 = vadd.f32 %v2058, %v2206
        %v2215 = vadd.f32 %v2059, %v2208
        %v2216 = vadd.f32 %v2060, %v2210
        %2220 = vrot.lane.b32.xlu0 %v2108, 126
        %v2221 = vpop.permute.xlu0 %2220
        %2222 = vrot.lane.b32.xlu0 %v2109, 126
        %v2223 = vpop.permute.xlu0 %2222
        %2224 = vrot.lane.b32.xlu0 %v2110, 126
        %v2225 = vpop.permute.xlu0 %2224
        %v2229 = vadd.f32 %v2088, %v2221
        %v2230 = vadd.f32 %v2089, %v2223
        %v2231 = vadd.f32 %v2090, %v2225
        %2235 = vrot.lane.b32.xlu0 %v2138, 126
        %v2236 = vpop.permute.xlu0 %2235
        %2237 = vrot.lane.b32.xlu0 %v2139, 126
        %v2238 = vpop.permute.xlu0 %2237
        %2239 = vrot.lane.b32.xlu0 %v2140, 126
        %v2240 = vpop.permute.xlu0 %2239
        %v2244 = vadd.f32 %v2123, %v2236
        %v2245 = vadd.f32 %v2124, %v2238
        %v2246 = vadd.f32 %v2125, %v2240
        %2250 = vrot.lane.b32.xlu0 %v2168, 126
        %v2251 = vpop.permute.xlu0 %2250
        %2252 = vrot.lane.b32.xlu0 %v2169, 126
        %v2253 = vpop.permute.xlu0 %2252
        %2254 = vrot.lane.b32.xlu0 %v2170, 126
        %v2255 = vpop.permute.xlu0 %2254
        %v2259 = vadd.f32 %v2153, %v2251
        %v2260 = vadd.f32 %v2154, %v2253
        %v2261 = vadd.f32 %v2155, %v2255
        %2264 = vrot.lane.b32.xlu0 %v2195, 124
        %v2265 = vpop.permute.xlu0 %2264
        %2266 = vrot.lane.b32.xlu0 %v2196, 124
        %v2267 = vpop.permute.xlu0 %2266
        %v2270 = vadd.f32 %v2179, %v2265
        %v2271 = vadd.f32 %v2180, %v2267
        %v2275 = vrot.slane %v2229, 1
        %v2276 = vrot.slane %v2230, 1
        %v2277 = vsel %vm507, %v2275, %v2276
        %v2278 = vrot.slane %v2231, 1
        %v2279 = vsel %vm507, %v2276, %v2278
        %2280 = vrot.lane.b32.xlu0 %v2277, 1
        %v2281 = vpop.permute.xlu0 %2280
        %2282 = vrot.lane.b32.xlu0 %v2279, 1
        %v2283 = vpop.permute.xlu0 %2282
        %2284 = vrot.lane.b32.xlu0 %v2278, 1
        %v2285 = vpop.permute.xlu0 %2284
        %v2289 = vadd.f32 %v2214, %v2281
        %v2290 = vadd.f32 %v2215, %v2283
        %v2291 = vadd.f32 %v2216, %v2285
        %v2295 = vrot.slane %v2259, 1
        %v2296 = vrot.slane %v2260, 1
        %v2297 = vsel %vm507, %v2295, %v2296
        %v2298 = vrot.slane %v2261, 1
        %v2299 = vsel %vm507, %v2296, %v2298
        %2300 = vrot.lane.b32.xlu0 %v2297, 1
        %v2301 = vpop.permute.xlu0 %2300
        %2302 = vrot.lane.b32.xlu0 %v2299, 1
        %v2303 = vpop.permute.xlu0 %2302
        %2304 = vrot.lane.b32.xlu0 %v2298, 1
        %v2305 = vpop.permute.xlu0 %2304
        %v2309 = vadd.f32 %v2244, %v2301
        %v2310 = vadd.f32 %v2245, %v2303
        %v2311 = vadd.f32 %v2246, %v2305
        %v2315 = vrot.slane %v2289, 1
        %v2316 = vrot.slane %v2290, 1
        %v2317 = vsel %vm507, %v2315, %v2316
        %v2318 = vrot.slane %v2291, 1
        %v2319 = vsel %vm507, %v2316, %v2318
        %2320 = vrot.lane.b32.xlu0 %v2317, 125
        %v2321 = vpop.permute.xlu0 %2320
        %2322 = vrot.lane.b32.xlu0 %v2319, 125
        %v2323 = vpop.permute.xlu0 %2322
        %v2326 = vadd.f32 %v2270, %v2321
        %v2327 = vadd.f32 %v2271, %v2323
        %v2331 = vrot.slane %v1992, 1
        %v2332 = vrot.slane %v1993, 1
        %v2333 = vsel %vm507, %v2331, %v2332
        %v2334 = vrot.slane %v1994, 1
        %v2335 = vsel %vm507, %v2332, %v2334
        %2336 = vrot.lane.b32.xlu0 %v2333, 125
        %v2337 = vpop.permute.xlu0 %2336
        %2338 = vrot.lane.b32.xlu0 %v2335, 125
        %v2339 = vpop.permute.xlu0 %2338
        %2340 = vrot.lane.b32.xlu0 %v2334, 125
        %v2341 = vpop.permute.xlu0 %2340
        %v2345 = vadd.f32 %v2309, %v2337
        %v2346 = vadd.f32 %v2310, %v2339
        %v2347 = vadd.f32 %v2311, %v2341
        %v2351 = vrot.slane %v2345, 3
        %v2352 = vrot.slane %v2346, 3
        %v2353 = vsel %vm841, %v2351, %v2352
        %v2354 = vrot.slane %v2347, 3
        %v2355 = vsel %vm841, %v2352, %v2354
        %2356 = vrot.lane.b32.xlu0 %v2353, 127
        %v2357 = vpop.permute.xlu0 %2356
        %2358 = vrot.lane.b32.xlu0 %v2355, 127
        %v2359 = vpop.permute.xlu0 %2358
        %v2362 = vadd.f32 %v2326, %v2357
        %v2363 = vadd.f32 %v2327, %v2359
        %s2364 = sld [smem:[#allocation7 + $0x1]]
        %v2365 = vstv %s2364
        %v2366 = vadd.f32 %v2362, %v2365
        %v2367 = vadd.f32 %v2363, %v2365
        %2370 = vrot.lane.b32.xlu0 %v2366, 9
        %v2371 = vpop.permute.xlu0 %2370
        %2372 = vrot.lane.b32.xlu0 %v2367, 9
        %v2373 = vpop.permute.xlu0 %2372
        %2376 = vst.msk [vmem:[#allocation2 + $0x9] sm:$0xff] %vm867, %v2371
        %2377 = vst.msk [vmem:[#allocation2 + $0x11] sm:$0xff] %vm867, %v2373
        %v2378 = vld [vmem:[#allocation2] sm:$0xff]
        %v2379 = vld [vmem:[#allocation2 + $0x8] sm:$0xff]
        %v2380 = vld [vmem:[#allocation2 + $0x10] sm:$0xff]
        %v2381 = vld [vmem:[#allocation2 + $0x18] sm:$0xff]
        %v2382 = vld [vmem:[#allocation2 + $0x20] sm:$0x3]
        %s2383 = sld [smem:[#allocation9 + $0x31]]
        %v2384 = vstv %s2383
        %v2385 = vmul.f32 %v2378, %v2384
        %v2386 = vmul.f32 %v2379, %v2384
        %s2387 = sld [smem:[#allocation9 + $0x32]]
        %v2388 = vstv %s2387
        %v2389 = vmul.f32 %v2378, %v2388
        %v2390 = vmul.f32 %v2379, %v2388
        %s2391 = sld [smem:[#allocation9 + $0x33]]
        %v2392 = vstv %s2391
        %v2393 = vmul.f32 %v2378, %v2392
        %v2394 = vmul.f32 %v2379, %v2392
        %s2395 = sld [smem:[#allocation9 + $0x34]]
        %v2396 = vstv %s2395
        %v2397 = vmul.f32 %v2378, %v2396
        %v2398 = vmul.f32 %v2379, %v2396
        %s2399 = sld [smem:[#allocation9 + $0x35]]
        %v2400 = vstv %s2399
        %v2401 = vmul.f32 %v2378, %v2400
        %v2402 = vmul.f32 %v2379, %v2400
        %s2403 = sld [smem:[#allocation9 + $0x36]]
        %v2404 = vstv %s2403
        %v2405 = vmul.f32 %v2378, %v2404
        %v2406 = vmul.f32 %v2379, %v2404
        %s2407 = sld [smem:[#allocation9 + $0x37]]
        %v2408 = vstv %s2407
        %v2409 = vmul.f32 %v2378, %v2408
        %v2410 = vmul.f32 %v2379, %v2408
        %s2411 = sld [smem:[#allocation9 + $0x38]]
        %v2412 = vstv %s2411
        %v2413 = vmul.f32 %v2378, %v2412
        %v2414 = vmul.f32 %v2379, %v2412
        %v2415 = vmul.f32 %v2380, %v2412
        %s2416 = sld [smem:[#allocation9 + $0x39]]
        %v2417 = vstv %s2416
        %v2418 = vmul.f32 %v2378, %v2417
        %v2419 = vmul.f32 %v2379, %v2417
        %v2420 = vmul.f32 %v2380, %v2417
        %s2421 = sld [smem:[#allocation9 + $0x3a]]
        %v2422 = vstv %s2421
        %v2423 = vmul.f32 %v2378, %v2422
        %v2424 = vmul.f32 %v2379, %v2422
        %v2425 = vmul.f32 %v2380, %v2422
        %s2426 = sld [smem:[#allocation9 + $0x3b]]
        %v2427 = vstv %s2426
        %v2428 = vmul.f32 %v2378, %v2427
        %v2429 = vmul.f32 %v2379, %v2427
        %v2430 = vmul.f32 %v2380, %v2427
        %s2431 = sld [smem:[#allocation9 + $0x3c]]
        %v2432 = vstv %s2431
        %v2433 = vmul.f32 %v2378, %v2432
        %v2434 = vmul.f32 %v2379, %v2432
        %v2435 = vmul.f32 %v2380, %v2432
        %s2436 = sld [smem:[#allocation9 + $0x3d]]
        %v2437 = vstv %s2436
        %v2438 = vmul.f32 %v2378, %v2437
        %v2439 = vmul.f32 %v2379, %v2437
        %v2440 = vmul.f32 %v2380, %v2437
        %s2441 = sld [smem:[#allocation9 + $0x3e]]
        %v2442 = vstv %s2441
        %v2443 = vmul.f32 %v2378, %v2442
        %v2444 = vmul.f32 %v2379, %v2442
        %v2445 = vmul.f32 %v2380, %v2442
        %s2446 = sld [smem:[#allocation9 + $0x3f]]
        %v2447 = vstv %s2446
        %v2448 = vmul.f32 %v2378, %v2447
        %v2449 = vmul.f32 %v2379, %v2447
        %v2450 = vmul.f32 %v2380, %v2447
        %s2451 = sld [smem:[#allocation9 + $0x40]]
        %v2452 = vstv %s2451
        %v2453 = vmul.f32 %v2378, %v2452
        %v2454 = vmul.f32 %v2379, %v2452
        %v2455 = vmul.f32 %v2380, %v2452
        %s2456 = sld [smem:[#allocation9 + $0x41]]
        %v2457 = vstv %s2456
        %v2458 = vmul.f32 %v2378, %v2457
        %v2459 = vmul.f32 %v2379, %v2457
        %v2460 = vmul.f32 %v2380, %v2457
        %s2461 = sld [smem:[#allocation9 + $0x42]]
        %v2462 = vstv %s2461
        %v2463 = vmul.f32 %v2378, %v2462
        %v2464 = vmul.f32 %v2379, %v2462
        %v2465 = vmul.f32 %v2380, %v2462
        %s2466 = sld [smem:[#allocation9 + $0x43]]
        %v2467 = vstv %s2466
        %v2468 = vmul.f32 %v2378, %v2467
        %v2469 = vmul.f32 %v2379, %v2467
        %v2470 = vmul.f32 %v2380, %v2467
        %s2471 = sld [smem:[#allocation9 + $0x44]]
        %v2472 = vstv %s2471
        %v2473 = vmul.f32 %v2378, %v2472
        %v2474 = vmul.f32 %v2379, %v2472
        %v2475 = vmul.f32 %v2380, %v2472
        %s2476 = sld [smem:[#allocation9 + $0x45]]
        %v2477 = vstv %s2476
        %v2478 = vmul.f32 %v2378, %v2477
        %v2479 = vmul.f32 %v2379, %v2477
        %v2480 = vmul.f32 %v2380, %v2477
        %s2481 = sld [smem:[#allocation9 + $0x46]]
        %v2482 = vstv %s2481
        %v2483 = vmul.f32 %v2379, %v2482
        %v2484 = vmul.f32 %v2380, %v2482
        %v2485 = vmul.f32 %v2381, %v2482
        %s2486 = sld [smem:[#allocation9 + $0x47]]
        %v2487 = vstv %s2486
        %v2488 = vmul.f32 %v2379, %v2487
        %v2489 = vmul.f32 %v2380, %v2487
        %v2490 = vmul.f32 %v2381, %v2487
        %s2491 = sld [smem:[#allocation9 + $0x48]]
        %v2492 = vstv %s2491
        %v2493 = vmul.f32 %v2379, %v2492
        %v2494 = vmul.f32 %v2380, %v2492
        %v2495 = vmul.f32 %v2381, %v2492
        %s2496 = sld [smem:[#allocation9 + $0x49]]
        %v2497 = vstv %s2496
        %v2498 = vmul.f32 %v2379, %v2497
        %v2499 = vmul.f32 %v2380, %v2497
        %v2500 = vmul.f32 %v2381, %v2497
        %s2501 = sld [smem:[#allocation9 + $0x4a]]
        %v2502 = vstv %s2501
        %v2503 = vmul.f32 %v2379, %v2502
        %v2504 = vmul.f32 %v2380, %v2502
        %v2505 = vmul.f32 %v2381, %v2502
        %s2506 = sld [smem:[#allocation9 + $0x4b]]
        %v2507 = vstv %s2506
        %v2508 = vmul.f32 %v2379, %v2507
        %v2509 = vmul.f32 %v2380, %v2507
        %v2510 = vmul.f32 %v2381, %v2507
        %s2511 = sld [smem:[#allocation9 + $0x4c]]
        %v2512 = vstv %s2511
        %v2513 = vmul.f32 %v2379, %v2512
        %v2514 = vmul.f32 %v2380, %v2512
        %v2515 = vmul.f32 %v2381, %v2512
        %s2516 = sld [smem:[#allocation9 + $0x4d]]
        %v2517 = vstv %s2516
        %v2518 = vmul.f32 %v2379, %v2517
        %v2519 = vmul.f32 %v2380, %v2517
        %v2520 = vmul.f32 %v2381, %v2517
        %s2521 = sld [smem:[#allocation9 + $0x4e]]
        %v2522 = vstv %s2521
        %v2523 = vmul.f32 %v2379, %v2522
        %v2524 = vmul.f32 %v2380, %v2522
        %v2525 = vmul.f32 %v2381, %v2522
        %s2526 = sld [smem:[#allocation9 + $0x4f]]
        %v2527 = vstv %s2526
        %v2528 = vmul.f32 %v2379, %v2527
        %v2529 = vmul.f32 %v2380, %v2527
        %v2530 = vmul.f32 %v2381, %v2527
        %s2531 = sld [smem:[#allocation9 + $0x50]]
        %v2532 = vstv %s2531
        %v2533 = vmul.f32 %v2379, %v2532
        %v2534 = vmul.f32 %v2380, %v2532
        %v2535 = vmul.f32 %v2381, %v2532
        %s2536 = sld [smem:[#allocation9 + $0x51]]
        %v2537 = vstv %s2536
        %v2538 = vmul.f32 %v2379, %v2537
        %v2539 = vmul.f32 %v2380, %v2537
        %v2540 = vmul.f32 %v2381, %v2537
        %s2541 = sld [smem:[#allocation9 + $0x52]]
        %v2542 = vstv %s2541
        %v2543 = vmul.f32 %v2379, %v2542
        %v2544 = vmul.f32 %v2380, %v2542
        %v2545 = vmul.f32 %v2381, %v2542
        %s2546 = sld [smem:[#allocation9 + $0x53]]
        %v2547 = vstv %s2546
        %v2548 = vmul.f32 %v2379, %v2547
        %v2549 = vmul.f32 %v2380, %v2547
        %v2550 = vmul.f32 %v2381, %v2547
        %s2551 = sld [smem:[#allocation9 + $0x54]]
        %v2552 = vstv %s2551
        %v2553 = vmul.f32 %v2379, %v2552
        %v2554 = vmul.f32 %v2380, %v2552
        %v2555 = vmul.f32 %v2381, %v2552
        %s2556 = sld [smem:[#allocation9 + $0x55]]
        %v2557 = vstv %s2556
        %v2558 = vmul.f32 %v2379, %v2557
        %v2559 = vmul.f32 %v2380, %v2557
        %v2560 = vmul.f32 %v2381, %v2557
        %s2561 = sld [smem:[#allocation9 + $0x56]]
        %v2562 = vstv %s2561
        %v2563 = vmul.f32 %v2379, %v2562
        %v2564 = vmul.f32 %v2380, %v2562
        %v2565 = vmul.f32 %v2381, %v2562
        %s2566 = sld [smem:[#allocation9 + $0x57]]
        %v2567 = vstv %s2566
        %v2568 = vmul.f32 %v2379, %v2567
        %v2569 = vmul.f32 %v2380, %v2567
        %v2570 = vmul.f32 %v2381, %v2567
        %s2571 = sld [smem:[#allocation9 + $0x58]]
        %v2572 = vstv %s2571
        %v2573 = vmul.f32 %v2379, %v2572
        %v2574 = vmul.f32 %v2380, %v2572
        %v2575 = vmul.f32 %v2381, %v2572
        %s2576 = sld [smem:[#allocation9 + $0x59]]
        %v2577 = vstv %s2576
        %v2578 = vmul.f32 %v2379, %v2577
        %v2579 = vmul.f32 %v2380, %v2577
        %v2580 = vmul.f32 %v2381, %v2577
        %s2581 = sld [smem:[#allocation9 + $0x5a]]
        %v2582 = vstv %s2581
        %v2583 = vmul.f32 %v2379, %v2582
        %v2584 = vmul.f32 %v2380, %v2582
        %v2585 = vmul.f32 %v2381, %v2582
        %s2586 = sld [smem:[#allocation9 + $0x5b]]
        %v2587 = vstv %s2586
        %v2588 = vmul.f32 %v2380, %v2587
        %v2589 = vmul.f32 %v2381, %v2587
        %v2590 = vmul.f32 %v2382, %v2587
        %s2591 = sld [smem:[#allocation9 + $0x5c]]
        %v2592 = vstv %s2591
        %v2593 = vmul.f32 %v2380, %v2592
        %v2594 = vmul.f32 %v2381, %v2592
        %v2595 = vmul.f32 %v2382, %v2592
        %s2596 = sld [smem:[#allocation9 + $0x5d]]
        %v2597 = vstv %s2596
        %v2598 = vmul.f32 %v2380, %v2597
        %v2599 = vmul.f32 %v2381, %v2597
        %v2600 = vmul.f32 %v2382, %v2597
        %s2601 = sld [smem:[#allocation9 + $0x5e]]
        %v2602 = vstv %s2601
        %v2603 = vmul.f32 %v2380, %v2602
        %v2604 = vmul.f32 %v2381, %v2602
        %v2605 = vmul.f32 %v2382, %v2602
        %s2606 = sld [smem:[#allocation9 + $0x5f]]
        %v2607 = vstv %s2606
        %v2608 = vmul.f32 %v2380, %v2607
        %v2609 = vmul.f32 %v2381, %v2607
        %v2610 = vmul.f32 %v2382, %v2607
        %s2611 = sld [smem:[#allocation9 + $0x60]]
        %v2612 = vstv %s2611
        %v2613 = vmul.f32 %v2380, %v2612
        %v2614 = vmul.f32 %v2381, %v2612
        %v2615 = vmul.f32 %v2382, %v2612
        %s2616 = sld [smem:[#allocation9 + $0x61]]
        %v2617 = vstv %s2616
        %v2618 = vmul.f32 %v2380, %v2617
        %v2619 = vmul.f32 %v2381, %v2617
        %v2620 = vmul.f32 %v2382, %v2617
        %2623 = vrot.lane.b32.xlu0 %v2389, 125
        %v2624 = vpop.permute.xlu0 %2623
        %2625 = vrot.lane.b32.xlu0 %v2390, 125
        %v2626 = vpop.permute.xlu0 %2625
        %v2629 = vadd.f32 %v2385, %v2624
        %v2630 = vadd.f32 %v2386, %v2626
        %2633 = vrot.lane.b32.xlu0 %v2397, 125
        %v2634 = vpop.permute.xlu0 %2633
        %2635 = vrot.lane.b32.xlu0 %v2398, 125
        %v2636 = vpop.permute.xlu0 %2635
        %v2639 = vadd.f32 %v2393, %v2634
        %v2640 = vadd.f32 %v2394, %v2636
        %2643 = vrot.lane.b32.xlu0 %v2405, 125
        %v2644 = vpop.permute.xlu0 %2643
        %2645 = vrot.lane.b32.xlu0 %v2406, 125
        %v2646 = vpop.permute.xlu0 %2645
        %v2649 = vadd.f32 %v2401, %v2644
        %v2650 = vadd.f32 %v2402, %v2646
        %v2654 = vrot.slane %v2413, 3
        %v2655 = vrot.slane %v2414, 3
        %v2656 = vsel %vm841, %v2654, %v2655
        %v2657 = vrot.slane %v2415, 3
        %v2658 = vsel %vm841, %v2655, %v2657
        %2659 = vrot.lane.b32.xlu0 %v2656, 18
        %v2660 = vpop.permute.xlu0 %2659
        %2661 = vrot.lane.b32.xlu0 %v2658, 18
        %v2662 = vpop.permute.xlu0 %2661
        %v2665 = vadd.f32 %v2409, %v2660
        %v2666 = vadd.f32 %v2410, %v2662
        %2670 = vrot.lane.b32.xlu0 %v2423, 125
        %v2671 = vpop.permute.xlu0 %2670
        %2672 = vrot.lane.b32.xlu0 %v2424, 125
        %v2673 = vpop.permute.xlu0 %2672
        %2674 = vrot.lane.b32.xlu0 %v2425, 125
        %v2675 = vpop.permute.xlu0 %2674
        %v2679 = vadd.f32 %v2418, %v2671
        %v2680 = vadd.f32 %v2419, %v2673
        %v2681 = vadd.f32 %v2420, %v2675
        %2685 = vrot.lane.b32.xlu0 %v2433, 125
        %v2686 = vpop.permute.xlu0 %2685
        %2687 = vrot.lane.b32.xlu0 %v2434, 125
        %v2688 = vpop.permute.xlu0 %2687
        %2689 = vrot.lane.b32.xlu0 %v2435, 125
        %v2690 = vpop.permute.xlu0 %2689
        %v2694 = vadd.f32 %v2428, %v2686
        %v2695 = vadd.f32 %v2429, %v2688
        %v2696 = vadd.f32 %v2430, %v2690
        %2700 = vrot.lane.b32.xlu0 %v2443, 125
        %v2701 = vpop.permute.xlu0 %2700
        %2702 = vrot.lane.b32.xlu0 %v2444, 125
        %v2703 = vpop.permute.xlu0 %2702
        %2704 = vrot.lane.b32.xlu0 %v2445, 125
        %v2705 = vpop.permute.xlu0 %2704
        %v2709 = vadd.f32 %v2438, %v2701
        %v2710 = vadd.f32 %v2439, %v2703
        %v2711 = vadd.f32 %v2440, %v2705
        %2715 = vrot.lane.b32.xlu0 %v2453, 125
        %v2716 = vpop.permute.xlu0 %2715
        %2717 = vrot.lane.b32.xlu0 %v2454, 125
        %v2718 = vpop.permute.xlu0 %2717
        %2719 = vrot.lane.b32.xlu0 %v2455, 125
        %v2720 = vpop.permute.xlu0 %2719
        %v2724 = vadd.f32 %v2448, %v2716
        %v2725 = vadd.f32 %v2449, %v2718
        %v2726 = vadd.f32 %v2450, %v2720
        %2730 = vrot.lane.b32.xlu0 %v2463, 125
        %v2731 = vpop.permute.xlu0 %2730
        %2732 = vrot.lane.b32.xlu0 %v2464, 125
        %v2733 = vpop.permute.xlu0 %2732
        %2734 = vrot.lane.b32.xlu0 %v2465, 125
        %v2735 = vpop.permute.xlu0 %2734
        %v2739 = vadd.f32 %v2458, %v2731
        %v2740 = vadd.f32 %v2459, %v2733
        %v2741 = vadd.f32 %v2460, %v2735
        %2745 = vrot.lane.b32.xlu0 %v2473, 125
        %v2746 = vpop.permute.xlu0 %2745
        %2747 = vrot.lane.b32.xlu0 %v2474, 125
        %v2748 = vpop.permute.xlu0 %2747
        %2749 = vrot.lane.b32.xlu0 %v2475, 125
        %v2750 = vpop.permute.xlu0 %2749
        %v2754 = vadd.f32 %v2468, %v2746
        %v2755 = vadd.f32 %v2469, %v2748
        %v2756 = vadd.f32 %v2470, %v2750
        %v2760 = vrot.slane %v2483, 3
        %v2761 = vrot.slane %v2484, 3
        %v2762 = vsel %vm841, %v2760, %v2761
        %v2763 = vrot.slane %v2485, 3
        %v2764 = vsel %vm841, %v2761, %v2763
        %2765 = vrot.lane.b32.xlu0 %v2760, 18
        %v2766 = vpop.permute.xlu0 %2765
        %2767 = vrot.lane.b32.xlu0 %v2762, 18
        %v2768 = vpop.permute.xlu0 %2767
        %2769 = vrot.lane.b32.xlu0 %v2764, 18
        %v2770 = vpop.permute.xlu0 %2769
        %v2774 = vadd.f32 %v2478, %v2766
        %v2775 = vadd.f32 %v2479, %v2768
        %v2776 = vadd.f32 %v2480, %v2770
        %2780 = vrot.lane.b32.xlu0 %v2493, 125
        %v2781 = vpop.permute.xlu0 %2780
        %2782 = vrot.lane.b32.xlu0 %v2494, 125
        %v2783 = vpop.permute.xlu0 %2782
        %2784 = vrot.lane.b32.xlu0 %v2495, 125
        %v2785 = vpop.permute.xlu0 %2784
        %v2789 = vadd.f32 %v2488, %v2781
        %v2790 = vadd.f32 %v2489, %v2783
        %v2791 = vadd.f32 %v2490, %v2785
        %2795 = vrot.lane.b32.xlu0 %v2503, 125
        %v2796 = vpop.permute.xlu0 %2795
        %2797 = vrot.lane.b32.xlu0 %v2504, 125
        %v2798 = vpop.permute.xlu0 %2797
        %2799 = vrot.lane.b32.xlu0 %v2505, 125
        %v2800 = vpop.permute.xlu0 %2799
        %v2804 = vadd.f32 %v2498, %v2796
        %v2805 = vadd.f32 %v2499, %v2798
        %v2806 = vadd.f32 %v2500, %v2800
        %2810 = vrot.lane.b32.xlu0 %v2513, 125
        %v2811 = vpop.permute.xlu0 %2810
        %2812 = vrot.lane.b32.xlu0 %v2514, 125
        %v2813 = vpop.permute.xlu0 %2812
        %2814 = vrot.lane.b32.xlu0 %v2515, 125
        %v2815 = vpop.permute.xlu0 %2814
        %v2819 = vadd.f32 %v2508, %v2811
        %v2820 = vadd.f32 %v2509, %v2813
        %v2821 = vadd.f32 %v2510, %v2815
        %2825 = vrot.lane.b32.xlu0 %v2523, 125
        %v2826 = vpop.permute.xlu0 %2825
        %2827 = vrot.lane.b32.xlu0 %v2524, 125
        %v2828 = vpop.permute.xlu0 %2827
        %2829 = vrot.lane.b32.xlu0 %v2525, 125
        %v2830 = vpop.permute.xlu0 %2829
        %v2834 = vadd.f32 %v2518, %v2826
        %v2835 = vadd.f32 %v2519, %v2828
        %v2836 = vadd.f32 %v2520, %v2830
        %2840 = vrot.lane.b32.xlu0 %v2533, 125
        %v2841 = vpop.permute.xlu0 %2840
        %2842 = vrot.lane.b32.xlu0 %v2534, 125
        %v2843 = vpop.permute.xlu0 %2842
        %2844 = vrot.lane.b32.xlu0 %v2535, 125
        %v2845 = vpop.permute.xlu0 %2844
        %v2849 = vadd.f32 %v2528, %v2841
        %v2850 = vadd.f32 %v2529, %v2843
        %v2851 = vadd.f32 %v2530, %v2845
        %2855 = vrot.lane.b32.xlu0 %v2543, 125
        %v2856 = vpop.permute.xlu0 %2855
        %2857 = vrot.lane.b32.xlu0 %v2544, 125
        %v2858 = vpop.permute.xlu0 %2857
        %2859 = vrot.lane.b32.xlu0 %v2545, 125
        %v2860 = vpop.permute.xlu0 %2859
        %v2864 = vadd.f32 %v2538, %v2856
        %v2865 = vadd.f32 %v2539, %v2858
        %v2866 = vadd.f32 %v2540, %v2860
        %v2870 = vrot.slane %v2553, 3
        %v2871 = vrot.slane %v2554, 3
        %v2872 = vsel %vm841, %v2870, %v2871
        %v2873 = vrot.slane %v2555, 3
        %v2874 = vsel %vm841, %v2871, %v2873
        %2875 = vrot.lane.b32.xlu0 %v2872, 18
        %v2876 = vpop.permute.xlu0 %2875
        %2877 = vrot.lane.b32.xlu0 %v2874, 18
        %v2878 = vpop.permute.xlu0 %2877
        %2879 = vrot.lane.b32.xlu0 %v2873, 18
        %v2880 = vpop.permute.xlu0 %2879
        %v2884 = vadd.f32 %v2548, %v2876
        %v2885 = vadd.f32 %v2549, %v2878
        %v2886 = vadd.f32 %v2550, %v2880
        %2890 = vrot.lane.b32.xlu0 %v2563, 125
        %v2891 = vpop.permute.xlu0 %2890
        %2892 = vrot.lane.b32.xlu0 %v2564, 125
        %v2893 = vpop.permute.xlu0 %2892
        %2894 = vrot.lane.b32.xlu0 %v2565, 125
        %v2895 = vpop.permute.xlu0 %2894
        %v2899 = vadd.f32 %v2558, %v2891
        %v2900 = vadd.f32 %v2559, %v2893
        %v2901 = vadd.f32 %v2560, %v2895
        %2905 = vrot.lane.b32.xlu0 %v2573, 125
        %v2906 = vpop.permute.xlu0 %2905
        %2907 = vrot.lane.b32.xlu0 %v2574, 125
        %v2908 = vpop.permute.xlu0 %2907
        %2909 = vrot.lane.b32.xlu0 %v2575, 125
        %v2910 = vpop.permute.xlu0 %2909
        %v2914 = vadd.f32 %v2568, %v2906
        %v2915 = vadd.f32 %v2569, %v2908
        %v2916 = vadd.f32 %v2570, %v2910
        %2920 = vrot.lane.b32.xlu0 %v2583, 125
        %v2921 = vpop.permute.xlu0 %2920
        %2922 = vrot.lane.b32.xlu0 %v2584, 125
        %v2923 = vpop.permute.xlu0 %2922
        %2924 = vrot.lane.b32.xlu0 %v2585, 125
        %v2925 = vpop.permute.xlu0 %2924
        %v2929 = vadd.f32 %v2578, %v2921
        %v2930 = vadd.f32 %v2579, %v2923
        %v2931 = vadd.f32 %v2580, %v2925
        %2935 = vrot.lane.b32.xlu0 %v2593, 125
        %v2936 = vpop.permute.xlu0 %2935
        %2937 = vrot.lane.b32.xlu0 %v2594, 125
        %v2938 = vpop.permute.xlu0 %2937
        %2939 = vrot.lane.b32.xlu0 %v2595, 125
        %v2940 = vpop.permute.xlu0 %2939
        %v2944 = vadd.f32 %v2588, %v2936
        %v2945 = vadd.f32 %v2589, %v2938
        %v2946 = vadd.f32 %v2590, %v2940
        %2950 = vrot.lane.b32.xlu0 %v2603, 125
        %v2951 = vpop.permute.xlu0 %2950
        %2952 = vrot.lane.b32.xlu0 %v2604, 125
        %v2953 = vpop.permute.xlu0 %2952
        %2954 = vrot.lane.b32.xlu0 %v2605, 125
        %v2955 = vpop.permute.xlu0 %2954
        %v2959 = vadd.f32 %v2598, %v2951
        %v2960 = vadd.f32 %v2599, %v2953
        %v2961 = vadd.f32 %v2600, %v2955
        %2965 = vrot.lane.b32.xlu0 %v2613, 125
        %v2966 = vpop.permute.xlu0 %2965
        %2967 = vrot.lane.b32.xlu0 %v2614, 125
        %v2968 = vpop.permute.xlu0 %2967
        %2969 = vrot.lane.b32.xlu0 %v2615, 125
        %v2970 = vpop.permute.xlu0 %2969
        %v2974 = vadd.f32 %v2608, %v2966
        %v2975 = vadd.f32 %v2609, %v2968
        %v2976 = vadd.f32 %v2610, %v2970
        %2979 = vrot.lane.b32.xlu0 %v2639, 122
        %v2980 = vpop.permute.xlu0 %2979
        %2981 = vrot.lane.b32.xlu0 %v2640, 122
        %v2982 = vpop.permute.xlu0 %2981
        %v2985 = vadd.f32 %v2629, %v2980
        %v2986 = vadd.f32 %v2630, %v2982
        %2989 = vrot.lane.b32.xlu0 %v2665, 122
        %v2990 = vpop.permute.xlu0 %2989
        %2991 = vrot.lane.b32.xlu0 %v2666, 122
        %v2992 = vpop.permute.xlu0 %2991
        %v2995 = vadd.f32 %v2649, %v2990
        %v2996 = vadd.f32 %v2650, %v2992
        %3000 = vrot.lane.b32.xlu0 %v2694, 122
        %v3001 = vpop.permute.xlu0 %3000
        %3002 = vrot.lane.b32.xlu0 %v2695, 122
        %v3003 = vpop.permute.xlu0 %3002
        %3004 = vrot.lane.b32.xlu0 %v2696, 122
        %v3005 = vpop.permute.xlu0 %3004
        %v3009 = vadd.f32 %v2679, %v3001
        %v3010 = vadd.f32 %v2680, %v3003
        %v3011 = vadd.f32 %v2681, %v3005
        %v3015 = vrot.slane %v2724, 3
        %v3016 = vrot.slane %v2725, 3
        %v3017 = vsel %vm841, %v3015, %v3016
        %v3018 = vrot.slane %v2726, 3
        %v3019 = vsel %vm841, %v3016, %v3018
        %3020 = vrot.lane.b32.xlu0 %v3017, 15
        %v3021 = vpop.permute.xlu0 %3020
        %3022 = vrot.lane.b32.xlu0 %v3019, 15
        %v3023 = vpop.permute.xlu0 %3022
        %3024 = vrot.lane.b32.xlu0 %v3018, 15
        %v3025 = vpop.permute.xlu0 %3024
        %v3029 = vadd.f32 %v2709, %v3021
        %v3030 = vadd.f32 %v2710, %v3023
        %v3031 = vadd.f32 %v2711, %v3025
        %3035 = vrot.lane.b32.xlu0 %v2754, 122
        %v3036 = vpop.permute.xlu0 %3035
        %3037 = vrot.lane.b32.xlu0 %v2755, 122
        %v3038 = vpop.permute.xlu0 %3037
        %3039 = vrot.lane.b32.xlu0 %v2756, 122
        %v3040 = vpop.permute.xlu0 %3039
        %v3044 = vadd.f32 %v2739, %v3036
        %v3045 = vadd.f32 %v2740, %v3038
        %v3046 = vadd.f32 %v2741, %v3040
        %v3050 = vrot.slane %v2789, 3
        %v3051 = vrot.slane %v2790, 3
        %v3052 = vsel %vm841, %v3050, %v3051
        %v3053 = vrot.slane %v2791, 3
        %v3054 = vsel %vm841, %v3051, %v3053
        %3055 = vrot.lane.b32.xlu0 %v3050, 15
        %v3056 = vpop.permute.xlu0 %3055
        %3057 = vrot.lane.b32.xlu0 %v3052, 15
        %v3058 = vpop.permute.xlu0 %3057
        %3059 = vrot.lane.b32.xlu0 %v3054, 15
        %v3060 = vpop.permute.xlu0 %3059
        %v3064 = vadd.f32 %v2774, %v3056
        %v3065 = vadd.f32 %v2775, %v3058
        %v3066 = vadd.f32 %v2776, %v3060
        %3070 = vrot.lane.b32.xlu0 %v2819, 122
        %v3071 = vpop.permute.xlu0 %3070
        %3072 = vrot.lane.b32.xlu0 %v2820, 122
        %v3073 = vpop.permute.xlu0 %3072
        %3074 = vrot.lane.b32.xlu0 %v2821, 122
        %v3075 = vpop.permute.xlu0 %3074
        %v3079 = vadd.f32 %v2804, %v3071
        %v3080 = vadd.f32 %v2805, %v3073
        %v3081 = vadd.f32 %v2806, %v3075
        %3085 = vrot.lane.b32.xlu0 %v2849, 122
        %v3086 = vpop.permute.xlu0 %3085
        %3087 = vrot.lane.b32.xlu0 %v2850, 122
        %v3088 = vpop.permute.xlu0 %3087
        %3089 = vrot.lane.b32.xlu0 %v2851, 122
        %v3090 = vpop.permute.xlu0 %3089
        %v3094 = vadd.f32 %v2834, %v3086
        %v3095 = vadd.f32 %v2835, %v3088
        %v3096 = vadd.f32 %v2836, %v3090
        %3100 = vrot.lane.b32.xlu0 %v2884, 122
        %v3101 = vpop.permute.xlu0 %3100
        %3102 = vrot.lane.b32.xlu0 %v2885, 122
        %v3103 = vpop.permute.xlu0 %3102
        %3104 = vrot.lane.b32.xlu0 %v2886, 122
        %v3105 = vpop.permute.xlu0 %3104
        %v3109 = vadd.f32 %v2864, %v3101
        %v3110 = vadd.f32 %v2865, %v3103
        %v3111 = vadd.f32 %v2866, %v3105
        %3115 = vrot.lane.b32.xlu0 %v2914, 122
        %v3116 = vpop.permute.xlu0 %3115
        %3117 = vrot.lane.b32.xlu0 %v2915, 122
        %v3118 = vpop.permute.xlu0 %3117
        %3119 = vrot.lane.b32.xlu0 %v2916, 122
        %v3120 = vpop.permute.xlu0 %3119
        %v3124 = vadd.f32 %v2899, %v3116
        %v3125 = vadd.f32 %v2900, %v3118
        %v3126 = vadd.f32 %v2901, %v3120
        %v3130 = vrot.slane %v2944, 3
        %v3131 = vrot.slane %v2945, 3
        %v3132 = vsel %vm841, %v3130, %v3131
        %v3133 = vrot.slane %v2946, 3
        %v3134 = vsel %vm841, %v3131, %v3133
        %3135 = vrot.lane.b32.xlu0 %v3130, 15
        %v3136 = vpop.permute.xlu0 %3135
        %3137 = vrot.lane.b32.xlu0 %v3132, 15
        %v3138 = vpop.permute.xlu0 %3137
        %3139 = vrot.lane.b32.xlu0 %v3134, 15
        %v3140 = vpop.permute.xlu0 %3139
        %v3144 = vadd.f32 %v2929, %v3136
        %v3145 = vadd.f32 %v2930, %v3138
        %v3146 = vadd.f32 %v2931, %v3140
        %3150 = vrot.lane.b32.xlu0 %v2974, 122
        %v3151 = vpop.permute.xlu0 %3150
        %3152 = vrot.lane.b32.xlu0 %v2975, 122
        %v3153 = vpop.permute.xlu0 %3152
        %3154 = vrot.lane.b32.xlu0 %v2976, 122
        %v3155 = vpop.permute.xlu0 %3154
        %v3159 = vadd.f32 %v2959, %v3151
        %v3160 = vadd.f32 %v2960, %v3153
        %v3161 = vadd.f32 %v2961, %v3155
        %3164 = vrot.lane.b32.xlu0 %v2995, 116
        %v3165 = vpop.permute.xlu0 %3164
        %3166 = vrot.lane.b32.xlu0 %v2996, 116
        %v3167 = vpop.permute.xlu0 %3166
        %v3170 = vadd.f32 %v2985, %v3165
        %v3171 = vadd.f32 %v2986, %v3167
        %3175 = vrot.lane.b32.xlu0 %v3029, 116
        %v3176 = vpop.permute.xlu0 %3175
        %3177 = vrot.lane.b32.xlu0 %v3030, 116
        %v3178 = vpop.permute.xlu0 %3177
        %3179 = vrot.lane.b32.xlu0 %v3031, 116
        %v3180 = vpop.permute.xlu0 %3179
        %v3184 = vadd.f32 %v3009, %v3176
        %v3185 = vadd.f32 %v3010, %v3178
        %v3186 = vadd.f32 %v3011, %v3180
        %3190 = vrot.lane.b32.xlu0 %v3064, 116
        %v3191 = vpop.permute.xlu0 %3190
        %3192 = vrot.lane.b32.xlu0 %v3065, 116
        %v3193 = vpop.permute.xlu0 %3192
        %3194 = vrot.lane.b32.xlu0 %v3066, 116
        %v3195 = vpop.permute.xlu0 %3194
        %v3199 = vadd.f32 %v3044, %v3191
        %v3200 = vadd.f32 %v3045, %v3193
        %v3201 = vadd.f32 %v3046, %v3195
        %v3205 = vrot.slane %v3094, 3
        %v3206 = vrot.slane %v3095, 3
        %v3207 = vsel %vm841, %v3205, %v3206
        %v3208 = vrot.slane %v3096, 3
        %v3209 = vsel %vm841, %v3206, %v3208
        %3210 = vrot.lane.b32.xlu0 %v3207, 9
        %v3211 = vpop.permute.xlu0 %3210
        %3212 = vrot.lane.b32.xlu0 %v3209, 9
        %v3213 = vpop.permute.xlu0 %3212
        %3214 = vrot.lane.b32.xlu0 %v3208, 9
        %v3215 = vpop.permute.xlu0 %3214
        %v3219 = vadd.f32 %v3079, %v3211
        %v3220 = vadd.f32 %v3080, %v3213
        %v3221 = vadd.f32 %v3081, %v3215
        %v3225 = vrot.slane %v3124, 3
        %v3226 = vrot.slane %v3125, 3
        %v3227 = vsel %vm841, %v3225, %v3226
        %v3228 = vrot.slane %v3126, 3
        %v3229 = vsel %vm841, %v3226, %v3228
        %3230 = vrot.lane.b32.xlu0 %v3227, 9
        %v3231 = vpop.permute.xlu0 %3230
        %3232 = vrot.lane.b32.xlu0 %v3229, 9
        %v3233 = vpop.permute.xlu0 %3232
        %3234 = vrot.lane.b32.xlu0 %v3228, 9
        %v3235 = vpop.permute.xlu0 %3234
        %v3239 = vadd.f32 %v3109, %v3231
        %v3240 = vadd.f32 %v3110, %v3233
        %v3241 = vadd.f32 %v3111, %v3235
        %v3245 = vrot.slane %v3159, 3
        %v3246 = vrot.slane %v3160, 3
        %v3247 = vsel %vm841, %v3245, %v3246
        %v3248 = vrot.slane %v3161, 3
        %v3249 = vsel %vm841, %v3246, %v3248
        %3250 = vrot.lane.b32.xlu0 %v3245, 9
        %v3251 = vpop.permute.xlu0 %3250
        %3252 = vrot.lane.b32.xlu0 %v3247, 9
        %v3253 = vpop.permute.xlu0 %3252
        %3254 = vrot.lane.b32.xlu0 %v3249, 9
        %v3255 = vpop.permute.xlu0 %3254
        %v3259 = vadd.f32 %v3144, %v3251
        %v3260 = vadd.f32 %v3145, %v3253
        %v3261 = vadd.f32 %v3146, %v3255
        %v3265 = vrot.slane %v3184, 3
        %v3266 = vrot.slane %v3185, 3
        %v3267 = vsel %vm841, %v3265, %v3266
        %v3268 = vrot.slane %v3186, 3
        %v3269 = vsel %vm841, %v3266, %v3268
        %3270 = vrot.lane.b32.xlu0 %v3267, 125
        %v3271 = vpop.permute.xlu0 %3270
        %3272 = vrot.lane.b32.xlu0 %v3269, 125
        %v3273 = vpop.permute.xlu0 %3272
        %v3276 = vadd.f32 %v3170, %v3271
        %v3277 = vadd.f32 %v3171, %v3273
        %v3281 = vrot.slane %v3219, 3
        %v3282 = vrot.slane %v3220, 3
        %v3283 = vsel %vm841, %v3281, %v3282
        %v3284 = vrot.slane %v3221, 3
        %v3285 = vsel %vm841, %v3282, %v3284
        %3286 = vrot.lane.b32.xlu0 %v3281, 125
        %v3287 = vpop.permute.xlu0 %3286
        %3288 = vrot.lane.b32.xlu0 %v3283, 125
        %v3289 = vpop.permute.xlu0 %3288
        %3290 = vrot.lane.b32.xlu0 %v3285, 125
        %v3291 = vpop.permute.xlu0 %3290
        %v3295 = vadd.f32 %v3199, %v3287
        %v3296 = vadd.f32 %v3200, %v3289
        %v3297 = vadd.f32 %v3201, %v3291
        %v3301 = vrot.slane %v3259, 3
        %v3302 = vrot.slane %v3260, 3
        %v3303 = vsel %vm841, %v3301, %v3302
        %v3304 = vrot.slane %v3261, 3
        %v3305 = vsel %vm841, %v3302, %v3304
        %3306 = vrot.lane.b32.xlu0 %v3303, 125
        %v3307 = vpop.permute.xlu0 %3306
        %3308 = vrot.lane.b32.xlu0 %v3305, 125
        %v3309 = vpop.permute.xlu0 %3308
        %3310 = vrot.lane.b32.xlu0 %v3304, 125
        %v3311 = vpop.permute.xlu0 %3310
        %v3315 = vadd.f32 %v3239, %v3307
        %v3316 = vadd.f32 %v3240, %v3309
        %v3317 = vadd.f32 %v3241, %v3311
        %v3321 = vrot.slane %v3295, 6
        %v3322 = vrot.slane %v3296, 6
        %v3323 = vsel %vm1813, %v3321, %v3322
        %v3324 = vrot.slane %v3297, 6
        %v3325 = vsel %vm1813, %v3322, %v3324
        %3326 = vrot.lane.b32.xlu0 %v3323, 122
        %v3327 = vpop.permute.xlu0 %3326
        %3328 = vrot.lane.b32.xlu0 %v3325, 122
        %v3329 = vpop.permute.xlu0 %3328
        %v3332 = vadd.f32 %v3276, %v3327
        %v3333 = vadd.f32 %v3277, %v3329
        %v3337 = vrot.slane %v2618, 6
        %v3338 = vrot.slane %v2619, 6
        %v3339 = vsel %vm1813, %v3337, %v3338
        %v3340 = vrot.slane %v2620, 6
        %v3341 = vsel %vm1813, %v3338, %v3340
        %3342 = vrot.lane.b32.xlu0 %v3337, 122
        %v3343 = vpop.permute.xlu0 %3342
        %3344 = vrot.lane.b32.xlu0 %v3339, 122
        %v3345 = vpop.permute.xlu0 %3344
        %3346 = vrot.lane.b32.xlu0 %v3341, 122
        %v3347 = vpop.permute.xlu0 %3346
        %v3351 = vadd.f32 %v3315, %v3343
        %v3352 = vadd.f32 %v3316, %v3345
        %v3353 = vadd.f32 %v3317, %v3347
        %v3357 = vrot.slane %v3351, 4
        %v3358 = vrot.slane %v3352, 4
        %v3359 = vsel %vm1850, %v3357, %v3358
        %v3360 = vrot.slane %v3353, 4
        %v3361 = vsel %vm1850, %v3358, %v3360
        %3362 = vrot.lane.b32.xlu0 %v3359, 116
        %v3363 = vpop.permute.xlu0 %3362
        %3364 = vrot.lane.b32.xlu0 %v3361, 116
        %v3365 = vpop.permute.xlu0 %3364
        %v3368 = vadd.f32 %v3332, %v3363
        %v3369 = vadd.f32 %v3333, %v3365
        %s3370 = sld [smem:[#allocation10 + $0x1]]
        %v3371 = vstv %s3370
        %v3372 = vadd.f32 %v3368, %v3371
        %v3373 = vadd.f32 %v3369, %v3371
        %s3374 = scalar_lea.vmem [#allocation3], 16
        %3375 = vst.msk [vmem:[%s3374] sm:$0xff] %vm1868, %v3372
        %3376 = vst.msk [vmem:[%s3374 + $0x8] sm:$0xff] %vm1868, %v3373
        %s3377 = scalar_lea.vmem %s353, 48
        %v3378 = vld [vmem:[%s3377] sm:$0xff]
        %v3379 = vld [vmem:[%s3377 + $0x8] sm:$0xff]
        %v3380 = vld [vmem:[%s3377 + $0x10] sm:$0xf]
        %s3381 = sld [smem:[#allocation4 + $0x32]]
        %v3382 = vstv %s3381
        %v3383 = vmul.f32 %v3378, %v3382
        %v3384 = vmul.f32 %v3379, %v3382
        %s3385 = sld [smem:[#allocation4 + $0x33]]
        %v3386 = vstv %s3385
        %v3387 = vmul.f32 %v3378, %v3386
        %v3388 = vmul.f32 %v3379, %v3386
        %s3389 = sld [smem:[#allocation4 + $0x34]]
        %v3390 = vstv %s3389
        %v3391 = vmul.f32 %v3378, %v3390
        %v3392 = vmul.f32 %v3379, %v3390
        %s3393 = sld [smem:[#allocation4 + $0x35]]
        %v3394 = vstv %s3393
        %v3395 = vmul.f32 %v3378, %v3394
        %v3396 = vmul.f32 %v3379, %v3394
        %s3397 = sld [smem:[#allocation4 + $0x36]]
        %v3398 = vstv %s3397
        %v3399 = vmul.f32 %v3378, %v3398
        %v3400 = vmul.f32 %v3379, %v3398
        %s3401 = sld [smem:[#allocation4 + $0x37]]
        %v3402 = vstv %s3401
        %v3403 = vmul.f32 %v3378, %v3402
        %v3404 = vmul.f32 %v3379, %v3402
        %v3405 = vmul.f32 %v3380, %v3402
        %s3406 = sld [smem:[#allocation4 + $0x38]]
        %v3407 = vstv %s3406
        %v3408 = vmul.f32 %v3378, %v3407
        %v3409 = vmul.f32 %v3379, %v3407
        %v3410 = vmul.f32 %v3380, %v3407
        %s3411 = sld [smem:[#allocation4 + $0x39]]
        %v3412 = vstv %s3411
        %v3413 = vmul.f32 %v3378, %v3412
        %v3414 = vmul.f32 %v3379, %v3412
        %v3415 = vmul.f32 %v3380, %v3412
        %s3416 = sld [smem:[#allocation4 + $0x3a]]
        %v3417 = vstv %s3416
        %v3418 = vmul.f32 %v3378, %v3417
        %v3419 = vmul.f32 %v3379, %v3417
        %v3420 = vmul.f32 %v3380, %v3417
        %s3421 = sld [smem:[#allocation4 + $0x3b]]
        %v3422 = vstv %s3421
        %v3423 = vmul.f32 %v3378, %v3422
        %v3424 = vmul.f32 %v3379, %v3422
        %v3425 = vmul.f32 %v3380, %v3422
        %s3426 = sld [smem:[#allocation4 + $0x3c]]
        %v3427 = vstv %s3426
        %v3428 = vmul.f32 %v3378, %v3427
        %v3429 = vmul.f32 %v3379, %v3427
        %v3430 = vmul.f32 %v3380, %v3427
        %s3431 = sld [smem:[#allocation4 + $0x3d]]
        %v3432 = vstv %s3431
        %v3433 = vmul.f32 %v3378, %v3432
        %v3434 = vmul.f32 %v3379, %v3432
        %v3435 = vmul.f32 %v3380, %v3432
        %s3436 = sld [smem:[#allocation4 + $0x3e]]
        %v3437 = vstv %s3436
        %v3438 = vmul.f32 %v3378, %v3437
        %v3439 = vmul.f32 %v3379, %v3437
        %v3440 = vmul.f32 %v3380, %v3437
        %s3441 = sld [smem:[#allocation4 + $0x3f]]
        %v3442 = vstv %s3441
        %v3443 = vmul.f32 %v3378, %v3442
        %v3444 = vmul.f32 %v3379, %v3442
        %v3445 = vmul.f32 %v3380, %v3442
        %s3446 = sld [smem:[#allocation4 + $0x40]]
        %v3447 = vstv %s3446
        %v3448 = vmul.f32 %v3378, %v3447
        %v3449 = vmul.f32 %v3379, %v3447
        %v3450 = vmul.f32 %v3380, %v3447
        %s3451 = sld [smem:[#allocation4 + $0x41]]
        %v3452 = vstv %s3451
        %v3453 = vmul.f32 %v3378, %v3452
        %v3454 = vmul.f32 %v3379, %v3452
        %v3455 = vmul.f32 %v3380, %v3452
        %s3456 = sld [smem:[#allocation4 + $0x42]]
        %v3457 = vstv %s3456
        %v3458 = vmul.f32 %v3378, %v3457
        %v3459 = vmul.f32 %v3379, %v3457
        %v3460 = vmul.f32 %v3380, %v3457
        %s3461 = sld [smem:[#allocation4 + $0x43]]
        %v3462 = vstv %s3461
        %v3463 = vmul.f32 %v3378, %v3462
        %v3464 = vmul.f32 %v3379, %v3462
        %v3465 = vmul.f32 %v3380, %v3462
        %s3466 = sld [smem:[#allocation4 + $0x44]]
        %v3467 = vstv %s3466
        %v3468 = vmul.f32 %v3378, %v3467
        %v3469 = vmul.f32 %v3379, %v3467
        %v3470 = vmul.f32 %v3380, %v3467
        %s3471 = sld [smem:[#allocation4 + $0x45]]
        %v3472 = vstv %s3471
        %v3473 = vmul.f32 %v3378, %v3472
        %v3474 = vmul.f32 %v3379, %v3472
        %v3475 = vmul.f32 %v3380, %v3472
        %s3476 = sld [smem:[#allocation4 + $0x46]]
        %v3477 = vstv %s3476
        %v3478 = vmul.f32 %v3378, %v3477
        %v3479 = vmul.f32 %v3379, %v3477
        %v3480 = vmul.f32 %v3380, %v3477
        %s3481 = sld [smem:[#allocation4 + $0x47]]
        %v3482 = vstv %s3481
        %v3483 = vmul.f32 %v3378, %v3482
        %v3484 = vmul.f32 %v3379, %v3482
        %v3485 = vmul.f32 %v3380, %v3482
        %s3486 = sld [smem:[#allocation4 + $0x48]]
        %v3487 = vstv %s3486
        %v3488 = vmul.f32 %v3378, %v3487
        %v3489 = vmul.f32 %v3379, %v3487
        %v3490 = vmul.f32 %v3380, %v3487
        %s3491 = sld [smem:[#allocation4 + $0x49]]
        %v3492 = vstv %s3491
        %v3493 = vmul.f32 %v3378, %v3492
        %v3494 = vmul.f32 %v3379, %v3492
        %v3495 = vmul.f32 %v3380, %v3492
        %s3496 = sld [smem:[#allocation4 + $0x4a]]
        %v3497 = vstv %s3496
        %v3498 = vmul.f32 %v3378, %v3497
        %v3499 = vmul.f32 %v3379, %v3497
        %v3500 = vmul.f32 %v3380, %v3497
        %3503 = vrot.lane.b32.xlu0 %v3387, 127
        %v3504 = vpop.permute.xlu0 %3503
        %3505 = vrot.lane.b32.xlu0 %v3388, 127
        %v3506 = vpop.permute.xlu0 %3505
        %v3509 = vadd.f32 %v3383, %v3504
        %v3510 = vadd.f32 %v3384, %v3506
        %3513 = vrot.lane.b32.xlu0 %v3395, 127
        %v3514 = vpop.permute.xlu0 %3513
        %3515 = vrot.lane.b32.xlu0 %v3396, 127
        %v3516 = vpop.permute.xlu0 %3515
        %v3519 = vadd.f32 %v3391, %v3514
        %v3520 = vadd.f32 %v3392, %v3516
        %v3524 = vrot.slane %v3403, 1
        %v3525 = vrot.slane %v3404, 1
        %v3526 = vsel %vm507, %v3524, %v3525
        %v3527 = vrot.slane %v3405, 1
        %v3528 = vsel %vm507, %v3525, %v3527
        %3529 = vrot.lane.b32.xlu0 %v3526, 4
        %v3530 = vpop.permute.xlu0 %3529
        %3531 = vrot.lane.b32.xlu0 %v3528, 4
        %v3532 = vpop.permute.xlu0 %3531
        %v3535 = vadd.f32 %v3399, %v3530
        %v3536 = vadd.f32 %v3400, %v3532
        %3540 = vrot.lane.b32.xlu0 %v3413, 127
        %v3541 = vpop.permute.xlu0 %3540
        %3542 = vrot.lane.b32.xlu0 %v3414, 127
        %v3543 = vpop.permute.xlu0 %3542
        %3544 = vrot.lane.b32.xlu0 %v3415, 127
        %v3545 = vpop.permute.xlu0 %3544
        %v3549 = vadd.f32 %v3408, %v3541
        %v3550 = vadd.f32 %v3409, %v3543
        %v3551 = vadd.f32 %v3410, %v3545
        %3555 = vrot.lane.b32.xlu0 %v3423, 127
        %v3556 = vpop.permute.xlu0 %3555
        %3557 = vrot.lane.b32.xlu0 %v3424, 127
        %v3558 = vpop.permute.xlu0 %3557
        %3559 = vrot.lane.b32.xlu0 %v3425, 127
        %v3560 = vpop.permute.xlu0 %3559
        %v3564 = vadd.f32 %v3418, %v3556
        %v3565 = vadd.f32 %v3419, %v3558
        %v3566 = vadd.f32 %v3420, %v3560
        %3570 = vrot.lane.b32.xlu0 %v3433, 127
        %v3571 = vpop.permute.xlu0 %3570
        %3572 = vrot.lane.b32.xlu0 %v3434, 127
        %v3573 = vpop.permute.xlu0 %3572
        %3574 = vrot.lane.b32.xlu0 %v3435, 127
        %v3575 = vpop.permute.xlu0 %3574
        %v3579 = vadd.f32 %v3428, %v3571
        %v3580 = vadd.f32 %v3429, %v3573
        %v3581 = vadd.f32 %v3430, %v3575
        %3585 = vrot.lane.b32.xlu0 %v3443, 127
        %v3586 = vpop.permute.xlu0 %3585
        %3587 = vrot.lane.b32.xlu0 %v3444, 127
        %v3588 = vpop.permute.xlu0 %3587
        %3589 = vrot.lane.b32.xlu0 %v3445, 127
        %v3590 = vpop.permute.xlu0 %3589
        %v3594 = vadd.f32 %v3438, %v3586
        %v3595 = vadd.f32 %v3439, %v3588
        %v3596 = vadd.f32 %v3440, %v3590
        %v3600 = vrot.slane %v3453, 1
        %v3601 = vrot.slane %v3454, 1
        %v3602 = vsel %vm507, %v3600, %v3601
        %v3603 = vrot.slane %v3455, 1
        %v3604 = vsel %vm507, %v3601, %v3603
        %3605 = vrot.lane.b32.xlu0 %v3602, 4
        %v3606 = vpop.permute.xlu0 %3605
        %3607 = vrot.lane.b32.xlu0 %v3604, 4
        %v3608 = vpop.permute.xlu0 %3607
        %3609 = vrot.lane.b32.xlu0 %v3603, 4
        %v3610 = vpop.permute.xlu0 %3609
        %v3614 = vadd.f32 %v3448, %v3606
        %v3615 = vadd.f32 %v3449, %v3608
        %v3616 = vadd.f32 %v3450, %v3610
        %3620 = vrot.lane.b32.xlu0 %v3463, 127
        %v3621 = vpop.permute.xlu0 %3620
        %3622 = vrot.lane.b32.xlu0 %v3464, 127
        %v3623 = vpop.permute.xlu0 %3622
        %3624 = vrot.lane.b32.xlu0 %v3465, 127
        %v3625 = vpop.permute.xlu0 %3624
        %v3629 = vadd.f32 %v3458, %v3621
        %v3630 = vadd.f32 %v3459, %v3623
        %v3631 = vadd.f32 %v3460, %v3625
        %3635 = vrot.lane.b32.xlu0 %v3473, 127
        %v3636 = vpop.permute.xlu0 %3635
        %3637 = vrot.lane.b32.xlu0 %v3474, 127
        %v3638 = vpop.permute.xlu0 %3637
        %3639 = vrot.lane.b32.xlu0 %v3475, 127
        %v3640 = vpop.permute.xlu0 %3639
        %v3644 = vadd.f32 %v3468, %v3636
        %v3645 = vadd.f32 %v3469, %v3638
        %v3646 = vadd.f32 %v3470, %v3640
        %3650 = vrot.lane.b32.xlu0 %v3483, 127
        %v3651 = vpop.permute.xlu0 %3650
        %3652 = vrot.lane.b32.xlu0 %v3484, 127
        %v3653 = vpop.permute.xlu0 %3652
        %3654 = vrot.lane.b32.xlu0 %v3485, 127
        %v3655 = vpop.permute.xlu0 %3654
        %v3659 = vadd.f32 %v3478, %v3651
        %v3660 = vadd.f32 %v3479, %v3653
        %v3661 = vadd.f32 %v3480, %v3655
        %3665 = vrot.lane.b32.xlu0 %v3493, 127
        %v3666 = vpop.permute.xlu0 %3665
        %3667 = vrot.lane.b32.xlu0 %v3494, 127
        %v3668 = vpop.permute.xlu0 %3667
        %3669 = vrot.lane.b32.xlu0 %v3495, 127
        %v3670 = vpop.permute.xlu0 %3669
        %v3674 = vadd.f32 %v3488, %v3666
        %v3675 = vadd.f32 %v3489, %v3668
        %v3676 = vadd.f32 %v3490, %v3670
        %3679 = vrot.lane.b32.xlu0 %v3519, 126
        %v3680 = vpop.permute.xlu0 %3679
        %3681 = vrot.lane.b32.xlu0 %v3520, 126
        %v3682 = vpop.permute.xlu0 %3681
        %v3685 = vadd.f32 %v3509, %v3680
        %v3686 = vadd.f32 %v3510, %v3682
        %v3690 = vrot.slane %v3549, 1
        %v3691 = vrot.slane %v3550, 1
        %v3692 = vsel %vm507, %v3690, %v3691
        %v3693 = vrot.slane %v3551, 1
        %v3694 = vsel %vm507, %v3691, %v3693
        %3695 = vrot.lane.b32.xlu0 %v3692, 3
        %v3696 = vpop.permute.xlu0 %3695
        %3697 = vrot.lane.b32.xlu0 %v3694, 3
        %v3698 = vpop.permute.xlu0 %3697
        %v3701 = vadd.f32 %v3535, %v3696
        %v3702 = vadd.f32 %v3536, %v3698
        %v3706 = vrot.slane %v3579, 1
        %v3707 = vrot.slane %v3580, 1
        %v3708 = vsel %vm507, %v3706, %v3707
        %v3709 = vrot.slane %v3581, 1
        %v3710 = vsel %vm507, %v3707, %v3709
        %3711 = vrot.lane.b32.xlu0 %v3708, 3
        %v3712 = vpop.permute.xlu0 %3711
        %3713 = vrot.lane.b32.xlu0 %v3710, 3
        %v3714 = vpop.permute.xlu0 %3713
        %3715 = vrot.lane.b32.xlu0 %v3709, 3
        %v3716 = vpop.permute.xlu0 %3715
        %v3720 = vadd.f32 %v3564, %v3712
        %v3721 = vadd.f32 %v3565, %v3714
        %v3722 = vadd.f32 %v3566, %v3716
        %3726 = vrot.lane.b32.xlu0 %v3614, 126
        %v3727 = vpop.permute.xlu0 %3726
        %3728 = vrot.lane.b32.xlu0 %v3615, 126
        %v3729 = vpop.permute.xlu0 %3728
        %3730 = vrot.lane.b32.xlu0 %v3616, 126
        %v3731 = vpop.permute.xlu0 %3730
        %v3735 = vadd.f32 %v3594, %v3727
        %v3736 = vadd.f32 %v3595, %v3729
        %v3737 = vadd.f32 %v3596, %v3731
        %3741 = vrot.lane.b32.xlu0 %v3644, 126
        %v3742 = vpop.permute.xlu0 %3741
        %3743 = vrot.lane.b32.xlu0 %v3645, 126
        %v3744 = vpop.permute.xlu0 %3743
        %3745 = vrot.lane.b32.xlu0 %v3646, 126
        %v3746 = vpop.permute.xlu0 %3745
        %v3750 = vadd.f32 %v3629, %v3742
        %v3751 = vadd.f32 %v3630, %v3744
        %v3752 = vadd.f32 %v3631, %v3746
        %3756 = vrot.lane.b32.xlu0 %v3674, 126
        %v3757 = vpop.permute.xlu0 %3756
        %3758 = vrot.lane.b32.xlu0 %v3675, 126
        %v3759 = vpop.permute.xlu0 %3758
        %3760 = vrot.lane.b32.xlu0 %v3676, 126
        %v3761 = vpop.permute.xlu0 %3760
        %v3765 = vadd.f32 %v3659, %v3757
        %v3766 = vadd.f32 %v3660, %v3759
        %v3767 = vadd.f32 %v3661, %v3761
        %3770 = vrot.lane.b32.xlu0 %v3701, 124
        %v3771 = vpop.permute.xlu0 %3770
        %3772 = vrot.lane.b32.xlu0 %v3702, 124
        %v3773 = vpop.permute.xlu0 %3772
        %v3776 = vadd.f32 %v3685, %v3771
        %v3777 = vadd.f32 %v3686, %v3773
        %v3781 = vrot.slane %v3735, 1
        %v3782 = vrot.slane %v3736, 1
        %v3783 = vsel %vm507, %v3781, %v3782
        %v3784 = vrot.slane %v3737, 1
        %v3785 = vsel %vm507, %v3782, %v3784
        %3786 = vrot.lane.b32.xlu0 %v3783, 1
        %v3787 = vpop.permute.xlu0 %3786
        %3788 = vrot.lane.b32.xlu0 %v3785, 1
        %v3789 = vpop.permute.xlu0 %3788
        %3790 = vrot.lane.b32.xlu0 %v3784, 1
        %v3791 = vpop.permute.xlu0 %3790
        %v3795 = vadd.f32 %v3720, %v3787
        %v3796 = vadd.f32 %v3721, %v3789
        %v3797 = vadd.f32 %v3722, %v3791
        %v3801 = vrot.slane %v3765, 1
        %v3802 = vrot.slane %v3766, 1
        %v3803 = vsel %vm507, %v3801, %v3802
        %v3804 = vrot.slane %v3767, 1
        %v3805 = vsel %vm507, %v3802, %v3804
        %3806 = vrot.lane.b32.xlu0 %v3803, 1
        %v3807 = vpop.permute.xlu0 %3806
        %3808 = vrot.lane.b32.xlu0 %v3805, 1
        %v3809 = vpop.permute.xlu0 %3808
        %3810 = vrot.lane.b32.xlu0 %v3804, 1
        %v3811 = vpop.permute.xlu0 %3810
        %v3815 = vadd.f32 %v3750, %v3807
        %v3816 = vadd.f32 %v3751, %v3809
        %v3817 = vadd.f32 %v3752, %v3811
        %v3821 = vrot.slane %v3795, 1
        %v3822 = vrot.slane %v3796, 1
        %v3823 = vsel %vm507, %v3821, %v3822
        %v3824 = vrot.slane %v3797, 1
        %v3825 = vsel %vm507, %v3822, %v3824
        %3826 = vrot.lane.b32.xlu0 %v3823, 125
        %v3827 = vpop.permute.xlu0 %3826
        %3828 = vrot.lane.b32.xlu0 %v3825, 125
        %v3829 = vpop.permute.xlu0 %3828
        %v3832 = vadd.f32 %v3776, %v3827
        %v3833 = vadd.f32 %v3777, %v3829
        %v3837 = vrot.slane %v3498, 1
        %v3838 = vrot.slane %v3499, 1
        %v3839 = vsel %vm507, %v3837, %v3838
        %v3840 = vrot.slane %v3500, 1
        %v3841 = vsel %vm507, %v3838, %v3840
        %3842 = vrot.lane.b32.xlu0 %v3839, 125
        %v3843 = vpop.permute.xlu0 %3842
        %3844 = vrot.lane.b32.xlu0 %v3841, 125
        %v3845 = vpop.permute.xlu0 %3844
        %3846 = vrot.lane.b32.xlu0 %v3840, 125
        %v3847 = vpop.permute.xlu0 %3846
        %v3851 = vadd.f32 %v3815, %v3843
        %v3852 = vadd.f32 %v3816, %v3845
        %v3853 = vadd.f32 %v3817, %v3847
        %v3857 = vrot.slane %v3851, 3
        %v3858 = vrot.slane %v3852, 3
        %v3859 = vsel %vm841, %v3857, %v3858
        %v3860 = vrot.slane %v3853, 3
        %v3861 = vsel %vm841, %v3858, %v3860
        %3862 = vrot.lane.b32.xlu0 %v3859, 127
        %v3863 = vpop.permute.xlu0 %3862
        %3864 = vrot.lane.b32.xlu0 %v3861, 127
        %v3865 = vpop.permute.xlu0 %3864
        %v3868 = vadd.f32 %v3832, %v3863
        %v3869 = vadd.f32 %v3833, %v3865
        %s3870 = sld [smem:[#allocation7 + $0x2]]
        %v3871 = vstv %s3870
        %v3872 = vadd.f32 %v3868, %v3871
        %v3873 = vadd.f32 %v3869, %v3871
        %3876 = vrot.lane.b32.xlu0 %v3872, 9
        %v3877 = vpop.permute.xlu0 %3876
        %3878 = vrot.lane.b32.xlu0 %v3873, 9
        %v3879 = vpop.permute.xlu0 %3878
        %3882 = vst.msk [vmem:[#allocation2 + $0x9] sm:$0xff] %vm867, %v3877
        %3883 = vst.msk [vmem:[#allocation2 + $0x11] sm:$0xff] %vm867, %v3879
        %v3884 = vld [vmem:[#allocation2] sm:$0xff]
        %v3885 = vld [vmem:[#allocation2 + $0x8] sm:$0xff]
        %v3886 = vld [vmem:[#allocation2 + $0x10] sm:$0xff]
        %v3887 = vld [vmem:[#allocation2 + $0x18] sm:$0xff]
        %v3888 = vld [vmem:[#allocation2 + $0x20] sm:$0x3]
        %s3889 = sld [smem:[#allocation9 + $0x62]]
        %v3890 = vstv %s3889
        %v3891 = vmul.f32 %v3884, %v3890
        %v3892 = vmul.f32 %v3885, %v3890
        %s3893 = sld [smem:[#allocation9 + $0x63]]
        %v3894 = vstv %s3893
        %v3895 = vmul.f32 %v3884, %v3894
        %v3896 = vmul.f32 %v3885, %v3894
        %s3897 = sld [smem:[#allocation9 + $0x64]]
        %v3898 = vstv %s3897
        %v3899 = vmul.f32 %v3884, %v3898
        %v3900 = vmul.f32 %v3885, %v3898
        %s3901 = sld [smem:[#allocation9 + $0x65]]
        %v3902 = vstv %s3901
        %v3903 = vmul.f32 %v3884, %v3902
        %v3904 = vmul.f32 %v3885, %v3902
        %s3905 = sld [smem:[#allocation9 + $0x66]]
        %v3906 = vstv %s3905
        %v3907 = vmul.f32 %v3884, %v3906
        %v3908 = vmul.f32 %v3885, %v3906
        %s3909 = sld [smem:[#allocation9 + $0x67]]
        %v3910 = vstv %s3909
        %v3911 = vmul.f32 %v3884, %v3910
        %v3912 = vmul.f32 %v3885, %v3910
        %s3913 = sld [smem:[#allocation9 + $0x68]]
        %v3914 = vstv %s3913
        %v3915 = vmul.f32 %v3884, %v3914
        %v3916 = vmul.f32 %v3885, %v3914
        %s3917 = sld [smem:[#allocation9 + $0x69]]
        %v3918 = vstv %s3917
        %v3919 = vmul.f32 %v3884, %v3918
        %v3920 = vmul.f32 %v3885, %v3918
        %v3921 = vmul.f32 %v3886, %v3918
        %s3922 = sld [smem:[#allocation9 + $0x6a]]
        %v3923 = vstv %s3922
        %v3924 = vmul.f32 %v3884, %v3923
        %v3925 = vmul.f32 %v3885, %v3923
        %v3926 = vmul.f32 %v3886, %v3923
        %s3927 = sld [smem:[#allocation9 + $0x6b]]
        %v3928 = vstv %s3927
        %v3929 = vmul.f32 %v3884, %v3928
        %v3930 = vmul.f32 %v3885, %v3928
        %v3931 = vmul.f32 %v3886, %v3928
        %s3932 = sld [smem:[#allocation9 + $0x6c]]
        %v3933 = vstv %s3932
        %v3934 = vmul.f32 %v3884, %v3933
        %v3935 = vmul.f32 %v3885, %v3933
        %v3936 = vmul.f32 %v3886, %v3933
        %s3937 = sld [smem:[#allocation9 + $0x6d]]
        %v3938 = vstv %s3937
        %v3939 = vmul.f32 %v3884, %v3938
        %v3940 = vmul.f32 %v3885, %v3938
        %v3941 = vmul.f32 %v3886, %v3938
        %s3942 = sld [smem:[#allocation9 + $0x6e]]
        %v3943 = vstv %s3942
        %v3944 = vmul.f32 %v3884, %v3943
        %v3945 = vmul.f32 %v3885, %v3943
        %v3946 = vmul.f32 %v3886, %v3943
        %s3947 = sld [smem:[#allocation9 + $0x6f]]
        %v3948 = vstv %s3947
        %v3949 = vmul.f32 %v3884, %v3948
        %v3950 = vmul.f32 %v3885, %v3948
        %v3951 = vmul.f32 %v3886, %v3948
        %s3952 = sld [smem:[#allocation9 + $0x70]]
        %v3953 = vstv %s3952
        %v3954 = vmul.f32 %v3884, %v3953
        %v3955 = vmul.f32 %v3885, %v3953
        %v3956 = vmul.f32 %v3886, %v3953
        %s3957 = sld [smem:[#allocation9 + $0x71]]
        %v3958 = vstv %s3957
        %v3959 = vmul.f32 %v3884, %v3958
        %v3960 = vmul.f32 %v3885, %v3958
        %v3961 = vmul.f32 %v3886, %v3958
        %s3962 = sld [smem:[#allocation9 + $0x72]]
        %v3963 = vstv %s3962
        %v3964 = vmul.f32 %v3884, %v3963
        %v3965 = vmul.f32 %v3885, %v3963
        %v3966 = vmul.f32 %v3886, %v3963
        %s3967 = sld [smem:[#allocation9 + $0x73]]
        %v3968 = vstv %s3967
        %v3969 = vmul.f32 %v3884, %v3968
        %v3970 = vmul.f32 %v3885, %v3968
        %v3971 = vmul.f32 %v3886, %v3968
        %s3972 = sld [smem:[#allocation9 + $0x74]]
        %v3973 = vstv %s3972
        %v3974 = vmul.f32 %v3884, %v3973
        %v3975 = vmul.f32 %v3885, %v3973
        %v3976 = vmul.f32 %v3886, %v3973
        %s3977 = sld [smem:[#allocation9 + $0x75]]
        %v3978 = vstv %s3977
        %v3979 = vmul.f32 %v3884, %v3978
        %v3980 = vmul.f32 %v3885, %v3978
        %v3981 = vmul.f32 %v3886, %v3978
        %s3982 = sld [smem:[#allocation9 + $0x76]]
        %v3983 = vstv %s3982
        %v3984 = vmul.f32 %v3884, %v3983
        %v3985 = vmul.f32 %v3885, %v3983
        %v3986 = vmul.f32 %v3886, %v3983
        %s3987 = sld [smem:[#allocation9 + $0x77]]
        %v3988 = vstv %s3987
        %v3989 = vmul.f32 %v3885, %v3988
        %v3990 = vmul.f32 %v3886, %v3988
        %v3991 = vmul.f32 %v3887, %v3988
        %s3992 = sld [smem:[#allocation9 + $0x78]]
        %v3993 = vstv %s3992
        %v3994 = vmul.f32 %v3885, %v3993
        %v3995 = vmul.f32 %v3886, %v3993
        %v3996 = vmul.f32 %v3887, %v3993
        %s3997 = sld [smem:[#allocation9 + $0x79]]
        %v3998 = vstv %s3997
        %v3999 = vmul.f32 %v3885, %v3998
        %v4000 = vmul.f32 %v3886, %v3998
        %v4001 = vmul.f32 %v3887, %v3998
        %s4002 = sld [smem:[#allocation9 + $0x7a]]
        %v4003 = vstv %s4002
        %v4004 = vmul.f32 %v3885, %v4003
        %v4005 = vmul.f32 %v3886, %v4003
        %v4006 = vmul.f32 %v3887, %v4003
        %s4007 = sld [smem:[#allocation9 + $0x7b]]
        %v4008 = vstv %s4007
        %v4009 = vmul.f32 %v3885, %v4008
        %v4010 = vmul.f32 %v3886, %v4008
        %v4011 = vmul.f32 %v3887, %v4008
        %s4012 = sld [smem:[#allocation9 + $0x7c]]
        %v4013 = vstv %s4012
        %v4014 = vmul.f32 %v3885, %v4013
        %v4015 = vmul.f32 %v3886, %v4013
        %v4016 = vmul.f32 %v3887, %v4013
        %s4017 = sld [smem:[#allocation9 + $0x7d]]
        %v4018 = vstv %s4017
        %v4019 = vmul.f32 %v3885, %v4018
        %v4020 = vmul.f32 %v3886, %v4018
        %v4021 = vmul.f32 %v3887, %v4018
        %s4022 = sld [smem:[#allocation9 + $0x7e]]
        %v4023 = vstv %s4022
        %v4024 = vmul.f32 %v3885, %v4023
        %v4025 = vmul.f32 %v3886, %v4023
        %v4026 = vmul.f32 %v3887, %v4023
        %s4027 = sld [smem:[#allocation9 + $0x7f]]
        %v4028 = vstv %s4027
        %v4029 = vmul.f32 %v3885, %v4028
        %v4030 = vmul.f32 %v3886, %v4028
        %v4031 = vmul.f32 %v3887, %v4028
        %s4032 = sld [smem:[#allocation9 + $0x80]]
        %v4033 = vstv %s4032
        %v4034 = vmul.f32 %v3885, %v4033
        %v4035 = vmul.f32 %v3886, %v4033
        %v4036 = vmul.f32 %v3887, %v4033
        %s4037 = sld [smem:[#allocation9 + $0x81]]
        %v4038 = vstv %s4037
        %v4039 = vmul.f32 %v3885, %v4038
        %v4040 = vmul.f32 %v3886, %v4038
        %v4041 = vmul.f32 %v3887, %v4038
        %s4042 = sld [smem:[#allocation9 + $0x82]]
        %v4043 = vstv %s4042
        %v4044 = vmul.f32 %v3885, %v4043
        %v4045 = vmul.f32 %v3886, %v4043
        %v4046 = vmul.f32 %v3887, %v4043
        %s4047 = sld [smem:[#allocation9 + $0x83]]
        %v4048 = vstv %s4047
        %v4049 = vmul.f32 %v3885, %v4048
        %v4050 = vmul.f32 %v3886, %v4048
        %v4051 = vmul.f32 %v3887, %v4048
        %s4052 = sld [smem:[#allocation9 + $0x84]]
        %v4053 = vstv %s4052
        %v4054 = vmul.f32 %v3885, %v4053
        %v4055 = vmul.f32 %v3886, %v4053
        %v4056 = vmul.f32 %v3887, %v4053
        %s4057 = sld [smem:[#allocation9 + $0x85]]
        %v4058 = vstv %s4057
        %v4059 = vmul.f32 %v3885, %v4058
        %v4060 = vmul.f32 %v3886, %v4058
        %v4061 = vmul.f32 %v3887, %v4058
        %s4062 = sld [smem:[#allocation9 + $0x86]]
        %v4063 = vstv %s4062
        %v4064 = vmul.f32 %v3885, %v4063
        %v4065 = vmul.f32 %v3886, %v4063
        %v4066 = vmul.f32 %v3887, %v4063
        %s4067 = sld [smem:[#allocation9 + $0x87]]
        %v4068 = vstv %s4067
        %v4069 = vmul.f32 %v3885, %v4068
        %v4070 = vmul.f32 %v3886, %v4068
        %v4071 = vmul.f32 %v3887, %v4068
        %s4072 = sld [smem:[#allocation9 + $0x88]]
        %v4073 = vstv %s4072
        %v4074 = vmul.f32 %v3885, %v4073
        %v4075 = vmul.f32 %v3886, %v4073
        %v4076 = vmul.f32 %v3887, %v4073
        %s4077 = sld [smem:[#allocation9 + $0x89]]
        %v4078 = vstv %s4077
        %v4079 = vmul.f32 %v3885, %v4078
        %v4080 = vmul.f32 %v3886, %v4078
        %v4081 = vmul.f32 %v3887, %v4078
        %s4082 = sld [smem:[#allocation9 + $0x8a]]
        %v4083 = vstv %s4082
        %v4084 = vmul.f32 %v3885, %v4083
        %v4085 = vmul.f32 %v3886, %v4083
        %v4086 = vmul.f32 %v3887, %v4083
        %s4087 = sld [smem:[#allocation9 + $0x8b]]
        %v4088 = vstv %s4087
        %v4089 = vmul.f32 %v3885, %v4088
        %v4090 = vmul.f32 %v3886, %v4088
        %v4091 = vmul.f32 %v3887, %v4088
        %s4092 = sld [smem:[#allocation9 + $0x8c]]
        %v4093 = vstv %s4092
        %v4094 = vmul.f32 %v3886, %v4093
        %v4095 = vmul.f32 %v3887, %v4093
        %v4096 = vmul.f32 %v3888, %v4093
        %s4097 = sld [smem:[#allocation9 + $0x8d]]
        %v4098 = vstv %s4097
        %v4099 = vmul.f32 %v3886, %v4098
        %v4100 = vmul.f32 %v3887, %v4098
        %v4101 = vmul.f32 %v3888, %v4098
        %s4102 = sld [smem:[#allocation9 + $0x8e]]
        %v4103 = vstv %s4102
        %v4104 = vmul.f32 %v3886, %v4103
        %v4105 = vmul.f32 %v3887, %v4103
        %v4106 = vmul.f32 %v3888, %v4103
        %s4107 = sld [smem:[#allocation9 + $0x8f]]
        %v4108 = vstv %s4107
        %v4109 = vmul.f32 %v3886, %v4108
        %v4110 = vmul.f32 %v3887, %v4108
        %v4111 = vmul.f32 %v3888, %v4108
        %s4112 = sld [smem:[#allocation9 + $0x90]]
        %v4113 = vstv %s4112
        %v4114 = vmul.f32 %v3886, %v4113
        %v4115 = vmul.f32 %v3887, %v4113
        %v4116 = vmul.f32 %v3888, %v4113
        %s4117 = sld [smem:[#allocation9 + $0x91]]
        %v4118 = vstv %s4117
        %v4119 = vmul.f32 %v3886, %v4118
        %v4120 = vmul.f32 %v3887, %v4118
        %v4121 = vmul.f32 %v3888, %v4118
        %s4122 = sld [smem:[#allocation9 + $0x92]]
        %v4123 = vstv %s4122
        %v4124 = vmul.f32 %v3886, %v4123
        %v4125 = vmul.f32 %v3887, %v4123
        %v4126 = vmul.f32 %v3888, %v4123
        %4129 = vrot.lane.b32.xlu0 %v3895, 125
        %v4130 = vpop.permute.xlu0 %4129
        %4131 = vrot.lane.b32.xlu0 %v3896, 125
        %v4132 = vpop.permute.xlu0 %4131
        %v4135 = vadd.f32 %v3891, %v4130
        %v4136 = vadd.f32 %v3892, %v4132
        %4139 = vrot.lane.b32.xlu0 %v3903, 125
        %v4140 = vpop.permute.xlu0 %4139
        %4141 = vrot.lane.b32.xlu0 %v3904, 125
        %v4142 = vpop.permute.xlu0 %4141
        %v4145 = vadd.f32 %v3899, %v4140
        %v4146 = vadd.f32 %v3900, %v4142
        %4149 = vrot.lane.b32.xlu0 %v3911, 125
        %v4150 = vpop.permute.xlu0 %4149
        %4151 = vrot.lane.b32.xlu0 %v3912, 125
        %v4152 = vpop.permute.xlu0 %4151
        %v4155 = vadd.f32 %v3907, %v4150
        %v4156 = vadd.f32 %v3908, %v4152
        %v4160 = vrot.slane %v3919, 3
        %v4161 = vrot.slane %v3920, 3
        %v4162 = vsel %vm841, %v4160, %v4161
        %v4163 = vrot.slane %v3921, 3
        %v4164 = vsel %vm841, %v4161, %v4163
        %4165 = vrot.lane.b32.xlu0 %v4162, 18
        %v4166 = vpop.permute.xlu0 %4165
        %4167 = vrot.lane.b32.xlu0 %v4164, 18
        %v4168 = vpop.permute.xlu0 %4167
        %v4171 = vadd.f32 %v3915, %v4166
        %v4172 = vadd.f32 %v3916, %v4168
        %4176 = vrot.lane.b32.xlu0 %v3929, 125
        %v4177 = vpop.permute.xlu0 %4176
        %4178 = vrot.lane.b32.xlu0 %v3930, 125
        %v4179 = vpop.permute.xlu0 %4178
        %4180 = vrot.lane.b32.xlu0 %v3931, 125
        %v4181 = vpop.permute.xlu0 %4180
        %v4185 = vadd.f32 %v3924, %v4177
        %v4186 = vadd.f32 %v3925, %v4179
        %v4187 = vadd.f32 %v3926, %v4181
        %4191 = vrot.lane.b32.xlu0 %v3939, 125
        %v4192 = vpop.permute.xlu0 %4191
        %4193 = vrot.lane.b32.xlu0 %v3940, 125
        %v4194 = vpop.permute.xlu0 %4193
        %4195 = vrot.lane.b32.xlu0 %v3941, 125
        %v4196 = vpop.permute.xlu0 %4195
        %v4200 = vadd.f32 %v3934, %v4192
        %v4201 = vadd.f32 %v3935, %v4194
        %v4202 = vadd.f32 %v3936, %v4196
        %4206 = vrot.lane.b32.xlu0 %v3949, 125
        %v4207 = vpop.permute.xlu0 %4206
        %4208 = vrot.lane.b32.xlu0 %v3950, 125
        %v4209 = vpop.permute.xlu0 %4208
        %4210 = vrot.lane.b32.xlu0 %v3951, 125
        %v4211 = vpop.permute.xlu0 %4210
        %v4215 = vadd.f32 %v3944, %v4207
        %v4216 = vadd.f32 %v3945, %v4209
        %v4217 = vadd.f32 %v3946, %v4211
        %4221 = vrot.lane.b32.xlu0 %v3959, 125
        %v4222 = vpop.permute.xlu0 %4221
        %4223 = vrot.lane.b32.xlu0 %v3960, 125
        %v4224 = vpop.permute.xlu0 %4223
        %4225 = vrot.lane.b32.xlu0 %v3961, 125
        %v4226 = vpop.permute.xlu0 %4225
        %v4230 = vadd.f32 %v3954, %v4222
        %v4231 = vadd.f32 %v3955, %v4224
        %v4232 = vadd.f32 %v3956, %v4226
        %4236 = vrot.lane.b32.xlu0 %v3969, 125
        %v4237 = vpop.permute.xlu0 %4236
        %4238 = vrot.lane.b32.xlu0 %v3970, 125
        %v4239 = vpop.permute.xlu0 %4238
        %4240 = vrot.lane.b32.xlu0 %v3971, 125
        %v4241 = vpop.permute.xlu0 %4240
        %v4245 = vadd.f32 %v3964, %v4237
        %v4246 = vadd.f32 %v3965, %v4239
        %v4247 = vadd.f32 %v3966, %v4241
        %4251 = vrot.lane.b32.xlu0 %v3979, 125
        %v4252 = vpop.permute.xlu0 %4251
        %4253 = vrot.lane.b32.xlu0 %v3980, 125
        %v4254 = vpop.permute.xlu0 %4253
        %4255 = vrot.lane.b32.xlu0 %v3981, 125
        %v4256 = vpop.permute.xlu0 %4255
        %v4260 = vadd.f32 %v3974, %v4252
        %v4261 = vadd.f32 %v3975, %v4254
        %v4262 = vadd.f32 %v3976, %v4256
        %v4266 = vrot.slane %v3989, 3
        %v4267 = vrot.slane %v3990, 3
        %v4268 = vsel %vm841, %v4266, %v4267
        %v4269 = vrot.slane %v3991, 3
        %v4270 = vsel %vm841, %v4267, %v4269
        %4271 = vrot.lane.b32.xlu0 %v4266, 18
        %v4272 = vpop.permute.xlu0 %4271
        %4273 = vrot.lane.b32.xlu0 %v4268, 18
        %v4274 = vpop.permute.xlu0 %4273
        %4275 = vrot.lane.b32.xlu0 %v4270, 18
        %v4276 = vpop.permute.xlu0 %4275
        %v4280 = vadd.f32 %v3984, %v4272
        %v4281 = vadd.f32 %v3985, %v4274
        %v4282 = vadd.f32 %v3986, %v4276
        %4286 = vrot.lane.b32.xlu0 %v3999, 125
        %v4287 = vpop.permute.xlu0 %4286
        %4288 = vrot.lane.b32.xlu0 %v4000, 125
        %v4289 = vpop.permute.xlu0 %4288
        %4290 = vrot.lane.b32.xlu0 %v4001, 125
        %v4291 = vpop.permute.xlu0 %4290
        %v4295 = vadd.f32 %v3994, %v4287
        %v4296 = vadd.f32 %v3995, %v4289
        %v4297 = vadd.f32 %v3996, %v4291
        %4301 = vrot.lane.b32.xlu0 %v4009, 125
        %v4302 = vpop.permute.xlu0 %4301
        %4303 = vrot.lane.b32.xlu0 %v4010, 125
        %v4304 = vpop.permute.xlu0 %4303
        %4305 = vrot.lane.b32.xlu0 %v4011, 125
        %v4306 = vpop.permute.xlu0 %4305
        %v4310 = vadd.f32 %v4004, %v4302
        %v4311 = vadd.f32 %v4005, %v4304
        %v4312 = vadd.f32 %v4006, %v4306
        %4316 = vrot.lane.b32.xlu0 %v4019, 125
        %v4317 = vpop.permute.xlu0 %4316
        %4318 = vrot.lane.b32.xlu0 %v4020, 125
        %v4319 = vpop.permute.xlu0 %4318
        %4320 = vrot.lane.b32.xlu0 %v4021, 125
        %v4321 = vpop.permute.xlu0 %4320
        %v4325 = vadd.f32 %v4014, %v4317
        %v4326 = vadd.f32 %v4015, %v4319
        %v4327 = vadd.f32 %v4016, %v4321
        %4331 = vrot.lane.b32.xlu0 %v4029, 125
        %v4332 = vpop.permute.xlu0 %4331
        %4333 = vrot.lane.b32.xlu0 %v4030, 125
        %v4334 = vpop.permute.xlu0 %4333
        %4335 = vrot.lane.b32.xlu0 %v4031, 125
        %v4336 = vpop.permute.xlu0 %4335
        %v4340 = vadd.f32 %v4024, %v4332
        %v4341 = vadd.f32 %v4025, %v4334
        %v4342 = vadd.f32 %v4026, %v4336
        %4346 = vrot.lane.b32.xlu0 %v4039, 125
        %v4347 = vpop.permute.xlu0 %4346
        %4348 = vrot.lane.b32.xlu0 %v4040, 125
        %v4349 = vpop.permute.xlu0 %4348
        %4350 = vrot.lane.b32.xlu0 %v4041, 125
        %v4351 = vpop.permute.xlu0 %4350
        %v4355 = vadd.f32 %v4034, %v4347
        %v4356 = vadd.f32 %v4035, %v4349
        %v4357 = vadd.f32 %v4036, %v4351
        %4361 = vrot.lane.b32.xlu0 %v4049, 125
        %v4362 = vpop.permute.xlu0 %4361
        %4363 = vrot.lane.b32.xlu0 %v4050, 125
        %v4364 = vpop.permute.xlu0 %4363
        %4365 = vrot.lane.b32.xlu0 %v4051, 125
        %v4366 = vpop.permute.xlu0 %4365
        %v4370 = vadd.f32 %v4044, %v4362
        %v4371 = vadd.f32 %v4045, %v4364
        %v4372 = vadd.f32 %v4046, %v4366
        %v4376 = vrot.slane %v4059, 3
        %v4377 = vrot.slane %v4060, 3
        %v4378 = vsel %vm841, %v4376, %v4377
        %v4379 = vrot.slane %v4061, 3
        %v4380 = vsel %vm841, %v4377, %v4379
        %4381 = vrot.lane.b32.xlu0 %v4378, 18
        %v4382 = vpop.permute.xlu0 %4381
        %4383 = vrot.lane.b32.xlu0 %v4380, 18
        %v4384 = vpop.permute.xlu0 %4383
        %4385 = vrot.lane.b32.xlu0 %v4379, 18
        %v4386 = vpop.permute.xlu0 %4385
        %v4390 = vadd.f32 %v4054, %v4382
        %v4391 = vadd.f32 %v4055, %v4384
        %v4392 = vadd.f32 %v4056, %v4386
        %4396 = vrot.lane.b32.xlu0 %v4069, 125
        %v4397 = vpop.permute.xlu0 %4396
        %4398 = vrot.lane.b32.xlu0 %v4070, 125
        %v4399 = vpop.permute.xlu0 %4398
        %4400 = vrot.lane.b32.xlu0 %v4071, 125
        %v4401 = vpop.permute.xlu0 %4400
        %v4405 = vadd.f32 %v4064, %v4397
        %v4406 = vadd.f32 %v4065, %v4399
        %v4407 = vadd.f32 %v4066, %v4401
        %4411 = vrot.lane.b32.xlu0 %v4079, 125
        %v4412 = vpop.permute.xlu0 %4411
        %4413 = vrot.lane.b32.xlu0 %v4080, 125
        %v4414 = vpop.permute.xlu0 %4413
        %4415 = vrot.lane.b32.xlu0 %v4081, 125
        %v4416 = vpop.permute.xlu0 %4415
        %v4420 = vadd.f32 %v4074, %v4412
        %v4421 = vadd.f32 %v4075, %v4414
        %v4422 = vadd.f32 %v4076, %v4416
        %4426 = vrot.lane.b32.xlu0 %v4089, 125
        %v4427 = vpop.permute.xlu0 %4426
        %4428 = vrot.lane.b32.xlu0 %v4090, 125
        %v4429 = vpop.permute.xlu0 %4428
        %4430 = vrot.lane.b32.xlu0 %v4091, 125
        %v4431 = vpop.permute.xlu0 %4430
        %v4435 = vadd.f32 %v4084, %v4427
        %v4436 = vadd.f32 %v4085, %v4429
        %v4437 = vadd.f32 %v4086, %v4431
        %4441 = vrot.lane.b32.xlu0 %v4099, 125
        %v4442 = vpop.permute.xlu0 %4441
        %4443 = vrot.lane.b32.xlu0 %v4100, 125
        %v4444 = vpop.permute.xlu0 %4443
        %4445 = vrot.lane.b32.xlu0 %v4101, 125
        %v4446 = vpop.permute.xlu0 %4445
        %v4450 = vadd.f32 %v4094, %v4442
        %v4451 = vadd.f32 %v4095, %v4444
        %v4452 = vadd.f32 %v4096, %v4446
        %4456 = vrot.lane.b32.xlu0 %v4109, 125
        %v4457 = vpop.permute.xlu0 %4456
        %4458 = vrot.lane.b32.xlu0 %v4110, 125
        %v4459 = vpop.permute.xlu0 %4458
        %4460 = vrot.lane.b32.xlu0 %v4111, 125
        %v4461 = vpop.permute.xlu0 %4460
        %v4465 = vadd.f32 %v4104, %v4457
        %v4466 = vadd.f32 %v4105, %v4459
        %v4467 = vadd.f32 %v4106, %v4461
        %4471 = vrot.lane.b32.xlu0 %v4119, 125
        %v4472 = vpop.permute.xlu0 %4471
        %4473 = vrot.lane.b32.xlu0 %v4120, 125
        %v4474 = vpop.permute.xlu0 %4473
        %4475 = vrot.lane.b32.xlu0 %v4121, 125
        %v4476 = vpop.permute.xlu0 %4475
        %v4480 = vadd.f32 %v4114, %v4472
        %v4481 = vadd.f32 %v4115, %v4474
        %v4482 = vadd.f32 %v4116, %v4476
        %4485 = vrot.lane.b32.xlu0 %v4145, 122
        %v4486 = vpop.permute.xlu0 %4485
        %4487 = vrot.lane.b32.xlu0 %v4146, 122
        %v4488 = vpop.permute.xlu0 %4487
        %v4491 = vadd.f32 %v4135, %v4486
        %v4492 = vadd.f32 %v4136, %v4488
        %4495 = vrot.lane.b32.xlu0 %v4171, 122
        %v4496 = vpop.permute.xlu0 %4495
        %4497 = vrot.lane.b32.xlu0 %v4172, 122
        %v4498 = vpop.permute.xlu0 %4497
        %v4501 = vadd.f32 %v4155, %v4496
        %v4502 = vadd.f32 %v4156, %v4498
        %4506 = vrot.lane.b32.xlu0 %v4200, 122
        %v4507 = vpop.permute.xlu0 %4506
        %4508 = vrot.lane.b32.xlu0 %v4201, 122
        %v4509 = vpop.permute.xlu0 %4508
        %4510 = vrot.lane.b32.xlu0 %v4202, 122
        %v4511 = vpop.permute.xlu0 %4510
        %v4515 = vadd.f32 %v4185, %v4507
        %v4516 = vadd.f32 %v4186, %v4509
        %v4517 = vadd.f32 %v4187, %v4511
        %v4521 = vrot.slane %v4230, 3
        %v4522 = vrot.slane %v4231, 3
        %v4523 = vsel %vm841, %v4521, %v4522
        %v4524 = vrot.slane %v4232, 3
        %v4525 = vsel %vm841, %v4522, %v4524
        %4526 = vrot.lane.b32.xlu0 %v4523, 15
        %v4527 = vpop.permute.xlu0 %4526
        %4528 = vrot.lane.b32.xlu0 %v4525, 15
        %v4529 = vpop.permute.xlu0 %4528
        %4530 = vrot.lane.b32.xlu0 %v4524, 15
        %v4531 = vpop.permute.xlu0 %4530
        %v4535 = vadd.f32 %v4215, %v4527
        %v4536 = vadd.f32 %v4216, %v4529
        %v4537 = vadd.f32 %v4217, %v4531
        %4541 = vrot.lane.b32.xlu0 %v4260, 122
        %v4542 = vpop.permute.xlu0 %4541
        %4543 = vrot.lane.b32.xlu0 %v4261, 122
        %v4544 = vpop.permute.xlu0 %4543
        %4545 = vrot.lane.b32.xlu0 %v4262, 122
        %v4546 = vpop.permute.xlu0 %4545
        %v4550 = vadd.f32 %v4245, %v4542
        %v4551 = vadd.f32 %v4246, %v4544
        %v4552 = vadd.f32 %v4247, %v4546
        %v4556 = vrot.slane %v4295, 3
        %v4557 = vrot.slane %v4296, 3
        %v4558 = vsel %vm841, %v4556, %v4557
        %v4559 = vrot.slane %v4297, 3
        %v4560 = vsel %vm841, %v4557, %v4559
        %4561 = vrot.lane.b32.xlu0 %v4556, 15
        %v4562 = vpop.permute.xlu0 %4561
        %4563 = vrot.lane.b32.xlu0 %v4558, 15
        %v4564 = vpop.permute.xlu0 %4563
        %4565 = vrot.lane.b32.xlu0 %v4560, 15
        %v4566 = vpop.permute.xlu0 %4565
        %v4570 = vadd.f32 %v4280, %v4562
        %v4571 = vadd.f32 %v4281, %v4564
        %v4572 = vadd.f32 %v4282, %v4566
        %4576 = vrot.lane.b32.xlu0 %v4325, 122
        %v4577 = vpop.permute.xlu0 %4576
        %4578 = vrot.lane.b32.xlu0 %v4326, 122
        %v4579 = vpop.permute.xlu0 %4578
        %4580 = vrot.lane.b32.xlu0 %v4327, 122
        %v4581 = vpop.permute.xlu0 %4580
        %v4585 = vadd.f32 %v4310, %v4577
        %v4586 = vadd.f32 %v4311, %v4579
        %v4587 = vadd.f32 %v4312, %v4581
        %4591 = vrot.lane.b32.xlu0 %v4355, 122
        %v4592 = vpop.permute.xlu0 %4591
        %4593 = vrot.lane.b32.xlu0 %v4356, 122
        %v4594 = vpop.permute.xlu0 %4593
        %4595 = vrot.lane.b32.xlu0 %v4357, 122
        %v4596 = vpop.permute.xlu0 %4595
        %v4600 = vadd.f32 %v4340, %v4592
        %v4601 = vadd.f32 %v4341, %v4594
        %v4602 = vadd.f32 %v4342, %v4596
        %4606 = vrot.lane.b32.xlu0 %v4390, 122
        %v4607 = vpop.permute.xlu0 %4606
        %4608 = vrot.lane.b32.xlu0 %v4391, 122
        %v4609 = vpop.permute.xlu0 %4608
        %4610 = vrot.lane.b32.xlu0 %v4392, 122
        %v4611 = vpop.permute.xlu0 %4610
        %v4615 = vadd.f32 %v4370, %v4607
        %v4616 = vadd.f32 %v4371, %v4609
        %v4617 = vadd.f32 %v4372, %v4611
        %4621 = vrot.lane.b32.xlu0 %v4420, 122
        %v4622 = vpop.permute.xlu0 %4621
        %4623 = vrot.lane.b32.xlu0 %v4421, 122
        %v4624 = vpop.permute.xlu0 %4623
        %4625 = vrot.lane.b32.xlu0 %v4422, 122
        %v4626 = vpop.permute.xlu0 %4625
        %v4630 = vadd.f32 %v4405, %v4622
        %v4631 = vadd.f32 %v4406, %v4624
        %v4632 = vadd.f32 %v4407, %v4626
        %v4636 = vrot.slane %v4450, 3
        %v4637 = vrot.slane %v4451, 3
        %v4638 = vsel %vm841, %v4636, %v4637
        %v4639 = vrot.slane %v4452, 3
        %v4640 = vsel %vm841, %v4637, %v4639
        %4641 = vrot.lane.b32.xlu0 %v4636, 15
        %v4642 = vpop.permute.xlu0 %4641
        %4643 = vrot.lane.b32.xlu0 %v4638, 15
        %v4644 = vpop.permute.xlu0 %4643
        %4645 = vrot.lane.b32.xlu0 %v4640, 15
        %v4646 = vpop.permute.xlu0 %4645
        %v4650 = vadd.f32 %v4435, %v4642
        %v4651 = vadd.f32 %v4436, %v4644
        %v4652 = vadd.f32 %v4437, %v4646
        %4656 = vrot.lane.b32.xlu0 %v4480, 122
        %v4657 = vpop.permute.xlu0 %4656
        %4658 = vrot.lane.b32.xlu0 %v4481, 122
        %v4659 = vpop.permute.xlu0 %4658
        %4660 = vrot.lane.b32.xlu0 %v4482, 122
        %v4661 = vpop.permute.xlu0 %4660
        %v4665 = vadd.f32 %v4465, %v4657
        %v4666 = vadd.f32 %v4466, %v4659
        %v4667 = vadd.f32 %v4467, %v4661
        %4670 = vrot.lane.b32.xlu0 %v4501, 116
        %v4671 = vpop.permute.xlu0 %4670
        %4672 = vrot.lane.b32.xlu0 %v4502, 116
        %v4673 = vpop.permute.xlu0 %4672
        %v4676 = vadd.f32 %v4491, %v4671
        %v4677 = vadd.f32 %v4492, %v4673
        %4681 = vrot.lane.b32.xlu0 %v4535, 116
        %v4682 = vpop.permute.xlu0 %4681
        %4683 = vrot.lane.b32.xlu0 %v4536, 116
        %v4684 = vpop.permute.xlu0 %4683
        %4685 = vrot.lane.b32.xlu0 %v4537, 116
        %v4686 = vpop.permute.xlu0 %4685
        %v4690 = vadd.f32 %v4515, %v4682
        %v4691 = vadd.f32 %v4516, %v4684
        %v4692 = vadd.f32 %v4517, %v4686
        %4696 = vrot.lane.b32.xlu0 %v4570, 116
        %v4697 = vpop.permute.xlu0 %4696
        %4698 = vrot.lane.b32.xlu0 %v4571, 116
        %v4699 = vpop.permute.xlu0 %4698
        %4700 = vrot.lane.b32.xlu0 %v4572, 116
        %v4701 = vpop.permute.xlu0 %4700
        %v4705 = vadd.f32 %v4550, %v4697
        %v4706 = vadd.f32 %v4551, %v4699
        %v4707 = vadd.f32 %v4552, %v4701
        %v4711 = vrot.slane %v4600, 3
        %v4712 = vrot.slane %v4601, 3
        %v4713 = vsel %vm841, %v4711, %v4712
        %v4714 = vrot.slane %v4602, 3
        %v4715 = vsel %vm841, %v4712, %v4714
        %4716 = vrot.lane.b32.xlu0 %v4713, 9
        %v4717 = vpop.permute.xlu0 %4716
        %4718 = vrot.lane.b32.xlu0 %v4715, 9
        %v4719 = vpop.permute.xlu0 %4718
        %4720 = vrot.lane.b32.xlu0 %v4714, 9
        %v4721 = vpop.permute.xlu0 %4720
        %v4725 = vadd.f32 %v4585, %v4717
        %v4726 = vadd.f32 %v4586, %v4719
        %v4727 = vadd.f32 %v4587, %v4721
        %v4731 = vrot.slane %v4630, 3
        %v4732 = vrot.slane %v4631, 3
        %v4733 = vsel %vm841, %v4731, %v4732
        %v4734 = vrot.slane %v4632, 3
        %v4735 = vsel %vm841, %v4732, %v4734
        %4736 = vrot.lane.b32.xlu0 %v4733, 9
        %v4737 = vpop.permute.xlu0 %4736
        %4738 = vrot.lane.b32.xlu0 %v4735, 9
        %v4739 = vpop.permute.xlu0 %4738
        %4740 = vrot.lane.b32.xlu0 %v4734, 9
        %v4741 = vpop.permute.xlu0 %4740
        %v4745 = vadd.f32 %v4615, %v4737
        %v4746 = vadd.f32 %v4616, %v4739
        %v4747 = vadd.f32 %v4617, %v4741
        %v4751 = vrot.slane %v4665, 3
        %v4752 = vrot.slane %v4666, 3
        %v4753 = vsel %vm841, %v4751, %v4752
        %v4754 = vrot.slane %v4667, 3
        %v4755 = vsel %vm841, %v4752, %v4754
        %4756 = vrot.lane.b32.xlu0 %v4751, 9
        %v4757 = vpop.permute.xlu0 %4756
        %4758 = vrot.lane.b32.xlu0 %v4753, 9
        %v4759 = vpop.permute.xlu0 %4758
        %4760 = vrot.lane.b32.xlu0 %v4755, 9
        %v4761 = vpop.permute.xlu0 %4760
        %v4765 = vadd.f32 %v4650, %v4757
        %v4766 = vadd.f32 %v4651, %v4759
        %v4767 = vadd.f32 %v4652, %v4761
        %v4771 = vrot.slane %v4690, 3
        %v4772 = vrot.slane %v4691, 3
        %v4773 = vsel %vm841, %v4771, %v4772
        %v4774 = vrot.slane %v4692, 3
        %v4775 = vsel %vm841, %v4772, %v4774
        %4776 = vrot.lane.b32.xlu0 %v4773, 125
        %v4777 = vpop.permute.xlu0 %4776
        %4778 = vrot.lane.b32.xlu0 %v4775, 125
        %v4779 = vpop.permute.xlu0 %4778
        %v4782 = vadd.f32 %v4676, %v4777
        %v4783 = vadd.f32 %v4677, %v4779
        %v4787 = vrot.slane %v4725, 3
        %v4788 = vrot.slane %v4726, 3
        %v4789 = vsel %vm841, %v4787, %v4788
        %v4790 = vrot.slane %v4727, 3
        %v4791 = vsel %vm841, %v4788, %v4790
        %4792 = vrot.lane.b32.xlu0 %v4787, 125
        %v4793 = vpop.permute.xlu0 %4792
        %4794 = vrot.lane.b32.xlu0 %v4789, 125
        %v4795 = vpop.permute.xlu0 %4794
        %4796 = vrot.lane.b32.xlu0 %v4791, 125
        %v4797 = vpop.permute.xlu0 %4796
        %v4801 = vadd.f32 %v4705, %v4793
        %v4802 = vadd.f32 %v4706, %v4795
        %v4803 = vadd.f32 %v4707, %v4797
        %v4807 = vrot.slane %v4765, 3
        %v4808 = vrot.slane %v4766, 3
        %v4809 = vsel %vm841, %v4807, %v4808
        %v4810 = vrot.slane %v4767, 3
        %v4811 = vsel %vm841, %v4808, %v4810
        %4812 = vrot.lane.b32.xlu0 %v4809, 125
        %v4813 = vpop.permute.xlu0 %4812
        %4814 = vrot.lane.b32.xlu0 %v4811, 125
        %v4815 = vpop.permute.xlu0 %4814
        %4816 = vrot.lane.b32.xlu0 %v4810, 125
        %v4817 = vpop.permute.xlu0 %4816
        %v4821 = vadd.f32 %v4745, %v4813
        %v4822 = vadd.f32 %v4746, %v4815
        %v4823 = vadd.f32 %v4747, %v4817
        %v4827 = vrot.slane %v4801, 6
        %v4828 = vrot.slane %v4802, 6
        %v4829 = vsel %vm1813, %v4827, %v4828
        %v4830 = vrot.slane %v4803, 6
        %v4831 = vsel %vm1813, %v4828, %v4830
        %4832 = vrot.lane.b32.xlu0 %v4829, 122
        %v4833 = vpop.permute.xlu0 %4832
        %4834 = vrot.lane.b32.xlu0 %v4831, 122
        %v4835 = vpop.permute.xlu0 %4834
        %v4838 = vadd.f32 %v4782, %v4833
        %v4839 = vadd.f32 %v4783, %v4835
        %v4843 = vrot.slane %v4124, 6
        %v4844 = vrot.slane %v4125, 6
        %v4845 = vsel %vm1813, %v4843, %v4844
        %v4846 = vrot.slane %v4126, 6
        %v4847 = vsel %vm1813, %v4844, %v4846
        %4848 = vrot.lane.b32.xlu0 %v4843, 122
        %v4849 = vpop.permute.xlu0 %4848
        %4850 = vrot.lane.b32.xlu0 %v4845, 122
        %v4851 = vpop.permute.xlu0 %4850
        %4852 = vrot.lane.b32.xlu0 %v4847, 122
        %v4853 = vpop.permute.xlu0 %4852
        %v4857 = vadd.f32 %v4821, %v4849
        %v4858 = vadd.f32 %v4822, %v4851
        %v4859 = vadd.f32 %v4823, %v4853
        %v4863 = vrot.slane %v4857, 4
        %v4864 = vrot.slane %v4858, 4
        %v4865 = vsel %vm1850, %v4863, %v4864
        %v4866 = vrot.slane %v4859, 4
        %v4867 = vsel %vm1850, %v4864, %v4866
        %4868 = vrot.lane.b32.xlu0 %v4865, 116
        %v4869 = vpop.permute.xlu0 %4868
        %4870 = vrot.lane.b32.xlu0 %v4867, 116
        %v4871 = vpop.permute.xlu0 %4870
        %v4874 = vadd.f32 %v4838, %v4869
        %v4875 = vadd.f32 %v4839, %v4871
        %s4876 = sld [smem:[#allocation10 + $0x2]]
        %v4877 = vstv %s4876
        %v4878 = vadd.f32 %v4874, %v4877
        %v4879 = vadd.f32 %v4875, %v4877
        %s4880 = scalar_lea.vmem [#allocation3], 32
        %4881 = vst.msk [vmem:[%s4880] sm:$0xff] %vm1868, %v4878
        %4882 = vst.msk [vmem:[%s4880 + $0x8] sm:$0xff] %vm1868, %v4879
        %s4883 = scalar_lea.vmem %s353, 72
        %v4884 = vld [vmem:[%s4883] sm:$0xff]
        %v4885 = vld [vmem:[%s4883 + $0x8] sm:$0xff]
        %v4886 = vld [vmem:[%s4883 + $0x10] sm:$0xf]
        %s4887 = sld [smem:[#allocation4 + $0x4b]]
        %v4888 = vstv %s4887
        %v4889 = vmul.f32 %v4884, %v4888
        %v4890 = vmul.f32 %v4885, %v4888
        %s4891 = sld [smem:[#allocation4 + $0x4c]]
        %v4892 = vstv %s4891
        %v4893 = vmul.f32 %v4884, %v4892
        %v4894 = vmul.f32 %v4885, %v4892
        %s4895 = sld [smem:[#allocation4 + $0x4d]]
        %v4896 = vstv %s4895
        %v4897 = vmul.f32 %v4884, %v4896
        %v4898 = vmul.f32 %v4885, %v4896
        %s4899 = sld [smem:[#allocation4 + $0x4e]]
        %v4900 = vstv %s4899
        %v4901 = vmul.f32 %v4884, %v4900
        %v4902 = vmul.f32 %v4885, %v4900
        %s4903 = sld [smem:[#allocation4 + $0x4f]]
        %v4904 = vstv %s4903
        %v4905 = vmul.f32 %v4884, %v4904
        %v4906 = vmul.f32 %v4885, %v4904
        %s4907 = sld [smem:[#allocation4 + $0x50]]
        %v4908 = vstv %s4907
        %v4909 = vmul.f32 %v4884, %v4908
        %v4910 = vmul.f32 %v4885, %v4908
        %v4911 = vmul.f32 %v4886, %v4908
        %s4912 = sld [smem:[#allocation4 + $0x51]]
        %v4913 = vstv %s4912
        %v4914 = vmul.f32 %v4884, %v4913
        %v4915 = vmul.f32 %v4885, %v4913
        %v4916 = vmul.f32 %v4886, %v4913
        %s4917 = sld [smem:[#allocation4 + $0x52]]
        %v4918 = vstv %s4917
        %v4919 = vmul.f32 %v4884, %v4918
        %v4920 = vmul.f32 %v4885, %v4918
        %v4921 = vmul.f32 %v4886, %v4918
        %s4922 = sld [smem:[#allocation4 + $0x53]]
        %v4923 = vstv %s4922
        %v4924 = vmul.f32 %v4884, %v4923
        %v4925 = vmul.f32 %v4885, %v4923
        %v4926 = vmul.f32 %v4886, %v4923
        %s4927 = sld [smem:[#allocation4 + $0x54]]
        %v4928 = vstv %s4927
        %v4929 = vmul.f32 %v4884, %v4928
        %v4930 = vmul.f32 %v4885, %v4928
        %v4931 = vmul.f32 %v4886, %v4928
        %s4932 = sld [smem:[#allocation4 + $0x55]]
        %v4933 = vstv %s4932
        %v4934 = vmul.f32 %v4884, %v4933
        %v4935 = vmul.f32 %v4885, %v4933
        %v4936 = vmul.f32 %v4886, %v4933
        %s4937 = sld [smem:[#allocation4 + $0x56]]
        %v4938 = vstv %s4937
        %v4939 = vmul.f32 %v4884, %v4938
        %v4940 = vmul.f32 %v4885, %v4938
        %v4941 = vmul.f32 %v4886, %v4938
        %s4942 = sld [smem:[#allocation4 + $0x57]]
        %v4943 = vstv %s4942
        %v4944 = vmul.f32 %v4884, %v4943
        %v4945 = vmul.f32 %v4885, %v4943
        %v4946 = vmul.f32 %v4886, %v4943
        %s4947 = sld [smem:[#allocation4 + $0x58]]
        %v4948 = vstv %s4947
        %v4949 = vmul.f32 %v4884, %v4948
        %v4950 = vmul.f32 %v4885, %v4948
        %v4951 = vmul.f32 %v4886, %v4948
        %s4952 = sld [smem:[#allocation4 + $0x59]]
        %v4953 = vstv %s4952
        %v4954 = vmul.f32 %v4884, %v4953
        %v4955 = vmul.f32 %v4885, %v4953
        %v4956 = vmul.f32 %v4886, %v4953
        %s4957 = sld [smem:[#allocation4 + $0x5a]]
        %v4958 = vstv %s4957
        %v4959 = vmul.f32 %v4884, %v4958
        %v4960 = vmul.f32 %v4885, %v4958
        %v4961 = vmul.f32 %v4886, %v4958
        %s4962 = sld [smem:[#allocation4 + $0x5b]]
        %v4963 = vstv %s4962
        %v4964 = vmul.f32 %v4884, %v4963
        %v4965 = vmul.f32 %v4885, %v4963
        %v4966 = vmul.f32 %v4886, %v4963
        %s4967 = sld [smem:[#allocation4 + $0x5c]]
        %v4968 = vstv %s4967
        %v4969 = vmul.f32 %v4884, %v4968
        %v4970 = vmul.f32 %v4885, %v4968
        %v4971 = vmul.f32 %v4886, %v4968
        %s4972 = sld [smem:[#allocation4 + $0x5d]]
        %v4973 = vstv %s4972
        %v4974 = vmul.f32 %v4884, %v4973
        %v4975 = vmul.f32 %v4885, %v4973
        %v4976 = vmul.f32 %v4886, %v4973
        %s4977 = sld [smem:[#allocation4 + $0x5e]]
        %v4978 = vstv %s4977
        %v4979 = vmul.f32 %v4884, %v4978
        %v4980 = vmul.f32 %v4885, %v4978
        %v4981 = vmul.f32 %v4886, %v4978
        %s4982 = sld [smem:[#allocation4 + $0x5f]]
        %v4983 = vstv %s4982
        %v4984 = vmul.f32 %v4884, %v4983
        %v4985 = vmul.f32 %v4885, %v4983
        %v4986 = vmul.f32 %v4886, %v4983
        %s4987 = sld [smem:[#allocation4 + $0x60]]
        %v4988 = vstv %s4987
        %v4989 = vmul.f32 %v4884, %v4988
        %v4990 = vmul.f32 %v4885, %v4988
        %v4991 = vmul.f32 %v4886, %v4988
        %s4992 = sld [smem:[#allocation4 + $0x61]]
        %v4993 = vstv %s4992
        %v4994 = vmul.f32 %v4884, %v4993
        %v4995 = vmul.f32 %v4885, %v4993
        %v4996 = vmul.f32 %v4886, %v4993
        %s4997 = sld [smem:[#allocation4 + $0x62]]
        %v4998 = vstv %s4997
        %v4999 = vmul.f32 %v4884, %v4998
        %v5000 = vmul.f32 %v4885, %v4998
        %v5001 = vmul.f32 %v4886, %v4998
        %s5002 = sld [smem:[#allocation4 + $0x63]]
        %v5003 = vstv %s5002
        %v5004 = vmul.f32 %v4884, %v5003
        %v5005 = vmul.f32 %v4885, %v5003
        %v5006 = vmul.f32 %v4886, %v5003
        %5009 = vrot.lane.b32.xlu0 %v4893, 127
        %v5010 = vpop.permute.xlu0 %5009
        %5011 = vrot.lane.b32.xlu0 %v4894, 127
        %v5012 = vpop.permute.xlu0 %5011
        %v5015 = vadd.f32 %v4889, %v5010
        %v5016 = vadd.f32 %v4890, %v5012
        %5019 = vrot.lane.b32.xlu0 %v4901, 127
        %v5020 = vpop.permute.xlu0 %5019
        %5021 = vrot.lane.b32.xlu0 %v4902, 127
        %v5022 = vpop.permute.xlu0 %5021
        %v5025 = vadd.f32 %v4897, %v5020
        %v5026 = vadd.f32 %v4898, %v5022
        %v5030 = vrot.slane %v4909, 1
        %v5031 = vrot.slane %v4910, 1
        %v5032 = vsel %vm507, %v5030, %v5031
        %v5033 = vrot.slane %v4911, 1
        %v5034 = vsel %vm507, %v5031, %v5033
        %5035 = vrot.lane.b32.xlu0 %v5032, 4
        %v5036 = vpop.permute.xlu0 %5035
        %5037 = vrot.lane.b32.xlu0 %v5034, 4
        %v5038 = vpop.permute.xlu0 %5037
        %v5041 = vadd.f32 %v4905, %v5036
        %v5042 = vadd.f32 %v4906, %v5038
        %5046 = vrot.lane.b32.xlu0 %v4919, 127
        %v5047 = vpop.permute.xlu0 %5046
        %5048 = vrot.lane.b32.xlu0 %v4920, 127
        %v5049 = vpop.permute.xlu0 %5048
        %5050 = vrot.lane.b32.xlu0 %v4921, 127
        %v5051 = vpop.permute.xlu0 %5050
        %v5055 = vadd.f32 %v4914, %v5047
        %v5056 = vadd.f32 %v4915, %v5049
        %v5057 = vadd.f32 %v4916, %v5051
        %5061 = vrot.lane.b32.xlu0 %v4929, 127
        %v5062 = vpop.permute.xlu0 %5061
        %5063 = vrot.lane.b32.xlu0 %v4930, 127
        %v5064 = vpop.permute.xlu0 %5063
        %5065 = vrot.lane.b32.xlu0 %v4931, 127
        %v5066 = vpop.permute.xlu0 %5065
        %v5070 = vadd.f32 %v4924, %v5062
        %v5071 = vadd.f32 %v4925, %v5064
        %v5072 = vadd.f32 %v4926, %v5066
        %5076 = vrot.lane.b32.xlu0 %v4939, 127
        %v5077 = vpop.permute.xlu0 %5076
        %5078 = vrot.lane.b32.xlu0 %v4940, 127
        %v5079 = vpop.permute.xlu0 %5078
        %5080 = vrot.lane.b32.xlu0 %v4941, 127
        %v5081 = vpop.permute.xlu0 %5080
        %v5085 = vadd.f32 %v4934, %v5077
        %v5086 = vadd.f32 %v4935, %v5079
        %v5087 = vadd.f32 %v4936, %v5081
        %5091 = vrot.lane.b32.xlu0 %v4949, 127
        %v5092 = vpop.permute.xlu0 %5091
        %5093 = vrot.lane.b32.xlu0 %v4950, 127
        %v5094 = vpop.permute.xlu0 %5093
        %5095 = vrot.lane.b32.xlu0 %v4951, 127
        %v5096 = vpop.permute.xlu0 %5095
        %v5100 = vadd.f32 %v4944, %v5092
        %v5101 = vadd.f32 %v4945, %v5094
        %v5102 = vadd.f32 %v4946, %v5096
        %v5106 = vrot.slane %v4959, 1
        %v5107 = vrot.slane %v4960, 1
        %v5108 = vsel %vm507, %v5106, %v5107
        %v5109 = vrot.slane %v4961, 1
        %v5110 = vsel %vm507, %v5107, %v5109
        %5111 = vrot.lane.b32.xlu0 %v5108, 4
        %v5112 = vpop.permute.xlu0 %5111
        %5113 = vrot.lane.b32.xlu0 %v5110, 4
        %v5114 = vpop.permute.xlu0 %5113
        %5115 = vrot.lane.b32.xlu0 %v5109, 4
        %v5116 = vpop.permute.xlu0 %5115
        %v5120 = vadd.f32 %v4954, %v5112
        %v5121 = vadd.f32 %v4955, %v5114
        %v5122 = vadd.f32 %v4956, %v5116
        %5126 = vrot.lane.b32.xlu0 %v4969, 127
        %v5127 = vpop.permute.xlu0 %5126
        %5128 = vrot.lane.b32.xlu0 %v4970, 127
        %v5129 = vpop.permute.xlu0 %5128
        %5130 = vrot.lane.b32.xlu0 %v4971, 127
        %v5131 = vpop.permute.xlu0 %5130
        %v5135 = vadd.f32 %v4964, %v5127
        %v5136 = vadd.f32 %v4965, %v5129
        %v5137 = vadd.f32 %v4966, %v5131
        %5141 = vrot.lane.b32.xlu0 %v4979, 127
        %v5142 = vpop.permute.xlu0 %5141
        %5143 = vrot.lane.b32.xlu0 %v4980, 127
        %v5144 = vpop.permute.xlu0 %5143
        %5145 = vrot.lane.b32.xlu0 %v4981, 127
        %v5146 = vpop.permute.xlu0 %5145
        %v5150 = vadd.f32 %v4974, %v5142
        %v5151 = vadd.f32 %v4975, %v5144
        %v5152 = vadd.f32 %v4976, %v5146
        %5156 = vrot.lane.b32.xlu0 %v4989, 127
        %v5157 = vpop.permute.xlu0 %5156
        %5158 = vrot.lane.b32.xlu0 %v4990, 127
        %v5159 = vpop.permute.xlu0 %5158
        %5160 = vrot.lane.b32.xlu0 %v4991, 127
        %v5161 = vpop.permute.xlu0 %5160
        %v5165 = vadd.f32 %v4984, %v5157
        %v5166 = vadd.f32 %v4985, %v5159
        %v5167 = vadd.f32 %v4986, %v5161
        %5171 = vrot.lane.b32.xlu0 %v4999, 127
        %v5172 = vpop.permute.xlu0 %5171
        %5173 = vrot.lane.b32.xlu0 %v5000, 127
        %v5174 = vpop.permute.xlu0 %5173
        %5175 = vrot.lane.b32.xlu0 %v5001, 127
        %v5176 = vpop.permute.xlu0 %5175
        %v5180 = vadd.f32 %v4994, %v5172
        %v5181 = vadd.f32 %v4995, %v5174
        %v5182 = vadd.f32 %v4996, %v5176
        %5185 = vrot.lane.b32.xlu0 %v5025, 126
        %v5186 = vpop.permute.xlu0 %5185
        %5187 = vrot.lane.b32.xlu0 %v5026, 126
        %v5188 = vpop.permute.xlu0 %5187
        %v5191 = vadd.f32 %v5015, %v5186
        %v5192 = vadd.f32 %v5016, %v5188
        %v5196 = vrot.slane %v5055, 1
        %v5197 = vrot.slane %v5056, 1
        %v5198 = vsel %vm507, %v5196, %v5197
        %v5199 = vrot.slane %v5057, 1
        %v5200 = vsel %vm507, %v5197, %v5199
        %5201 = vrot.lane.b32.xlu0 %v5198, 3
        %v5202 = vpop.permute.xlu0 %5201
        %5203 = vrot.lane.b32.xlu0 %v5200, 3
        %v5204 = vpop.permute.xlu0 %5203
        %v5207 = vadd.f32 %v5041, %v5202
        %v5208 = vadd.f32 %v5042, %v5204
        %v5212 = vrot.slane %v5085, 1
        %v5213 = vrot.slane %v5086, 1
        %v5214 = vsel %vm507, %v5212, %v5213
        %v5215 = vrot.slane %v5087, 1
        %v5216 = vsel %vm507, %v5213, %v5215
        %5217 = vrot.lane.b32.xlu0 %v5214, 3
        %v5218 = vpop.permute.xlu0 %5217
        %5219 = vrot.lane.b32.xlu0 %v5216, 3
        %v5220 = vpop.permute.xlu0 %5219
        %5221 = vrot.lane.b32.xlu0 %v5215, 3
        %v5222 = vpop.permute.xlu0 %5221
        %v5226 = vadd.f32 %v5070, %v5218
        %v5227 = vadd.f32 %v5071, %v5220
        %v5228 = vadd.f32 %v5072, %v5222
        %5232 = vrot.lane.b32.xlu0 %v5120, 126
        %v5233 = vpop.permute.xlu0 %5232
        %5234 = vrot.lane.b32.xlu0 %v5121, 126
        %v5235 = vpop.permute.xlu0 %5234
        %5236 = vrot.lane.b32.xlu0 %v5122, 126
        %v5237 = vpop.permute.xlu0 %5236
        %v5241 = vadd.f32 %v5100, %v5233
        %v5242 = vadd.f32 %v5101, %v5235
        %v5243 = vadd.f32 %v5102, %v5237
        %5247 = vrot.lane.b32.xlu0 %v5150, 126
        %v5248 = vpop.permute.xlu0 %5247
        %5249 = vrot.lane.b32.xlu0 %v5151, 126
        %v5250 = vpop.permute.xlu0 %5249
        %5251 = vrot.lane.b32.xlu0 %v5152, 126
        %v5252 = vpop.permute.xlu0 %5251
        %v5256 = vadd.f32 %v5135, %v5248
        %v5257 = vadd.f32 %v5136, %v5250
        %v5258 = vadd.f32 %v5137, %v5252
        %5262 = vrot.lane.b32.xlu0 %v5180, 126
        %v5263 = vpop.permute.xlu0 %5262
        %5264 = vrot.lane.b32.xlu0 %v5181, 126
        %v5265 = vpop.permute.xlu0 %5264
        %5266 = vrot.lane.b32.xlu0 %v5182, 126
        %v5267 = vpop.permute.xlu0 %5266
        %v5271 = vadd.f32 %v5165, %v5263
        %v5272 = vadd.f32 %v5166, %v5265
        %v5273 = vadd.f32 %v5167, %v5267
        %5276 = vrot.lane.b32.xlu0 %v5207, 124
        %v5277 = vpop.permute.xlu0 %5276
        %5278 = vrot.lane.b32.xlu0 %v5208, 124
        %v5279 = vpop.permute.xlu0 %5278
        %v5282 = vadd.f32 %v5191, %v5277
        %v5283 = vadd.f32 %v5192, %v5279
        %v5287 = vrot.slane %v5241, 1
        %v5288 = vrot.slane %v5242, 1
        %v5289 = vsel %vm507, %v5287, %v5288
        %v5290 = vrot.slane %v5243, 1
        %v5291 = vsel %vm507, %v5288, %v5290
        %5292 = vrot.lane.b32.xlu0 %v5289, 1
        %v5293 = vpop.permute.xlu0 %5292
        %5294 = vrot.lane.b32.xlu0 %v5291, 1
        %v5295 = vpop.permute.xlu0 %5294
        %5296 = vrot.lane.b32.xlu0 %v5290, 1
        %v5297 = vpop.permute.xlu0 %5296
        %v5301 = vadd.f32 %v5226, %v5293
        %v5302 = vadd.f32 %v5227, %v5295
        %v5303 = vadd.f32 %v5228, %v5297
        %v5307 = vrot.slane %v5271, 1
        %v5308 = vrot.slane %v5272, 1
        %v5309 = vsel %vm507, %v5307, %v5308
        %v5310 = vrot.slane %v5273, 1
        %v5311 = vsel %vm507, %v5308, %v5310
        %5312 = vrot.lane.b32.xlu0 %v5309, 1
        %v5313 = vpop.permute.xlu0 %5312
        %5314 = vrot.lane.b32.xlu0 %v5311, 1
        %v5315 = vpop.permute.xlu0 %5314
        %5316 = vrot.lane.b32.xlu0 %v5310, 1
        %v5317 = vpop.permute.xlu0 %5316
        %v5321 = vadd.f32 %v5256, %v5313
        %v5322 = vadd.f32 %v5257, %v5315
        %v5323 = vadd.f32 %v5258, %v5317
        %v5327 = vrot.slane %v5301, 1
        %v5328 = vrot.slane %v5302, 1
        %v5329 = vsel %vm507, %v5327, %v5328
        %v5330 = vrot.slane %v5303, 1
        %v5331 = vsel %vm507, %v5328, %v5330
        %5332 = vrot.lane.b32.xlu0 %v5329, 125
        %v5333 = vpop.permute.xlu0 %5332
        %5334 = vrot.lane.b32.xlu0 %v5331, 125
        %v5335 = vpop.permute.xlu0 %5334
        %v5338 = vadd.f32 %v5282, %v5333
        %v5339 = vadd.f32 %v5283, %v5335
        %v5343 = vrot.slane %v5004, 1
        %v5344 = vrot.slane %v5005, 1
        %v5345 = vsel %vm507, %v5343, %v5344
        %v5346 = vrot.slane %v5006, 1
        %v5347 = vsel %vm507, %v5344, %v5346
        %5348 = vrot.lane.b32.xlu0 %v5345, 125
        %v5349 = vpop.permute.xlu0 %5348
        %5350 = vrot.lane.b32.xlu0 %v5347, 125
        %v5351 = vpop.permute.xlu0 %5350
        %5352 = vrot.lane.b32.xlu0 %v5346, 125
        %v5353 = vpop.permute.xlu0 %5352
        %v5357 = vadd.f32 %v5321, %v5349
        %v5358 = vadd.f32 %v5322, %v5351
        %v5359 = vadd.f32 %v5323, %v5353
        %v5363 = vrot.slane %v5357, 3
        %v5364 = vrot.slane %v5358, 3
        %v5365 = vsel %vm841, %v5363, %v5364
        %v5366 = vrot.slane %v5359, 3
        %v5367 = vsel %vm841, %v5364, %v5366
        %5368 = vrot.lane.b32.xlu0 %v5365, 127
        %v5369 = vpop.permute.xlu0 %5368
        %5370 = vrot.lane.b32.xlu0 %v5367, 127
        %v5371 = vpop.permute.xlu0 %5370
        %v5374 = vadd.f32 %v5338, %v5369
        %v5375 = vadd.f32 %v5339, %v5371
        %s5376 = sld [smem:[#allocation7 + $0x3]]
        %v5377 = vstv %s5376
        %v5378 = vadd.f32 %v5374, %v5377
        %v5379 = vadd.f32 %v5375, %v5377
        %5382 = vrot.lane.b32.xlu0 %v5378, 9
        %v5383 = vpop.permute.xlu0 %5382
        %5384 = vrot.lane.b32.xlu0 %v5379, 9
        %v5385 = vpop.permute.xlu0 %5384
        %5388 = vst.msk [vmem:[#allocation2 + $0x9] sm:$0xff] %vm867, %v5383
        %5389 = vst.msk [vmem:[#allocation2 + $0x11] sm:$0xff] %vm867, %v5385
        %v5390 = vld [vmem:[#allocation2] sm:$0xff]
        %v5391 = vld [vmem:[#allocation2 + $0x8] sm:$0xff]
        %v5392 = vld [vmem:[#allocation2 + $0x10] sm:$0xff]
        %v5393 = vld [vmem:[#allocation2 + $0x18] sm:$0xff]
        %v5394 = vld [vmem:[#allocation2 + $0x20] sm:$0x3]
        %s5395 = sld [smem:[#allocation9 + $0x93]]
        %v5396 = vstv %s5395
        %v5397 = vmul.f32 %v5390, %v5396
        %v5398 = vmul.f32 %v5391, %v5396
        %s5399 = sld [smem:[#allocation9 + $0x94]]
        %v5400 = vstv %s5399
        %v5401 = vmul.f32 %v5390, %v5400
        %v5402 = vmul.f32 %v5391, %v5400
        %s5403 = sld [smem:[#allocation9 + $0x95]]
        %v5404 = vstv %s5403
        %v5405 = vmul.f32 %v5390, %v5404
        %v5406 = vmul.f32 %v5391, %v5404
        %s5407 = sld [smem:[#allocation9 + $0x96]]
        %v5408 = vstv %s5407
        %v5409 = vmul.f32 %v5390, %v5408
        %v5410 = vmul.f32 %v5391, %v5408
        %s5411 = sld [smem:[#allocation9 + $0x97]]
        %v5412 = vstv %s5411
        %v5413 = vmul.f32 %v5390, %v5412
        %v5414 = vmul.f32 %v5391, %v5412
        %s5415 = sld [smem:[#allocation9 + $0x98]]
        %v5416 = vstv %s5415
        %v5417 = vmul.f32 %v5390, %v5416
        %v5418 = vmul.f32 %v5391, %v5416
        %s5419 = sld [smem:[#allocation9 + $0x99]]
        %v5420 = vstv %s5419
        %v5421 = vmul.f32 %v5390, %v5420
        %v5422 = vmul.f32 %v5391, %v5420
        %s5423 = sld [smem:[#allocation9 + $0x9a]]
        %v5424 = vstv %s5423
        %v5425 = vmul.f32 %v5390, %v5424
        %v5426 = vmul.f32 %v5391, %v5424
        %v5427 = vmul.f32 %v5392, %v5424
        %s5428 = sld [smem:[#allocation9 + $0x9b]]
        %v5429 = vstv %s5428
        %v5430 = vmul.f32 %v5390, %v5429
        %v5431 = vmul.f32 %v5391, %v5429
        %v5432 = vmul.f32 %v5392, %v5429
        %s5433 = sld [smem:[#allocation9 + $0x9c]]
        %v5434 = vstv %s5433
        %v5435 = vmul.f32 %v5390, %v5434
        %v5436 = vmul.f32 %v5391, %v5434
        %v5437 = vmul.f32 %v5392, %v5434
        %s5438 = sld [smem:[#allocation9 + $0x9d]]
        %v5439 = vstv %s5438
        %v5440 = vmul.f32 %v5390, %v5439
        %v5441 = vmul.f32 %v5391, %v5439
        %v5442 = vmul.f32 %v5392, %v5439
        %s5443 = sld [smem:[#allocation9 + $0x9e]]
        %v5444 = vstv %s5443
        %v5445 = vmul.f32 %v5390, %v5444
        %v5446 = vmul.f32 %v5391, %v5444
        %v5447 = vmul.f32 %v5392, %v5444
        %s5448 = sld [smem:[#allocation9 + $0x9f]]
        %v5449 = vstv %s5448
        %v5450 = vmul.f32 %v5390, %v5449
        %v5451 = vmul.f32 %v5391, %v5449
        %v5452 = vmul.f32 %v5392, %v5449
        %s5453 = sld [smem:[#allocation9 + $0xa0]]
        %v5454 = vstv %s5453
        %v5455 = vmul.f32 %v5390, %v5454
        %v5456 = vmul.f32 %v5391, %v5454
        %v5457 = vmul.f32 %v5392, %v5454
        %s5458 = sld [smem:[#allocation9 + $0xa1]]
        %v5459 = vstv %s5458
        %v5460 = vmul.f32 %v5390, %v5459
        %v5461 = vmul.f32 %v5391, %v5459
        %v5462 = vmul.f32 %v5392, %v5459
        %s5463 = sld [smem:[#allocation9 + $0xa2]]
        %v5464 = vstv %s5463
        %v5465 = vmul.f32 %v5390, %v5464
        %v5466 = vmul.f32 %v5391, %v5464
        %v5467 = vmul.f32 %v5392, %v5464
        %s5468 = sld [smem:[#allocation9 + $0xa3]]
        %v5469 = vstv %s5468
        %v5470 = vmul.f32 %v5390, %v5469
        %v5471 = vmul.f32 %v5391, %v5469
        %v5472 = vmul.f32 %v5392, %v5469
        %s5473 = sld [smem:[#allocation9 + $0xa4]]
        %v5474 = vstv %s5473
        %v5475 = vmul.f32 %v5390, %v5474
        %v5476 = vmul.f32 %v5391, %v5474
        %v5477 = vmul.f32 %v5392, %v5474
        %s5478 = sld [smem:[#allocation9 + $0xa5]]
        %v5479 = vstv %s5478
        %v5480 = vmul.f32 %v5390, %v5479
        %v5481 = vmul.f32 %v5391, %v5479
        %v5482 = vmul.f32 %v5392, %v5479
        %s5483 = sld [smem:[#allocation9 + $0xa6]]
        %v5484 = vstv %s5483
        %v5485 = vmul.f32 %v5390, %v5484
        %v5486 = vmul.f32 %v5391, %v5484
        %v5487 = vmul.f32 %v5392, %v5484
        %s5488 = sld [smem:[#allocation9 + $0xa7]]
        %v5489 = vstv %s5488
        %v5490 = vmul.f32 %v5390, %v5489
        %v5491 = vmul.f32 %v5391, %v5489
        %v5492 = vmul.f32 %v5392, %v5489
        %s5493 = sld [smem:[#allocation9 + $0xa8]]
        %v5494 = vstv %s5493
        %v5495 = vmul.f32 %v5391, %v5494
        %v5496 = vmul.f32 %v5392, %v5494
        %v5497 = vmul.f32 %v5393, %v5494
        %s5498 = sld [smem:[#allocation9 + $0xa9]]
        %v5499 = vstv %s5498
        %v5500 = vmul.f32 %v5391, %v5499
        %v5501 = vmul.f32 %v5392, %v5499
        %v5502 = vmul.f32 %v5393, %v5499
        %s5503 = sld [smem:[#allocation9 + $0xaa]]
        %v5504 = vstv %s5503
        %v5505 = vmul.f32 %v5391, %v5504
        %v5506 = vmul.f32 %v5392, %v5504
        %v5507 = vmul.f32 %v5393, %v5504
        %s5508 = sld [smem:[#allocation9 + $0xab]]
        %v5509 = vstv %s5508
        %v5510 = vmul.f32 %v5391, %v5509
        %v5511 = vmul.f32 %v5392, %v5509
        %v5512 = vmul.f32 %v5393, %v5509
        %s5513 = sld [smem:[#allocation9 + $0xac]]
        %v5514 = vstv %s5513
        %v5515 = vmul.f32 %v5391, %v5514
        %v5516 = vmul.f32 %v5392, %v5514
        %v5517 = vmul.f32 %v5393, %v5514
        %s5518 = sld [smem:[#allocation9 + $0xad]]
        %v5519 = vstv %s5518
        %v5520 = vmul.f32 %v5391, %v5519
        %v5521 = vmul.f32 %v5392, %v5519
        %v5522 = vmul.f32 %v5393, %v5519
        %s5523 = sld [smem:[#allocation9 + $0xae]]
        %v5524 = vstv %s5523
        %v5525 = vmul.f32 %v5391, %v5524
        %v5526 = vmul.f32 %v5392, %v5524
        %v5527 = vmul.f32 %v5393, %v5524
        %s5528 = sld [smem:[#allocation9 + $0xaf]]
        %v5529 = vstv %s5528
        %v5530 = vmul.f32 %v5391, %v5529
        %v5531 = vmul.f32 %v5392, %v5529
        %v5532 = vmul.f32 %v5393, %v5529
        %s5533 = sld [smem:[#allocation9 + $0xb0]]
        %v5534 = vstv %s5533
        %v5535 = vmul.f32 %v5391, %v5534
        %v5536 = vmul.f32 %v5392, %v5534
        %v5537 = vmul.f32 %v5393, %v5534
        %s5538 = sld [smem:[#allocation9 + $0xb1]]
        %v5539 = vstv %s5538
        %v5540 = vmul.f32 %v5391, %v5539
        %v5541 = vmul.f32 %v5392, %v5539
        %v5542 = vmul.f32 %v5393, %v5539
        %s5543 = sld [smem:[#allocation9 + $0xb2]]
        %v5544 = vstv %s5543
        %v5545 = vmul.f32 %v5391, %v5544
        %v5546 = vmul.f32 %v5392, %v5544
        %v5547 = vmul.f32 %v5393, %v5544
        %s5548 = sld [smem:[#allocation9 + $0xb3]]
        %v5549 = vstv %s5548
        %v5550 = vmul.f32 %v5391, %v5549
        %v5551 = vmul.f32 %v5392, %v5549
        %v5552 = vmul.f32 %v5393, %v5549
        %s5553 = sld [smem:[#allocation9 + $0xb4]]
        %v5554 = vstv %s5553
        %v5555 = vmul.f32 %v5391, %v5554
        %v5556 = vmul.f32 %v5392, %v5554
        %v5557 = vmul.f32 %v5393, %v5554
        %s5558 = sld [smem:[#allocation9 + $0xb5]]
        %v5559 = vstv %s5558
        %v5560 = vmul.f32 %v5391, %v5559
        %v5561 = vmul.f32 %v5392, %v5559
        %v5562 = vmul.f32 %v5393, %v5559
        %s5563 = sld [smem:[#allocation9 + $0xb6]]
        %v5564 = vstv %s5563
        %v5565 = vmul.f32 %v5391, %v5564
        %v5566 = vmul.f32 %v5392, %v5564
        %v5567 = vmul.f32 %v5393, %v5564
        %s5568 = sld [smem:[#allocation9 + $0xb7]]
        %v5569 = vstv %s5568
        %v5570 = vmul.f32 %v5391, %v5569
        %v5571 = vmul.f32 %v5392, %v5569
        %v5572 = vmul.f32 %v5393, %v5569
        %s5573 = sld [smem:[#allocation9 + $0xb8]]
        %v5574 = vstv %s5573
        %v5575 = vmul.f32 %v5391, %v5574
        %v5576 = vmul.f32 %v5392, %v5574
        %v5577 = vmul.f32 %v5393, %v5574
        %s5578 = sld [smem:[#allocation9 + $0xb9]]
        %v5579 = vstv %s5578
        %v5580 = vmul.f32 %v5391, %v5579
        %v5581 = vmul.f32 %v5392, %v5579
        %v5582 = vmul.f32 %v5393, %v5579
        %s5583 = sld [smem:[#allocation9 + $0xba]]
        %v5584 = vstv %s5583
        %v5585 = vmul.f32 %v5391, %v5584
        %v5586 = vmul.f32 %v5392, %v5584
        %v5587 = vmul.f32 %v5393, %v5584
        %s5588 = sld [smem:[#allocation9 + $0xbb]]
        %v5589 = vstv %s5588
        %v5590 = vmul.f32 %v5391, %v5589
        %v5591 = vmul.f32 %v5392, %v5589
        %v5592 = vmul.f32 %v5393, %v5589
        %s5593 = sld [smem:[#allocation9 + $0xbc]]
        %v5594 = vstv %s5593
        %v5595 = vmul.f32 %v5391, %v5594
        %v5596 = vmul.f32 %v5392, %v5594
        %v5597 = vmul.f32 %v5393, %v5594
        %s5598 = sld [smem:[#allocation9 + $0xbd]]
        %v5599 = vstv %s5598
        %v5600 = vmul.f32 %v5392, %v5599
        %v5601 = vmul.f32 %v5393, %v5599
        %v5602 = vmul.f32 %v5394, %v5599
        %s5603 = sld [smem:[#allocation9 + $0xbe]]
        %v5604 = vstv %s5603
        %v5605 = vmul.f32 %v5392, %v5604
        %v5606 = vmul.f32 %v5393, %v5604
        %v5607 = vmul.f32 %v5394, %v5604
        %s5608 = sld [smem:[#allocation9 + $0xbf]]
        %v5609 = vstv %s5608
        %v5610 = vmul.f32 %v5392, %v5609
        %v5611 = vmul.f32 %v5393, %v5609
        %v5612 = vmul.f32 %v5394, %v5609
        %s5613 = sld [smem:[#allocation9 + $0xc0]]
        %v5614 = vstv %s5613
        %v5615 = vmul.f32 %v5392, %v5614
        %v5616 = vmul.f32 %v5393, %v5614
        %v5617 = vmul.f32 %v5394, %v5614
        %s5618 = sld [smem:[#allocation9 + $0xc1]]
        %v5619 = vstv %s5618
        %v5620 = vmul.f32 %v5392, %v5619
        %v5621 = vmul.f32 %v5393, %v5619
        %v5622 = vmul.f32 %v5394, %v5619
        %s5623 = sld [smem:[#allocation9 + $0xc2]]
        %v5624 = vstv %s5623
        %v5625 = vmul.f32 %v5392, %v5624
        %v5626 = vmul.f32 %v5393, %v5624
        %v5627 = vmul.f32 %v5394, %v5624
        %s5628 = sld [smem:[#allocation9 + $0xc3]]
        %v5629 = vstv %s5628
        %v5630 = vmul.f32 %v5392, %v5629
        %v5631 = vmul.f32 %v5393, %v5629
        %v5632 = vmul.f32 %v5394, %v5629
        %5635 = vrot.lane.b32.xlu0 %v5401, 125
        %v5636 = vpop.permute.xlu0 %5635
        %5637 = vrot.lane.b32.xlu0 %v5402, 125
        %v5638 = vpop.permute.xlu0 %5637
        %v5641 = vadd.f32 %v5397, %v5636
        %v5642 = vadd.f32 %v5398, %v5638
        %5645 = vrot.lane.b32.xlu0 %v5409, 125
        %v5646 = vpop.permute.xlu0 %5645
        %5647 = vrot.lane.b32.xlu0 %v5410, 125
        %v5648 = vpop.permute.xlu0 %5647
        %v5651 = vadd.f32 %v5405, %v5646
        %v5652 = vadd.f32 %v5406, %v5648
        %5655 = vrot.lane.b32.xlu0 %v5417, 125
        %v5656 = vpop.permute.xlu0 %5655
        %5657 = vrot.lane.b32.xlu0 %v5418, 125
        %v5658 = vpop.permute.xlu0 %5657
        %v5661 = vadd.f32 %v5413, %v5656
        %v5662 = vadd.f32 %v5414, %v5658
        %v5666 = vrot.slane %v5425, 3
        %v5667 = vrot.slane %v5426, 3
        %v5668 = vsel %vm841, %v5666, %v5667
        %v5669 = vrot.slane %v5427, 3
        %v5670 = vsel %vm841, %v5667, %v5669
        %5671 = vrot.lane.b32.xlu0 %v5668, 18
        %v5672 = vpop.permute.xlu0 %5671
        %5673 = vrot.lane.b32.xlu0 %v5670, 18
        %v5674 = vpop.permute.xlu0 %5673
        %v5677 = vadd.f32 %v5421, %v5672
        %v5678 = vadd.f32 %v5422, %v5674
        %5682 = vrot.lane.b32.xlu0 %v5435, 125
        %v5683 = vpop.permute.xlu0 %5682
        %5684 = vrot.lane.b32.xlu0 %v5436, 125
        %v5685 = vpop.permute.xlu0 %5684
        %5686 = vrot.lane.b32.xlu0 %v5437, 125
        %v5687 = vpop.permute.xlu0 %5686
        %v5691 = vadd.f32 %v5430, %v5683
        %v5692 = vadd.f32 %v5431, %v5685
        %v5693 = vadd.f32 %v5432, %v5687
        %5697 = vrot.lane.b32.xlu0 %v5445, 125
        %v5698 = vpop.permute.xlu0 %5697
        %5699 = vrot.lane.b32.xlu0 %v5446, 125
        %v5700 = vpop.permute.xlu0 %5699
        %5701 = vrot.lane.b32.xlu0 %v5447, 125
        %v5702 = vpop.permute.xlu0 %5701
        %v5706 = vadd.f32 %v5440, %v5698
        %v5707 = vadd.f32 %v5441, %v5700
        %v5708 = vadd.f32 %v5442, %v5702
        %5712 = vrot.lane.b32.xlu0 %v5455, 125
        %v5713 = vpop.permute.xlu0 %5712
        %5714 = vrot.lane.b32.xlu0 %v5456, 125
        %v5715 = vpop.permute.xlu0 %5714
        %5716 = vrot.lane.b32.xlu0 %v5457, 125
        %v5717 = vpop.permute.xlu0 %5716
        %v5721 = vadd.f32 %v5450, %v5713
        %v5722 = vadd.f32 %v5451, %v5715
        %v5723 = vadd.f32 %v5452, %v5717
        %5727 = vrot.lane.b32.xlu0 %v5465, 125
        %v5728 = vpop.permute.xlu0 %5727
        %5729 = vrot.lane.b32.xlu0 %v5466, 125
        %v5730 = vpop.permute.xlu0 %5729
        %5731 = vrot.lane.b32.xlu0 %v5467, 125
        %v5732 = vpop.permute.xlu0 %5731
        %v5736 = vadd.f32 %v5460, %v5728
        %v5737 = vadd.f32 %v5461, %v5730
        %v5738 = vadd.f32 %v5462, %v5732
        %5742 = vrot.lane.b32.xlu0 %v5475, 125
        %v5743 = vpop.permute.xlu0 %5742
        %5744 = vrot.lane.b32.xlu0 %v5476, 125
        %v5745 = vpop.permute.xlu0 %5744
        %5746 = vrot.lane.b32.xlu0 %v5477, 125
        %v5747 = vpop.permute.xlu0 %5746
        %v5751 = vadd.f32 %v5470, %v5743
        %v5752 = vadd.f32 %v5471, %v5745
        %v5753 = vadd.f32 %v5472, %v5747
        %5757 = vrot.lane.b32.xlu0 %v5485, 125
        %v5758 = vpop.permute.xlu0 %5757
        %5759 = vrot.lane.b32.xlu0 %v5486, 125
        %v5760 = vpop.permute.xlu0 %5759
        %5761 = vrot.lane.b32.xlu0 %v5487, 125
        %v5762 = vpop.permute.xlu0 %5761
        %v5766 = vadd.f32 %v5480, %v5758
        %v5767 = vadd.f32 %v5481, %v5760
        %v5768 = vadd.f32 %v5482, %v5762
        %v5772 = vrot.slane %v5495, 3
        %v5773 = vrot.slane %v5496, 3
        %v5774 = vsel %vm841, %v5772, %v5773
        %v5775 = vrot.slane %v5497, 3
        %v5776 = vsel %vm841, %v5773, %v5775
        %5777 = vrot.lane.b32.xlu0 %v5772, 18
        %v5778 = vpop.permute.xlu0 %5777
        %5779 = vrot.lane.b32.xlu0 %v5774, 18
        %v5780 = vpop.permute.xlu0 %5779
        %5781 = vrot.lane.b32.xlu0 %v5776, 18
        %v5782 = vpop.permute.xlu0 %5781
        %v5786 = vadd.f32 %v5490, %v5778
        %v5787 = vadd.f32 %v5491, %v5780
        %v5788 = vadd.f32 %v5492, %v5782
        %5792 = vrot.lane.b32.xlu0 %v5505, 125
        %v5793 = vpop.permute.xlu0 %5792
        %5794 = vrot.lane.b32.xlu0 %v5506, 125
        %v5795 = vpop.permute.xlu0 %5794
        %5796 = vrot.lane.b32.xlu0 %v5507, 125
        %v5797 = vpop.permute.xlu0 %5796
        %v5801 = vadd.f32 %v5500, %v5793
        %v5802 = vadd.f32 %v5501, %v5795
        %v5803 = vadd.f32 %v5502, %v5797
        %5807 = vrot.lane.b32.xlu0 %v5515, 125
        %v5808 = vpop.permute.xlu0 %5807
        %5809 = vrot.lane.b32.xlu0 %v5516, 125
        %v5810 = vpop.permute.xlu0 %5809
        %5811 = vrot.lane.b32.xlu0 %v5517, 125
        %v5812 = vpop.permute.xlu0 %5811
        %v5816 = vadd.f32 %v5510, %v5808
        %v5817 = vadd.f32 %v5511, %v5810
        %v5818 = vadd.f32 %v5512, %v5812
        %5822 = vrot.lane.b32.xlu0 %v5525, 125
        %v5823 = vpop.permute.xlu0 %5822
        %5824 = vrot.lane.b32.xlu0 %v5526, 125
        %v5825 = vpop.permute.xlu0 %5824
        %5826 = vrot.lane.b32.xlu0 %v5527, 125
        %v5827 = vpop.permute.xlu0 %5826
        %v5831 = vadd.f32 %v5520, %v5823
        %v5832 = vadd.f32 %v5521, %v5825
        %v5833 = vadd.f32 %v5522, %v5827
        %5837 = vrot.lane.b32.xlu0 %v5535, 125
        %v5838 = vpop.permute.xlu0 %5837
        %5839 = vrot.lane.b32.xlu0 %v5536, 125
        %v5840 = vpop.permute.xlu0 %5839
        %5841 = vrot.lane.b32.xlu0 %v5537, 125
        %v5842 = vpop.permute.xlu0 %5841
        %v5846 = vadd.f32 %v5530, %v5838
        %v5847 = vadd.f32 %v5531, %v5840
        %v5848 = vadd.f32 %v5532, %v5842
        %5852 = vrot.lane.b32.xlu0 %v5545, 125
        %v5853 = vpop.permute.xlu0 %5852
        %5854 = vrot.lane.b32.xlu0 %v5546, 125
        %v5855 = vpop.permute.xlu0 %5854
        %5856 = vrot.lane.b32.xlu0 %v5547, 125
        %v5857 = vpop.permute.xlu0 %5856
        %v5861 = vadd.f32 %v5540, %v5853
        %v5862 = vadd.f32 %v5541, %v5855
        %v5863 = vadd.f32 %v5542, %v5857
        %5867 = vrot.lane.b32.xlu0 %v5555, 125
        %v5868 = vpop.permute.xlu0 %5867
        %5869 = vrot.lane.b32.xlu0 %v5556, 125
        %v5870 = vpop.permute.xlu0 %5869
        %5871 = vrot.lane.b32.xlu0 %v5557, 125
        %v5872 = vpop.permute.xlu0 %5871
        %v5876 = vadd.f32 %v5550, %v5868
        %v5877 = vadd.f32 %v5551, %v5870
        %v5878 = vadd.f32 %v5552, %v5872
        %v5882 = vrot.slane %v5565, 3
        %v5883 = vrot.slane %v5566, 3
        %v5884 = vsel %vm841, %v5882, %v5883
        %v5885 = vrot.slane %v5567, 3
        %v5886 = vsel %vm841, %v5883, %v5885
        %5887 = vrot.lane.b32.xlu0 %v5884, 18
        %v5888 = vpop.permute.xlu0 %5887
        %5889 = vrot.lane.b32.xlu0 %v5886, 18
        %v5890 = vpop.permute.xlu0 %5889
        %5891 = vrot.lane.b32.xlu0 %v5885, 18
        %v5892 = vpop.permute.xlu0 %5891
        %v5896 = vadd.f32 %v5560, %v5888
        %v5897 = vadd.f32 %v5561, %v5890
        %v5898 = vadd.f32 %v5562, %v5892
        %5902 = vrot.lane.b32.xlu0 %v5575, 125
        %v5903 = vpop.permute.xlu0 %5902
        %5904 = vrot.lane.b32.xlu0 %v5576, 125
        %v5905 = vpop.permute.xlu0 %5904
        %5906 = vrot.lane.b32.xlu0 %v5577, 125
        %v5907 = vpop.permute.xlu0 %5906
        %v5911 = vadd.f32 %v5570, %v5903
        %v5912 = vadd.f32 %v5571, %v5905
        %v5913 = vadd.f32 %v5572, %v5907
        %5917 = vrot.lane.b32.xlu0 %v5585, 125
        %v5918 = vpop.permute.xlu0 %5917
        %5919 = vrot.lane.b32.xlu0 %v5586, 125
        %v5920 = vpop.permute.xlu0 %5919
        %5921 = vrot.lane.b32.xlu0 %v5587, 125
        %v5922 = vpop.permute.xlu0 %5921
        %v5926 = vadd.f32 %v5580, %v5918
        %v5927 = vadd.f32 %v5581, %v5920
        %v5928 = vadd.f32 %v5582, %v5922
        %5932 = vrot.lane.b32.xlu0 %v5595, 125
        %v5933 = vpop.permute.xlu0 %5932
        %5934 = vrot.lane.b32.xlu0 %v5596, 125
        %v5935 = vpop.permute.xlu0 %5934
        %5936 = vrot.lane.b32.xlu0 %v5597, 125
        %v5937 = vpop.permute.xlu0 %5936
        %v5941 = vadd.f32 %v5590, %v5933
        %v5942 = vadd.f32 %v5591, %v5935
        %v5943 = vadd.f32 %v5592, %v5937
        %5947 = vrot.lane.b32.xlu0 %v5605, 125
        %v5948 = vpop.permute.xlu0 %5947
        %5949 = vrot.lane.b32.xlu0 %v5606, 125
        %v5950 = vpop.permute.xlu0 %5949
        %5951 = vrot.lane.b32.xlu0 %v5607, 125
        %v5952 = vpop.permute.xlu0 %5951
        %v5956 = vadd.f32 %v5600, %v5948
        %v5957 = vadd.f32 %v5601, %v5950
        %v5958 = vadd.f32 %v5602, %v5952
        %5962 = vrot.lane.b32.xlu0 %v5615, 125
        %v5963 = vpop.permute.xlu0 %5962
        %5964 = vrot.lane.b32.xlu0 %v5616, 125
        %v5965 = vpop.permute.xlu0 %5964
        %5966 = vrot.lane.b32.xlu0 %v5617, 125
        %v5967 = vpop.permute.xlu0 %5966
        %v5971 = vadd.f32 %v5610, %v5963
        %v5972 = vadd.f32 %v5611, %v5965
        %v5973 = vadd.f32 %v5612, %v5967
        %5977 = vrot.lane.b32.xlu0 %v5625, 125
        %v5978 = vpop.permute.xlu0 %5977
        %5979 = vrot.lane.b32.xlu0 %v5626, 125
        %v5980 = vpop.permute.xlu0 %5979
        %5981 = vrot.lane.b32.xlu0 %v5627, 125
        %v5982 = vpop.permute.xlu0 %5981
        %v5986 = vadd.f32 %v5620, %v5978
        %v5987 = vadd.f32 %v5621, %v5980
        %v5988 = vadd.f32 %v5622, %v5982
        %5991 = vrot.lane.b32.xlu0 %v5651, 122
        %v5992 = vpop.permute.xlu0 %5991
        %5993 = vrot.lane.b32.xlu0 %v5652, 122
        %v5994 = vpop.permute.xlu0 %5993
        %v5997 = vadd.f32 %v5641, %v5992
        %v5998 = vadd.f32 %v5642, %v5994
        %6001 = vrot.lane.b32.xlu0 %v5677, 122
        %v6002 = vpop.permute.xlu0 %6001
        %6003 = vrot.lane.b32.xlu0 %v5678, 122
        %v6004 = vpop.permute.xlu0 %6003
        %v6007 = vadd.f32 %v5661, %v6002
        %v6008 = vadd.f32 %v5662, %v6004
        %6012 = vrot.lane.b32.xlu0 %v5706, 122
        %v6013 = vpop.permute.xlu0 %6012
        %6014 = vrot.lane.b32.xlu0 %v5707, 122
        %v6015 = vpop.permute.xlu0 %6014
        %6016 = vrot.lane.b32.xlu0 %v5708, 122
        %v6017 = vpop.permute.xlu0 %6016
        %v6021 = vadd.f32 %v5691, %v6013
        %v6022 = vadd.f32 %v5692, %v6015
        %v6023 = vadd.f32 %v5693, %v6017
        %v6027 = vrot.slane %v5736, 3
        %v6028 = vrot.slane %v5737, 3
        %v6029 = vsel %vm841, %v6027, %v6028
        %v6030 = vrot.slane %v5738, 3
        %v6031 = vsel %vm841, %v6028, %v6030
        %6032 = vrot.lane.b32.xlu0 %v6029, 15
        %v6033 = vpop.permute.xlu0 %6032
        %6034 = vrot.lane.b32.xlu0 %v6031, 15
        %v6035 = vpop.permute.xlu0 %6034
        %6036 = vrot.lane.b32.xlu0 %v6030, 15
        %v6037 = vpop.permute.xlu0 %6036
        %v6041 = vadd.f32 %v5721, %v6033
        %v6042 = vadd.f32 %v5722, %v6035
        %v6043 = vadd.f32 %v5723, %v6037
        %6047 = vrot.lane.b32.xlu0 %v5766, 122
        %v6048 = vpop.permute.xlu0 %6047
        %6049 = vrot.lane.b32.xlu0 %v5767, 122
        %v6050 = vpop.permute.xlu0 %6049
        %6051 = vrot.lane.b32.xlu0 %v5768, 122
        %v6052 = vpop.permute.xlu0 %6051
        %v6056 = vadd.f32 %v5751, %v6048
        %v6057 = vadd.f32 %v5752, %v6050
        %v6058 = vadd.f32 %v5753, %v6052
        %v6062 = vrot.slane %v5801, 3
        %v6063 = vrot.slane %v5802, 3
        %v6064 = vsel %vm841, %v6062, %v6063
        %v6065 = vrot.slane %v5803, 3
        %v6066 = vsel %vm841, %v6063, %v6065
        %6067 = vrot.lane.b32.xlu0 %v6062, 15
        %v6068 = vpop.permute.xlu0 %6067
        %6069 = vrot.lane.b32.xlu0 %v6064, 15
        %v6070 = vpop.permute.xlu0 %6069
        %6071 = vrot.lane.b32.xlu0 %v6066, 15
        %v6072 = vpop.permute.xlu0 %6071
        %v6076 = vadd.f32 %v5786, %v6068
        %v6077 = vadd.f32 %v5787, %v6070
        %v6078 = vadd.f32 %v5788, %v6072
        %6082 = vrot.lane.b32.xlu0 %v5831, 122
        %v6083 = vpop.permute.xlu0 %6082
        %6084 = vrot.lane.b32.xlu0 %v5832, 122
        %v6085 = vpop.permute.xlu0 %6084
        %6086 = vrot.lane.b32.xlu0 %v5833, 122
        %v6087 = vpop.permute.xlu0 %6086
        %v6091 = vadd.f32 %v5816, %v6083
        %v6092 = vadd.f32 %v5817, %v6085
        %v6093 = vadd.f32 %v5818, %v6087
        %6097 = vrot.lane.b32.xlu0 %v5861, 122
        %v6098 = vpop.permute.xlu0 %6097
        %6099 = vrot.lane.b32.xlu0 %v5862, 122
        %v6100 = vpop.permute.xlu0 %6099
        %6101 = vrot.lane.b32.xlu0 %v5863, 122
        %v6102 = vpop.permute.xlu0 %6101
        %v6106 = vadd.f32 %v5846, %v6098
        %v6107 = vadd.f32 %v5847, %v6100
        %v6108 = vadd.f32 %v5848, %v6102
        %6112 = vrot.lane.b32.xlu0 %v5896, 122
        %v6113 = vpop.permute.xlu0 %6112
        %6114 = vrot.lane.b32.xlu0 %v5897, 122
        %v6115 = vpop.permute.xlu0 %6114
        %6116 = vrot.lane.b32.xlu0 %v5898, 122
        %v6117 = vpop.permute.xlu0 %6116
        %v6121 = vadd.f32 %v5876, %v6113
        %v6122 = vadd.f32 %v5877, %v6115
        %v6123 = vadd.f32 %v5878, %v6117
        %6127 = vrot.lane.b32.xlu0 %v5926, 122
        %v6128 = vpop.permute.xlu0 %6127
        %6129 = vrot.lane.b32.xlu0 %v5927, 122
        %v6130 = vpop.permute.xlu0 %6129
        %6131 = vrot.lane.b32.xlu0 %v5928, 122
        %v6132 = vpop.permute.xlu0 %6131
        %v6136 = vadd.f32 %v5911, %v6128
        %v6137 = vadd.f32 %v5912, %v6130
        %v6138 = vadd.f32 %v5913, %v6132
        %v6142 = vrot.slane %v5956, 3
        %v6143 = vrot.slane %v5957, 3
        %v6144 = vsel %vm841, %v6142, %v6143
        %v6145 = vrot.slane %v5958, 3
        %v6146 = vsel %vm841, %v6143, %v6145
        %6147 = vrot.lane.b32.xlu0 %v6142, 15
        %v6148 = vpop.permute.xlu0 %6147
        %6149 = vrot.lane.b32.xlu0 %v6144, 15
        %v6150 = vpop.permute.xlu0 %6149
        %6151 = vrot.lane.b32.xlu0 %v6146, 15
        %v6152 = vpop.permute.xlu0 %6151
        %v6156 = vadd.f32 %v5941, %v6148
        %v6157 = vadd.f32 %v5942, %v6150
        %v6158 = vadd.f32 %v5943, %v6152
        %6162 = vrot.lane.b32.xlu0 %v5986, 122
        %v6163 = vpop.permute.xlu0 %6162
        %6164 = vrot.lane.b32.xlu0 %v5987, 122
        %v6165 = vpop.permute.xlu0 %6164
        %6166 = vrot.lane.b32.xlu0 %v5988, 122
        %v6167 = vpop.permute.xlu0 %6166
        %v6171 = vadd.f32 %v5971, %v6163
        %v6172 = vadd.f32 %v5972, %v6165
        %v6173 = vadd.f32 %v5973, %v6167
        %6176 = vrot.lane.b32.xlu0 %v6007, 116
        %v6177 = vpop.permute.xlu0 %6176
        %6178 = vrot.lane.b32.xlu0 %v6008, 116
        %v6179 = vpop.permute.xlu0 %6178
        %v6182 = vadd.f32 %v5997, %v6177
        %v6183 = vadd.f32 %v5998, %v6179
        %6187 = vrot.lane.b32.xlu0 %v6041, 116
        %v6188 = vpop.permute.xlu0 %6187
        %6189 = vrot.lane.b32.xlu0 %v6042, 116
        %v6190 = vpop.permute.xlu0 %6189
        %6191 = vrot.lane.b32.xlu0 %v6043, 116
        %v6192 = vpop.permute.xlu0 %6191
        %v6196 = vadd.f32 %v6021, %v6188
        %v6197 = vadd.f32 %v6022, %v6190
        %v6198 = vadd.f32 %v6023, %v6192
        %6202 = vrot.lane.b32.xlu0 %v6076, 116
        %v6203 = vpop.permute.xlu0 %6202
        %6204 = vrot.lane.b32.xlu0 %v6077, 116
        %v6205 = vpop.permute.xlu0 %6204
        %6206 = vrot.lane.b32.xlu0 %v6078, 116
        %v6207 = vpop.permute.xlu0 %6206
        %v6211 = vadd.f32 %v6056, %v6203
        %v6212 = vadd.f32 %v6057, %v6205
        %v6213 = vadd.f32 %v6058, %v6207
        %v6217 = vrot.slane %v6106, 3
        %v6218 = vrot.slane %v6107, 3
        %v6219 = vsel %vm841, %v6217, %v6218
        %v6220 = vrot.slane %v6108, 3
        %v6221 = vsel %vm841, %v6218, %v6220
        %6222 = vrot.lane.b32.xlu0 %v6219, 9
        %v6223 = vpop.permute.xlu0 %6222
        %6224 = vrot.lane.b32.xlu0 %v6221, 9
        %v6225 = vpop.permute.xlu0 %6224
        %6226 = vrot.lane.b32.xlu0 %v6220, 9
        %v6227 = vpop.permute.xlu0 %6226
        %v6231 = vadd.f32 %v6091, %v6223
        %v6232 = vadd.f32 %v6092, %v6225
        %v6233 = vadd.f32 %v6093, %v6227
        %v6237 = vrot.slane %v6136, 3
        %v6238 = vrot.slane %v6137, 3
        %v6239 = vsel %vm841, %v6237, %v6238
        %v6240 = vrot.slane %v6138, 3
        %v6241 = vsel %vm841, %v6238, %v6240
        %6242 = vrot.lane.b32.xlu0 %v6239, 9
        %v6243 = vpop.permute.xlu0 %6242
        %6244 = vrot.lane.b32.xlu0 %v6241, 9
        %v6245 = vpop.permute.xlu0 %6244
        %6246 = vrot.lane.b32.xlu0 %v6240, 9
        %v6247 = vpop.permute.xlu0 %6246
        %v6251 = vadd.f32 %v6121, %v6243
        %v6252 = vadd.f32 %v6122, %v6245
        %v6253 = vadd.f32 %v6123, %v6247
        %v6257 = vrot.slane %v6171, 3
        %v6258 = vrot.slane %v6172, 3
        %v6259 = vsel %vm841, %v6257, %v6258
        %v6260 = vrot.slane %v6173, 3
        %v6261 = vsel %vm841, %v6258, %v6260
        %6262 = vrot.lane.b32.xlu0 %v6257, 9
        %v6263 = vpop.permute.xlu0 %6262
        %6264 = vrot.lane.b32.xlu0 %v6259, 9
        %v6265 = vpop.permute.xlu0 %6264
        %6266 = vrot.lane.b32.xlu0 %v6261, 9
        %v6267 = vpop.permute.xlu0 %6266
        %v6271 = vadd.f32 %v6156, %v6263
        %v6272 = vadd.f32 %v6157, %v6265
        %v6273 = vadd.f32 %v6158, %v6267
        %v6277 = vrot.slane %v6196, 3
        %v6278 = vrot.slane %v6197, 3
        %v6279 = vsel %vm841, %v6277, %v6278
        %v6280 = vrot.slane %v6198, 3
        %v6281 = vsel %vm841, %v6278, %v6280
        %6282 = vrot.lane.b32.xlu0 %v6279, 125
        %v6283 = vpop.permute.xlu0 %6282
        %6284 = vrot.lane.b32.xlu0 %v6281, 125
        %v6285 = vpop.permute.xlu0 %6284
        %v6288 = vadd.f32 %v6182, %v6283
        %v6289 = vadd.f32 %v6183, %v6285
        %v6293 = vrot.slane %v6231, 3
        %v6294 = vrot.slane %v6232, 3
        %v6295 = vsel %vm841, %v6293, %v6294
        %v6296 = vrot.slane %v6233, 3
        %v6297 = vsel %vm841, %v6294, %v6296
        %6298 = vrot.lane.b32.xlu0 %v6293, 125
        %v6299 = vpop.permute.xlu0 %6298
        %6300 = vrot.lane.b32.xlu0 %v6295, 125
        %v6301 = vpop.permute.xlu0 %6300
        %6302 = vrot.lane.b32.xlu0 %v6297, 125
        %v6303 = vpop.permute.xlu0 %6302
        %v6307 = vadd.f32 %v6211, %v6299
        %v6308 = vadd.f32 %v6212, %v6301
        %v6309 = vadd.f32 %v6213, %v6303
        %v6313 = vrot.slane %v6271, 3
        %v6314 = vrot.slane %v6272, 3
        %v6315 = vsel %vm841, %v6313, %v6314
        %v6316 = vrot.slane %v6273, 3
        %v6317 = vsel %vm841, %v6314, %v6316
        %6318 = vrot.lane.b32.xlu0 %v6315, 125
        %v6319 = vpop.permute.xlu0 %6318
        %6320 = vrot.lane.b32.xlu0 %v6317, 125
        %v6321 = vpop.permute.xlu0 %6320
        %6322 = vrot.lane.b32.xlu0 %v6316, 125
        %v6323 = vpop.permute.xlu0 %6322
        %v6327 = vadd.f32 %v6251, %v6319
        %v6328 = vadd.f32 %v6252, %v6321
        %v6329 = vadd.f32 %v6253, %v6323
        %v6333 = vrot.slane %v6307, 6
        %v6334 = vrot.slane %v6308, 6
        %v6335 = vsel %vm1813, %v6333, %v6334
        %v6336 = vrot.slane %v6309, 6
        %v6337 = vsel %vm1813, %v6334, %v6336
        %6338 = vrot.lane.b32.xlu0 %v6335, 122
        %v6339 = vpop.permute.xlu0 %6338
        %6340 = vrot.lane.b32.xlu0 %v6337, 122
        %v6341 = vpop.permute.xlu0 %6340
        %v6344 = vadd.f32 %v6288, %v6339
        %v6345 = vadd.f32 %v6289, %v6341
        %v6349 = vrot.slane %v5630, 6
        %v6350 = vrot.slane %v5631, 6
        %v6351 = vsel %vm1813, %v6349, %v6350
        %v6352 = vrot.slane %v5632, 6
        %v6353 = vsel %vm1813, %v6350, %v6352
        %6354 = vrot.lane.b32.xlu0 %v6349, 122
        %v6355 = vpop.permute.xlu0 %6354
        %6356 = vrot.lane.b32.xlu0 %v6351, 122
        %v6357 = vpop.permute.xlu0 %6356
        %6358 = vrot.lane.b32.xlu0 %v6353, 122
        %v6359 = vpop.permute.xlu0 %6358
        %v6363 = vadd.f32 %v6327, %v6355
        %v6364 = vadd.f32 %v6328, %v6357
        %v6365 = vadd.f32 %v6329, %v6359
        %v6369 = vrot.slane %v6363, 4
        %v6370 = vrot.slane %v6364, 4
        %v6371 = vsel %vm1850, %v6369, %v6370
        %v6372 = vrot.slane %v6365, 4
        %v6373 = vsel %vm1850, %v6370, %v6372
        %6374 = vrot.lane.b32.xlu0 %v6371, 116
        %v6375 = vpop.permute.xlu0 %6374
        %6376 = vrot.lane.b32.xlu0 %v6373, 116
        %v6377 = vpop.permute.xlu0 %6376
        %v6380 = vadd.f32 %v6344, %v6375
        %v6381 = vadd.f32 %v6345, %v6377
        %s6382 = sld [smem:[#allocation10 + $0x3]]
        %v6383 = vstv %s6382
        %v6384 = vadd.f32 %v6380, %v6383
        %v6385 = vadd.f32 %v6381, %v6383
        %s6386 = scalar_lea.vmem [#allocation3], 48
        %6387 = vst.msk [vmem:[%s6386] sm:$0xff] %vm1868, %v6384
        %6388 = vst.msk [vmem:[%s6386 + $0x8] sm:$0xff] %vm1868, %v6385
        %v6389 = vld [vmem:[#allocation3] sm:$0xff]
        %v6390 = vld [vmem:[#allocation3 + $0x8] sm:$0xff]
        %s6391 = sld [smem:[#allocation12]]
        %v6392 = vstv %s6391
        %v6393 = vmul.f32 %v6389, %v6392
        %v6394 = vmul.f32 %v6390, %v6392
        %v6395 = vld [vmem:[%s3374] sm:$0xff]
        %v6396 = vld [vmem:[%s3374 + $0x8] sm:$0xff]
        %s6397 = sld [smem:[#allocation12 + $0x4]]
        %v6398 = vstv %s6397
        %v6399 = vmul.f32 %v6395, %v6398
        %v6400 = vmul.f32 %v6396, %v6398
        %v6401 = vld [vmem:[%s4880] sm:$0xff]
        %v6402 = vld [vmem:[%s4880 + $0x8] sm:$0xff]
        %s6403 = sld [smem:[#allocation12 + $0x8]]
        %v6404 = vstv %s6403
        %v6405 = vmul.f32 %v6401, %v6404
        %v6406 = vmul.f32 %v6402, %v6404
        %v6407 = vld [vmem:[%s6386] sm:$0xff]
        %v6408 = vld [vmem:[%s6386 + $0x8] sm:$0xff]
        %s6409 = sld [smem:[#allocation12 + $0xc]]
        %v6410 = vstv %s6409
        %v6411 = vmul.f32 %v6407, %v6410
        %v6412 = vmul.f32 %v6408, %v6410
        %v6413 = vadd.f32 %v6393, %v6399
        %v6414 = vadd.f32 %v6394, %v6400
        %v6415 = vadd.f32 %v6405, %v6411
        %v6416 = vadd.f32 %v6406, %v6412
        %v6417 = vadd.f32 %v6413, %v6415
        %v6418 = vadd.f32 %v6414, %v6416
        %s6419 = sld [smem:[#allocation13]]
        %v6420 = vstv %s6419
        %v6421 = vadd.f32 %v6417, %v6420
        %v6422 = vadd.f32 %v6418, %v6420
        %v6423 = vld [vmem:[%s353 + $0x2] sm:$0xff]
        %v6424 = vld [vmem:[%s353 + $0xa] sm:$0xff]
        %6427 = vrot.lane.b32.xlu0 %v6423, 126
        %v6428 = vpop.permute.xlu0 %6427
        %6429 = vrot.lane.b32.xlu0 %v6424, 126
        %v6430 = vpop.permute.xlu0 %6429
        %v6433 = vmul.f32 %v6421, %v6428
        %v6434 = vmul.f32 %v6422, %v6430
        %6435 = vst.msk [vmem:[%s348] sm:$0xff] %vm1868, %v6433
        %6436 = vst.msk [vmem:[%s348 + $0x8] sm:$0xff] %vm1868, %v6434
        %v6437 = vld [vmem:[#allocation3] sm:$0xff]
        %v6438 = vld [vmem:[#allocation3 + $0x8] sm:$0xff]
        %s6439 = sld [smem:[#allocation12 + $0x1]]
        %v6440 = vstv %s6439
        %v6441 = vmul.f32 %v6437, %v6440
        %v6442 = vmul.f32 %v6438, %v6440
        %v6443 = vld [vmem:[%s3374] sm:$0xff]
        %v6444 = vld [vmem:[%s3374 + $0x8] sm:$0xff]
        %s6445 = sld [smem:[#allocation12 + $0x5]]
        %v6446 = vstv %s6445
        %v6447 = vmul.f32 %v6443, %v6446
        %v6448 = vmul.f32 %v6444, %v6446
        %v6449 = vld [vmem:[%s4880] sm:$0xff]
        %v6450 = vld [vmem:[%s4880 + $0x8] sm:$0xff]
        %s6451 = sld [smem:[#allocation12 + $0x9]]
        %v6452 = vstv %s6451
        %v6453 = vmul.f32 %v6449, %v6452
        %v6454 = vmul.f32 %v6450, %v6452
        %v6455 = vld [vmem:[%s6386] sm:$0xff]
        %v6456 = vld [vmem:[%s6386 + $0x8] sm:$0xff]
        %s6457 = sld [smem:[#allocation12 + $0xd]]
        %v6458 = vstv %s6457
        %v6459 = vmul.f32 %v6455, %v6458
        %v6460 = vmul.f32 %v6456, %v6458
        %v6461 = vadd.f32 %v6441, %v6447
        %v6462 = vadd.f32 %v6442, %v6448
        %v6463 = vadd.f32 %v6453, %v6459
        %v6464 = vadd.f32 %v6454, %v6460
        %v6465 = vadd.f32 %v6461, %v6463
        %v6466 = vadd.f32 %v6462, %v6464
        %s6467 = sld [smem:[#allocation13 + $0x1]]
        %v6468 = vstv %s6467
        %v6469 = vadd.f32 %v6465, %v6468
        %v6470 = vadd.f32 %v6466, %v6468
        %v6471 = vld [vmem:[%s1871 + $0x2] sm:$0xff]
        %v6472 = vld [vmem:[%s1871 + $0xa] sm:$0xff]
        %6475 = vrot.lane.b32.xlu0 %v6471, 126
        %v6476 = vpop.permute.xlu0 %6475
        %6477 = vrot.lane.b32.xlu0 %v6472, 126
        %v6478 = vpop.permute.xlu0 %6477
        %v6481 = vmul.f32 %v6469, %v6476
        %v6482 = vmul.f32 %v6470, %v6478
        %s6483 = scalar_lea.vmem %s348, 16 [#allocation15]
        %6484 = vst.msk [vmem:[%s6483] sm:$0xff] %vm1868, %v6481
        %6485 = vst.msk [vmem:[%s6483 + $0x8] sm:$0xff] %vm1868, %v6482
        %v6486 = vld [vmem:[#allocation3] sm:$0xff]
        %v6487 = vld [vmem:[#allocation3 + $0x8] sm:$0xff]
        %s6488 = sld [smem:[#allocation12 + $0x2]]
        %v6489 = vstv %s6488
        %v6490 = vmul.f32 %v6486, %v6489
        %v6491 = vmul.f32 %v6487, %v6489
        %v6492 = vld [vmem:[%s3374] sm:$0xff]
        %v6493 = vld [vmem:[%s3374 + $0x8] sm:$0xff]
        %s6494 = sld [smem:[#allocation12 + $0x6]]
        %v6495 = vstv %s6494
        %v6496 = vmul.f32 %v6492, %v6495
        %v6497 = vmul.f32 %v6493, %v6495
        %v6498 = vld [vmem:[%s4880] sm:$0xff]
        %v6499 = vld [vmem:[%s4880 + $0x8] sm:$0xff]
        %s6500 = sld [smem:[#allocation12 + $0xa]]
        %v6501 = vstv %s6500
        %v6502 = vmul.f32 %v6498, %v6501
        %v6503 = vmul.f32 %v6499, %v6501
        %v6504 = vld [vmem:[%s6386] sm:$0xff]
        %v6505 = vld [vmem:[%s6386 + $0x8] sm:$0xff]
        %s6506 = sld [smem:[#allocation12 + $0xe]]
        %v6507 = vstv %s6506
        %v6508 = vmul.f32 %v6504, %v6507
        %v6509 = vmul.f32 %v6505, %v6507
        %v6510 = vadd.f32 %v6490, %v6496
        %v6511 = vadd.f32 %v6491, %v6497
        %v6512 = vadd.f32 %v6502, %v6508
        %v6513 = vadd.f32 %v6503, %v6509
        %v6514 = vadd.f32 %v6510, %v6512
        %v6515 = vadd.f32 %v6511, %v6513
        %s6516 = sld [smem:[#allocation13 + $0x2]]
        %v6517 = vstv %s6516
        %v6518 = vadd.f32 %v6514, %v6517
        %v6519 = vadd.f32 %v6515, %v6517
        %v6520 = vld [vmem:[%s3377 + $0x2] sm:$0xff]
        %v6521 = vld [vmem:[%s3377 + $0xa] sm:$0xff]
        %6524 = vrot.lane.b32.xlu0 %v6520, 126
        %v6525 = vpop.permute.xlu0 %6524
        %6526 = vrot.lane.b32.xlu0 %v6521, 126
        %v6527 = vpop.permute.xlu0 %6526
        %v6530 = vmul.f32 %v6518, %v6525
        %v6531 = vmul.f32 %v6519, %v6527
        %s6532 = scalar_lea.vmem %s348, 32 [#allocation15]
        %6533 = vst.msk [vmem:[%s6532] sm:$0xff] %vm1868, %v6530
        %6534 = vst.msk [vmem:[%s6532 + $0x8] sm:$0xff] %vm1868, %v6531
        %v6535 = vld [vmem:[#allocation3] sm:$0xff]
        %v6536 = vld [vmem:[#allocation3 + $0x8] sm:$0xff]
        %s6537 = sld [smem:[#allocation12 + $0x3]]
        %v6538 = vstv %s6537
        %v6539 = vmul.f32 %v6535, %v6538
        %v6540 = vmul.f32 %v6536, %v6538
        %v6541 = vld [vmem:[%s3374] sm:$0xff]
        %v6542 = vld [vmem:[%s3374 + $0x8] sm:$0xff]
        %s6543 = sld [smem:[#allocation12 + $0x7]]
        %v6544 = vstv %s6543
        %v6545 = vmul.f32 %v6541, %v6544
        %v6546 = vmul.f32 %v6542, %v6544
        %v6547 = vld [vmem:[%s4880] sm:$0xff]
        %v6548 = vld [vmem:[%s4880 + $0x8] sm:$0xff]
        %s6549 = sld [smem:[#allocation12 + $0xb]]
        %v6550 = vstv %s6549
        %v6551 = vmul.f32 %v6547, %v6550
        %v6552 = vmul.f32 %v6548, %v6550
        %v6553 = vld [vmem:[%s6386] sm:$0xff]
        %v6554 = vld [vmem:[%s6386 + $0x8] sm:$0xff]
        %s6555 = sld [smem:[#allocation12 + $0xf]]
        %v6556 = vstv %s6555
        %v6557 = vmul.f32 %v6553, %v6556
        %v6558 = vmul.f32 %v6554, %v6556
        %v6559 = vadd.f32 %v6539, %v6545
        %v6560 = vadd.f32 %v6540, %v6546
        %v6561 = vadd.f32 %v6551, %v6557
        %v6562 = vadd.f32 %v6552, %v6558
        %v6563 = vadd.f32 %v6559, %v6561
        %v6564 = vadd.f32 %v6560, %v6562
        %s6565 = sld [smem:[#allocation13 + $0x3]]
        %v6566 = vstv %s6565
        %v6567 = vadd.f32 %v6563, %v6566
        %v6568 = vadd.f32 %v6564, %v6566
        %v6569 = vld [vmem:[%s4883 + $0x2] sm:$0xff]
        %v6570 = vld [vmem:[%s4883 + $0xa] sm:$0xff]
        %6573 = vrot.lane.b32.xlu0 %v6569, 126
        %v6574 = vpop.permute.xlu0 %6573
        %6575 = vrot.lane.b32.xlu0 %v6570, 126
        %v6576 = vpop.permute.xlu0 %6575
        %v6579 = vmul.f32 %v6567, %v6574
        %v6580 = vmul.f32 %v6568, %v6576
        %s6581 = scalar_lea.vmem %s348, 48 [#allocation15]
        %6582 = vst.msk [vmem:[%s6581] sm:$0xff] %vm1868, %v6579
        %6583 = vst.msk [vmem:[%s6581 + $0x8] sm:$0xff] %vm1868, %v6580
        %s6584 = sand.u32 %s185, 1
        %s6585 = scalar_lea.sflag [#allocation5], %s6584
        %s6586 = sand.u32 %s185, 1
        %s6587 = smul.addr %s6586, 64
        %s6588 = scalar_lea.vmem [#allocation15], %s6587
        // Predicated region
        $region73: #{tpu_custom_call.1} parent=47 // pred_check
          %p6589 = pneg %p195
        $region74: #{tpu_custom_call.1} parent=47 // pred_check_branch
          %6591 = sbr.rel (%p6589) target = $region76
        $region75: #{tpu_custom_call.1} parent=47 // pred_region
          %s6593 = ssub.s32 1024, 1024
          %6594 = vsyncadd %s6585, %s6593
          %s6595 = smul.addr %s25, 8
          %s6596 = smul.addr %s6595, 128
          %s6597 = scalar_lea.hbm %s7, %s6596
          %s6598 = sshll.u32 %s6588, 4
          %s6599 = int_to_ptr.vmem [resolvable:$true] %s6598
          %6604 = dma.vmem_to_hbm [thread:$0]  %s6599, 1024, %s6597, %s6585, 128, 128, 8
        $region76: #{tpu_custom_call.1} parent=47 // pred_fallthru
          _
      $region48: #{tpu_custom_call.1} parent=5 // pred_fallthru
        _
      %p6605 = scmp.le.s32.totalorder 2, %s20
      // Predicated region
      $region77: #{tpu_custom_call.1} parent=5 // pred_check
        %p6606 = pneg %p6605
      $region78: #{tpu_custom_call.1} parent=5 // pred_check_branch
        %6608 = sbr.rel (%p6606) target = $region80
      $region79: #{tpu_custom_call.1} parent=5 // pred_region
        %s6609 = ssub.s32 %s20, 2
        // Predicated region
        $region81: #{tpu_custom_call.1} parent=79 // pred_check
          %p6610 = pneg %p201
        $region82: #{tpu_custom_call.1} parent=79 // pred_check_branch
          %6612 = sbr.rel (%p6610) target = $region84
        $region83: #{tpu_custom_call.1} parent=79 // pred_region
          %s6613 = sand.u32 %s186, 1
          %s6614 = scalar_lea.sflag [#allocation5], %s6613
          %s6615 = sand.u32 %s186, 1
          %s6616 = smul.addr %s6615, 64
          %s6617 = scalar_lea.vmem [#allocation15], %s6616
          %6618 = dma.done %s6614, 1024
        $region84: #{tpu_custom_call.1} parent=79 // pred_fallthru
          _
      $region80: #{tpu_custom_call.1} parent=5 // pred_fallthru
        _
    $region6: #{tpu_custom_call.1} parent=1 // loop_footer
      %s24 = sadd.s32 1, %s20
    $region7: #{tpu_custom_call.1} parent=1 // loop_footer_branch
      %19 = sbr.rel target = $region3
    $region8: #{tpu_custom_call.1} parent=1 // loop_exit
      _
    %6619 = vsyncpa [#allocation5], 1
    %s6620 = scalar_lea.sflag [#allocation5], 1
    %6621 = vsyncpa %s6620, 1
    %6622 = vsyncpa [#allocation6], 1
    %s6623 = scalar_lea.sflag [#allocation6], 1
    %6624 = vsyncpa %s6623, 1
    %6625 = vsyncpa [#allocation8], 1
    %6626 = vsyncpa [#allocation11], 1
    %6627 = vsyncpa [#allocation14], 1

</llo_original>
